<compile_context>
chip_gen: v7x
topology: tpu7x:2x2x1
jax: 0.10.0
libtpu: 0.0.40
codegen_flags: <defaults>
</compile_context>

<pallas_src>
import functools

import jax
import jax.numpy as jnp
import numpy as np
from jax.experimental import pallas as pl
from jax.experimental.pallas import tpu as pltpu

BN_EPS = 1e-5
_TAPS3 = tuple((ki, kj) for ki in range(3) for kj in range(3))


# ------------------------------ small helpers -------------------------------


def _num_rows(h_out, w_out, w_in, stride):
    """Rows of the stride-1 flat enumeration needed to cover all outputs."""
    return stride * (h_out - 1) * w_in + stride * (w_out - 1) + 1


def _selector(h_out, w_out, w_in, stride, n_rows):
    """0/1 matrix picking flat row stride*(io*w_in + jo) for output (io, jo)."""
    s = np.zeros((h_out * w_out, n_rows), np.float32)
    for io in range(h_out):
        for jo in range(w_out):
            s[io * w_out + jo, stride * (io * w_in + jo)] = 1.0
    return jnp.asarray(s)


def _prep_conv(p):
    """Torch (w OIHW, b, gamma, beta, mean, var) -> (per-tap w, scale, bias)."""
    w, b, gamma, beta, mean, var = p
    cout, cin, kh, kw = w.shape
    wt = jnp.transpose(w, (2, 3, 1, 0)).reshape(kh * kw, cin, cout)
    wt = wt.astype(jnp.bfloat16)
    scale = (gamma / jnp.sqrt(var + BN_EPS)).astype(jnp.float32)
    bias = ((b - mean) * scale + beta).astype(jnp.float32)
    return wt, scale.reshape(1, cout), bias.reshape(1, cout)


# ------------------------------- fused kernel -------------------------------


def _inception_b_kernel(x_ref,
                        w1_ref, sc1_ref, bi1_ref,     # branch 1: 3x3 stride 2
                        w20_ref, sc20_ref, bi20_ref,  # branch 2: 1x1
                        w21_ref, sc21_ref, bi21_ref,  # branch 2: 3x3 pad 1
                        w22_ref, sc22_ref, bi22_ref,  # branch 2: 3x3 stride 2
                        sel1_ref, sel2_ref,           # row selectors (49, M)
                        o_ref,                        # (1, Ho*Wo, Ctot) f32
                        ypad_ref,                     # scratch ((H+2)*(W+2), C20) f32
                        *, H, W):
    f32 = jnp.float32
    Wp = W + 2
    Ho, Wo = (H - 3) // 2 + 1, (W - 3) // 2 + 1
    M1 = _num_rows(Ho, Wo, W, 2)        # rows for branch-1 conv & maxpool
    M21 = _num_rows(H, W, Wp, 1)        # rows for branch-2 conv 1 (covers HxW)
    M22 = _num_rows(Ho, Wo, Wp, 2)      # rows for branch-2 conv 2

    x_f32 = x_ref[0]                    # (H*W, Cin) f32, flat row-major image

    def conv3(src, w_ref, sc_ref, bi_ref, w_in, m):
        """9 shifted (m,Cin)x(Cin,Cout) matmuls into a LOCAL f32 accumulator,
        then BN scale + bias + ReLU in f32 (stored once by the caller)."""
        acc = None
        for t, (ki, kj) in enumerate(_TAPS3):
            off = ki * w_in + kj
            tap = src[off:off + m, :].astype(jnp.bfloat16)
            part = jnp.dot(tap, w_ref[t], preferred_element_type=f32)
            acc = part if acc is None else acc + part
        return jnp.maximum(acc * sc_ref[...] + bi_ref[...], 0.0)

    # ---------------- branch 1: Conv 3x3 stride 2 + BN + ReLU ----------------
    y1 = conv3(x_f32, w1_ref, sc1_ref, bi1_ref, W, M1)            # (M1, C1)
    x1 = jnp.dot(sel1_ref[...], y1, preferred_element_type=f32)   # (Ho*Wo, C1)

    # ------------- branch 2: 1x1 -> 3x3 (pad 1) -> 3x3 stride 2 --------------
    y20 = jnp.dot(x_f32.astype(jnp.bfloat16), w20_ref[0],
                  preferred_element_type=f32)
    y20 = jnp.maximum(y20 * sc20_ref[...] + bi20_ref[...], 0.0)   # (H*W, C20)

    # Zero-padded (H+2, W+2) flat slab for the padding=1 conv, built in VMEM.
    ypad_ref[...] = jnp.zeros_like(ypad_ref)
    for i in range(H):
        dst = Wp * (i + 1) + 1
        ypad_ref[dst:dst + W, :] = y20[W * i:W * (i + 1), :]

    y21 = conv3(ypad_ref, w21_ref, sc21_ref, bi21_ref, Wp, M21)   # (M21, C21)
    y22 = conv3(y21, w22_ref, sc22_ref, bi22_ref, Wp, M22)        # (M22, C22)
    x2 = jnp.dot(sel2_ref[...], y22, preferred_element_type=f32)  # (Ho*Wo, C22)

    # ---------------- branch 3: MaxPool 3x3 stride 2 (exact f32) -------------
    pool = None
    for ki, kj in _TAPS3:
        off = ki * W + kj
        tap = x_f32[off:off + M1, :]
        pool = tap if pool is None else jnp.maximum(pool, tap)
    x3 = jnp.dot(sel1_ref[...], pool, preferred_element_type=f32)  # (Ho*Wo, Cin)

    # -------- concat: disjoint channel slices of the single output block -----
    c1 = x1.shape[-1]
    c2 = x2.shape[-1]
    o_ref[0, :, 0:c1] = x1
    o_ref[0, :, c1:c1 + c2] = x2
    o_ref[0, :, c1 + c2:] = x3


# ------------------------------ module wrapper -------------------------------


@jax.jit
def inception_block_b(x_nchw, params):
    N, Cin, H, W = x_nchw.shape
    Ho, Wo = (H - 3) // 2 + 1, (W - 3) // 2 + 1
    Wp = W + 2

    w1, sc1, bi1 = _prep_conv(params["b1_0"])
    w20, sc20, bi20 = _prep_conv(params["b2_0"])
    w21, sc21, bi21 = _prep_conv(params["b2_1"])
    w22, sc22, bi22 = _prep_conv(params["b2_2"])

    c1, c20, c21, c22 = (w1.shape[-1], w20.shape[-1],
                         w21.shape[-1], w22.shape[-1])
    ctot = c1 + c22 + Cin

    M1 = _num_rows(Ho, Wo, W, 2)
    M21 = _num_rows(H, W, Wp, 1)
    M22 = _num_rows(Ho, Wo, Wp, 2)
    sel1 = _selector(Ho, Wo, W, 2, M1)     # constants, built once at trace time
    sel2 = _selector(Ho, Wo, Wp, 2, M22)

    # NCHW -> flat row-major NHWC (the only XLA pass over the activations).
    xf = jnp.transpose(x_nchw, (0, 2, 3, 1)).reshape(N, H * W, Cin)

    kernel = functools.partial(_inception_b_kernel, H=H, W=W)

    def full(shape):
        nd = len(shape)
        return pl.BlockSpec(shape, lambda n, nd=nd: (0,) * nd)

    in_specs = [
        pl.BlockSpec((1, H * W, Cin), lambda n: (n, 0, 0)),
        full(w1.shape), full(sc1.shape), full(bi1.shape),
        full(w20.shape), full(sc20.shape), full(bi20.shape),
        full(w21.shape), full(sc21.shape), full(bi21.shape),
        full(w22.shape), full(sc22.shape), full(bi22.shape),
        full(sel1.shape), full(sel2.shape),
    ]

    flops = 2 * N * (M1 * 9 * Cin * c1
                     + H * W * Cin * c20
                     + M21 * 9 * c20 * c21
                     + M22 * 9 * c21 * c22
                     + Ho * Wo * (M1 * (c1 + Cin) + M22 * c22))
    bytes_accessed = (xf.size * 4 + w1.size * 2 + w20.size * 2 + w21.size * 2
                      + w22.size * 2 + (sel1.size + sel2.size) * 4
                      + N * Ho * Wo * ctot * 4)

    out = pl.pallas_call(
        kernel,
        out_shape=jax.ShapeDtypeStruct((N, Ho * Wo, ctot), jnp.float32),
        grid=(N,),
        in_specs=in_specs,
        out_specs=pl.BlockSpec((1, Ho * Wo, ctot), lambda n: (n, 0, 0)),
        scratch_shapes=[pltpu.VMEM(((H + 2) * (W + 2), c20), jnp.float32)],
        compiler_params=pltpu.CompilerParams(
            dimension_semantics=("parallel",)),
        cost_estimate=pl.CostEstimate(
            flops=flops, transcendentals=0, bytes_accessed=bytes_accessed),
    )(xf, w1, sc1, bi1, w20, sc20, bi20, w21, sc21, bi21, w22, sc22, bi22,
      sel1, sel2)

    out = out.reshape(N, Ho, Wo, ctot)
    return jnp.transpose(out, (0, 3, 1, 2))        # back to NCHW


# --------------------------------- reference ---------------------------------


def _ref_conv_bn_relu(x_nchw, w, b, gamma, beta, mean, var, stride, padding):
    y = jax.lax.conv_general_dilated(
        x_nchw, w, (stride, stride), [(padding, padding)] * 2,
        dimension_numbers=("NCHW", "OIHW", "NCHW"))
    y = y + b[None, :, None, None]
    inv = (gamma / jnp.sqrt(var + BN_EPS))[None, :, None, None]
    y = (y - mean[None, :, None, None]) * inv + beta[None, :, None, None]
    return jnp.maximum(y, 0.0)


def _ref_maxpool(x_nchw):
    return jax.lax.reduce_window(x_nchw, -jnp.inf, jax.lax.max,
                                 (1, 1, 3, 3), (1, 1, 2, 2), "VALID")


def _ref_block(x_nchw, params):
    x1 = _ref_conv_bn_relu(x_nchw, *params["b1_0"], 2, 0)
    y = _ref_conv_bn_relu(x_nchw, *params["b2_0"], 1, 0)
    y = _ref_conv_bn_relu(y, *params["b2_1"], 1, 1)
    x2 = _ref_conv_bn_relu(y, *params["b2_2"], 2, 0)
    x3 = _ref_maxpool(x_nchw)
    return jnp.concatenate([x1, x2, x3], axis=1)


# ----------------------------------- params ----------------------------------


def make_conv_bn_params(key, cin, cout, k):
    k1, k2, k3, k4, k5, k6 = jax.random.split(key, 6)
    w = 0.1 * jax.random.normal(k1, (cout, cin, k, k), jnp.float32)
    b = 0.05 * jax.random.normal(k2, (cout,), jnp.float32)
    gamma = 1.0 + 0.1 * jax.random.normal(k3, (cout,), jnp.float32)
    beta = 0.1 * jax.random.normal(k4, (cout,), jnp.float32)
    mean = 0.1 * jax.random.normal(k5, (cout,), jnp.float32)
    var = 0.5 + 0.1 * jnp.abs(jax.random.normal(k6, (cout,), jnp.float32))
    return (w, b, gamma, beta, mean, var)


if __name__ == "__main__":
    key = jax.random.PRNGKey(0)
    kx, k1, k2a, k2b, k2c = jax.random.split(key, 5)

    N, C_in, H, W = 2, 4, 16, 16
    out_1 = 8
    out_2 = (8, 12, 16)

    x = jax.random.normal(kx, (N, C_in, H, W), jnp.float32)

    params = {
        "b1_0": make_conv_bn_params(k1, C_in, out_1, 3),
        "b2_0": make_conv_bn_params(k2a, C_in, out_2[0], 1),
        "b2_1": make_conv_bn_params(k2b, out_2[0], out_2[1], 3),
        "b2_2": make_conv_bn_params(k2c, out_2[1], out_2[2], 3),
    }

    out = jax.block_until_ready(inception_block_b(x, params))
    ref = jax.block_until_ready(_ref_block(x, params))

    assert out.shape == (N, out_1 + out_2[2] + C_in, 7, 7), out.shape
    # bf16 MXU operands (f32 accumulation, f32 BN epilogue) -> slightly relaxed
    # tolerance vs. the all-f32 XLA reference.
    np.testing.assert_allclose(np.asarray(out), np.asarray(ref),
                               rtol=2e-2, atol=2e-2)
    print("KERNEL_OK")
</pallas_src>

<mosaic_0001>
module attributes {stable_mosaic.version = 11 : i64} {
  func.func @_inception_b_kernel(%arg0: i32, %arg1: memref<1x256x4xf32, #tpu.memory_space<vmem>>, %arg2: memref<9x4x8xbf16, #tpu.memory_space<vmem>>, %arg3: memref<1x8xf32, #tpu.memory_space<vmem>>, %arg4: memref<1x8xf32, #tpu.memory_space<vmem>>, %arg5: memref<1x4x8xbf16, #tpu.memory_space<vmem>>, %arg6: memref<1x8xf32, #tpu.memory_space<vmem>>, %arg7: memref<1x8xf32, #tpu.memory_space<vmem>>, %arg8: memref<9x8x12xbf16, #tpu.memory_space<vmem>>, %arg9: memref<1x12xf32, #tpu.memory_space<vmem>>, %arg10: memref<1x12xf32, #tpu.memory_space<vmem>>, %arg11: memref<9x12x16xbf16, #tpu.memory_space<vmem>>, %arg12: memref<1x16xf32, #tpu.memory_space<vmem>>, %arg13: memref<1x16xf32, #tpu.memory_space<vmem>>, %arg14: memref<49x205xf32, #tpu.memory_space<vmem>>, %arg15: memref<49x229xf32, #tpu.memory_space<vmem>>, %arg16: memref<1x49x28xf32, #tpu.memory_space<vmem>>, %arg17: memref<324x8xf32, #tpu.memory_space<vmem>>) attributes {dimension_semantics = [#tpu.dimension_semantics<parallel>], iteration_bounds = array<i64: 2>, scalar_prefetch = 0 : i64, scratch_operands = 1 : i64, tpu.core_type = #tpu.core_type<tc>, window_params = [{transform_indices = @transform_0, window_bounds = array<i64: 1, 256, 4>}, {pipeline_mode = #tpu.pipeline_mode<synchronous>, transform_indices = @transform_1, window_bounds = array<i64: 9, 4, 8>}, {pipeline_mode = #tpu.pipeline_mode<synchronous>, transform_indices = @transform_2, window_bounds = array<i64: 1, 8>}, {pipeline_mode = #tpu.pipeline_mode<synchronous>, transform_indices = @transform_3, window_bounds = array<i64: 1, 8>}, {pipeline_mode = #tpu.pipeline_mode<synchronous>, transform_indices = @transform_4, window_bounds = array<i64: 1, 4, 8>}, {pipeline_mode = #tpu.pipeline_mode<synchronous>, transform_indices = @transform_5, window_bounds = array<i64: 1, 8>}, {pipeline_mode = #tpu.pipeline_mode<synchronous>, transform_indices = @transform_6, window_bounds = array<i64: 1, 8>}, {pipeline_mode = #tpu.pipeline_mode<synchronous>, transform_indices = @transform_7, window_bounds = array<i64: 9, 8, 12>}, {pipeline_mode = #tpu.pipeline_mode<synchronous>, transform_indices = @transform_8, window_bounds = array<i64: 1, 12>}, {pipeline_mode = #tpu.pipeline_mode<synchronous>, transform_indices = @transform_9, window_bounds = array<i64: 1, 12>}, {pipeline_mode = #tpu.pipeline_mode<synchronous>, transform_indices = @transform_10, window_bounds = array<i64: 9, 12, 16>}, {pipeline_mode = #tpu.pipeline_mode<synchronous>, transform_indices = @transform_11, window_bounds = array<i64: 1, 16>}, {pipeline_mode = #tpu.pipeline_mode<synchronous>, transform_indices = @transform_12, window_bounds = array<i64: 1, 16>}, {pipeline_mode = #tpu.pipeline_mode<synchronous>, transform_indices = @transform_13, window_bounds = array<i64: 49, 205>}, {pipeline_mode = #tpu.pipeline_mode<synchronous>, transform_indices = @transform_14, window_bounds = array<i64: 49, 229>}, {transform_indices = @transform_15, window_bounds = array<i64: 1, 49, 28>}]} {
    %c0 = arith.constant 0 : index
    %c0_0 = arith.constant 0 : index
    %c0_1 = arith.constant 0 : index
    %0 = vector.load %arg1[%c0, %c0_0, %c0_1] : memref<1x256x4xf32, #tpu.memory_space<vmem>>, vector<1x256x4xf32>
    %1 = vector.shape_cast %0 : vector<1x256x4xf32> to vector<256x4xf32>
    %2 = vector.extract_strided_slice %1 {offsets = [0, 0], sizes = [205, 4], strides = [1, 1]} : vector<256x4xf32> to vector<205x4xf32>
    %3 = arith.truncf %2 : vector<205x4xf32> to vector<205x4xbf16>
    %c0_2 = arith.constant 0 : index
    %c0_3 = arith.constant 0 : index
    %c0_4 = arith.constant 0 : index
    %4 = vector.load %arg2[%c0_2, %c0_3, %c0_4] : memref<9x4x8xbf16, #tpu.memory_space<vmem>>, vector<1x4x8xbf16>
    %5 = vector.shape_cast %4 : vector<1x4x8xbf16> to vector<4x8xbf16>
    %cst = arith.constant dense<0.000000e+00> : vector<205x8xf32>
    %6 = tpu.matmul %3, %5, %cst {dimension_numbers = #tpu.dot_dimension_numbers<[1], [0], [0], [1], [0, 0, 1, 1], [], []>} : vector<205x4xbf16>, vector<4x8xbf16>, vector<205x8xf32> -> vector<205x8xf32>
    %7 = vector.extract_strided_slice %1 {offsets = [1, 0], sizes = [205, 4], strides = [1, 1]} : vector<256x4xf32> to vector<205x4xf32>
    %8 = arith.truncf %7 : vector<205x4xf32> to vector<205x4xbf16>
    %c1 = arith.constant 1 : index
    %c0_5 = arith.constant 0 : index
    %c0_6 = arith.constant 0 : index
    %9 = vector.load %arg2[%c1, %c0_5, %c0_6] : memref<9x4x8xbf16, #tpu.memory_space<vmem>>, vector<1x4x8xbf16>
    %10 = vector.shape_cast %9 : vector<1x4x8xbf16> to vector<4x8xbf16>
    %cst_7 = arith.constant dense<0.000000e+00> : vector<205x8xf32>
    %11 = tpu.matmul %8, %10, %cst_7 {dimension_numbers = #tpu.dot_dimension_numbers<[1], [0], [0], [1], [0, 0, 1, 1], [], []>} : vector<205x4xbf16>, vector<4x8xbf16>, vector<205x8xf32> -> vector<205x8xf32>
    %12 = arith.addf %6, %11 : vector<205x8xf32>
    %13 = vector.extract_strided_slice %1 {offsets = [2, 0], sizes = [205, 4], strides = [1, 1]} : vector<256x4xf32> to vector<205x4xf32>
    %14 = arith.truncf %13 : vector<205x4xf32> to vector<205x4xbf16>
    %c2 = arith.constant 2 : index
    %c0_8 = arith.constant 0 : index
    %c0_9 = arith.constant 0 : index
    %15 = vector.load %arg2[%c2, %c0_8, %c0_9] : memref<9x4x8xbf16, #tpu.memory_space<vmem>>, vector<1x4x8xbf16>
    %16 = vector.shape_cast %15 : vector<1x4x8xbf16> to vector<4x8xbf16>
    %cst_10 = arith.constant dense<0.000000e+00> : vector<205x8xf32>
    %17 = tpu.matmul %14, %16, %cst_10 {dimension_numbers = #tpu.dot_dimension_numbers<[1], [0], [0], [1], [0, 0, 1, 1], [], []>} : vector<205x4xbf16>, vector<4x8xbf16>, vector<205x8xf32> -> vector<205x8xf32>
    %18 = arith.addf %12, %17 : vector<205x8xf32>
    %19 = vector.extract_strided_slice %1 {offsets = [16, 0], sizes = [205, 4], strides = [1, 1]} : vector<256x4xf32> to vector<205x4xf32>
    %20 = arith.truncf %19 : vector<205x4xf32> to vector<205x4xbf16>
    %c3 = arith.constant 3 : index
    %c0_11 = arith.constant 0 : index
    %c0_12 = arith.constant 0 : index
    %21 = vector.load %arg2[%c3, %c0_11, %c0_12] : memref<9x4x8xbf16, #tpu.memory_space<vmem>>, vector<1x4x8xbf16>
    %22 = vector.shape_cast %21 : vector<1x4x8xbf16> to vector<4x8xbf16>
    %cst_13 = arith.constant dense<0.000000e+00> : vector<205x8xf32>
    %23 = tpu.matmul %20, %22, %cst_13 {dimension_numbers = #tpu.dot_dimension_numbers<[1], [0], [0], [1], [0, 0, 1, 1], [], []>} : vector<205x4xbf16>, vector<4x8xbf16>, vector<205x8xf32> -> vector<205x8xf32>
    %24 = arith.addf %18, %23 : vector<205x8xf32>
    %25 = vector.extract_strided_slice %1 {offsets = [17, 0], sizes = [205, 4], strides = [1, 1]} : vector<256x4xf32> to vector<205x4xf32>
    %26 = arith.truncf %25 : vector<205x4xf32> to vector<205x4xbf16>
    %c4 = arith.constant 4 : index
    %c0_14 = arith.constant 0 : index
    %c0_15 = arith.constant 0 : index
    %27 = vector.load %arg2[%c4, %c0_14, %c0_15] : memref<9x4x8xbf16, #tpu.memory_space<vmem>>, vector<1x4x8xbf16>
    %28 = vector.shape_cast %27 : vector<1x4x8xbf16> to vector<4x8xbf16>
    %cst_16 = arith.constant dense<0.000000e+00> : vector<205x8xf32>
    %29 = tpu.matmul %26, %28, %cst_16 {dimension_numbers = #tpu.dot_dimension_numbers<[1], [0], [0], [1], [0, 0, 1, 1], [], []>} : vector<205x4xbf16>, vector<4x8xbf16>, vector<205x8xf32> -> vector<205x8xf32>
    %30 = arith.addf %24, %29 : vector<205x8xf32>
    %31 = vector.extract_strided_slice %1 {offsets = [18, 0], sizes = [205, 4], strides = [1, 1]} : vector<256x4xf32> to vector<205x4xf32>
    %32 = arith.truncf %31 : vector<205x4xf32> to vector<205x4xbf16>
    %c5 = arith.constant 5 : index
    %c0_17 = arith.constant 0 : index
    %c0_18 = arith.constant 0 : index
    %33 = vector.load %arg2[%c5, %c0_17, %c0_18] : memref<9x4x8xbf16, #tpu.memory_space<vmem>>, vector<1x4x8xbf16>
    %34 = vector.shape_cast %33 : vector<1x4x8xbf16> to vector<4x8xbf16>
    %cst_19 = arith.constant dense<0.000000e+00> : vector<205x8xf32>
    %35 = tpu.matmul %32, %34, %cst_19 {dimension_numbers = #tpu.dot_dimension_numbers<[1], [0], [0], [1], [0, 0, 1, 1], [], []>} : vector<205x4xbf16>, vector<4x8xbf16>, vector<205x8xf32> -> vector<205x8xf32>
    %36 = arith.addf %30, %35 : vector<205x8xf32>
    %37 = vector.extract_strided_slice %1 {offsets = [32, 0], sizes = [205, 4], strides = [1, 1]} : vector<256x4xf32> to vector<205x4xf32>
    %38 = arith.truncf %37 : vector<205x4xf32> to vector<205x4xbf16>
    %c6 = arith.constant 6 : index
    %c0_20 = arith.constant 0 : index
    %c0_21 = arith.constant 0 : index
    %39 = vector.load %arg2[%c6, %c0_20, %c0_21] : memref<9x4x8xbf16, #tpu.memory_space<vmem>>, vector<1x4x8xbf16>
    %40 = vector.shape_cast %39 : vector<1x4x8xbf16> to vector<4x8xbf16>
    %cst_22 = arith.constant dense<0.000000e+00> : vector<205x8xf32>
    %41 = tpu.matmul %38, %40, %cst_22 {dimension_numbers = #tpu.dot_dimension_numbers<[1], [0], [0], [1], [0, 0, 1, 1], [], []>} : vector<205x4xbf16>, vector<4x8xbf16>, vector<205x8xf32> -> vector<205x8xf32>
    %42 = arith.addf %36, %41 : vector<205x8xf32>
    %43 = vector.extract_strided_slice %1 {offsets = [33, 0], sizes = [205, 4], strides = [1, 1]} : vector<256x4xf32> to vector<205x4xf32>
    %44 = arith.truncf %43 : vector<205x4xf32> to vector<205x4xbf16>
    %c7 = arith.constant 7 : index
    %c0_23 = arith.constant 0 : index
    %c0_24 = arith.constant 0 : index
    %45 = vector.load %arg2[%c7, %c0_23, %c0_24] : memref<9x4x8xbf16, #tpu.memory_space<vmem>>, vector<1x4x8xbf16>
    %46 = vector.shape_cast %45 : vector<1x4x8xbf16> to vector<4x8xbf16>
    %cst_25 = arith.constant dense<0.000000e+00> : vector<205x8xf32>
    %47 = tpu.matmul %44, %46, %cst_25 {dimension_numbers = #tpu.dot_dimension_numbers<[1], [0], [0], [1], [0, 0, 1, 1], [], []>} : vector<205x4xbf16>, vector<4x8xbf16>, vector<205x8xf32> -> vector<205x8xf32>
    %48 = arith.addf %42, %47 : vector<205x8xf32>
    %49 = vector.extract_strided_slice %1 {offsets = [34, 0], sizes = [205, 4], strides = [1, 1]} : vector<256x4xf32> to vector<205x4xf32>
    %50 = arith.truncf %49 : vector<205x4xf32> to vector<205x4xbf16>
    %c8 = arith.constant 8 : index
    %c0_26 = arith.constant 0 : index
    %c0_27 = arith.constant 0 : index
    %51 = vector.load %arg2[%c8, %c0_26, %c0_27] : memref<9x4x8xbf16, #tpu.memory_space<vmem>>, vector<1x4x8xbf16>
    %52 = vector.shape_cast %51 : vector<1x4x8xbf16> to vector<4x8xbf16>
    %cst_28 = arith.constant dense<0.000000e+00> : vector<205x8xf32>
    %53 = tpu.matmul %50, %52, %cst_28 {dimension_numbers = #tpu.dot_dimension_numbers<[1], [0], [0], [1], [0, 0, 1, 1], [], []>} : vector<205x4xbf16>, vector<4x8xbf16>, vector<205x8xf32> -> vector<205x8xf32>
    %54 = arith.addf %48, %53 : vector<205x8xf32>
    %c0_29 = arith.constant 0 : index
    %c0_30 = arith.constant 0 : index
    %55 = vector.load %arg3[%c0_29, %c0_30] : memref<1x8xf32, #tpu.memory_space<vmem>>, vector<1x8xf32>
    %56 = vector.broadcast %55 : vector<1x8xf32> to vector<205x8xf32>
    %57 = arith.mulf %54, %56 : vector<205x8xf32>
    %c0_31 = arith.constant 0 : index
    %c0_32 = arith.constant 0 : index
    %58 = vector.load %arg4[%c0_31, %c0_32] : memref<1x8xf32, #tpu.memory_space<vmem>>, vector<1x8xf32>
    %59 = vector.broadcast %58 : vector<1x8xf32> to vector<205x8xf32>
    %60 = arith.addf %57, %59 : vector<205x8xf32>
    %cst_33 = arith.constant 0.000000e+00 : f32
    %61 = vector.broadcast %cst_33 : f32 to vector<205x8xf32>
    %62 = arith.maximumf %60, %61 : vector<205x8xf32>
    %c0_34 = arith.constant 0 : index
    %c0_35 = arith.constant 0 : index
    %63 = vector.load %arg14[%c0_34, %c0_35] : memref<49x205xf32, #tpu.memory_space<vmem>>, vector<49x205xf32>
    %cst_36 = arith.constant dense<0.000000e+00> : vector<49x8xf32>
    %64 = tpu.matmul %63, %62, %cst_36 {dimension_numbers = #tpu.dot_dimension_numbers<[1], [0], [0], [1], [0, 0, 1, 1], [], []>} : vector<49x205xf32>, vector<205x8xf32>, vector<49x8xf32> -> vector<49x8xf32>
    %65 = arith.truncf %1 : vector<256x4xf32> to vector<256x4xbf16>
    %c0_37 = arith.constant 0 : index
    %c0_38 = arith.constant 0 : index
    %c0_39 = arith.constant 0 : index
    %66 = vector.load %arg5[%c0_37, %c0_38, %c0_39] : memref<1x4x8xbf16, #tpu.memory_space<vmem>>, vector<1x4x8xbf16>
    %67 = vector.shape_cast %66 : vector<1x4x8xbf16> to vector<4x8xbf16>
    %cst_40 = arith.constant dense<0.000000e+00> : vector<256x8xf32>
    %68 = tpu.matmul %65, %67, %cst_40 {dimension_numbers = #tpu.dot_dimension_numbers<[1], [0], [0], [1], [0, 0, 1, 1], [], []>} : vector<256x4xbf16>, vector<4x8xbf16>, vector<256x8xf32> -> vector<256x8xf32>
    %c0_41 = arith.constant 0 : index
    %c0_42 = arith.constant 0 : index
    %69 = vector.load %arg6[%c0_41, %c0_42] : memref<1x8xf32, #tpu.memory_space<vmem>>, vector<1x8xf32>
    %70 = vector.broadcast %69 : vector<1x8xf32> to vector<256x8xf32>
    %71 = arith.mulf %68, %70 : vector<256x8xf32>
    %c0_43 = arith.constant 0 : index
    %c0_44 = arith.constant 0 : index
    %72 = vector.load %arg7[%c0_43, %c0_44] : memref<1x8xf32, #tpu.memory_space<vmem>>, vector<1x8xf32>
    %73 = vector.broadcast %72 : vector<1x8xf32> to vector<256x8xf32>
    %74 = arith.addf %71, %73 : vector<256x8xf32>
    %cst_45 = arith.constant 0.000000e+00 : f32
    %75 = vector.broadcast %cst_45 : f32 to vector<256x8xf32>
    %76 = arith.maximumf %74, %75 : vector<256x8xf32>
    %cst_46 = arith.constant 0.000000e+00 : f32
    %77 = vector.broadcast %cst_46 : f32 to vector<324x8xf32>
    %c0_47 = arith.constant 0 : index
    %c0_48 = arith.constant 0 : index
    %78 = vector.load %arg17[%c0_47, %c0_48] : memref<324x8xf32, #tpu.memory_space<vmem>>, vector<324x8xf32>
    tpu.vector_store %arg17[%c0_47, %c0_48], %77 {strides = array<i32>} : memref<324x8xf32, #tpu.memory_space<vmem>>, vector<324x8xf32>,
    %79 = vector.extract_strided_slice %76 {offsets = [0, 0], sizes = [16, 8], strides = [1, 1]} : vector<256x8xf32> to vector<16x8xf32>
    %c19 = arith.constant 19 : index
    %c0_49 = arith.constant 0 : index
    %80 = vector.load %arg17[%c19, %c0_49] : memref<324x8xf32, #tpu.memory_space<vmem>>, vector<16x8xf32>
    tpu.vector_store %arg17[%c19, %c0_49], %79 {strides = array<i32>} : memref<324x8xf32, #tpu.memory_space<vmem>>, vector<16x8xf32>,
    %81 = vector.extract_strided_slice %76 {offsets = [16, 0], sizes = [16, 8], strides = [1, 1]} : vector<256x8xf32> to vector<16x8xf32>
    %c37 = arith.constant 37 : index
    %c0_50 = arith.constant 0 : index
    %82 = vector.load %arg17[%c37, %c0_50] : memref<324x8xf32, #tpu.memory_space<vmem>>, vector<16x8xf32>
    tpu.vector_store %arg17[%c37, %c0_50], %81 {strides = array<i32>} : memref<324x8xf32, #tpu.memory_space<vmem>>, vector<16x8xf32>,
    %83 = vector.extract_strided_slice %76 {offsets = [32, 0], sizes = [16, 8], strides = [1, 1]} : vector<256x8xf32> to vector<16x8xf32>
    %c55 = arith.constant 55 : index
    %c0_51 = arith.constant 0 : index
    %84 = vector.load %arg17[%c55, %c0_51] : memref<324x8xf32, #tpu.memory_space<vmem>>, vector<16x8xf32>
    tpu.vector_store %arg17[%c55, %c0_51], %83 {strides = array<i32>} : memref<324x8xf32, #tpu.memory_space<vmem>>, vector<16x8xf32>,
    %85 = vector.extract_strided_slice %76 {offsets = [48, 0], sizes = [16, 8], strides = [1, 1]} : vector<256x8xf32> to vector<16x8xf32>
    %c73 = arith.constant 73 : index
    %c0_52 = arith.constant 0 : index
    %86 = vector.load %arg17[%c73, %c0_52] : memref<324x8xf32, #tpu.memory_space<vmem>>, vector<16x8xf32>
    tpu.vector_store %arg17[%c73, %c0_52], %85 {strides = array<i32>} : memref<324x8xf32, #tpu.memory_space<vmem>>, vector<16x8xf32>,
    %87 = vector.extract_strided_slice %76 {offsets = [64, 0], sizes = [16, 8], strides = [1, 1]} : vector<256x8xf32> to vector<16x8xf32>
    %c91 = arith.constant 91 : index
    %c0_53 = arith.constant 0 : index
    %88 = vector.load %arg17[%c91, %c0_53] : memref<324x8xf32, #tpu.memory_space<vmem>>, vector<16x8xf32>
    tpu.vector_store %arg17[%c91, %c0_53], %87 {strides = array<i32>} : memref<324x8xf32, #tpu.memory_space<vmem>>, vector<16x8xf32>,
    %89 = vector.extract_strided_slice %76 {offsets = [80, 0], sizes = [16, 8], strides = [1, 1]} : vector<256x8xf32> to vector<16x8xf32>
    %c109 = arith.constant 109 : index
    %c0_54 = arith.constant 0 : index
    %90 = vector.load %arg17[%c109, %c0_54] : memref<324x8xf32, #tpu.memory_space<vmem>>, vector<16x8xf32>
    tpu.vector_store %arg17[%c109, %c0_54], %89 {strides = array<i32>} : memref<324x8xf32, #tpu.memory_space<vmem>>, vector<16x8xf32>,
    %91 = vector.extract_strided_slice %76 {offsets = [96, 0], sizes = [16, 8], strides = [1, 1]} : vector<256x8xf32> to vector<16x8xf32>
    %c127 = arith.constant 127 : index
    %c0_55 = arith.constant 0 : index
    %92 = vector.load %arg17[%c127, %c0_55] : memref<324x8xf32, #tpu.memory_space<vmem>>, vector<16x8xf32>
    tpu.vector_store %arg17[%c127, %c0_55], %91 {strides = array<i32>} : memref<324x8xf32, #tpu.memory_space<vmem>>, vector<16x8xf32>,
    %93 = vector.extract_strided_slice %76 {offsets = [112, 0], sizes = [16, 8], strides = [1, 1]} : vector<256x8xf32> to vector<16x8xf32>
    %c145 = arith.constant 145 : index
    %c0_56 = arith.constant 0 : index
    %94 = vector.load %arg17[%c145, %c0_56] : memref<324x8xf32, #tpu.memory_space<vmem>>, vector<16x8xf32>
    tpu.vector_store %arg17[%c145, %c0_56], %93 {strides = array<i32>} : memref<324x8xf32, #tpu.memory_space<vmem>>, vector<16x8xf32>,
    %95 = vector.extract_strided_slice %76 {offsets = [128, 0], sizes = [16, 8], strides = [1, 1]} : vector<256x8xf32> to vector<16x8xf32>
    %c163 = arith.constant 163 : index
    %c0_57 = arith.constant 0 : index
    %96 = vector.load %arg17[%c163, %c0_57] : memref<324x8xf32, #tpu.memory_space<vmem>>, vector<16x8xf32>
    tpu.vector_store %arg17[%c163, %c0_57], %95 {strides = array<i32>} : memref<324x8xf32, #tpu.memory_space<vmem>>, vector<16x8xf32>,
    %97 = vector.extract_strided_slice %76 {offsets = [144, 0], sizes = [16, 8], strides = [1, 1]} : vector<256x8xf32> to vector<16x8xf32>
    %c181 = arith.constant 181 : index
    %c0_58 = arith.constant 0 : index
    %98 = vector.load %arg17[%c181, %c0_58] : memref<324x8xf32, #tpu.memory_space<vmem>>, vector<16x8xf32>
    tpu.vector_store %arg17[%c181, %c0_58], %97 {strides = array<i32>} : memref<324x8xf32, #tpu.memory_space<vmem>>, vector<16x8xf32>,
    %99 = vector.extract_strided_slice %76 {offsets = [160, 0], sizes = [16, 8], strides = [1, 1]} : vector<256x8xf32> to vector<16x8xf32>
    %c199 = arith.constant 199 : index
    %c0_59 = arith.constant 0 : index
    %100 = vector.load %arg17[%c199, %c0_59] : memref<324x8xf32, #tpu.memory_space<vmem>>, vector<16x8xf32>
    tpu.vector_store %arg17[%c199, %c0_59], %99 {strides = array<i32>} : memref<324x8xf32, #tpu.memory_space<vmem>>, vector<16x8xf32>,
    %101 = vector.extract_strided_slice %76 {offsets = [176, 0], sizes = [16, 8], strides = [1, 1]} : vector<256x8xf32> to vector<16x8xf32>
    %c217 = arith.constant 217 : index
    %c0_60 = arith.constant 0 : index
    %102 = vector.load %arg17[%c217, %c0_60] : memref<324x8xf32, #tpu.memory_space<vmem>>, vector<16x8xf32>
    tpu.vector_store %arg17[%c217, %c0_60], %101 {strides = array<i32>} : memref<324x8xf32, #tpu.memory_space<vmem>>, vector<16x8xf32>,
    %103 = vector.extract_strided_slice %76 {offsets = [192, 0], sizes = [16, 8], strides = [1, 1]} : vector<256x8xf32> to vector<16x8xf32>
    %c235 = arith.constant 235 : index
    %c0_61 = arith.constant 0 : index
    %104 = vector.load %arg17[%c235, %c0_61] : memref<324x8xf32, #tpu.memory_space<vmem>>, vector<16x8xf32>
    tpu.vector_store %arg17[%c235, %c0_61], %103 {strides = array<i32>} : memref<324x8xf32, #tpu.memory_space<vmem>>, vector<16x8xf32>,
    %105 = vector.extract_strided_slice %76 {offsets = [208, 0], sizes = [16, 8], strides = [1, 1]} : vector<256x8xf32> to vector<16x8xf32>
    %c253 = arith.constant 253 : index
    %c0_62 = arith.constant 0 : index
    %106 = vector.load %arg17[%c253, %c0_62] : memref<324x8xf32, #tpu.memory_space<vmem>>, vector<16x8xf32>
    tpu.vector_store %arg17[%c253, %c0_62], %105 {strides = array<i32>} : memref<324x8xf32, #tpu.memory_space<vmem>>, vector<16x8xf32>,
    %107 = vector.extract_strided_slice %76 {offsets = [224, 0], sizes = [16, 8], strides = [1, 1]} : vector<256x8xf32> to vector<16x8xf32>
    %c271 = arith.constant 271 : index
    %c0_63 = arith.constant 0 : index
    %108 = vector.load %arg17[%c271, %c0_63] : memref<324x8xf32, #tpu.memory_space<vmem>>, vector<16x8xf32>
    tpu.vector_store %arg17[%c271, %c0_63], %107 {strides = array<i32>} : memref<324x8xf32, #tpu.memory_space<vmem>>, vector<16x8xf32>,
    %109 = vector.extract_strided_slice %76 {offsets = [240, 0], sizes = [16, 8], strides = [1, 1]} : vector<256x8xf32> to vector<16x8xf32>
    %c289 = arith.constant 289 : index
    %c0_64 = arith.constant 0 : index
    %110 = vector.load %arg17[%c289, %c0_64] : memref<324x8xf32, #tpu.memory_space<vmem>>, vector<16x8xf32>
    tpu.vector_store %arg17[%c289, %c0_64], %109 {strides = array<i32>} : memref<324x8xf32, #tpu.memory_space<vmem>>, vector<16x8xf32>,
    %c0_65 = arith.constant 0 : index
    %c0_66 = arith.constant 0 : index
    %111 = vector.load %arg17[%c0_65, %c0_66] : memref<324x8xf32, #tpu.memory_space<vmem>>, vector<286x8xf32>
    %112 = arith.truncf %111 : vector<286x8xf32> to vector<286x8xbf16>
    %c0_67 = arith.constant 0 : index
    %c0_68 = arith.constant 0 : index
    %c0_69 = arith.constant 0 : index
    %113 = vector.load %arg8[%c0_67, %c0_68, %c0_69] : memref<9x8x12xbf16, #tpu.memory_space<vmem>>, vector<1x8x12xbf16>
    %114 = vector.shape_cast %113 : vector<1x8x12xbf16> to vector<8x12xbf16>
    %cst_70 = arith.constant dense<0.000000e+00> : vector<286x12xf32>
    %115 = tpu.matmul %112, %114, %cst_70 {dimension_numbers = #tpu.dot_dimension_numbers<[1], [0], [0], [1], [0, 0, 1, 1], [], []>} : vector<286x8xbf16>, vector<8x12xbf16>, vector<286x12xf32> -> vector<286x12xf32>
    %c1_71 = arith.constant 1 : index
    %c0_72 = arith.constant 0 : index
    %116 = vector.load %arg17[%c1_71, %c0_72] : memref<324x8xf32, #tpu.memory_space<vmem>>, vector<286x8xf32>
    %117 = arith.truncf %116 : vector<286x8xf32> to vector<286x8xbf16>
    %c1_73 = arith.constant 1 : index
    %c0_74 = arith.constant 0 : index
    %c0_75 = arith.constant 0 : index
    %118 = vector.load %arg8[%c1_73, %c0_74, %c0_75] : memref<9x8x12xbf16, #tpu.memory_space<vmem>>, vector<1x8x12xbf16>
    %119 = vector.shape_cast %118 : vector<1x8x12xbf16> to vector<8x12xbf16>
    %cst_76 = arith.constant dense<0.000000e+00> : vector<286x12xf32>
    %120 = tpu.matmul %117, %119, %cst_76 {dimension_numbers = #tpu.dot_dimension_numbers<[1], [0], [0], [1], [0, 0, 1, 1], [], []>} : vector<286x8xbf16>, vector<8x12xbf16>, vector<286x12xf32> -> vector<286x12xf32>
    %121 = arith.addf %115, %120 : vector<286x12xf32>
    %c2_77 = arith.constant 2 : index
    %c0_78 = arith.constant 0 : index
    %122 = vector.load %arg17[%c2_77, %c0_78] : memref<324x8xf32, #tpu.memory_space<vmem>>, vector<286x8xf32>
    %123 = arith.truncf %122 : vector<286x8xf32> to vector<286x8xbf16>
    %c2_79 = arith.constant 2 : index
    %c0_80 = arith.constant 0 : index
    %c0_81 = arith.constant 0 : index
    %124 = vector.load %arg8[%c2_79, %c0_80, %c0_81] : memref<9x8x12xbf16, #tpu.memory_space<vmem>>, vector<1x8x12xbf16>
    %125 = vector.shape_cast %124 : vector<1x8x12xbf16> to vector<8x12xbf16>
    %cst_82 = arith.constant dense<0.000000e+00> : vector<286x12xf32>
    %126 = tpu.matmul %123, %125, %cst_82 {dimension_numbers = #tpu.dot_dimension_numbers<[1], [0], [0], [1], [0, 0, 1, 1], [], []>} : vector<286x8xbf16>, vector<8x12xbf16>, vector<286x12xf32> -> vector<286x12xf32>
    %127 = arith.addf %121, %126 : vector<286x12xf32>
    %c18 = arith.constant 18 : index
    %c0_83 = arith.constant 0 : index
    %128 = vector.load %arg17[%c18, %c0_83] : memref<324x8xf32, #tpu.memory_space<vmem>>, vector<286x8xf32>
    %129 = arith.truncf %128 : vector<286x8xf32> to vector<286x8xbf16>
    %c3_84 = arith.constant 3 : index
    %c0_85 = arith.constant 0 : index
    %c0_86 = arith.constant 0 : index
    %130 = vector.load %arg8[%c3_84, %c0_85, %c0_86] : memref<9x8x12xbf16, #tpu.memory_space<vmem>>, vector<1x8x12xbf16>
    %131 = vector.shape_cast %130 : vector<1x8x12xbf16> to vector<8x12xbf16>
    %cst_87 = arith.constant dense<0.000000e+00> : vector<286x12xf32>
    %132 = tpu.matmul %129, %131, %cst_87 {dimension_numbers = #tpu.dot_dimension_numbers<[1], [0], [0], [1], [0, 0, 1, 1], [], []>} : vector<286x8xbf16>, vector<8x12xbf16>, vector<286x12xf32> -> vector<286x12xf32>
    %133 = arith.addf %127, %132 : vector<286x12xf32>
    %c19_88 = arith.constant 19 : index
    %c0_89 = arith.constant 0 : index
    %134 = vector.load %arg17[%c19_88, %c0_89] : memref<324x8xf32, #tpu.memory_space<vmem>>, vector<286x8xf32>
    %135 = arith.truncf %134 : vector<286x8xf32> to vector<286x8xbf16>
    %c4_90 = arith.constant 4 : index
    %c0_91 = arith.constant 0 : index
    %c0_92 = arith.constant 0 : index
    %136 = vector.load %arg8[%c4_90, %c0_91, %c0_92] : memref<9x8x12xbf16, #tpu.memory_space<vmem>>, vector<1x8x12xbf16>
    %137 = vector.shape_cast %136 : vector<1x8x12xbf16> to vector<8x12xbf16>
    %cst_93 = arith.constant dense<0.000000e+00> : vector<286x12xf32>
    %138 = tpu.matmul %135, %137, %cst_93 {dimension_numbers = #tpu.dot_dimension_numbers<[1], [0], [0], [1], [0, 0, 1, 1], [], []>} : vector<286x8xbf16>, vector<8x12xbf16>, vector<286x12xf32> -> vector<286x12xf32>
    %139 = arith.addf %133, %138 : vector<286x12xf32>
    %c20 = arith.constant 20 : index
    %c0_94 = arith.constant 0 : index
    %140 = vector.load %arg17[%c20, %c0_94] : memref<324x8xf32, #tpu.memory_space<vmem>>, vector<286x8xf32>
    %141 = arith.truncf %140 : vector<286x8xf32> to vector<286x8xbf16>
    %c5_95 = arith.constant 5 : index
    %c0_96 = arith.constant 0 : index
    %c0_97 = arith.constant 0 : index
    %142 = vector.load %arg8[%c5_95, %c0_96, %c0_97] : memref<9x8x12xbf16, #tpu.memory_space<vmem>>, vector<1x8x12xbf16>
    %143 = vector.shape_cast %142 : vector<1x8x12xbf16> to vector<8x12xbf16>
    %cst_98 = arith.constant dense<0.000000e+00> : vector<286x12xf32>
    %144 = tpu.matmul %141, %143, %cst_98 {dimension_numbers = #tpu.dot_dimension_numbers<[1], [0], [0], [1], [0, 0, 1, 1], [], []>} : vector<286x8xbf16>, vector<8x12xbf16>, vector<286x12xf32> -> vector<286x12xf32>
    %145 = arith.addf %139, %144 : vector<286x12xf32>
    %c36 = arith.constant 36 : index
    %c0_99 = arith.constant 0 : index
    %146 = vector.load %arg17[%c36, %c0_99] : memref<324x8xf32, #tpu.memory_space<vmem>>, vector<286x8xf32>
    %147 = arith.truncf %146 : vector<286x8xf32> to vector<286x8xbf16>
    %c6_100 = arith.constant 6 : index
    %c0_101 = arith.constant 0 : index
    %c0_102 = arith.constant 0 : index
    %148 = vector.load %arg8[%c6_100, %c0_101, %c0_102] : memref<9x8x12xbf16, #tpu.memory_space<vmem>>, vector<1x8x12xbf16>
    %149 = vector.shape_cast %148 : vector<1x8x12xbf16> to vector<8x12xbf16>
    %cst_103 = arith.constant dense<0.000000e+00> : vector<286x12xf32>
    %150 = tpu.matmul %147, %149, %cst_103 {dimension_numbers = #tpu.dot_dimension_numbers<[1], [0], [0], [1], [0, 0, 1, 1], [], []>} : vector<286x8xbf16>, vector<8x12xbf16>, vector<286x12xf32> -> vector<286x12xf32>
    %151 = arith.addf %145, %150 : vector<286x12xf32>
    %c37_104 = arith.constant 37 : index
    %c0_105 = arith.constant 0 : index
    %152 = vector.load %arg17[%c37_104, %c0_105] : memref<324x8xf32, #tpu.memory_space<vmem>>, vector<286x8xf32>
    %153 = arith.truncf %152 : vector<286x8xf32> to vector<286x8xbf16>
    %c7_106 = arith.constant 7 : index
    %c0_107 = arith.constant 0 : index
    %c0_108 = arith.constant 0 : index
    %154 = vector.load %arg8[%c7_106, %c0_107, %c0_108] : memref<9x8x12xbf16, #tpu.memory_space<vmem>>, vector<1x8x12xbf16>
    %155 = vector.shape_cast %154 : vector<1x8x12xbf16> to vector<8x12xbf16>
    %cst_109 = arith.constant dense<0.000000e+00> : vector<286x12xf32>
    %156 = tpu.matmul %153, %155, %cst_109 {dimension_numbers = #tpu.dot_dimension_numbers<[1], [0], [0], [1], [0, 0, 1, 1], [], []>} : vector<286x8xbf16>, vector<8x12xbf16>, vector<286x12xf32> -> vector<286x12xf32>
    %157 = arith.addf %151, %156 : vector<286x12xf32>
    %c38 = arith.constant 38 : index
    %c0_110 = arith.constant 0 : index
    %158 = vector.load %arg17[%c38, %c0_110] : memref<324x8xf32, #tpu.memory_space<vmem>>, vector<286x8xf32>
    %159 = arith.truncf %158 : vector<286x8xf32> to vector<286x8xbf16>
    %c8_111 = arith.constant 8 : index
    %c0_112 = arith.constant 0 : index
    %c0_113 = arith.constant 0 : index
    %160 = vector.load %arg8[%c8_111, %c0_112, %c0_113] : memref<9x8x12xbf16, #tpu.memory_space<vmem>>, vector<1x8x12xbf16>
    %161 = vector.shape_cast %160 : vector<1x8x12xbf16> to vector<8x12xbf16>
    %cst_114 = arith.constant dense<0.000000e+00> : vector<286x12xf32>
    %162 = tpu.matmul %159, %161, %cst_114 {dimension_numbers = #tpu.dot_dimension_numbers<[1], [0], [0], [1], [0, 0, 1, 1], [], []>} : vector<286x8xbf16>, vector<8x12xbf16>, vector<286x12xf32> -> vector<286x12xf32>
    %163 = arith.addf %157, %162 : vector<286x12xf32>
    %c0_115 = arith.constant 0 : index
    %c0_116 = arith.constant 0 : index
    %164 = vector.load %arg9[%c0_115, %c0_116] : memref<1x12xf32, #tpu.memory_space<vmem>>, vector<1x12xf32>
    %165 = vector.broadcast %164 : vector<1x12xf32> to vector<286x12xf32>
    %166 = arith.mulf %163, %165 : vector<286x12xf32>
    %c0_117 = arith.constant 0 : index
    %c0_118 = arith.constant 0 : index
    %167 = vector.load %arg10[%c0_117, %c0_118] : memref<1x12xf32, #tpu.memory_space<vmem>>, vector<1x12xf32>
    %168 = vector.broadcast %167 : vector<1x12xf32> to vector<286x12xf32>
    %169 = arith.addf %166, %168 : vector<286x12xf32>
    %cst_119 = arith.constant 0.000000e+00 : f32
    %170 = vector.broadcast %cst_119 : f32 to vector<286x12xf32>
    %171 = arith.maximumf %169, %170 : vector<286x12xf32>
    %172 = vector.extract_strided_slice %171 {offsets = [0, 0], sizes = [229, 12], strides = [1, 1]} : vector<286x12xf32> to vector<229x12xf32>
    %173 = arith.truncf %172 : vector<229x12xf32> to vector<229x12xbf16>
    %c0_120 = arith.constant 0 : index
    %c0_121 = arith.constant 0 : index
    %c0_122 = arith.constant 0 : index
    %174 = vector.load %arg11[%c0_120, %c0_121, %c0_122] : memref<9x12x16xbf16, #tpu.memory_space<vmem>>, vector<1x12x16xbf16>
    %175 = vector.shape_cast %174 : vector<1x12x16xbf16> to vector<12x16xbf16>
    %cst_123 = arith.constant dense<0.000000e+00> : vector<229x16xf32>
    %176 = tpu.matmul %173, %175, %cst_123 {dimension_numbers = #tpu.dot_dimension_numbers<[1], [0], [0], [1], [0, 0, 1, 1], [], []>} : vector<229x12xbf16>, vector<12x16xbf16>, vector<229x16xf32> -> vector<229x16xf32>
    %177 = vector.extract_strided_slice %171 {offsets = [1, 0], sizes = [229, 12], strides = [1, 1]} : vector<286x12xf32> to vector<229x12xf32>
    %178 = arith.truncf %177 : vector<229x12xf32> to vector<229x12xbf16>
    %c1_124 = arith.constant 1 : index
    %c0_125 = arith.constant 0 : index
    %c0_126 = arith.constant 0 : index
    %179 = vector.load %arg11[%c1_124, %c0_125, %c0_126] : memref<9x12x16xbf16, #tpu.memory_space<vmem>>, vector<1x12x16xbf16>
    %180 = vector.shape_cast %179 : vector<1x12x16xbf16> to vector<12x16xbf16>
    %cst_127 = arith.constant dense<0.000000e+00> : vector<229x16xf32>
    %181 = tpu.matmul %178, %180, %cst_127 {dimension_numbers = #tpu.dot_dimension_numbers<[1], [0], [0], [1], [0, 0, 1, 1], [], []>} : vector<229x12xbf16>, vector<12x16xbf16>, vector<229x16xf32> -> vector<229x16xf32>
    %182 = arith.addf %176, %181 : vector<229x16xf32>
    %183 = vector.extract_strided_slice %171 {offsets = [2, 0], sizes = [229, 12], strides = [1, 1]} : vector<286x12xf32> to vector<229x12xf32>
    %184 = arith.truncf %183 : vector<229x12xf32> to vector<229x12xbf16>
    %c2_128 = arith.constant 2 : index
    %c0_129 = arith.constant 0 : index
    %c0_130 = arith.constant 0 : index
    %185 = vector.load %arg11[%c2_128, %c0_129, %c0_130] : memref<9x12x16xbf16, #tpu.memory_space<vmem>>, vector<1x12x16xbf16>
    %186 = vector.shape_cast %185 : vector<1x12x16xbf16> to vector<12x16xbf16>
    %cst_131 = arith.constant dense<0.000000e+00> : vector<229x16xf32>
    %187 = tpu.matmul %184, %186, %cst_131 {dimension_numbers = #tpu.dot_dimension_numbers<[1], [0], [0], [1], [0, 0, 1, 1], [], []>} : vector<229x12xbf16>, vector<12x16xbf16>, vector<229x16xf32> -> vector<229x16xf32>
    %188 = arith.addf %182, %187 : vector<229x16xf32>
    %189 = vector.extract_strided_slice %171 {offsets = [18, 0], sizes = [229, 12], strides = [1, 1]} : vector<286x12xf32> to vector<229x12xf32>
    %190 = arith.truncf %189 : vector<229x12xf32> to vector<229x12xbf16>
    %c3_132 = arith.constant 3 : index
    %c0_133 = arith.constant 0 : index
    %c0_134 = arith.constant 0 : index
    %191 = vector.load %arg11[%c3_132, %c0_133, %c0_134] : memref<9x12x16xbf16, #tpu.memory_space<vmem>>, vector<1x12x16xbf16>
    %192 = vector.shape_cast %191 : vector<1x12x16xbf16> to vector<12x16xbf16>
    %cst_135 = arith.constant dense<0.000000e+00> : vector<229x16xf32>
    %193 = tpu.matmul %190, %192, %cst_135 {dimension_numbers = #tpu.dot_dimension_numbers<[1], [0], [0], [1], [0, 0, 1, 1], [], []>} : vector<229x12xbf16>, vector<12x16xbf16>, vector<229x16xf32> -> vector<229x16xf32>
    %194 = arith.addf %188, %193 : vector<229x16xf32>
    %195 = vector.extract_strided_slice %171 {offsets = [19, 0], sizes = [229, 12], strides = [1, 1]} : vector<286x12xf32> to vector<229x12xf32>
    %196 = arith.truncf %195 : vector<229x12xf32> to vector<229x12xbf16>
    %c4_136 = arith.constant 4 : index
    %c0_137 = arith.constant 0 : index
    %c0_138 = arith.constant 0 : index
    %197 = vector.load %arg11[%c4_136, %c0_137, %c0_138] : memref<9x12x16xbf16, #tpu.memory_space<vmem>>, vector<1x12x16xbf16>
    %198 = vector.shape_cast %197 : vector<1x12x16xbf16> to vector<12x16xbf16>
    %cst_139 = arith.constant dense<0.000000e+00> : vector<229x16xf32>
    %199 = tpu.matmul %196, %198, %cst_139 {dimension_numbers = #tpu.dot_dimension_numbers<[1], [0], [0], [1], [0, 0, 1, 1], [], []>} : vector<229x12xbf16>, vector<12x16xbf16>, vector<229x16xf32> -> vector<229x16xf32>
    %200 = arith.addf %194, %199 : vector<229x16xf32>
    %201 = vector.extract_strided_slice %171 {offsets = [20, 0], sizes = [229, 12], strides = [1, 1]} : vector<286x12xf32> to vector<229x12xf32>
    %202 = arith.truncf %201 : vector<229x12xf32> to vector<229x12xbf16>
    %c5_140 = arith.constant 5 : index
    %c0_141 = arith.constant 0 : index
    %c0_142 = arith.constant 0 : index
    %203 = vector.load %arg11[%c5_140, %c0_141, %c0_142] : memref<9x12x16xbf16, #tpu.memory_space<vmem>>, vector<1x12x16xbf16>
    %204 = vector.shape_cast %203 : vector<1x12x16xbf16> to vector<12x16xbf16>
    %cst_143 = arith.constant dense<0.000000e+00> : vector<229x16xf32>
    %205 = tpu.matmul %202, %204, %cst_143 {dimension_numbers = #tpu.dot_dimension_numbers<[1], [0], [0], [1], [0, 0, 1, 1], [], []>} : vector<229x12xbf16>, vector<12x16xbf16>, vector<229x16xf32> -> vector<229x16xf32>
    %206 = arith.addf %200, %205 : vector<229x16xf32>
    %207 = vector.extract_strided_slice %171 {offsets = [36, 0], sizes = [229, 12], strides = [1, 1]} : vector<286x12xf32> to vector<229x12xf32>
    %208 = arith.truncf %207 : vector<229x12xf32> to vector<229x12xbf16>
    %c6_144 = arith.constant 6 : index
    %c0_145 = arith.constant 0 : index
    %c0_146 = arith.constant 0 : index
    %209 = vector.load %arg11[%c6_144, %c0_145, %c0_146] : memref<9x12x16xbf16, #tpu.memory_space<vmem>>, vector<1x12x16xbf16>
    %210 = vector.shape_cast %209 : vector<1x12x16xbf16> to vector<12x16xbf16>
    %cst_147 = arith.constant dense<0.000000e+00> : vector<229x16xf32>
    %211 = tpu.matmul %208, %210, %cst_147 {dimension_numbers = #tpu.dot_dimension_numbers<[1], [0], [0], [1], [0, 0, 1, 1], [], []>} : vector<229x12xbf16>, vector<12x16xbf16>, vector<229x16xf32> -> vector<229x16xf32>
    %212 = arith.addf %206, %211 : vector<229x16xf32>
    %213 = vector.extract_strided_slice %171 {offsets = [37, 0], sizes = [229, 12], strides = [1, 1]} : vector<286x12xf32> to vector<229x12xf32>
    %214 = arith.truncf %213 : vector<229x12xf32> to vector<229x12xbf16>
    %c7_148 = arith.constant 7 : index
    %c0_149 = arith.constant 0 : index
    %c0_150 = arith.constant 0 : index
    %215 = vector.load %arg11[%c7_148, %c0_149, %c0_150] : memref<9x12x16xbf16, #tpu.memory_space<vmem>>, vector<1x12x16xbf16>
    %216 = vector.shape_cast %215 : vector<1x12x16xbf16> to vector<12x16xbf16>
    %cst_151 = arith.constant dense<0.000000e+00> : vector<229x16xf32>
    %217 = tpu.matmul %214, %216, %cst_151 {dimension_numbers = #tpu.dot_dimension_numbers<[1], [0], [0], [1], [0, 0, 1, 1], [], []>} : vector<229x12xbf16>, vector<12x16xbf16>, vector<229x16xf32> -> vector<229x16xf32>
    %218 = arith.addf %212, %217 : vector<229x16xf32>
    %219 = vector.extract_strided_slice %171 {offsets = [38, 0], sizes = [229, 12], strides = [1, 1]} : vector<286x12xf32> to vector<229x12xf32>
    %220 = arith.truncf %219 : vector<229x12xf32> to vector<229x12xbf16>
    %c8_152 = arith.constant 8 : index
    %c0_153 = arith.constant 0 : index
    %c0_154 = arith.constant 0 : index
    %221 = vector.load %arg11[%c8_152, %c0_153, %c0_154] : memref<9x12x16xbf16, #tpu.memory_space<vmem>>, vector<1x12x16xbf16>
    %222 = vector.shape_cast %221 : vector<1x12x16xbf16> to vector<12x16xbf16>
    %cst_155 = arith.constant dense<0.000000e+00> : vector<229x16xf32>
    %223 = tpu.matmul %220, %222, %cst_155 {dimension_numbers = #tpu.dot_dimension_numbers<[1], [0], [0], [1], [0, 0, 1, 1], [], []>} : vector<229x12xbf16>, vector<12x16xbf16>, vector<229x16xf32> -> vector<229x16xf32>
    %224 = arith.addf %218, %223 : vector<229x16xf32>
    %c0_156 = arith.constant 0 : index
    %c0_157 = arith.constant 0 : index
    %225 = vector.load %arg12[%c0_156, %c0_157] : memref<1x16xf32, #tpu.memory_space<vmem>>, vector<1x16xf32>
    %226 = vector.broadcast %225 : vector<1x16xf32> to vector<229x16xf32>
    %227 = arith.mulf %224, %226 : vector<229x16xf32>
    %c0_158 = arith.constant 0 : index
    %c0_159 = arith.constant 0 : index
    %228 = vector.load %arg13[%c0_158, %c0_159] : memref<1x16xf32, #tpu.memory_space<vmem>>, vector<1x16xf32>
    %229 = vector.broadcast %228 : vector<1x16xf32> to vector<229x16xf32>
    %230 = arith.addf %227, %229 : vector<229x16xf32>
    %cst_160 = arith.constant 0.000000e+00 : f32
    %231 = vector.broadcast %cst_160 : f32 to vector<229x16xf32>
    %232 = arith.maximumf %230, %231 : vector<229x16xf32>
    %c0_161 = arith.constant 0 : index
    %c0_162 = arith.constant 0 : index
    %233 = vector.load %arg15[%c0_161, %c0_162] : memref<49x229xf32, #tpu.memory_space<vmem>>, vector<49x229xf32>
    %cst_163 = arith.constant dense<0.000000e+00> : vector<49x16xf32>
    %234 = tpu.matmul %233, %232, %cst_163 {dimension_numbers = #tpu.dot_dimension_numbers<[1], [0], [0], [1], [0, 0, 1, 1], [], []>} : vector<49x229xf32>, vector<229x16xf32>, vector<49x16xf32> -> vector<49x16xf32>
    %235 = vector.extract_strided_slice %1 {offsets = [0, 0], sizes = [205, 4], strides = [1, 1]} : vector<256x4xf32> to vector<205x4xf32>
    %236 = vector.extract_strided_slice %1 {offsets = [1, 0], sizes = [205, 4], strides = [1, 1]} : vector<256x4xf32> to vector<205x4xf32>
    %237 = arith.maximumf %235, %236 : vector<205x4xf32>
    %238 = vector.extract_strided_slice %1 {offsets = [2, 0], sizes = [205, 4], strides = [1, 1]} : vector<256x4xf32> to vector<205x4xf32>
    %239 = arith.maximumf %237, %238 : vector<205x4xf32>
    %240 = vector.extract_strided_slice %1 {offsets = [16, 0], sizes = [205, 4], strides = [1, 1]} : vector<256x4xf32> to vector<205x4xf32>
    %241 = arith.maximumf %239, %240 : vector<205x4xf32>
    %242 = vector.extract_strided_slice %1 {offsets = [17, 0], sizes = [205, 4], strides = [1, 1]} : vector<256x4xf32> to vector<205x4xf32>
    %243 = arith.maximumf %241, %242 : vector<205x4xf32>
    %244 = vector.extract_strided_slice %1 {offsets = [18, 0], sizes = [205, 4], strides = [1, 1]} : vector<256x4xf32> to vector<205x4xf32>
    %245 = arith.maximumf %243, %244 : vector<205x4xf32>
    %246 = vector.extract_strided_slice %1 {offsets = [32, 0], sizes = [205, 4], strides = [1, 1]} : vector<256x4xf32> to vector<205x4xf32>
    %247 = arith.maximumf %245, %246 : vector<205x4xf32>
    %248 = vector.extract_strided_slice %1 {offsets = [33, 0], sizes = [205, 4], strides = [1, 1]} : vector<256x4xf32> to vector<205x4xf32>
    %249 = arith.maximumf %247, %248 : vector<205x4xf32>
    %250 = vector.extract_strided_slice %1 {offsets = [34, 0], sizes = [205, 4], strides = [1, 1]} : vector<256x4xf32> to vector<205x4xf32>
    %251 = arith.maximumf %249, %250 : vector<205x4xf32>
    %c0_164 = arith.constant 0 : index
    %c0_165 = arith.constant 0 : index
    %252 = vector.load %arg14[%c0_164, %c0_165] : memref<49x205xf32, #tpu.memory_space<vmem>>, vector<49x205xf32>
    %cst_166 = arith.constant dense<0.000000e+00> : vector<49x4xf32>
    %253 = tpu.matmul %252, %251, %cst_166 {dimension_numbers = #tpu.dot_dimension_numbers<[1], [0], [0], [1], [0, 0, 1, 1], [], []>} : vector<49x205xf32>, vector<205x4xf32>, vector<49x4xf32> -> vector<49x4xf32>
    %c0_167 = arith.constant 0 : index
    %c0_168 = arith.constant 0 : index
    %c0_169 = arith.constant 0 : index
    %254 = vector.load %arg16[%c0_167, %c0_168, %c0_169] : memref<1x49x28xf32, #tpu.memory_space<vmem>>, vector<1x49x8xf32>
    %255 = vector.shape_cast %254 : vector<1x49x8xf32> to vector<49x8xf32>
    %256 = vector.shape_cast %64 : vector<49x8xf32> to vector<1x49x8xf32>
    tpu.vector_store %arg16[%c0_167, %c0_168, %c0_169], %256 {strides = array<i32>} : memref<1x49x28xf32, #tpu.memory_space<vmem>>, vector<1x49x8xf32>,
    %c0_170 = arith.constant 0 : index
    %c0_171 = arith.constant 0 : index
    %c8_172 = arith.constant 8 : index
    %257 = vector.load %arg16[%c0_170, %c0_171, %c8_172] : memref<1x49x28xf32, #tpu.memory_space<vmem>>, vector<1x49x16xf32>
    %258 = vector.shape_cast %257 : vector<1x49x16xf32> to vector<49x16xf32>
    %259 = vector.shape_cast %234 : vector<49x16xf32> to vector<1x49x16xf32>
    tpu.vector_store %arg16[%c0_170, %c0_171, %c8_172], %259 {strides = array<i32>} : memref<1x49x28xf32, #tpu.memory_space<vmem>>, vector<1x49x16xf32>,
    %c0_173 = arith.constant 0 : index
    %c0_174 = arith.constant 0 : index
    %c24 = arith.constant 24 : index
    %260 = vector.load %arg16[%c0_173, %c0_174, %c24] : memref<1x49x28xf32, #tpu.memory_space<vmem>>, vector<1x49x4xf32>
    %261 = vector.shape_cast %260 : vector<1x49x4xf32> to vector<49x4xf32>
    %262 = vector.shape_cast %253 : vector<49x4xf32> to vector<1x49x4xf32>
    tpu.vector_store %arg16[%c0_173, %c0_174, %c24], %262 {strides = array<i32>} : memref<1x49x28xf32, #tpu.memory_space<vmem>>, vector<1x49x4xf32>,
    return
  }
  func.func @transform_0(%arg0: i32) -> (i32, i32, i32) {
    %c0_i32 = arith.constant 0 : i32
    %c0_i32_0 = arith.constant 0 : i32
    %c0_i32_1 = arith.constant 0 : i32
    return %arg0, %c0_i32, %c0_i32_0 : i32, i32, i32
  }
  func.func @transform_1(%arg0: i32) -> (i32, i32, i32) {
    %c0_i32 = arith.constant 0 : i32
    %c0_i32_0 = arith.constant 0 : i32
    %c0_i32_1 = arith.constant 0 : i32
    %c0_i32_2 = arith.constant 0 : i32
    return %c0_i32, %c0_i32_0, %c0_i32_1 : i32, i32, i32
  }
  func.func @transform_2(%arg0: i32) -> (i32, i32) {
    %c0_i32 = arith.constant 0 : i32
    %c0_i32_0 = arith.constant 0 : i32
    %c0_i32_1 = arith.constant 0 : i32
    return %c0_i32, %c0_i32_0 : i32, i32
  }
  func.func @transform_3(%arg0: i32) -> (i32, i32) {
    %c0_i32 = arith.constant 0 : i32
    %c0_i32_0 = arith.constant 0 : i32
    %c0_i32_1 = arith.constant 0 : i32
    return %c0_i32, %c0_i32_0 : i32, i32
  }
  func.func @transform_4(%arg0: i32) -> (i32, i32, i32) {
    %c0_i32 = arith.constant 0 : i32
    %c0_i32_0 = arith.constant 0 : i32
    %c0_i32_1 = arith.constant 0 : i32
    %c0_i32_2 = arith.constant 0 : i32
    return %c0_i32, %c0_i32_0, %c0_i32_1 : i32, i32, i32
  }
  func.func @transform_5(%arg0: i32) -> (i32, i32) {
    %c0_i32 = arith.constant 0 : i32
    %c0_i32_0 = arith.constant 0 : i32
    %c0_i32_1 = arith.constant 0 : i32
    return %c0_i32, %c0_i32_0 : i32, i32
  }
  func.func @transform_6(%arg0: i32) -> (i32, i32) {
    %c0_i32 = arith.constant 0 : i32
    %c0_i32_0 = arith.constant 0 : i32
    %c0_i32_1 = arith.constant 0 : i32
    return %c0_i32, %c0_i32_0 : i32, i32
  }
  func.func @transform_7(%arg0: i32) -> (i32, i32, i32) {
    %c0_i32 = arith.constant 0 : i32
    %c0_i32_0 = arith.constant 0 : i32
    %c0_i32_1 = arith.constant 0 : i32
    %c0_i32_2 = arith.constant 0 : i32
    return %c0_i32, %c0_i32_0, %c0_i32_1 : i32, i32, i32
  }
  func.func @transform_8(%arg0: i32) -> (i32, i32) {
    %c0_i32 = arith.constant 0 : i32
    %c0_i32_0 = arith.constant 0 : i32
    %c0_i32_1 = arith.constant 0 : i32
    return %c0_i32, %c0_i32_0 : i32, i32
  }
  func.func @transform_9(%arg0: i32) -> (i32, i32) {
    %c0_i32 = arith.constant 0 : i32
    %c0_i32_0 = arith.constant 0 : i32
    %c0_i32_1 = arith.constant 0 : i32
    return %c0_i32, %c0_i32_0 : i32, i32
  }
  func.func @transform_10(%arg0: i32) -> (i32, i32, i32) {
    %c0_i32 = arith.constant 0 : i32
    %c0_i32_0 = arith.constant 0 : i32
    %c0_i32_1 = arith.constant 0 : i32
    %c0_i32_2 = arith.constant 0 : i32
    return %c0_i32, %c0_i32_0, %c0_i32_1 : i32, i32, i32
  }
  func.func @transform_11(%arg0: i32) -> (i32, i32) {
    %c0_i32 = arith.constant 0 : i32
    %c0_i32_0 = arith.constant 0 : i32
    %c0_i32_1 = arith.constant 0 : i32
    return %c0_i32, %c0_i32_0 : i32, i32
  }
  func.func @transform_12(%arg0: i32) -> (i32, i32) {
    %c0_i32 = arith.constant 0 : i32
    %c0_i32_0 = arith.constant 0 : i32
    %c0_i32_1 = arith.constant 0 : i32
    return %c0_i32, %c0_i32_0 : i32, i32
  }
  func.func @transform_13(%arg0: i32) -> (i32, i32) {
    %c0_i32 = arith.constant 0 : i32
    %c0_i32_0 = arith.constant 0 : i32
    %c0_i32_1 = arith.constant 0 : i32
    return %c0_i32, %c0_i32_0 : i32, i32
  }
  func.func @transform_14(%arg0: i32) -> (i32, i32) {
    %c0_i32 = arith.constant 0 : i32
    %c0_i32_0 = arith.constant 0 : i32
    %c0_i32_1 = arith.constant 0 : i32
    return %c0_i32, %c0_i32_0 : i32, i32
  }
  func.func @transform_15(%arg0: i32) -> (i32, i32, i32) {
    %c0_i32 = arith.constant 0 : i32
    %c0_i32_0 = arith.constant 0 : i32
    %c0_i32_1 = arith.constant 0 : i32
    return %arg0, %c0_i32, %c0_i32_0 : i32, i32, i32
  }
}

</mosaic_0001>

<llo_original>
// kernel: inception_block_b.1
$region0: #{inception_block_b.1}
  #allocation0 [shape = 'u32[]', space=smem, size = 0x4, offset = 0x4, fixed_abs, tag = 'smem constant byte address 0x4 - core index']
  #allocation1 [shape = 'u32[144,128]{1,0:T(1,128)}', space=vmem, size = 0x12000, scoped, tag = 'internal scratch']
  #allocation2 [shape = 'f32[324,8]{1,0:T(8,128)}', space=vmem, size = 0x29000, scoped, tag = 'scratch operand']
  %s0 = inlined_call_operand.vmem [shape: f32[2,256,4], index: 0, kind: input, shape index: {}]
  %s1 = inlined_call_operand.vmem [shape: bf16[9,4,8], index: 1, kind: input, shape index: {}]
  %s2 = inlined_call_operand.vmem [shape: f32[1,8], index: 2, kind: input, shape index: {}]
  %s3 = inlined_call_operand.vmem [shape: f32[1,8], index: 3, kind: input, shape index: {}]
  %s4 = inlined_call_operand.vmem [shape: bf16[1,4,8], index: 4, kind: input, shape index: {}]
  %s5 = inlined_call_operand.vmem [shape: f32[1,8], index: 5, kind: input, shape index: {}]
  %s6 = inlined_call_operand.vmem [shape: f32[1,8], index: 6, kind: input, shape index: {}]
  %s7 = inlined_call_operand.vmem [shape: bf16[9,8,12], index: 7, kind: input, shape index: {}]
  %s8 = inlined_call_operand.vmem [shape: f32[1,12], index: 8, kind: input, shape index: {}]
  %s9 = inlined_call_operand.vmem [shape: f32[1,12], index: 9, kind: input, shape index: {}]
  %s10 = inlined_call_operand.vmem [shape: bf16[9,12,16], index: 10, kind: input, shape index: {}]
  %s11 = inlined_call_operand.vmem [shape: f32[1,16], index: 11, kind: input, shape index: {}]
  %s12 = inlined_call_operand.vmem [shape: f32[1,16], index: 12, kind: input, shape index: {}]
  %s13 = inlined_call_operand.vmem [shape: f32[49,205], index: 13, kind: input, shape index: {}]
  %s14 = inlined_call_operand.vmem [shape: f32[49,229], index: 14, kind: input, shape index: {}]
  %s15 = inlined_call_operand.vmem [shape: f32[2,49,28], index: 15, kind: output, shape index: {}]
  %s16 = sld [smem:[#allocation0]]
  $region93: #{inception_block_b.1} parent=0
    _
  %s18 = ssub.s32 1, %s16
  %s19 = scalar_select 0, %s18, %s16
  loop: start=0, step=1, limit=4
  $region2: #{inception_block_b.1} parent=0 // loop_pre_header
    _
  $region3: #{inception_block_b.1} parent=0 // loop_header
    %s21 = sphi 0, %s25
    %p22 = scmp.ge.s32.totalorder %s21, 4
    %s31 = sphi 0, %s33
    %s34 = sphi 0, %s31
    %s35 = sphi 0, %s34
    %s51 = sphi 0, %s35
    %s55 = sphi 0, %s55
    %s57 = sphi 0, %s55
    %s58 = sphi 0, %s57
    %s72 = sphi 0, %s58
    %s76 = sphi 0, %s76
    %s78 = sphi 0, %s76
    %s79 = sphi 0, %s78
    %s93 = sphi 0, %s79
    %s97 = sphi 0, %s97
    %s99 = sphi 0, %s97
    %s100 = sphi 0, %s99
    %s114 = sphi 0, %s100
    %s118 = sphi 0, %s118
    %s120 = sphi 0, %s118
    %s121 = sphi 0, %s120
    %s135 = sphi 0, %s121
    %s139 = sphi 0, %s139
    %s141 = sphi 0, %s139
    %s142 = sphi 0, %s141
    %s156 = sphi 0, %s142
    %s160 = sphi 0, %s160
    %s162 = sphi 0, %s160
    %s163 = sphi 0, %s162
    %s177 = sphi 0, %s163
    %s181 = sphi 0, %s181
    %s183 = sphi 0, %s181
    %s184 = sphi 0, %s183
    %s198 = sphi 0, %s184
    %s202 = sphi 0, %s202
    %s204 = sphi 0, %s202
    %s205 = sphi 0, %s204
    %s219 = sphi 0, %s205
    %s223 = sphi 0, %s223
    %s225 = sphi 0, %s223
    %s226 = sphi 0, %s225
    %s240 = sphi 0, %s226
    %s244 = sphi 0, %s244
    %s246 = sphi 0, %s244
    %s247 = sphi 0, %s246
    %s261 = sphi 0, %s247
    %s265 = sphi 0, %s265
    %s267 = sphi 0, %s265
    %s268 = sphi 0, %s267
    %s282 = sphi 0, %s268
    %s286 = sphi 0, %s286
    %s288 = sphi 0, %s286
    %s289 = sphi 0, %s288
    %s303 = sphi 0, %s289
    %s307 = sphi 0, %s307
    %s309 = sphi 0, %s307
    %s310 = sphi 0, %s309
    %s324 = sphi 0, %s310
    %s328 = sphi 0, %s328
    %s330 = sphi 0, %s328
    %s331 = sphi 0, %s330
    %s345 = sphi 0, %s331
    %s351 = sphi 0, %s353
    %s354 = sphi 0, %s351
    %s355 = sphi 0, %s354
    %s371 = sphi 0, %s355
  $region4: #{inception_block_b.1} parent=0 // loop_header_branch
    %24 = sbr.rel (%p22) target = $region8
  $region5: #{inception_block_b.1} parent=0 // loop_body
    %s26 = ssub.s32 %s21, 1
    %s27 = ssub.s32 %s21, 2
    %s28 = sadd.s32 %s21, 1
    %s29 = ssub.s32 %s21, %s28
    %p30 = scmp.eq.s32.totalorder %s29, 0
    %s32 = sadd.s32 %s31, 1
    %s33 = scalar_select %p30, %s31, %s32
    %p36 = pneg %p30
    %p37 = scmp.eq.s32.totalorder %s21, 1
    %p38 = por %p36, %p37
    %p39 = scmp.ne.s32.totalorder %s31, %s34
    %p40 = scmp.eq.s32.totalorder %s21, 0
    %p41 = por %p39, %p40
    %p42 = scmp.ne.s32.totalorder %s31, %s34
    %p43 = scmp.eq.s32.totalorder %s26, 1
    %p44 = por %p42, %p43
    %p45 = scmp.ne.s32.totalorder %s34, %s35
    %p46 = scmp.eq.s32.totalorder %s26, 0
    %p47 = por %p45, %p46
    %p48 = scmp.ne.s32.totalorder %s34, %s35
    %p49 = scmp.eq.s32.totalorder %s27, 1
    %p50 = por %p48, %p49
    %p52 = scmp.ne.s32.totalorder %s35, %s51
    %p53 = scmp.eq.s32.totalorder %s27, 0
    %p54 = por %p52, %p53
    %s56 = sadd.s32 %s55, 1
    %p59 = scmp.eq.s32.totalorder %s21, 1
    %p60 = scmp.ne.s32.totalorder %s55, %s57
    %p61 = scmp.eq.s32.totalorder %s21, 0
    %p62 = por %p60, %p61
    %p63 = scmp.ne.s32.totalorder %s55, %s57
    %p64 = scmp.eq.s32.totalorder %s26, 1
    %p65 = por %p63, %p64
    %p66 = scmp.ne.s32.totalorder %s57, %s58
    %p67 = scmp.eq.s32.totalorder %s26, 0
    %p68 = por %p66, %p67
    %p69 = scmp.ne.s32.totalorder %s57, %s58
    %p70 = scmp.eq.s32.totalorder %s27, 1
    %p71 = por %p69, %p70
    %p73 = scmp.ne.s32.totalorder %s58, %s72
    %p74 = scmp.eq.s32.totalorder %s27, 0
    %p75 = por %p73, %p74
    %s77 = sadd.s32 %s76, 1
    %p80 = scmp.eq.s32.totalorder %s21, 1
    %p81 = scmp.ne.s32.totalorder %s76, %s78
    %p82 = scmp.eq.s32.totalorder %s21, 0
    %p83 = por %p81, %p82
    %p84 = scmp.ne.s32.totalorder %s76, %s78
    %p85 = scmp.eq.s32.totalorder %s26, 1
    %p86 = por %p84, %p85
    %p87 = scmp.ne.s32.totalorder %s78, %s79
    %p88 = scmp.eq.s32.totalorder %s26, 0
    %p89 = por %p87, %p88
    %p90 = scmp.ne.s32.totalorder %s78, %s79
    %p91 = scmp.eq.s32.totalorder %s27, 1
    %p92 = por %p90, %p91
    %p94 = scmp.ne.s32.totalorder %s79, %s93
    %p95 = scmp.eq.s32.totalorder %s27, 0
    %p96 = por %p94, %p95
    %s98 = sadd.s32 %s97, 1
    %p101 = scmp.eq.s32.totalorder %s21, 1
    %p102 = scmp.ne.s32.totalorder %s97, %s99
    %p103 = scmp.eq.s32.totalorder %s21, 0
    %p104 = por %p102, %p103
    %p105 = scmp.ne.s32.totalorder %s97, %s99
    %p106 = scmp.eq.s32.totalorder %s26, 1
    %p107 = por %p105, %p106
    %p108 = scmp.ne.s32.totalorder %s99, %s100
    %p109 = scmp.eq.s32.totalorder %s26, 0
    %p110 = por %p108, %p109
    %p111 = scmp.ne.s32.totalorder %s99, %s100
    %p112 = scmp.eq.s32.totalorder %s27, 1
    %p113 = por %p111, %p112
    %p115 = scmp.ne.s32.totalorder %s100, %s114
    %p116 = scmp.eq.s32.totalorder %s27, 0
    %p117 = por %p115, %p116
    %s119 = sadd.s32 %s118, 1
    %p122 = scmp.eq.s32.totalorder %s21, 1
    %p123 = scmp.ne.s32.totalorder %s118, %s120
    %p124 = scmp.eq.s32.totalorder %s21, 0
    %p125 = por %p123, %p124
    %p126 = scmp.ne.s32.totalorder %s118, %s120
    %p127 = scmp.eq.s32.totalorder %s26, 1
    %p128 = por %p126, %p127
    %p129 = scmp.ne.s32.totalorder %s120, %s121
    %p130 = scmp.eq.s32.totalorder %s26, 0
    %p131 = por %p129, %p130
    %p132 = scmp.ne.s32.totalorder %s120, %s121
    %p133 = scmp.eq.s32.totalorder %s27, 1
    %p134 = por %p132, %p133
    %p136 = scmp.ne.s32.totalorder %s121, %s135
    %p137 = scmp.eq.s32.totalorder %s27, 0
    %p138 = por %p136, %p137
    %s140 = sadd.s32 %s139, 1
    %p143 = scmp.eq.s32.totalorder %s21, 1
    %p144 = scmp.ne.s32.totalorder %s139, %s141
    %p145 = scmp.eq.s32.totalorder %s21, 0
    %p146 = por %p144, %p145
    %p147 = scmp.ne.s32.totalorder %s139, %s141
    %p148 = scmp.eq.s32.totalorder %s26, 1
    %p149 = por %p147, %p148
    %p150 = scmp.ne.s32.totalorder %s141, %s142
    %p151 = scmp.eq.s32.totalorder %s26, 0
    %p152 = por %p150, %p151
    %p153 = scmp.ne.s32.totalorder %s141, %s142
    %p154 = scmp.eq.s32.totalorder %s27, 1
    %p155 = por %p153, %p154
    %p157 = scmp.ne.s32.totalorder %s142, %s156
    %p158 = scmp.eq.s32.totalorder %s27, 0
    %p159 = por %p157, %p158
    %s161 = sadd.s32 %s160, 1
    %p164 = scmp.eq.s32.totalorder %s21, 1
    %p165 = scmp.ne.s32.totalorder %s160, %s162
    %p166 = scmp.eq.s32.totalorder %s21, 0
    %p167 = por %p165, %p166
    %p168 = scmp.ne.s32.totalorder %s160, %s162
    %p169 = scmp.eq.s32.totalorder %s26, 1
    %p170 = por %p168, %p169
    %p171 = scmp.ne.s32.totalorder %s162, %s163
    %p172 = scmp.eq.s32.totalorder %s26, 0
    %p173 = por %p171, %p172
    %p174 = scmp.ne.s32.totalorder %s162, %s163
    %p175 = scmp.eq.s32.totalorder %s27, 1
    %p176 = por %p174, %p175
    %p178 = scmp.ne.s32.totalorder %s163, %s177
    %p179 = scmp.eq.s32.totalorder %s27, 0
    %p180 = por %p178, %p179
    %s182 = sadd.s32 %s181, 1
    %p185 = scmp.eq.s32.totalorder %s21, 1
    %p186 = scmp.ne.s32.totalorder %s181, %s183
    %p187 = scmp.eq.s32.totalorder %s21, 0
    %p188 = por %p186, %p187
    %p189 = scmp.ne.s32.totalorder %s181, %s183
    %p190 = scmp.eq.s32.totalorder %s26, 1
    %p191 = por %p189, %p190
    %p192 = scmp.ne.s32.totalorder %s183, %s184
    %p193 = scmp.eq.s32.totalorder %s26, 0
    %p194 = por %p192, %p193
    %p195 = scmp.ne.s32.totalorder %s183, %s184
    %p196 = scmp.eq.s32.totalorder %s27, 1
    %p197 = por %p195, %p196
    %p199 = scmp.ne.s32.totalorder %s184, %s198
    %p200 = scmp.eq.s32.totalorder %s27, 0
    %p201 = por %p199, %p200
    %s203 = sadd.s32 %s202, 1
    %p206 = scmp.eq.s32.totalorder %s21, 1
    %p207 = scmp.ne.s32.totalorder %s202, %s204
    %p208 = scmp.eq.s32.totalorder %s21, 0
    %p209 = por %p207, %p208
    %p210 = scmp.ne.s32.totalorder %s202, %s204
    %p211 = scmp.eq.s32.totalorder %s26, 1
    %p212 = por %p210, %p211
    %p213 = scmp.ne.s32.totalorder %s204, %s205
    %p214 = scmp.eq.s32.totalorder %s26, 0
    %p215 = por %p213, %p214
    %p216 = scmp.ne.s32.totalorder %s204, %s205
    %p217 = scmp.eq.s32.totalorder %s27, 1
    %p218 = por %p216, %p217
    %p220 = scmp.ne.s32.totalorder %s205, %s219
    %p221 = scmp.eq.s32.totalorder %s27, 0
    %p222 = por %p220, %p221
    %s224 = sadd.s32 %s223, 1
    %p227 = scmp.eq.s32.totalorder %s21, 1
    %p228 = scmp.ne.s32.totalorder %s223, %s225
    %p229 = scmp.eq.s32.totalorder %s21, 0
    %p230 = por %p228, %p229
    %p231 = scmp.ne.s32.totalorder %s223, %s225
    %p232 = scmp.eq.s32.totalorder %s26, 1
    %p233 = por %p231, %p232
    %p234 = scmp.ne.s32.totalorder %s225, %s226
    %p235 = scmp.eq.s32.totalorder %s26, 0
    %p236 = por %p234, %p235
    %p237 = scmp.ne.s32.totalorder %s225, %s226
    %p238 = scmp.eq.s32.totalorder %s27, 1
    %p239 = por %p237, %p238
    %p241 = scmp.ne.s32.totalorder %s226, %s240
    %p242 = scmp.eq.s32.totalorder %s27, 0
    %p243 = por %p241, %p242
    %s245 = sadd.s32 %s244, 1
    %p248 = scmp.eq.s32.totalorder %s21, 1
    %p249 = scmp.ne.s32.totalorder %s244, %s246
    %p250 = scmp.eq.s32.totalorder %s21, 0
    %p251 = por %p249, %p250
    %p252 = scmp.ne.s32.totalorder %s244, %s246
    %p253 = scmp.eq.s32.totalorder %s26, 1
    %p254 = por %p252, %p253
    %p255 = scmp.ne.s32.totalorder %s246, %s247
    %p256 = scmp.eq.s32.totalorder %s26, 0
    %p257 = por %p255, %p256
    %p258 = scmp.ne.s32.totalorder %s246, %s247
    %p259 = scmp.eq.s32.totalorder %s27, 1
    %p260 = por %p258, %p259
    %p262 = scmp.ne.s32.totalorder %s247, %s261
    %p263 = scmp.eq.s32.totalorder %s27, 0
    %p264 = por %p262, %p263
    %s266 = sadd.s32 %s265, 1
    %p269 = scmp.eq.s32.totalorder %s21, 1
    %p270 = scmp.ne.s32.totalorder %s265, %s267
    %p271 = scmp.eq.s32.totalorder %s21, 0
    %p272 = por %p270, %p271
    %p273 = scmp.ne.s32.totalorder %s265, %s267
    %p274 = scmp.eq.s32.totalorder %s26, 1
    %p275 = por %p273, %p274
    %p276 = scmp.ne.s32.totalorder %s267, %s268
    %p277 = scmp.eq.s32.totalorder %s26, 0
    %p278 = por %p276, %p277
    %p279 = scmp.ne.s32.totalorder %s267, %s268
    %p280 = scmp.eq.s32.totalorder %s27, 1
    %p281 = por %p279, %p280
    %p283 = scmp.ne.s32.totalorder %s268, %s282
    %p284 = scmp.eq.s32.totalorder %s27, 0
    %p285 = por %p283, %p284
    %s287 = sadd.s32 %s286, 1
    %p290 = scmp.eq.s32.totalorder %s21, 1
    %p291 = scmp.ne.s32.totalorder %s286, %s288
    %p292 = scmp.eq.s32.totalorder %s21, 0
    %p293 = por %p291, %p292
    %p294 = scmp.ne.s32.totalorder %s286, %s288
    %p295 = scmp.eq.s32.totalorder %s26, 1
    %p296 = por %p294, %p295
    %p297 = scmp.ne.s32.totalorder %s288, %s289
    %p298 = scmp.eq.s32.totalorder %s26, 0
    %p299 = por %p297, %p298
    %p300 = scmp.ne.s32.totalorder %s288, %s289
    %p301 = scmp.eq.s32.totalorder %s27, 1
    %p302 = por %p300, %p301
    %p304 = scmp.ne.s32.totalorder %s289, %s303
    %p305 = scmp.eq.s32.totalorder %s27, 0
    %p306 = por %p304, %p305
    %s308 = sadd.s32 %s307, 1
    %p311 = scmp.eq.s32.totalorder %s21, 1
    %p312 = scmp.ne.s32.totalorder %s307, %s309
    %p313 = scmp.eq.s32.totalorder %s21, 0
    %p314 = por %p312, %p313
    %p315 = scmp.ne.s32.totalorder %s307, %s309
    %p316 = scmp.eq.s32.totalorder %s26, 1
    %p317 = por %p315, %p316
    %p318 = scmp.ne.s32.totalorder %s309, %s310
    %p319 = scmp.eq.s32.totalorder %s26, 0
    %p320 = por %p318, %p319
    %p321 = scmp.ne.s32.totalorder %s309, %s310
    %p322 = scmp.eq.s32.totalorder %s27, 1
    %p323 = por %p321, %p322
    %p325 = scmp.ne.s32.totalorder %s310, %s324
    %p326 = scmp.eq.s32.totalorder %s27, 0
    %p327 = por %p325, %p326
    %s329 = sadd.s32 %s328, 1
    %p332 = scmp.eq.s32.totalorder %s21, 1
    %p333 = scmp.ne.s32.totalorder %s328, %s330
    %p334 = scmp.eq.s32.totalorder %s21, 0
    %p335 = por %p333, %p334
    %p336 = scmp.ne.s32.totalorder %s328, %s330
    %p337 = scmp.eq.s32.totalorder %s26, 1
    %p338 = por %p336, %p337
    %p339 = scmp.ne.s32.totalorder %s330, %s331
    %p340 = scmp.eq.s32.totalorder %s26, 0
    %p341 = por %p339, %p340
    %p342 = scmp.ne.s32.totalorder %s330, %s331
    %p343 = scmp.eq.s32.totalorder %s27, 1
    %p344 = por %p342, %p343
    %p346 = scmp.ne.s32.totalorder %s331, %s345
    %p347 = scmp.eq.s32.totalorder %s27, 0
    %p348 = por %p346, %p347
    %s349 = ssub.s32 %s21, %s28
    %p350 = scmp.eq.s32.totalorder %s349, 0
    %s352 = sadd.s32 %s351, 1
    %s353 = scalar_select %p350, %s351, %s352
    %p356 = pneg %p350
    %p357 = scmp.eq.s32.totalorder %s21, 1
    %p358 = por %p356, %p357
    %p359 = scmp.ne.s32.totalorder %s351, %s354
    %p360 = scmp.eq.s32.totalorder %s21, 0
    %p361 = por %p359, %p360
    %p362 = scmp.ne.s32.totalorder %s351, %s354
    %p363 = scmp.eq.s32.totalorder %s26, 1
    %p364 = por %p362, %p363
    %p365 = scmp.ne.s32.totalorder %s354, %s355
    %p366 = scmp.eq.s32.totalorder %s26, 0
    %p367 = por %p365, %p366
    %p368 = scmp.ne.s32.totalorder %s354, %s355
    %p369 = scmp.eq.s32.totalorder %s27, 1
    %p370 = por %p368, %p369
    %p372 = scmp.ne.s32.totalorder %s355, %s371
    %p373 = scmp.eq.s32.totalorder %s27, 0
    %p374 = por %p372, %p373
    %p375 = scmp.le.s32.totalorder 1, %s21
    %p376 = scmp.lt.s32.totalorder %s21, 3
    %p377 = pnand %p375, %p376
    %p378 = pneg %p377
    // Predicated region
    $region9: #{inception_block_b.1} parent=5 // pred_check
      _
    $region10: #{inception_block_b.1} parent=5 // pred_check_branch
      %380 = sbr.rel (%p377) target = $region12
    $region11: #{inception_block_b.1} parent=5 // pred_region
      %s381 = ssub.s32 %s21, 1
      // Predicated region
      $region13: #{inception_block_b.1} parent=11 // pred_check
        %p382 = pneg %p68
      $region14: #{inception_block_b.1} parent=11 // pred_check_branch
        %384 = sbr.rel (%p382) target = $region16
      $region15: #{inception_block_b.1} parent=11 // pred_region
        _
      $region16: #{inception_block_b.1} parent=11 // pred_fallthru
        _
      // Predicated region
      $region17: #{inception_block_b.1} parent=11 // pred_check
        %p385 = pneg %p89
      $region18: #{inception_block_b.1} parent=11 // pred_check_branch
        %387 = sbr.rel (%p385) target = $region20
      $region19: #{inception_block_b.1} parent=11 // pred_region
        _
      $region20: #{inception_block_b.1} parent=11 // pred_fallthru
        _
      // Predicated region
      $region21: #{inception_block_b.1} parent=11 // pred_check
        %p388 = pneg %p110
      $region22: #{inception_block_b.1} parent=11 // pred_check_branch
        %390 = sbr.rel (%p388) target = $region24
      $region23: #{inception_block_b.1} parent=11 // pred_region
        _
      $region24: #{inception_block_b.1} parent=11 // pred_fallthru
        _
      // Predicated region
      $region25: #{inception_block_b.1} parent=11 // pred_check
        %p391 = pneg %p131
      $region26: #{inception_block_b.1} parent=11 // pred_check_branch
        %393 = sbr.rel (%p391) target = $region28
      $region27: #{inception_block_b.1} parent=11 // pred_region
        _
      $region28: #{inception_block_b.1} parent=11 // pred_fallthru
        _
      // Predicated region
      $region29: #{inception_block_b.1} parent=11 // pred_check
        %p394 = pneg %p152
      $region30: #{inception_block_b.1} parent=11 // pred_check_branch
        %396 = sbr.rel (%p394) target = $region32
      $region31: #{inception_block_b.1} parent=11 // pred_region
        _
      $region32: #{inception_block_b.1} parent=11 // pred_fallthru
        _
      // Predicated region
      $region33: #{inception_block_b.1} parent=11 // pred_check
        %p397 = pneg %p173
      $region34: #{inception_block_b.1} parent=11 // pred_check_branch
        %399 = sbr.rel (%p397) target = $region36
      $region35: #{inception_block_b.1} parent=11 // pred_region
        _
      $region36: #{inception_block_b.1} parent=11 // pred_fallthru
        _
      // Predicated region
      $region37: #{inception_block_b.1} parent=11 // pred_check
        %p400 = pneg %p194
      $region38: #{inception_block_b.1} parent=11 // pred_check_branch
        %402 = sbr.rel (%p400) target = $region40
      $region39: #{inception_block_b.1} parent=11 // pred_region
        _
      $region40: #{inception_block_b.1} parent=11 // pred_fallthru
        _
      // Predicated region
      $region41: #{inception_block_b.1} parent=11 // pred_check
        %p403 = pneg %p215
      $region42: #{inception_block_b.1} parent=11 // pred_check_branch
        %405 = sbr.rel (%p403) target = $region44
      $region43: #{inception_block_b.1} parent=11 // pred_region
        _
      $region44: #{inception_block_b.1} parent=11 // pred_fallthru
        _
      // Predicated region
      $region45: #{inception_block_b.1} parent=11 // pred_check
        %p406 = pneg %p236
      $region46: #{inception_block_b.1} parent=11 // pred_check_branch
        %408 = sbr.rel (%p406) target = $region48
      $region47: #{inception_block_b.1} parent=11 // pred_region
        _
      $region48: #{inception_block_b.1} parent=11 // pred_fallthru
        _
      // Predicated region
      $region49: #{inception_block_b.1} parent=11 // pred_check
        %p409 = pneg %p257
      $region50: #{inception_block_b.1} parent=11 // pred_check_branch
        %411 = sbr.rel (%p409) target = $region52
      $region51: #{inception_block_b.1} parent=11 // pred_region
        _
      $region52: #{inception_block_b.1} parent=11 // pred_fallthru
        _
      // Predicated region
      $region53: #{inception_block_b.1} parent=11 // pred_check
        %p412 = pneg %p278
      $region54: #{inception_block_b.1} parent=11 // pred_check_branch
        %414 = sbr.rel (%p412) target = $region56
      $region55: #{inception_block_b.1} parent=11 // pred_region
        _
      $region56: #{inception_block_b.1} parent=11 // pred_fallthru
        _
      // Predicated region
      $region57: #{inception_block_b.1} parent=11 // pred_check
        %p415 = pneg %p299
      $region58: #{inception_block_b.1} parent=11 // pred_check_branch
        %417 = sbr.rel (%p415) target = $region60
      $region59: #{inception_block_b.1} parent=11 // pred_region
        _
      $region60: #{inception_block_b.1} parent=11 // pred_fallthru
        _
      // Predicated region
      $region61: #{inception_block_b.1} parent=11 // pred_check
        %p418 = pneg %p320
      $region62: #{inception_block_b.1} parent=11 // pred_check_branch
        %420 = sbr.rel (%p418) target = $region64
      $region63: #{inception_block_b.1} parent=11 // pred_region
        _
      $region64: #{inception_block_b.1} parent=11 // pred_fallthru
        _
      // Predicated region
      $region65: #{inception_block_b.1} parent=11 // pred_check
        %p421 = pneg %p341
      $region66: #{inception_block_b.1} parent=11 // pred_check_branch
        %423 = sbr.rel (%p421) target = $region68
      $region67: #{inception_block_b.1} parent=11 // pred_region
        _
      $region68: #{inception_block_b.1} parent=11 // pred_fallthru
        _
    $region12: #{inception_block_b.1} parent=5 // pred_fallthru
      _
    %p424 = scmp.lt.s32.totalorder %s21, 2
    // Predicated region
    $region69: #{inception_block_b.1} parent=5 // pred_check
      %p425 = pneg %p424
    $region70: #{inception_block_b.1} parent=5 // pred_check_branch
      %427 = sbr.rel (%p425) target = $region72
    $region71: #{inception_block_b.1} parent=5 // pred_region
      // Predicated region
      $region73: #{inception_block_b.1} parent=71 // pred_check
        %p428 = pneg %p41
      $region74: #{inception_block_b.1} parent=71 // pred_check_branch
        %430 = sbr.rel (%p428) target = $region76
      $region75: #{inception_block_b.1} parent=71 // pred_region
        %p431 = scmp.lt.s32.totalorder %s21, 1
        %s432 = scalar_select %p431, %s21, 1
        %s433 = smul.addr %s432, 32
        %s434 = smul.addr %s433, 8
        %s435 = scalar_lea.vmem %s0, %s434
      $region76: #{inception_block_b.1} parent=71 // pred_fallthru
        _
    $region72: #{inception_block_b.1} parent=5 // pred_fallthru
      _
    %p436 = scmp.le.s32.totalorder 1, %s21
    %p437 = scmp.lt.s32.totalorder %s21, 3
    %p438 = pnand %p436, %p437
    %p439 = pneg %p438
    // Predicated region
    $region77: #{inception_block_b.1} parent=5 // pred_check
      _
    $region78: #{inception_block_b.1} parent=5 // pred_check_branch
      %441 = sbr.rel (%p438) target = $region80
    $region79: #{inception_block_b.1} parent=5 // pred_region
      %s442 = ssub.s32 %s21, 1
      %p443 = scmp.lt.s32.totalorder %s26, 1
      %s444 = scalar_select %p443, %s26, 1
      %s445 = smul.addr %s444, 32
      %s446 = smul.addr %s445, 8
      %s447 = scalar_lea.vmem %s0, %s446
      %p448 = pneg %p47
      %p449 = pneg %p44
      %p450 = pneg %p68
      %p451 = pneg %p65
      %p452 = pneg %p89
      %p453 = pneg %p86
      %p454 = pneg %p110
      %p455 = pneg %p107
      %p456 = pneg %p131
      %p457 = pneg %p128
      %p458 = pneg %p152
      %p459 = pneg %p149
      %p460 = pneg %p173
      %p461 = pneg %p170
      %p462 = pneg %p194
      %p463 = pneg %p191
      %p464 = pneg %p215
      %p465 = pneg %p212
      %p466 = pneg %p236
      %p467 = pneg %p233
      %p468 = pneg %p257
      %p469 = pneg %p254
      %p470 = pneg %p278
      %p471 = pneg %p275
      %p472 = pneg %p299
      %p473 = pneg %p296
      %p474 = pneg %p320
      %p475 = pneg %p317
      %p476 = pneg %p341
      %p477 = pneg %p338
      %p478 = pneg %p367
      %p479 = pneg %p364
      %p480 = scmp.lt.s32.totalorder %s26, 1
      %s481 = scalar_select %p480, %s26, 1
      %s482 = smul.addr %s481, 7
      %s483 = smul.addr %s482, 8
      %s484 = scalar_lea.vmem %s15, %s483
      %p485 = scmp.lt.s32.totalorder %s26, 1
      %s486 = scalar_select %p485, %s26, 1
      %s487 = smul.addr %s486, 32
      %s488 = smul.addr %s487, 8
      %s489 = scalar_lea.vmem %s0, %s488
      %p490 = scmp.lt.s32.totalorder %s26, 1
      %s491 = scalar_select %p490, %s26, 1
      %s492 = smul.addr %s491, 7
      %s493 = smul.addr %s492, 8
      %s494 = scalar_lea.vmem %s15, %s493
      %v496 = vld [vmem:[%s489] sm:$0xff]
      %v497 = vld [vmem:[%s489 + $0x8] sm:$0xff]
      %v498 = vld [vmem:[%s489 + $0x10] sm:$0xff]
      %v499 = vld [vmem:[%s489 + $0x18] sm:$0xff]
      %v500 = vld [vmem:[%s489 + $0x20] sm:$0xff]
      %v501 = vld [vmem:[%s489 + $0x28] sm:$0xff]
      %v502 = vld [vmem:[%s489 + $0x30] sm:$0xff]
      %v503 = vld [vmem:[%s489 + $0x38] sm:$0xff]
      %v504 = vld [vmem:[%s489 + $0x40] sm:$0xff]
      %v505 = vld [vmem:[%s489 + $0x48] sm:$0xff]
      %v506 = vld [vmem:[%s489 + $0x50] sm:$0xff]
      %v507 = vld [vmem:[%s489 + $0x58] sm:$0xff]
      %v508 = vld [vmem:[%s489 + $0x60] sm:$0xff]
      %v509 = vld [vmem:[%s489 + $0x68] sm:$0xff]
      %v510 = vld [vmem:[%s489 + $0x70] sm:$0xff]
      %v511 = vld [vmem:[%s489 + $0x78] sm:$0xff]
      %v512 = vld [vmem:[%s489 + $0x80] sm:$0xff]
      %v513 = vld [vmem:[%s489 + $0x88] sm:$0xff]
      %v514 = vld [vmem:[%s489 + $0x90] sm:$0xff]
      %v515 = vld [vmem:[%s489 + $0x98] sm:$0xff]
      %v516 = vld [vmem:[%s489 + $0xa0] sm:$0xff]
      %v517 = vld [vmem:[%s489 + $0xa8] sm:$0xff]
      %v518 = vld [vmem:[%s489 + $0xb0] sm:$0xff]
      %v519 = vld [vmem:[%s489 + $0xb8] sm:$0xff]
      %v520 = vld [vmem:[%s489 + $0xc0] sm:$0xff]
      %v521 = vld [vmem:[%s489 + $0xc8] sm:$0xff]
      %v522 = vld [vmem:[%s489 + $0xd0] sm:$0xff]
      %v523 = vld [vmem:[%s489 + $0xd8] sm:$0xff]
      %v524 = vld [vmem:[%s489 + $0xe0] sm:$0xff]
      %v525 = vld [vmem:[%s489 + $0xe8] sm:$0xff]
      %v526 = vld [vmem:[%s489 + $0xf0] sm:$0xff]
      %v527 = vld [vmem:[%s489 + $0xf8] sm:$0xff]
      %v528 = vpack.c.bf16 %v497, %v496
      %v529 = vpack.c.bf16 %v499, %v498
      %v530 = vpack.c.bf16 %v501, %v500
      %v531 = vpack.c.bf16 %v503, %v502
      %v532 = vpack.c.bf16 %v505, %v504
      %v533 = vpack.c.bf16 %v507, %v506
      %v534 = vpack.c.bf16 %v509, %v508
      %v535 = vpack.c.bf16 %v511, %v510
      %v536 = vpack.c.bf16 %v513, %v512
      %v537 = vpack.c.bf16 %v515, %v514
      %v538 = vpack.c.bf16 %v517, %v516
      %v539 = vpack.c.bf16 %v519, %v518
      %v540 = vpack.c.bf16 %v521, %v520
      %v541 = vld [vmem:[%s1] sm:$0x3]
      %s542 = scalar_lea.vmem %s1, 2
      %v543 = vld [vmem:[%s542] sm:$0x3]
      %vm544 = vsmask.f32 7424
      %v546 = vshrl.u32 %v528, 16
      %v548 = vshll.u32 %v528, 16
      %v550 = vrot.slane %v548, 1
      %v551 = vor.u32 %v546, %v550
      %v553 = vshll.u32 %v529, 16
      %v555 = vrot.slane %v553, 1
      %v556 = vsel %vm544, %v551, %v555
      %v557 = vshrl.u32 %v529, 16
      %v559 = vor.u32 %v557, %v555
      %v561 = vshll.u32 %v530, 16
      %v563 = vrot.slane %v561, 1
      %v564 = vsel %vm544, %v559, %v563
      %v565 = vshrl.u32 %v530, 16
      %v567 = vor.u32 %v565, %v563
      %v569 = vshll.u32 %v531, 16
      %v571 = vrot.slane %v569, 1
      %v572 = vsel %vm544, %v567, %v571
      %v573 = vshrl.u32 %v531, 16
      %v575 = vor.u32 %v573, %v571
      %v577 = vshll.u32 %v532, 16
      %v579 = vrot.slane %v577, 1
      %v580 = vsel %vm544, %v575, %v579
      %v581 = vshrl.u32 %v532, 16
      %v583 = vor.u32 %v581, %v579
      %v585 = vshll.u32 %v533, 16
      %v587 = vrot.slane %v585, 1
      %v588 = vsel %vm544, %v583, %v587
      %v589 = vshrl.u32 %v533, 16
      %v591 = vor.u32 %v589, %v587
      %v593 = vshll.u32 %v534, 16
      %v595 = vrot.slane %v593, 1
      %v596 = vsel %vm544, %v591, %v595
      %v597 = vshrl.u32 %v534, 16
      %v599 = vor.u32 %v597, %v595
      %v601 = vshll.u32 %v535, 16
      %v603 = vrot.slane %v601, 1
      %v604 = vsel %vm544, %v599, %v603
      %v605 = vshrl.u32 %v535, 16
      %v607 = vor.u32 %v605, %v603
      %v609 = vshll.u32 %v536, 16
      %v611 = vrot.slane %v609, 1
      %v612 = vsel %vm544, %v607, %v611
      %v613 = vshrl.u32 %v536, 16
      %v615 = vor.u32 %v613, %v611
      %v617 = vshll.u32 %v537, 16
      %v619 = vrot.slane %v617, 1
      %v620 = vsel %vm544, %v615, %v619
      %v621 = vshrl.u32 %v537, 16
      %v623 = vor.u32 %v621, %v619
      %v625 = vshll.u32 %v538, 16
      %v627 = vrot.slane %v625, 1
      %v628 = vsel %vm544, %v623, %v627
      %v629 = vshrl.u32 %v538, 16
      %v631 = vor.u32 %v629, %v627
      %v633 = vshll.u32 %v539, 16
      %v635 = vrot.slane %v633, 1
      %v636 = vsel %vm544, %v631, %v635
      %v637 = vshrl.u32 %v539, 16
      %v639 = vor.u32 %v637, %v635
      %v641 = vshll.u32 %v540, 16
      %v643 = vrot.slane %v641, 1
      %v644 = vsel %vm544, %v639, %v643
      %v645 = vshrl.u32 %v540, 16
      %v647 = vor.u32 %v645, %v643
      %vm648 = vcmask 31744
      %v650 = vsel %vm648, %v556, 0
      %v653 = vsel %vm648, %v564, 0
      %v656 = vsel %vm648, %v572, 0
      %v659 = vsel %vm648, %v580, 0
      %v662 = vsel %vm648, %v588, 0
      %v665 = vsel %vm648, %v596, 0
      %v668 = vsel %vm648, %v604, 0
      %v671 = vsel %vm648, %v612, 0
      %v674 = vsel %vm648, %v620, 0
      %v677 = vsel %vm648, %v628, 0
      %v680 = vsel %vm648, %v636, 0
      %v683 = vsel %vm648, %v644, 0
      %v686 = vsel %vm648, %v647, 0
      %vm688 = vcmask 1041408
      %v690 = vsel %vm688, %v543, 0
      %692 = vmatprep.subr.bf16.mxu0 0
      %693 = vmatpush1.bf16.msra.mxu0 %v690
      %694 = vmatprep.subr.bf16.mxu0 0
      %695 = vmatpush1.bf16.msra.mxu0 0
      %696 = vmatprep.subr.bf16.mxu0 0
      %697 = vmatpush1.bf16.msra.mxu0 0
      %698 = vmatprep.subr.bf16.mxu0 0
      %699 = vmatpush1.bf16.msra.mxu0 0
      %700 = vmatprep.subr.bf16.mxu0 0
      %701 = vmatpush1.bf16.msra.mxu0 0
      %702 = vmatprep.subr.bf16.mxu0 0
      %703 = vmatpush1.bf16.msra.mxu0 0
      %704 = vmatprep.subr.bf16.mxu0 0
      %705 = vmatpush1.bf16.msra.mxu0 0
      %706 = vmatprep.subr.bf16.mxu0 0
      %707 = vmatpush1.bf16.msra.mxu0 0
      %708 = vmatprep.subr.bf16.mxu0 0
      %709 = vmatpush1.bf16.msra.mxu0 0
      %710 = vmatprep.subr.bf16.mxu0 0
      %711 = vmatpush1.bf16.msra.mxu0 0
      %712 = vmatprep.subr.bf16.mxu0 0
      %713 = vmatpush1.bf16.msra.mxu0 0
      %714 = vmatprep.subr.bf16.mxu0 0
      %715 = vmatpush1.bf16.msra.mxu0 0
      %716 = vmatprep.subr.bf16.mxu0 0
      %717 = vmatpush1.bf16.msra.mxu0 0
      %718 = vmatprep.subr.bf16.mxu0 0
      %719 = vmatpush1.bf16.msra.mxu0 0
      %720 = vmatprep.subr.bf16.mxu0 0
      %721 = vmatpush1.bf16.msra.mxu0 0
      %722 = vmatprep.subr.bf16.mxu0 0
      %723 = vmatpush1.bf16.msra.mxu0 0
      %724 = vmatprep.mubr.bf16.mxu0 0
      %725 = vmatmul.mubr.bf16.gmra.mrb[0].mxu0 %v650
      %v726 = vpop.f32.mrb[0].mxu0
      %v727 = vadd.f32 0.0, %v726
      %v728 = vpop.f32.mrb[0].mxu0
      %v729 = vpop.f32.mrb[0].mxu0
      %v730 = vadd.f32 0.0, %v729
      %v731 = vpop.f32.mrb[0].mxu0
      %732 = vmatprep.mubr.bf16.mxu0 0
      %733 = vmatmul.mubr.bf16.gmra.mrb[0].mxu0 %v653
      %v734 = vpop.f32.mrb[0].mxu0
      %v735 = vadd.f32 0.0, %v734
      %v736 = vpop.f32.mrb[0].mxu0
      %v737 = vpop.f32.mrb[0].mxu0
      %v738 = vadd.f32 0.0, %v737
      %v739 = vpop.f32.mrb[0].mxu0
      %740 = vmatprep.mubr.bf16.mxu0 0
      %741 = vmatmul.mubr.bf16.gmra.mrb[0].mxu0 %v656
      %v742 = vpop.f32.mrb[0].mxu0
      %v743 = vadd.f32 0.0, %v742
      %v744 = vpop.f32.mrb[0].mxu0
      %v745 = vpop.f32.mrb[0].mxu0
      %v746 = vadd.f32 0.0, %v745
      %v747 = vpop.f32.mrb[0].mxu0
      %748 = vmatprep.mubr.bf16.mxu0 0
      %749 = vmatmul.mubr.bf16.gmra.mrb[0].mxu0 %v659
      %v750 = vpop.f32.mrb[0].mxu0
      %v751 = vadd.f32 0.0, %v750
      %v752 = vpop.f32.mrb[0].mxu0
      %v753 = vpop.f32.mrb[0].mxu0
      %v754 = vadd.f32 0.0, %v753
      %v755 = vpop.f32.mrb[0].mxu0
      %756 = vmatprep.mubr.bf16.mxu0 0
      %757 = vmatmul.mubr.bf16.gmra.mrb[0].mxu0 %v662
      %v758 = vpop.f32.mrb[0].mxu0
      %v759 = vadd.f32 0.0, %v758
      %v760 = vpop.f32.mrb[0].mxu0
      %v761 = vpop.f32.mrb[0].mxu0
      %v762 = vadd.f32 0.0, %v761
      %v763 = vpop.f32.mrb[0].mxu0
      %764 = vmatprep.mubr.bf16.mxu0 0
      %765 = vmatmul.mubr.bf16.gmra.mrb[0].mxu0 %v665
      %v766 = vpop.f32.mrb[0].mxu0
      %v767 = vadd.f32 0.0, %v766
      %v768 = vpop.f32.mrb[0].mxu0
      %v769 = vpop.f32.mrb[0].mxu0
      %v770 = vadd.f32 0.0, %v769
      %v771 = vpop.f32.mrb[0].mxu0
      %772 = vmatprep.mubr.bf16.mxu0 0
      %773 = vmatmul.mubr.bf16.gmra.mrb[0].mxu0 %v668
      %v774 = vpop.f32.mrb[0].mxu0
      %v775 = vadd.f32 0.0, %v774
      %v776 = vpop.f32.mrb[0].mxu0
      %v777 = vpop.f32.mrb[0].mxu0
      %v778 = vadd.f32 0.0, %v777
      %v779 = vpop.f32.mrb[0].mxu0
      %780 = vmatprep.mubr.bf16.mxu0 0
      %781 = vmatmul.mubr.bf16.gmra.mrb[0].mxu0 %v671
      %v782 = vpop.f32.mrb[0].mxu0
      %v783 = vadd.f32 0.0, %v782
      %v784 = vpop.f32.mrb[0].mxu0
      %v785 = vpop.f32.mrb[0].mxu0
      %v786 = vadd.f32 0.0, %v785
      %v787 = vpop.f32.mrb[0].mxu0
      %788 = vmatprep.mubr.bf16.mxu0 0
      %789 = vmatmul.mubr.bf16.gmra.mrb[0].mxu0 %v674
      %v790 = vpop.f32.mrb[0].mxu0
      %v791 = vadd.f32 0.0, %v790
      %v792 = vpop.f32.mrb[0].mxu0
      %v793 = vpop.f32.mrb[0].mxu0
      %v794 = vadd.f32 0.0, %v793
      %v795 = vpop.f32.mrb[0].mxu0
      %796 = vmatprep.mubr.bf16.mxu0 0
      %797 = vmatmul.mubr.bf16.gmra.mrb[0].mxu0 %v677
      %v798 = vpop.f32.mrb[0].mxu0
      %v799 = vadd.f32 0.0, %v798
      %v800 = vpop.f32.mrb[0].mxu0
      %v801 = vpop.f32.mrb[0].mxu0
      %v802 = vadd.f32 0.0, %v801
      %v803 = vpop.f32.mrb[0].mxu0
      %804 = vmatprep.mubr.bf16.mxu0 0
      %805 = vmatmul.mubr.bf16.gmra.mrb[0].mxu0 %v680
      %v806 = vpop.f32.mrb[0].mxu0
      %v807 = vadd.f32 0.0, %v806
      %v808 = vpop.f32.mrb[0].mxu0
      %v809 = vpop.f32.mrb[0].mxu0
      %v810 = vadd.f32 0.0, %v809
      %v811 = vpop.f32.mrb[0].mxu0
      %812 = vmatprep.mubr.bf16.mxu0 0
      %813 = vmatmul.mubr.bf16.gmra.mrb[0].mxu0 %v683
      %v814 = vpop.f32.mrb[0].mxu0
      %v815 = vadd.f32 0.0, %v814
      %v816 = vpop.f32.mrb[0].mxu0
      %v817 = vpop.f32.mrb[0].mxu0
      %v818 = vadd.f32 0.0, %v817
      %v819 = vpop.f32.mrb[0].mxu0
      %820 = vmatprep.mubr.bf16.mxu0 0
      %821 = vmatmul.mubr.bf16.gmra.mrb[0].mxu0 %v686
      %v822 = vpop.f32.mrb[0].mxu0
      %v823 = vadd.f32 0.0, %v822
      %v824 = vpop.f32.mrb[0].mxu0
      %v825 = vpop.f32.mrb[0].mxu0
      %v826 = vadd.f32 0.0, %v825
      %v827 = vpop.f32.mrb[0].mxu0
      %828 = vdwg.mxu0
      %v829 = vsel %vm648, %v528, 0
      %v831 = vsel %vm648, %v529, 0
      %v833 = vsel %vm648, %v530, 0
      %v835 = vsel %vm648, %v531, 0
      %v837 = vsel %vm648, %v532, 0
      %v839 = vsel %vm648, %v533, 0
      %v841 = vsel %vm648, %v534, 0
      %v843 = vsel %vm648, %v535, 0
      %v845 = vsel %vm648, %v536, 0
      %v847 = vsel %vm648, %v537, 0
      %v849 = vsel %vm648, %v538, 0
      %v851 = vsel %vm648, %v539, 0
      %v853 = vsel %vm648, %v540, 0
      %v856 = vsel %vm688, %v541, 0
      %858 = vmatprep.subr.bf16.mxu0 0
      %859 = vmatpush1.bf16.msra.mxu0 %v856
      %860 = vmatprep.subr.bf16.mxu0 0
      %861 = vmatpush1.bf16.msra.mxu0 0
      %862 = vmatprep.subr.bf16.mxu0 0
      %863 = vmatpush1.bf16.msra.mxu0 0
      %864 = vmatprep.subr.bf16.mxu0 0
      %865 = vmatpush1.bf16.msra.mxu0 0
      %866 = vmatprep.subr.bf16.mxu0 0
      %867 = vmatpush1.bf16.msra.mxu0 0
      %868 = vmatprep.subr.bf16.mxu0 0
      %869 = vmatpush1.bf16.msra.mxu0 0
      %870 = vmatprep.subr.bf16.mxu0 0
      %871 = vmatpush1.bf16.msra.mxu0 0
      %872 = vmatprep.subr.bf16.mxu0 0
      %873 = vmatpush1.bf16.msra.mxu0 0
      %874 = vmatprep.subr.bf16.mxu0 0
      %875 = vmatpush1.bf16.msra.mxu0 0
      %876 = vmatprep.subr.bf16.mxu0 0
      %877 = vmatpush1.bf16.msra.mxu0 0
      %878 = vmatprep.subr.bf16.mxu0 0
      %879 = vmatpush1.bf16.msra.mxu0 0
      %880 = vmatprep.subr.bf16.mxu0 0
      %881 = vmatpush1.bf16.msra.mxu0 0
      %882 = vmatprep.subr.bf16.mxu0 0
      %883 = vmatpush1.bf16.msra.mxu0 0
      %884 = vmatprep.subr.bf16.mxu0 0
      %885 = vmatpush1.bf16.msra.mxu0 0
      %886 = vmatprep.subr.bf16.mxu0 0
      %887 = vmatpush1.bf16.msra.mxu0 0
      %888 = vmatprep.subr.bf16.mxu0 0
      %889 = vmatpush1.bf16.msra.mxu0 0
      %890 = vmatprep.mubr.bf16.mxu0 0
      %891 = vmatmul.mubr.bf16.gmra.mrb[0].mxu0 %v829
      %v892 = vpop.f32.mrb[0].mxu0
      %v893 = vadd.f32 %v727, %v892
      %v894 = vpop.f32.mrb[0].mxu0
      %v895 = vpop.f32.mrb[0].mxu0
      %v896 = vadd.f32 %v730, %v895
      %v897 = vpop.f32.mrb[0].mxu0
      %898 = vmatprep.mubr.bf16.mxu0 0
      %899 = vmatmul.mubr.bf16.gmra.mrb[0].mxu0 %v831
      %v900 = vpop.f32.mrb[0].mxu0
      %v901 = vadd.f32 %v735, %v900
      %v902 = vpop.f32.mrb[0].mxu0
      %v903 = vpop.f32.mrb[0].mxu0
      %v904 = vadd.f32 %v738, %v903
      %v905 = vpop.f32.mrb[0].mxu0
      %906 = vmatprep.mubr.bf16.mxu0 0
      %907 = vmatmul.mubr.bf16.gmra.mrb[0].mxu0 %v833
      %v908 = vpop.f32.mrb[0].mxu0
      %v909 = vadd.f32 %v743, %v908
      %v910 = vpop.f32.mrb[0].mxu0
      %v911 = vpop.f32.mrb[0].mxu0
      %v912 = vadd.f32 %v746, %v911
      %v913 = vpop.f32.mrb[0].mxu0
      %914 = vmatprep.mubr.bf16.mxu0 0
      %915 = vmatmul.mubr.bf16.gmra.mrb[0].mxu0 %v835
      %v916 = vpop.f32.mrb[0].mxu0
      %v917 = vadd.f32 %v751, %v916
      %v918 = vpop.f32.mrb[0].mxu0
      %v919 = vpop.f32.mrb[0].mxu0
      %v920 = vadd.f32 %v754, %v919
      %v921 = vpop.f32.mrb[0].mxu0
      %922 = vmatprep.mubr.bf16.mxu0 0
      %923 = vmatmul.mubr.bf16.gmra.mrb[0].mxu0 %v837
      %v924 = vpop.f32.mrb[0].mxu0
      %v925 = vadd.f32 %v759, %v924
      %v926 = vpop.f32.mrb[0].mxu0
      %v927 = vpop.f32.mrb[0].mxu0
      %v928 = vadd.f32 %v762, %v927
      %v929 = vpop.f32.mrb[0].mxu0
      %930 = vmatprep.mubr.bf16.mxu0 0
      %931 = vmatmul.mubr.bf16.gmra.mrb[0].mxu0 %v839
      %v932 = vpop.f32.mrb[0].mxu0
      %v933 = vadd.f32 %v767, %v932
      %v934 = vpop.f32.mrb[0].mxu0
      %v935 = vpop.f32.mrb[0].mxu0
      %v936 = vadd.f32 %v770, %v935
      %v937 = vpop.f32.mrb[0].mxu0
      %938 = vmatprep.mubr.bf16.mxu0 0
      %939 = vmatmul.mubr.bf16.gmra.mrb[0].mxu0 %v841
      %v940 = vpop.f32.mrb[0].mxu0
      %v941 = vadd.f32 %v775, %v940
      %v942 = vpop.f32.mrb[0].mxu0
      %v943 = vpop.f32.mrb[0].mxu0
      %v944 = vadd.f32 %v778, %v943
      %v945 = vpop.f32.mrb[0].mxu0
      %946 = vmatprep.mubr.bf16.mxu0 0
      %947 = vmatmul.mubr.bf16.gmra.mrb[0].mxu0 %v843
      %v948 = vpop.f32.mrb[0].mxu0
      %v949 = vadd.f32 %v783, %v948
      %v950 = vpop.f32.mrb[0].mxu0
      %v951 = vpop.f32.mrb[0].mxu0
      %v952 = vadd.f32 %v786, %v951
      %v953 = vpop.f32.mrb[0].mxu0
      %954 = vmatprep.mubr.bf16.mxu0 0
      %955 = vmatmul.mubr.bf16.gmra.mrb[0].mxu0 %v845
      %v956 = vpop.f32.mrb[0].mxu0
      %v957 = vadd.f32 %v791, %v956
      %v958 = vpop.f32.mrb[0].mxu0
      %v959 = vpop.f32.mrb[0].mxu0
      %v960 = vadd.f32 %v794, %v959
      %v961 = vpop.f32.mrb[0].mxu0
      %962 = vmatprep.mubr.bf16.mxu0 0
      %963 = vmatmul.mubr.bf16.gmra.mrb[0].mxu0 %v847
      %v964 = vpop.f32.mrb[0].mxu0
      %v965 = vadd.f32 %v799, %v964
      %v966 = vpop.f32.mrb[0].mxu0
      %v967 = vpop.f32.mrb[0].mxu0
      %v968 = vadd.f32 %v802, %v967
      %v969 = vpop.f32.mrb[0].mxu0
      %970 = vmatprep.mubr.bf16.mxu0 0
      %971 = vmatmul.mubr.bf16.gmra.mrb[0].mxu0 %v849
      %v972 = vpop.f32.mrb[0].mxu0
      %v973 = vadd.f32 %v807, %v972
      %v974 = vpop.f32.mrb[0].mxu0
      %v975 = vpop.f32.mrb[0].mxu0
      %v976 = vadd.f32 %v810, %v975
      %v977 = vpop.f32.mrb[0].mxu0
      %978 = vmatprep.mubr.bf16.mxu0 0
      %979 = vmatmul.mubr.bf16.gmra.mrb[0].mxu0 %v851
      %v980 = vpop.f32.mrb[0].mxu0
      %v981 = vadd.f32 %v815, %v980
      %v982 = vpop.f32.mrb[0].mxu0
      %v983 = vpop.f32.mrb[0].mxu0
      %v984 = vadd.f32 %v818, %v983
      %v985 = vpop.f32.mrb[0].mxu0
      %986 = vmatprep.mubr.bf16.mxu0 0
      %987 = vmatmul.mubr.bf16.gmra.mrb[0].mxu0 %v853
      %v988 = vpop.f32.mrb[0].mxu0
      %v989 = vadd.f32 %v823, %v988
      %v990 = vpop.f32.mrb[0].mxu0
      %v991 = vpop.f32.mrb[0].mxu0
      %v992 = vadd.f32 %v826, %v991
      %v993 = vpop.f32.mrb[0].mxu0
      %994 = vdwg.mxu0
      %s995 = scalar_lea.vmem %s1, 4
      %v996 = vld [vmem:[%s995] sm:$0x3]
      %vm1010 = vcmask 1046528
      %v1011 = vrot.slane %v528, 1
      %v1012 = vrot.slane %v529, 1
      %v1013 = vsel %vm1010, %v1011, %v1012
      %v1014 = vrot.slane %v530, 1
      %v1015 = vsel %vm1010, %v1012, %v1014
      %v1016 = vrot.slane %v531, 1
      %v1017 = vsel %vm1010, %v1014, %v1016
      %v1018 = vrot.slane %v532, 1
      %v1019 = vsel %vm1010, %v1016, %v1018
      %v1020 = vrot.slane %v533, 1
      %v1021 = vsel %vm1010, %v1018, %v1020
      %v1022 = vrot.slane %v534, 1
      %v1023 = vsel %vm1010, %v1020, %v1022
      %v1024 = vrot.slane %v535, 1
      %v1025 = vsel %vm1010, %v1022, %v1024
      %v1026 = vrot.slane %v536, 1
      %v1027 = vsel %vm1010, %v1024, %v1026
      %v1028 = vrot.slane %v537, 1
      %v1029 = vsel %vm1010, %v1026, %v1028
      %v1030 = vrot.slane %v538, 1
      %v1031 = vsel %vm1010, %v1028, %v1030
      %v1032 = vrot.slane %v539, 1
      %v1033 = vsel %vm1010, %v1030, %v1032
      %v1034 = vrot.slane %v540, 1
      %v1035 = vsel %vm1010, %v1032, %v1034
      %v1037 = vsel %vm648, %v1013, 0
      %v1040 = vsel %vm648, %v1015, 0
      %v1043 = vsel %vm648, %v1017, 0
      %v1046 = vsel %vm648, %v1019, 0
      %v1049 = vsel %vm648, %v1021, 0
      %v1052 = vsel %vm648, %v1023, 0
      %v1055 = vsel %vm648, %v1025, 0
      %v1058 = vsel %vm648, %v1027, 0
      %v1061 = vsel %vm648, %v1029, 0
      %v1064 = vsel %vm648, %v1031, 0
      %v1067 = vsel %vm648, %v1033, 0
      %v1070 = vsel %vm648, %v1035, 0
      %v1073 = vsel %vm648, %v1034, 0
      %v1076 = vsel %vm688, %v996, 0
      %1078 = vmatprep.subr.bf16.mxu0 0
      %1079 = vmatpush1.bf16.msra.mxu0 %v1076
      %1080 = vmatprep.subr.bf16.mxu0 0
      %1081 = vmatpush1.bf16.msra.mxu0 0
      %1082 = vmatprep.subr.bf16.mxu0 0
      %1083 = vmatpush1.bf16.msra.mxu0 0
      %1084 = vmatprep.subr.bf16.mxu0 0
      %1085 = vmatpush1.bf16.msra.mxu0 0
      %1086 = vmatprep.subr.bf16.mxu0 0
      %1087 = vmatpush1.bf16.msra.mxu0 0
      %1088 = vmatprep.subr.bf16.mxu0 0
      %1089 = vmatpush1.bf16.msra.mxu0 0
      %1090 = vmatprep.subr.bf16.mxu0 0
      %1091 = vmatpush1.bf16.msra.mxu0 0
      %1092 = vmatprep.subr.bf16.mxu0 0
      %1093 = vmatpush1.bf16.msra.mxu0 0
      %1094 = vmatprep.subr.bf16.mxu0 0
      %1095 = vmatpush1.bf16.msra.mxu0 0
      %1096 = vmatprep.subr.bf16.mxu0 0
      %1097 = vmatpush1.bf16.msra.mxu0 0
      %1098 = vmatprep.subr.bf16.mxu0 0
      %1099 = vmatpush1.bf16.msra.mxu0 0
      %1100 = vmatprep.subr.bf16.mxu0 0
      %1101 = vmatpush1.bf16.msra.mxu0 0
      %1102 = vmatprep.subr.bf16.mxu0 0
      %1103 = vmatpush1.bf16.msra.mxu0 0
      %1104 = vmatprep.subr.bf16.mxu0 0
      %1105 = vmatpush1.bf16.msra.mxu0 0
      %1106 = vmatprep.subr.bf16.mxu0 0
      %1107 = vmatpush1.bf16.msra.mxu0 0
      %1108 = vmatprep.subr.bf16.mxu0 0
      %1109 = vmatpush1.bf16.msra.mxu0 0
      %1110 = vmatprep.mubr.bf16.mxu0 0
      %1111 = vmatmul.mubr.bf16.gmra.mrb[0].mxu0 %v1037
      %v1112 = vpop.f32.mrb[0].mxu0
      %v1113 = vadd.f32 0.0, %v1112
      %v1114 = vpop.f32.mrb[0].mxu0
      %v1115 = vpop.f32.mrb[0].mxu0
      %v1116 = vadd.f32 0.0, %v1115
      %v1117 = vpop.f32.mrb[0].mxu0
      %1118 = vmatprep.mubr.bf16.mxu0 0
      %1119 = vmatmul.mubr.bf16.gmra.mrb[0].mxu0 %v1040
      %v1120 = vpop.f32.mrb[0].mxu0
      %v1121 = vadd.f32 0.0, %v1120
      %v1122 = vpop.f32.mrb[0].mxu0
      %v1123 = vpop.f32.mrb[0].mxu0
      %v1124 = vadd.f32 0.0, %v1123
      %v1125 = vpop.f32.mrb[0].mxu0
      %1126 = vmatprep.mubr.bf16.mxu0 0
      %1127 = vmatmul.mubr.bf16.gmra.mrb[0].mxu0 %v1043
      %v1128 = vpop.f32.mrb[0].mxu0
      %v1129 = vadd.f32 0.0, %v1128
      %v1130 = vpop.f32.mrb[0].mxu0
      %v1131 = vpop.f32.mrb[0].mxu0
      %v1132 = vadd.f32 0.0, %v1131
      %v1133 = vpop.f32.mrb[0].mxu0
      %1134 = vmatprep.mubr.bf16.mxu0 0
      %1135 = vmatmul.mubr.bf16.gmra.mrb[0].mxu0 %v1046
      %v1136 = vpop.f32.mrb[0].mxu0
      %v1137 = vadd.f32 0.0, %v1136
      %v1138 = vpop.f32.mrb[0].mxu0
      %v1139 = vpop.f32.mrb[0].mxu0
      %v1140 = vadd.f32 0.0, %v1139
      %v1141 = vpop.f32.mrb[0].mxu0
      %1142 = vmatprep.mubr.bf16.mxu0 0
      %1143 = vmatmul.mubr.bf16.gmra.mrb[0].mxu0 %v1049
      %v1144 = vpop.f32.mrb[0].mxu0
      %v1145 = vadd.f32 0.0, %v1144
      %v1146 = vpop.f32.mrb[0].mxu0
      %v1147 = vpop.f32.mrb[0].mxu0
      %v1148 = vadd.f32 0.0, %v1147
      %v1149 = vpop.f32.mrb[0].mxu0
      %1150 = vmatprep.mubr.bf16.mxu0 0
      %1151 = vmatmul.mubr.bf16.gmra.mrb[0].mxu0 %v1052
      %v1152 = vpop.f32.mrb[0].mxu0
      %v1153 = vadd.f32 0.0, %v1152
      %v1154 = vpop.f32.mrb[0].mxu0
      %v1155 = vpop.f32.mrb[0].mxu0
      %v1156 = vadd.f32 0.0, %v1155
      %v1157 = vpop.f32.mrb[0].mxu0
      %1158 = vmatprep.mubr.bf16.mxu0 0
      %1159 = vmatmul.mubr.bf16.gmra.mrb[0].mxu0 %v1055
      %v1160 = vpop.f32.mrb[0].mxu0
      %v1161 = vadd.f32 0.0, %v1160
      %v1162 = vpop.f32.mrb[0].mxu0
      %v1163 = vpop.f32.mrb[0].mxu0
      %v1164 = vadd.f32 0.0, %v1163
      %v1165 = vpop.f32.mrb[0].mxu0
      %1166 = vmatprep.mubr.bf16.mxu0 0
      %1167 = vmatmul.mubr.bf16.gmra.mrb[0].mxu0 %v1058
      %v1168 = vpop.f32.mrb[0].mxu0
      %v1169 = vadd.f32 0.0, %v1168
      %v1170 = vpop.f32.mrb[0].mxu0
      %v1171 = vpop.f32.mrb[0].mxu0
      %v1172 = vadd.f32 0.0, %v1171
      %v1173 = vpop.f32.mrb[0].mxu0
      %1174 = vmatprep.mubr.bf16.mxu0 0
      %1175 = vmatmul.mubr.bf16.gmra.mrb[0].mxu0 %v1061
      %v1176 = vpop.f32.mrb[0].mxu0
      %v1177 = vadd.f32 0.0, %v1176
      %v1178 = vpop.f32.mrb[0].mxu0
      %v1179 = vpop.f32.mrb[0].mxu0
      %v1180 = vadd.f32 0.0, %v1179
      %v1181 = vpop.f32.mrb[0].mxu0
      %1182 = vmatprep.mubr.bf16.mxu0 0
      %1183 = vmatmul.mubr.bf16.gmra.mrb[0].mxu0 %v1064
      %v1184 = vpop.f32.mrb[0].mxu0
      %v1185 = vadd.f32 0.0, %v1184
      %v1186 = vpop.f32.mrb[0].mxu0
      %v1187 = vpop.f32.mrb[0].mxu0
      %v1188 = vadd.f32 0.0, %v1187
      %v1189 = vpop.f32.mrb[0].mxu0
      %1190 = vmatprep.mubr.bf16.mxu0 0
      %1191 = vmatmul.mubr.bf16.gmra.mrb[0].mxu0 %v1067
      %v1192 = vpop.f32.mrb[0].mxu0
      %v1193 = vadd.f32 0.0, %v1192
      %v1194 = vpop.f32.mrb[0].mxu0
      %v1195 = vpop.f32.mrb[0].mxu0
      %v1196 = vadd.f32 0.0, %v1195
      %v1197 = vpop.f32.mrb[0].mxu0
      %1198 = vmatprep.mubr.bf16.mxu0 0
      %1199 = vmatmul.mubr.bf16.gmra.mrb[0].mxu0 %v1070
      %v1200 = vpop.f32.mrb[0].mxu0
      %v1201 = vadd.f32 0.0, %v1200
      %v1202 = vpop.f32.mrb[0].mxu0
      %v1203 = vpop.f32.mrb[0].mxu0
      %v1204 = vadd.f32 0.0, %v1203
      %v1205 = vpop.f32.mrb[0].mxu0
      %1206 = vmatprep.mubr.bf16.mxu0 0
      %1207 = vmatmul.mubr.bf16.gmra.mrb[0].mxu0 %v1073
      %v1208 = vpop.f32.mrb[0].mxu0
      %v1209 = vadd.f32 0.0, %v1208
      %v1210 = vpop.f32.mrb[0].mxu0
      %v1211 = vpop.f32.mrb[0].mxu0
      %v1212 = vadd.f32 0.0, %v1211
      %v1213 = vpop.f32.mrb[0].mxu0
      %1214 = vdwg.mxu0
      %v1215 = vadd.f32 %v893, %v1113
      %v1216 = vadd.f32 %v896, %v1116
      %v1217 = vadd.f32 %v901, %v1121
      %v1218 = vadd.f32 %v904, %v1124
      %v1219 = vadd.f32 %v909, %v1129
      %v1220 = vadd.f32 %v912, %v1132
      %v1221 = vadd.f32 %v917, %v1137
      %v1222 = vadd.f32 %v920, %v1140
      %v1223 = vadd.f32 %v925, %v1145
      %v1224 = vadd.f32 %v928, %v1148
      %v1225 = vadd.f32 %v933, %v1153
      %v1226 = vadd.f32 %v936, %v1156
      %v1227 = vadd.f32 %v941, %v1161
      %v1228 = vadd.f32 %v944, %v1164
      %v1229 = vadd.f32 %v949, %v1169
      %v1230 = vadd.f32 %v952, %v1172
      %v1231 = vadd.f32 %v957, %v1177
      %v1232 = vadd.f32 %v960, %v1180
      %v1233 = vadd.f32 %v965, %v1185
      %v1234 = vadd.f32 %v968, %v1188
      %v1235 = vadd.f32 %v973, %v1193
      %v1236 = vadd.f32 %v976, %v1196
      %v1237 = vadd.f32 %v981, %v1201
      %v1238 = vadd.f32 %v984, %v1204
      %v1239 = vadd.f32 %v989, %v1209
      %v1240 = vadd.f32 %v992, %v1212
      %v1241 = vpack.c.bf16 %v523, %v522
      %s1242 = scalar_lea.vmem %s1, 6
      %v1243 = vld [vmem:[%s1242] sm:$0x3]
      %v1245 = vsel %vm648, %v1241, 0
      %v1248 = vsel %vm688, %v1243, 0
      %1250 = vmatprep.subr.bf16.mxu0 0
      %1251 = vmatpush1.bf16.msra.mxu0 %v1248
      %1252 = vmatprep.subr.bf16.mxu0 0
      %1253 = vmatpush1.bf16.msra.mxu0 0
      %1254 = vmatprep.subr.bf16.mxu0 0
      %1255 = vmatpush1.bf16.msra.mxu0 0
      %1256 = vmatprep.subr.bf16.mxu0 0
      %1257 = vmatpush1.bf16.msra.mxu0 0
      %1258 = vmatprep.subr.bf16.mxu0 0
      %1259 = vmatpush1.bf16.msra.mxu0 0
      %1260 = vmatprep.subr.bf16.mxu0 0
      %1261 = vmatpush1.bf16.msra.mxu0 0
      %1262 = vmatprep.subr.bf16.mxu0 0
      %1263 = vmatpush1.bf16.msra.mxu0 0
      %1264 = vmatprep.subr.bf16.mxu0 0
      %1265 = vmatpush1.bf16.msra.mxu0 0
      %1266 = vmatprep.subr.bf16.mxu0 0
      %1267 = vmatpush1.bf16.msra.mxu0 0
      %1268 = vmatprep.subr.bf16.mxu0 0
      %1269 = vmatpush1.bf16.msra.mxu0 0
      %1270 = vmatprep.subr.bf16.mxu0 0
      %1271 = vmatpush1.bf16.msra.mxu0 0
      %1272 = vmatprep.subr.bf16.mxu0 0
      %1273 = vmatpush1.bf16.msra.mxu0 0
      %1274 = vmatprep.subr.bf16.mxu0 0
      %1275 = vmatpush1.bf16.msra.mxu0 0
      %1276 = vmatprep.subr.bf16.mxu0 0
      %1277 = vmatpush1.bf16.msra.mxu0 0
      %1278 = vmatprep.subr.bf16.mxu0 0
      %1279 = vmatpush1.bf16.msra.mxu0 0
      %1280 = vmatprep.subr.bf16.mxu0 0
      %1281 = vmatpush1.bf16.msra.mxu0 0
      %1282 = vmatprep.mubr.bf16.mxu0 0
      %1283 = vmatmul.mubr.bf16.gmra.mrb[0].mxu0 %v831
      %v1284 = vpop.f32.mrb[0].mxu0
      %v1285 = vadd.f32 0.0, %v1284
      %v1286 = vpop.f32.mrb[0].mxu0
      %v1287 = vpop.f32.mrb[0].mxu0
      %v1288 = vadd.f32 0.0, %v1287
      %v1289 = vpop.f32.mrb[0].mxu0
      %1290 = vmatprep.mubr.bf16.mxu0 0
      %1291 = vmatmul.mubr.bf16.gmra.mrb[0].mxu0 %v833
      %v1292 = vpop.f32.mrb[0].mxu0
      %v1293 = vadd.f32 0.0, %v1292
      %v1294 = vpop.f32.mrb[0].mxu0
      %v1295 = vpop.f32.mrb[0].mxu0
      %v1296 = vadd.f32 0.0, %v1295
      %v1297 = vpop.f32.mrb[0].mxu0
      %1298 = vmatprep.mubr.bf16.mxu0 0
      %1299 = vmatmul.mubr.bf16.gmra.mrb[0].mxu0 %v835
      %v1300 = vpop.f32.mrb[0].mxu0
      %v1301 = vadd.f32 0.0, %v1300
      %v1302 = vpop.f32.mrb[0].mxu0
      %v1303 = vpop.f32.mrb[0].mxu0
      %v1304 = vadd.f32 0.0, %v1303
      %v1305 = vpop.f32.mrb[0].mxu0
      %1306 = vmatprep.mubr.bf16.mxu0 0
      %1307 = vmatmul.mubr.bf16.gmra.mrb[0].mxu0 %v837
      %v1308 = vpop.f32.mrb[0].mxu0
      %v1309 = vadd.f32 0.0, %v1308
      %v1310 = vpop.f32.mrb[0].mxu0
      %v1311 = vpop.f32.mrb[0].mxu0
      %v1312 = vadd.f32 0.0, %v1311
      %v1313 = vpop.f32.mrb[0].mxu0
      %1314 = vmatprep.mubr.bf16.mxu0 0
      %1315 = vmatmul.mubr.bf16.gmra.mrb[0].mxu0 %v839
      %v1316 = vpop.f32.mrb[0].mxu0
      %v1317 = vadd.f32 0.0, %v1316
      %v1318 = vpop.f32.mrb[0].mxu0
      %v1319 = vpop.f32.mrb[0].mxu0
      %v1320 = vadd.f32 0.0, %v1319
      %v1321 = vpop.f32.mrb[0].mxu0
      %1322 = vmatprep.mubr.bf16.mxu0 0
      %1323 = vmatmul.mubr.bf16.gmra.mrb[0].mxu0 %v841
      %v1324 = vpop.f32.mrb[0].mxu0
      %v1325 = vadd.f32 0.0, %v1324
      %v1326 = vpop.f32.mrb[0].mxu0
      %v1327 = vpop.f32.mrb[0].mxu0
      %v1328 = vadd.f32 0.0, %v1327
      %v1329 = vpop.f32.mrb[0].mxu0
      %1330 = vmatprep.mubr.bf16.mxu0 0
      %1331 = vmatmul.mubr.bf16.gmra.mrb[0].mxu0 %v843
      %v1332 = vpop.f32.mrb[0].mxu0
      %v1333 = vadd.f32 0.0, %v1332
      %v1334 = vpop.f32.mrb[0].mxu0
      %v1335 = vpop.f32.mrb[0].mxu0
      %v1336 = vadd.f32 0.0, %v1335
      %v1337 = vpop.f32.mrb[0].mxu0
      %1338 = vmatprep.mubr.bf16.mxu0 0
      %1339 = vmatmul.mubr.bf16.gmra.mrb[0].mxu0 %v845
      %v1340 = vpop.f32.mrb[0].mxu0
      %v1341 = vadd.f32 0.0, %v1340
      %v1342 = vpop.f32.mrb[0].mxu0
      %v1343 = vpop.f32.mrb[0].mxu0
      %v1344 = vadd.f32 0.0, %v1343
      %v1345 = vpop.f32.mrb[0].mxu0
      %1346 = vmatprep.mubr.bf16.mxu0 0
      %1347 = vmatmul.mubr.bf16.gmra.mrb[0].mxu0 %v847
      %v1348 = vpop.f32.mrb[0].mxu0
      %v1349 = vadd.f32 0.0, %v1348
      %v1350 = vpop.f32.mrb[0].mxu0
      %v1351 = vpop.f32.mrb[0].mxu0
      %v1352 = vadd.f32 0.0, %v1351
      %v1353 = vpop.f32.mrb[0].mxu0
      %1354 = vmatprep.mubr.bf16.mxu0 0
      %1355 = vmatmul.mubr.bf16.gmra.mrb[0].mxu0 %v849
      %v1356 = vpop.f32.mrb[0].mxu0
      %v1357 = vadd.f32 0.0, %v1356
      %v1358 = vpop.f32.mrb[0].mxu0
      %v1359 = vpop.f32.mrb[0].mxu0
      %v1360 = vadd.f32 0.0, %v1359
      %v1361 = vpop.f32.mrb[0].mxu0
      %1362 = vmatprep.mubr.bf16.mxu0 0
      %1363 = vmatmul.mubr.bf16.gmra.mrb[0].mxu0 %v851
      %v1364 = vpop.f32.mrb[0].mxu0
      %v1365 = vadd.f32 0.0, %v1364
      %v1366 = vpop.f32.mrb[0].mxu0
      %v1367 = vpop.f32.mrb[0].mxu0
      %v1368 = vadd.f32 0.0, %v1367
      %v1369 = vpop.f32.mrb[0].mxu0
      %1370 = vmatprep.mubr.bf16.mxu0 0
      %1371 = vmatmul.mubr.bf16.gmra.mrb[0].mxu0 %v853
      %v1372 = vpop.f32.mrb[0].mxu0
      %v1373 = vadd.f32 0.0, %v1372
      %v1374 = vpop.f32.mrb[0].mxu0
      %v1375 = vpop.f32.mrb[0].mxu0
      %v1376 = vadd.f32 0.0, %v1375
      %v1377 = vpop.f32.mrb[0].mxu0
      %1378 = vmatprep.mubr.bf16.mxu0 0
      %1379 = vmatmul.mubr.bf16.gmra.mrb[0].mxu0 %v1245
      %v1380 = vpop.f32.mrb[0].mxu0
      %v1381 = vadd.f32 0.0, %v1380
      %v1382 = vpop.f32.mrb[0].mxu0
      %v1383 = vpop.f32.mrb[0].mxu0
      %v1384 = vadd.f32 0.0, %v1383
      %v1385 = vpop.f32.mrb[0].mxu0
      %1386 = vdwg.mxu0
      %v1387 = vadd.f32 %v1215, %v1285
      %v1388 = vadd.f32 %v1216, %v1288
      %v1389 = vadd.f32 %v1217, %v1293
      %v1390 = vadd.f32 %v1218, %v1296
      %v1391 = vadd.f32 %v1219, %v1301
      %v1392 = vadd.f32 %v1220, %v1304
      %v1393 = vadd.f32 %v1221, %v1309
      %v1394 = vadd.f32 %v1222, %v1312
      %v1395 = vadd.f32 %v1223, %v1317
      %v1396 = vadd.f32 %v1224, %v1320
      %v1397 = vadd.f32 %v1225, %v1325
      %v1398 = vadd.f32 %v1226, %v1328
      %v1399 = vadd.f32 %v1227, %v1333
      %v1400 = vadd.f32 %v1228, %v1336
      %v1401 = vadd.f32 %v1229, %v1341
      %v1402 = vadd.f32 %v1230, %v1344
      %v1403 = vadd.f32 %v1231, %v1349
      %v1404 = vadd.f32 %v1232, %v1352
      %v1405 = vadd.f32 %v1233, %v1357
      %v1406 = vadd.f32 %v1234, %v1360
      %v1407 = vadd.f32 %v1235, %v1365
      %v1408 = vadd.f32 %v1236, %v1368
      %v1409 = vadd.f32 %v1237, %v1373
      %v1410 = vadd.f32 %v1238, %v1376
      %v1411 = vadd.f32 %v1239, %v1381
      %v1412 = vadd.f32 %v1240, %v1384
      %s1413 = scalar_lea.vmem %s1, 8
      %v1414 = vld [vmem:[%s1413] sm:$0x3]
      %v1415 = vshll.u32 %v1241, 16
      %v1417 = vrot.slane %v1415, 1
      %v1418 = vsel %vm544, %v647, %v1417
      %v1419 = vshrl.u32 %v1241, 16
      %v1421 = vor.u32 %v1419, %v1417
      %v1423 = vsel %vm648, %v1418, 0
      %v1426 = vsel %vm648, %v1421, 0
      %v1429 = vsel %vm688, %v1414, 0
      %1431 = vmatprep.subr.bf16.mxu0 0
      %1432 = vmatpush1.bf16.msra.mxu0 %v1429
      %1433 = vmatprep.subr.bf16.mxu0 0
      %1434 = vmatpush1.bf16.msra.mxu0 0
      %1435 = vmatprep.subr.bf16.mxu0 0
      %1436 = vmatpush1.bf16.msra.mxu0 0
      %1437 = vmatprep.subr.bf16.mxu0 0
      %1438 = vmatpush1.bf16.msra.mxu0 0
      %1439 = vmatprep.subr.bf16.mxu0 0
      %1440 = vmatpush1.bf16.msra.mxu0 0
      %1441 = vmatprep.subr.bf16.mxu0 0
      %1442 = vmatpush1.bf16.msra.mxu0 0
      %1443 = vmatprep.subr.bf16.mxu0 0
      %1444 = vmatpush1.bf16.msra.mxu0 0
      %1445 = vmatprep.subr.bf16.mxu0 0
      %1446 = vmatpush1.bf16.msra.mxu0 0
      %1447 = vmatprep.subr.bf16.mxu0 0
      %1448 = vmatpush1.bf16.msra.mxu0 0
      %1449 = vmatprep.subr.bf16.mxu0 0
      %1450 = vmatpush1.bf16.msra.mxu0 0
      %1451 = vmatprep.subr.bf16.mxu0 0
      %1452 = vmatpush1.bf16.msra.mxu0 0
      %1453 = vmatprep.subr.bf16.mxu0 0
      %1454 = vmatpush1.bf16.msra.mxu0 0
      %1455 = vmatprep.subr.bf16.mxu0 0
      %1456 = vmatpush1.bf16.msra.mxu0 0
      %1457 = vmatprep.subr.bf16.mxu0 0
      %1458 = vmatpush1.bf16.msra.mxu0 0
      %1459 = vmatprep.subr.bf16.mxu0 0
      %1460 = vmatpush1.bf16.msra.mxu0 0
      %1461 = vmatprep.subr.bf16.mxu0 0
      %1462 = vmatpush1.bf16.msra.mxu0 0
      %1463 = vmatprep.mubr.bf16.mxu0 0
      %1464 = vmatmul.mubr.bf16.gmra.mrb[0].mxu0 %v653
      %v1465 = vpop.f32.mrb[0].mxu0
      %v1466 = vadd.f32 0.0, %v1465
      %v1467 = vpop.f32.mrb[0].mxu0
      %v1468 = vpop.f32.mrb[0].mxu0
      %v1469 = vadd.f32 0.0, %v1468
      %v1470 = vpop.f32.mrb[0].mxu0
      %1471 = vmatprep.mubr.bf16.mxu0 0
      %1472 = vmatmul.mubr.bf16.gmra.mrb[0].mxu0 %v656
      %v1473 = vpop.f32.mrb[0].mxu0
      %v1474 = vadd.f32 0.0, %v1473
      %v1475 = vpop.f32.mrb[0].mxu0
      %v1476 = vpop.f32.mrb[0].mxu0
      %v1477 = vadd.f32 0.0, %v1476
      %v1478 = vpop.f32.mrb[0].mxu0
      %1479 = vmatprep.mubr.bf16.mxu0 0
      %1480 = vmatmul.mubr.bf16.gmra.mrb[0].mxu0 %v659
      %v1481 = vpop.f32.mrb[0].mxu0
      %v1482 = vadd.f32 0.0, %v1481
      %v1483 = vpop.f32.mrb[0].mxu0
      %v1484 = vpop.f32.mrb[0].mxu0
      %v1485 = vadd.f32 0.0, %v1484
      %v1486 = vpop.f32.mrb[0].mxu0
      %1487 = vmatprep.mubr.bf16.mxu0 0
      %1488 = vmatmul.mubr.bf16.gmra.mrb[0].mxu0 %v662
      %v1489 = vpop.f32.mrb[0].mxu0
      %v1490 = vadd.f32 0.0, %v1489
      %v1491 = vpop.f32.mrb[0].mxu0
      %v1492 = vpop.f32.mrb[0].mxu0
      %v1493 = vadd.f32 0.0, %v1492
      %v1494 = vpop.f32.mrb[0].mxu0
      %1495 = vmatprep.mubr.bf16.mxu0 0
      %1496 = vmatmul.mubr.bf16.gmra.mrb[0].mxu0 %v665
      %v1497 = vpop.f32.mrb[0].mxu0
      %v1498 = vadd.f32 0.0, %v1497
      %v1499 = vpop.f32.mrb[0].mxu0
      %v1500 = vpop.f32.mrb[0].mxu0
      %v1501 = vadd.f32 0.0, %v1500
      %v1502 = vpop.f32.mrb[0].mxu0
      %1503 = vmatprep.mubr.bf16.mxu0 0
      %1504 = vmatmul.mubr.bf16.gmra.mrb[0].mxu0 %v668
      %v1505 = vpop.f32.mrb[0].mxu0
      %v1506 = vadd.f32 0.0, %v1505
      %v1507 = vpop.f32.mrb[0].mxu0
      %v1508 = vpop.f32.mrb[0].mxu0
      %v1509 = vadd.f32 0.0, %v1508
      %v1510 = vpop.f32.mrb[0].mxu0
      %1511 = vmatprep.mubr.bf16.mxu0 0
      %1512 = vmatmul.mubr.bf16.gmra.mrb[0].mxu0 %v671
      %v1513 = vpop.f32.mrb[0].mxu0
      %v1514 = vadd.f32 0.0, %v1513
      %v1515 = vpop.f32.mrb[0].mxu0
      %v1516 = vpop.f32.mrb[0].mxu0
      %v1517 = vadd.f32 0.0, %v1516
      %v1518 = vpop.f32.mrb[0].mxu0
      %1519 = vmatprep.mubr.bf16.mxu0 0
      %1520 = vmatmul.mubr.bf16.gmra.mrb[0].mxu0 %v674
      %v1521 = vpop.f32.mrb[0].mxu0
      %v1522 = vadd.f32 0.0, %v1521
      %v1523 = vpop.f32.mrb[0].mxu0
      %v1524 = vpop.f32.mrb[0].mxu0
      %v1525 = vadd.f32 0.0, %v1524
      %v1526 = vpop.f32.mrb[0].mxu0
      %1527 = vmatprep.mubr.bf16.mxu0 0
      %1528 = vmatmul.mubr.bf16.gmra.mrb[0].mxu0 %v677
      %v1529 = vpop.f32.mrb[0].mxu0
      %v1530 = vadd.f32 0.0, %v1529
      %v1531 = vpop.f32.mrb[0].mxu0
      %v1532 = vpop.f32.mrb[0].mxu0
      %v1533 = vadd.f32 0.0, %v1532
      %v1534 = vpop.f32.mrb[0].mxu0
      %1535 = vmatprep.mubr.bf16.mxu0 0
      %1536 = vmatmul.mubr.bf16.gmra.mrb[0].mxu0 %v680
      %v1537 = vpop.f32.mrb[0].mxu0
      %v1538 = vadd.f32 0.0, %v1537
      %v1539 = vpop.f32.mrb[0].mxu0
      %v1540 = vpop.f32.mrb[0].mxu0
      %v1541 = vadd.f32 0.0, %v1540
      %v1542 = vpop.f32.mrb[0].mxu0
      %1543 = vmatprep.mubr.bf16.mxu0 0
      %1544 = vmatmul.mubr.bf16.gmra.mrb[0].mxu0 %v683
      %v1545 = vpop.f32.mrb[0].mxu0
      %v1546 = vadd.f32 0.0, %v1545
      %v1547 = vpop.f32.mrb[0].mxu0
      %v1548 = vpop.f32.mrb[0].mxu0
      %v1549 = vadd.f32 0.0, %v1548
      %v1550 = vpop.f32.mrb[0].mxu0
      %1551 = vmatprep.mubr.bf16.mxu0 0
      %1552 = vmatmul.mubr.bf16.gmra.mrb[0].mxu0 %v1423
      %v1553 = vpop.f32.mrb[0].mxu0
      %v1554 = vadd.f32 0.0, %v1553
      %v1555 = vpop.f32.mrb[0].mxu0
      %v1556 = vpop.f32.mrb[0].mxu0
      %v1557 = vadd.f32 0.0, %v1556
      %v1558 = vpop.f32.mrb[0].mxu0
      %1559 = vmatprep.mubr.bf16.mxu0 0
      %1560 = vmatmul.mubr.bf16.gmra.mrb[0].mxu0 %v1426
      %v1561 = vpop.f32.mrb[0].mxu0
      %v1562 = vadd.f32 0.0, %v1561
      %v1563 = vpop.f32.mrb[0].mxu0
      %v1564 = vpop.f32.mrb[0].mxu0
      %v1565 = vadd.f32 0.0, %v1564
      %v1566 = vpop.f32.mrb[0].mxu0
      %1567 = vdwg.mxu0
      %v1568 = vadd.f32 %v1387, %v1466
      %v1569 = vadd.f32 %v1388, %v1469
      %v1570 = vadd.f32 %v1389, %v1474
      %v1571 = vadd.f32 %v1390, %v1477
      %v1572 = vadd.f32 %v1391, %v1482
      %v1573 = vadd.f32 %v1392, %v1485
      %v1574 = vadd.f32 %v1393, %v1490
      %v1575 = vadd.f32 %v1394, %v1493
      %v1576 = vadd.f32 %v1395, %v1498
      %v1577 = vadd.f32 %v1396, %v1501
      %v1578 = vadd.f32 %v1397, %v1506
      %v1579 = vadd.f32 %v1398, %v1509
      %v1580 = vadd.f32 %v1399, %v1514
      %v1581 = vadd.f32 %v1400, %v1517
      %v1582 = vadd.f32 %v1401, %v1522
      %v1583 = vadd.f32 %v1402, %v1525
      %v1584 = vadd.f32 %v1403, %v1530
      %v1585 = vadd.f32 %v1404, %v1533
      %v1586 = vadd.f32 %v1405, %v1538
      %v1587 = vadd.f32 %v1406, %v1541
      %v1588 = vadd.f32 %v1407, %v1546
      %v1589 = vadd.f32 %v1408, %v1549
      %v1590 = vadd.f32 %v1409, %v1554
      %v1591 = vadd.f32 %v1410, %v1557
      %v1592 = vadd.f32 %v1411, %v1562
      %v1593 = vadd.f32 %v1412, %v1565
      %s1594 = scalar_lea.vmem %s1, 10
      %v1595 = vld [vmem:[%s1594] sm:$0x3]
      %v1597 = vrot.slane %v1241, 1
      %v1598 = vsel %vm1010, %v1034, %v1597
      %v1600 = vsel %vm648, %v1598, 0
      %v1603 = vsel %vm648, %v1597, 0
      %v1606 = vsel %vm688, %v1595, 0
      %1608 = vmatprep.subr.bf16.mxu0 0
      %1609 = vmatpush1.bf16.msra.mxu0 %v1606
      %1610 = vmatprep.subr.bf16.mxu0 0
      %1611 = vmatpush1.bf16.msra.mxu0 0
      %1612 = vmatprep.subr.bf16.mxu0 0
      %1613 = vmatpush1.bf16.msra.mxu0 0
      %1614 = vmatprep.subr.bf16.mxu0 0
      %1615 = vmatpush1.bf16.msra.mxu0 0
      %1616 = vmatprep.subr.bf16.mxu0 0
      %1617 = vmatpush1.bf16.msra.mxu0 0
      %1618 = vmatprep.subr.bf16.mxu0 0
      %1619 = vmatpush1.bf16.msra.mxu0 0
      %1620 = vmatprep.subr.bf16.mxu0 0
      %1621 = vmatpush1.bf16.msra.mxu0 0
      %1622 = vmatprep.subr.bf16.mxu0 0
      %1623 = vmatpush1.bf16.msra.mxu0 0
      %1624 = vmatprep.subr.bf16.mxu0 0
      %1625 = vmatpush1.bf16.msra.mxu0 0
      %1626 = vmatprep.subr.bf16.mxu0 0
      %1627 = vmatpush1.bf16.msra.mxu0 0
      %1628 = vmatprep.subr.bf16.mxu0 0
      %1629 = vmatpush1.bf16.msra.mxu0 0
      %1630 = vmatprep.subr.bf16.mxu0 0
      %1631 = vmatpush1.bf16.msra.mxu0 0
      %1632 = vmatprep.subr.bf16.mxu0 0
      %1633 = vmatpush1.bf16.msra.mxu0 0
      %1634 = vmatprep.subr.bf16.mxu0 0
      %1635 = vmatpush1.bf16.msra.mxu0 0
      %1636 = vmatprep.subr.bf16.mxu0 0
      %1637 = vmatpush1.bf16.msra.mxu0 0
      %1638 = vmatprep.subr.bf16.mxu0 0
      %1639 = vmatpush1.bf16.msra.mxu0 0
      %1640 = vmatprep.mubr.bf16.mxu0 0
      %1641 = vmatmul.mubr.bf16.gmra.mrb[0].mxu0 %v1040
      %v1642 = vpop.f32.mrb[0].mxu0
      %v1643 = vadd.f32 0.0, %v1642
      %v1644 = vpop.f32.mrb[0].mxu0
      %v1645 = vpop.f32.mrb[0].mxu0
      %v1646 = vadd.f32 0.0, %v1645
      %v1647 = vpop.f32.mrb[0].mxu0
      %1648 = vmatprep.mubr.bf16.mxu0 0
      %1649 = vmatmul.mubr.bf16.gmra.mrb[0].mxu0 %v1043
      %v1650 = vpop.f32.mrb[0].mxu0
      %v1651 = vadd.f32 0.0, %v1650
      %v1652 = vpop.f32.mrb[0].mxu0
      %v1653 = vpop.f32.mrb[0].mxu0
      %v1654 = vadd.f32 0.0, %v1653
      %v1655 = vpop.f32.mrb[0].mxu0
      %1656 = vmatprep.mubr.bf16.mxu0 0
      %1657 = vmatmul.mubr.bf16.gmra.mrb[0].mxu0 %v1046
      %v1658 = vpop.f32.mrb[0].mxu0
      %v1659 = vadd.f32 0.0, %v1658
      %v1660 = vpop.f32.mrb[0].mxu0
      %v1661 = vpop.f32.mrb[0].mxu0
      %v1662 = vadd.f32 0.0, %v1661
      %v1663 = vpop.f32.mrb[0].mxu0
      %1664 = vmatprep.mubr.bf16.mxu0 0
      %1665 = vmatmul.mubr.bf16.gmra.mrb[0].mxu0 %v1049
      %v1666 = vpop.f32.mrb[0].mxu0
      %v1667 = vadd.f32 0.0, %v1666
      %v1668 = vpop.f32.mrb[0].mxu0
      %v1669 = vpop.f32.mrb[0].mxu0
      %v1670 = vadd.f32 0.0, %v1669
      %v1671 = vpop.f32.mrb[0].mxu0
      %1672 = vmatprep.mubr.bf16.mxu0 0
      %1673 = vmatmul.mubr.bf16.gmra.mrb[0].mxu0 %v1052
      %v1674 = vpop.f32.mrb[0].mxu0
      %v1675 = vadd.f32 0.0, %v1674
      %v1676 = vpop.f32.mrb[0].mxu0
      %v1677 = vpop.f32.mrb[0].mxu0
      %v1678 = vadd.f32 0.0, %v1677
      %v1679 = vpop.f32.mrb[0].mxu0
      %1680 = vmatprep.mubr.bf16.mxu0 0
      %1681 = vmatmul.mubr.bf16.gmra.mrb[0].mxu0 %v1055
      %v1682 = vpop.f32.mrb[0].mxu0
      %v1683 = vadd.f32 0.0, %v1682
      %v1684 = vpop.f32.mrb[0].mxu0
      %v1685 = vpop.f32.mrb[0].mxu0
      %v1686 = vadd.f32 0.0, %v1685
      %v1687 = vpop.f32.mrb[0].mxu0
      %1688 = vmatprep.mubr.bf16.mxu0 0
      %1689 = vmatmul.mubr.bf16.gmra.mrb[0].mxu0 %v1058
      %v1690 = vpop.f32.mrb[0].mxu0
      %v1691 = vadd.f32 0.0, %v1690
      %v1692 = vpop.f32.mrb[0].mxu0
      %v1693 = vpop.f32.mrb[0].mxu0
      %v1694 = vadd.f32 0.0, %v1693
      %v1695 = vpop.f32.mrb[0].mxu0
      %1696 = vmatprep.mubr.bf16.mxu0 0
      %1697 = vmatmul.mubr.bf16.gmra.mrb[0].mxu0 %v1061
      %v1698 = vpop.f32.mrb[0].mxu0
      %v1699 = vadd.f32 0.0, %v1698
      %v1700 = vpop.f32.mrb[0].mxu0
      %v1701 = vpop.f32.mrb[0].mxu0
      %v1702 = vadd.f32 0.0, %v1701
      %v1703 = vpop.f32.mrb[0].mxu0
      %1704 = vmatprep.mubr.bf16.mxu0 0
      %1705 = vmatmul.mubr.bf16.gmra.mrb[0].mxu0 %v1064
      %v1706 = vpop.f32.mrb[0].mxu0
      %v1707 = vadd.f32 0.0, %v1706
      %v1708 = vpop.f32.mrb[0].mxu0
      %v1709 = vpop.f32.mrb[0].mxu0
      %v1710 = vadd.f32 0.0, %v1709
      %v1711 = vpop.f32.mrb[0].mxu0
      %1712 = vmatprep.mubr.bf16.mxu0 0
      %1713 = vmatmul.mubr.bf16.gmra.mrb[0].mxu0 %v1067
      %v1714 = vpop.f32.mrb[0].mxu0
      %v1715 = vadd.f32 0.0, %v1714
      %v1716 = vpop.f32.mrb[0].mxu0
      %v1717 = vpop.f32.mrb[0].mxu0
      %v1718 = vadd.f32 0.0, %v1717
      %v1719 = vpop.f32.mrb[0].mxu0
      %1720 = vmatprep.mubr.bf16.mxu0 0
      %1721 = vmatmul.mubr.bf16.gmra.mrb[0].mxu0 %v1070
      %v1722 = vpop.f32.mrb[0].mxu0
      %v1723 = vadd.f32 0.0, %v1722
      %v1724 = vpop.f32.mrb[0].mxu0
      %v1725 = vpop.f32.mrb[0].mxu0
      %v1726 = vadd.f32 0.0, %v1725
      %v1727 = vpop.f32.mrb[0].mxu0
      %1728 = vmatprep.mubr.bf16.mxu0 0
      %1729 = vmatmul.mubr.bf16.gmra.mrb[0].mxu0 %v1600
      %v1730 = vpop.f32.mrb[0].mxu0
      %v1731 = vadd.f32 0.0, %v1730
      %v1732 = vpop.f32.mrb[0].mxu0
      %v1733 = vpop.f32.mrb[0].mxu0
      %v1734 = vadd.f32 0.0, %v1733
      %v1735 = vpop.f32.mrb[0].mxu0
      %1736 = vmatprep.mubr.bf16.mxu0 0
      %1737 = vmatmul.mubr.bf16.gmra.mrb[0].mxu0 %v1603
      %v1738 = vpop.f32.mrb[0].mxu0
      %v1739 = vadd.f32 0.0, %v1738
      %v1740 = vpop.f32.mrb[0].mxu0
      %v1741 = vpop.f32.mrb[0].mxu0
      %v1742 = vadd.f32 0.0, %v1741
      %v1743 = vpop.f32.mrb[0].mxu0
      %1744 = vdwg.mxu0
      %v1745 = vadd.f32 %v1568, %v1643
      %v1746 = vadd.f32 %v1569, %v1646
      %v1747 = vadd.f32 %v1570, %v1651
      %v1748 = vadd.f32 %v1571, %v1654
      %v1749 = vadd.f32 %v1572, %v1659
      %v1750 = vadd.f32 %v1573, %v1662
      %v1751 = vadd.f32 %v1574, %v1667
      %v1752 = vadd.f32 %v1575, %v1670
      %v1753 = vadd.f32 %v1576, %v1675
      %v1754 = vadd.f32 %v1577, %v1678
      %v1755 = vadd.f32 %v1578, %v1683
      %v1756 = vadd.f32 %v1579, %v1686
      %v1757 = vadd.f32 %v1580, %v1691
      %v1758 = vadd.f32 %v1581, %v1694
      %v1759 = vadd.f32 %v1582, %v1699
      %v1760 = vadd.f32 %v1583, %v1702
      %v1761 = vadd.f32 %v1584, %v1707
      %v1762 = vadd.f32 %v1585, %v1710
      %v1763 = vadd.f32 %v1586, %v1715
      %v1764 = vadd.f32 %v1587, %v1718
      %v1765 = vadd.f32 %v1588, %v1723
      %v1766 = vadd.f32 %v1589, %v1726
      %v1767 = vadd.f32 %v1590, %v1731
      %v1768 = vadd.f32 %v1591, %v1734
      %v1769 = vadd.f32 %v1592, %v1739
      %v1770 = vadd.f32 %v1593, %v1742
      %v1771 = vpack.c.bf16 %v525, %v524
      %s1772 = scalar_lea.vmem %s1, 12
      %v1773 = vld [vmem:[%s1772] sm:$0x3]
      %v1775 = vsel %vm648, %v1771, 0
      %v1778 = vsel %vm688, %v1773, 0
      %1780 = vmatprep.subr.bf16.mxu0 0
      %1781 = vmatpush1.bf16.msra.mxu0 %v1778
      %1782 = vmatprep.subr.bf16.mxu0 0
      %1783 = vmatpush1.bf16.msra.mxu0 0
      %1784 = vmatprep.subr.bf16.mxu0 0
      %1785 = vmatpush1.bf16.msra.mxu0 0
      %1786 = vmatprep.subr.bf16.mxu0 0
      %1787 = vmatpush1.bf16.msra.mxu0 0
      %1788 = vmatprep.subr.bf16.mxu0 0
      %1789 = vmatpush1.bf16.msra.mxu0 0
      %1790 = vmatprep.subr.bf16.mxu0 0
      %1791 = vmatpush1.bf16.msra.mxu0 0
      %1792 = vmatprep.subr.bf16.mxu0 0
      %1793 = vmatpush1.bf16.msra.mxu0 0
      %1794 = vmatprep.subr.bf16.mxu0 0
      %1795 = vmatpush1.bf16.msra.mxu0 0
      %1796 = vmatprep.subr.bf16.mxu0 0
      %1797 = vmatpush1.bf16.msra.mxu0 0
      %1798 = vmatprep.subr.bf16.mxu0 0
      %1799 = vmatpush1.bf16.msra.mxu0 0
      %1800 = vmatprep.subr.bf16.mxu0 0
      %1801 = vmatpush1.bf16.msra.mxu0 0
      %1802 = vmatprep.subr.bf16.mxu0 0
      %1803 = vmatpush1.bf16.msra.mxu0 0
      %1804 = vmatprep.subr.bf16.mxu0 0
      %1805 = vmatpush1.bf16.msra.mxu0 0
      %1806 = vmatprep.subr.bf16.mxu0 0
      %1807 = vmatpush1.bf16.msra.mxu0 0
      %1808 = vmatprep.subr.bf16.mxu0 0
      %1809 = vmatpush1.bf16.msra.mxu0 0
      %1810 = vmatprep.subr.bf16.mxu0 0
      %1811 = vmatpush1.bf16.msra.mxu0 0
      %1812 = vmatprep.mubr.bf16.mxu0 0
      %1813 = vmatmul.mubr.bf16.gmra.mrb[0].mxu0 %v833
      %v1814 = vpop.f32.mrb[0].mxu0
      %v1815 = vadd.f32 0.0, %v1814
      %v1816 = vpop.f32.mrb[0].mxu0
      %v1817 = vpop.f32.mrb[0].mxu0
      %v1818 = vadd.f32 0.0, %v1817
      %v1819 = vpop.f32.mrb[0].mxu0
      %1820 = vmatprep.mubr.bf16.mxu0 0
      %1821 = vmatmul.mubr.bf16.gmra.mrb[0].mxu0 %v835
      %v1822 = vpop.f32.mrb[0].mxu0
      %v1823 = vadd.f32 0.0, %v1822
      %v1824 = vpop.f32.mrb[0].mxu0
      %v1825 = vpop.f32.mrb[0].mxu0
      %v1826 = vadd.f32 0.0, %v1825
      %v1827 = vpop.f32.mrb[0].mxu0
      %1828 = vmatprep.mubr.bf16.mxu0 0
      %1829 = vmatmul.mubr.bf16.gmra.mrb[0].mxu0 %v837
      %v1830 = vpop.f32.mrb[0].mxu0
      %v1831 = vadd.f32 0.0, %v1830
      %v1832 = vpop.f32.mrb[0].mxu0
      %v1833 = vpop.f32.mrb[0].mxu0
      %v1834 = vadd.f32 0.0, %v1833
      %v1835 = vpop.f32.mrb[0].mxu0
      %1836 = vmatprep.mubr.bf16.mxu0 0
      %1837 = vmatmul.mubr.bf16.gmra.mrb[0].mxu0 %v839
      %v1838 = vpop.f32.mrb[0].mxu0
      %v1839 = vadd.f32 0.0, %v1838
      %v1840 = vpop.f32.mrb[0].mxu0
      %v1841 = vpop.f32.mrb[0].mxu0
      %v1842 = vadd.f32 0.0, %v1841
      %v1843 = vpop.f32.mrb[0].mxu0
      %1844 = vmatprep.mubr.bf16.mxu0 0
      %1845 = vmatmul.mubr.bf16.gmra.mrb[0].mxu0 %v841
      %v1846 = vpop.f32.mrb[0].mxu0
      %v1847 = vadd.f32 0.0, %v1846
      %v1848 = vpop.f32.mrb[0].mxu0
      %v1849 = vpop.f32.mrb[0].mxu0
      %v1850 = vadd.f32 0.0, %v1849
      %v1851 = vpop.f32.mrb[0].mxu0
      %1852 = vmatprep.mubr.bf16.mxu0 0
      %1853 = vmatmul.mubr.bf16.gmra.mrb[0].mxu0 %v843
      %v1854 = vpop.f32.mrb[0].mxu0
      %v1855 = vadd.f32 0.0, %v1854
      %v1856 = vpop.f32.mrb[0].mxu0
      %v1857 = vpop.f32.mrb[0].mxu0
      %v1858 = vadd.f32 0.0, %v1857
      %v1859 = vpop.f32.mrb[0].mxu0
      %1860 = vmatprep.mubr.bf16.mxu0 0
      %1861 = vmatmul.mubr.bf16.gmra.mrb[0].mxu0 %v845
      %v1862 = vpop.f32.mrb[0].mxu0
      %v1863 = vadd.f32 0.0, %v1862
      %v1864 = vpop.f32.mrb[0].mxu0
      %v1865 = vpop.f32.mrb[0].mxu0
      %v1866 = vadd.f32 0.0, %v1865
      %v1867 = vpop.f32.mrb[0].mxu0
      %1868 = vmatprep.mubr.bf16.mxu0 0
      %1869 = vmatmul.mubr.bf16.gmra.mrb[0].mxu0 %v847
      %v1870 = vpop.f32.mrb[0].mxu0
      %v1871 = vadd.f32 0.0, %v1870
      %v1872 = vpop.f32.mrb[0].mxu0
      %v1873 = vpop.f32.mrb[0].mxu0
      %v1874 = vadd.f32 0.0, %v1873
      %v1875 = vpop.f32.mrb[0].mxu0
      %1876 = vmatprep.mubr.bf16.mxu0 0
      %1877 = vmatmul.mubr.bf16.gmra.mrb[0].mxu0 %v849
      %v1878 = vpop.f32.mrb[0].mxu0
      %v1879 = vadd.f32 0.0, %v1878
      %v1880 = vpop.f32.mrb[0].mxu0
      %v1881 = vpop.f32.mrb[0].mxu0
      %v1882 = vadd.f32 0.0, %v1881
      %v1883 = vpop.f32.mrb[0].mxu0
      %1884 = vmatprep.mubr.bf16.mxu0 0
      %1885 = vmatmul.mubr.bf16.gmra.mrb[0].mxu0 %v851
      %v1886 = vpop.f32.mrb[0].mxu0
      %v1887 = vadd.f32 0.0, %v1886
      %v1888 = vpop.f32.mrb[0].mxu0
      %v1889 = vpop.f32.mrb[0].mxu0
      %v1890 = vadd.f32 0.0, %v1889
      %v1891 = vpop.f32.mrb[0].mxu0
      %1892 = vmatprep.mubr.bf16.mxu0 0
      %1893 = vmatmul.mubr.bf16.gmra.mrb[0].mxu0 %v853
      %v1894 = vpop.f32.mrb[0].mxu0
      %v1895 = vadd.f32 0.0, %v1894
      %v1896 = vpop.f32.mrb[0].mxu0
      %v1897 = vpop.f32.mrb[0].mxu0
      %v1898 = vadd.f32 0.0, %v1897
      %v1899 = vpop.f32.mrb[0].mxu0
      %1900 = vmatprep.mubr.bf16.mxu0 0
      %1901 = vmatmul.mubr.bf16.gmra.mrb[0].mxu0 %v1245
      %v1902 = vpop.f32.mrb[0].mxu0
      %v1903 = vadd.f32 0.0, %v1902
      %v1904 = vpop.f32.mrb[0].mxu0
      %v1905 = vpop.f32.mrb[0].mxu0
      %v1906 = vadd.f32 0.0, %v1905
      %v1907 = vpop.f32.mrb[0].mxu0
      %1908 = vmatprep.mubr.bf16.mxu0 0
      %1909 = vmatmul.mubr.bf16.gmra.mrb[0].mxu0 %v1775
      %v1910 = vpop.f32.mrb[0].mxu0
      %v1911 = vadd.f32 0.0, %v1910
      %v1912 = vpop.f32.mrb[0].mxu0
      %v1913 = vpop.f32.mrb[0].mxu0
      %v1914 = vadd.f32 0.0, %v1913
      %v1915 = vpop.f32.mrb[0].mxu0
      %1916 = vdwg.mxu0
      %v1917 = vadd.f32 %v1745, %v1815
      %v1918 = vadd.f32 %v1746, %v1818
      %v1919 = vadd.f32 %v1747, %v1823
      %v1920 = vadd.f32 %v1748, %v1826
      %v1921 = vadd.f32 %v1749, %v1831
      %v1922 = vadd.f32 %v1750, %v1834
      %v1923 = vadd.f32 %v1751, %v1839
      %v1924 = vadd.f32 %v1752, %v1842
      %v1925 = vadd.f32 %v1753, %v1847
      %v1926 = vadd.f32 %v1754, %v1850
      %v1927 = vadd.f32 %v1755, %v1855
      %v1928 = vadd.f32 %v1756, %v1858
      %v1929 = vadd.f32 %v1757, %v1863
      %v1930 = vadd.f32 %v1758, %v1866
      %v1931 = vadd.f32 %v1759, %v1871
      %v1932 = vadd.f32 %v1760, %v1874
      %v1933 = vadd.f32 %v1761, %v1879
      %v1934 = vadd.f32 %v1762, %v1882
      %v1935 = vadd.f32 %v1763, %v1887
      %v1936 = vadd.f32 %v1764, %v1890
      %v1937 = vadd.f32 %v1765, %v1895
      %v1938 = vadd.f32 %v1766, %v1898
      %v1939 = vadd.f32 %v1767, %v1903
      %v1940 = vadd.f32 %v1768, %v1906
      %v1941 = vadd.f32 %v1769, %v1911
      %v1942 = vadd.f32 %v1770, %v1914
      %s1943 = scalar_lea.vmem %s1, 14
      %v1944 = vld [vmem:[%s1943] sm:$0x3]
      %v1945 = vshll.u32 %v1771, 16
      %v1947 = vrot.slane %v1945, 1
      %v1948 = vsel %vm544, %v1421, %v1947
      %v1949 = vshrl.u32 %v1771, 16
      %v1951 = vor.u32 %v1949, %v1947
      %v1953 = vsel %vm648, %v1948, 0
      %v1956 = vsel %vm648, %v1951, 0
      %v1959 = vsel %vm688, %v1944, 0
      %1961 = vmatprep.subr.bf16.mxu0 0
      %1962 = vmatpush1.bf16.msra.mxu0 %v1959
      %1963 = vmatprep.subr.bf16.mxu0 0
      %1964 = vmatpush1.bf16.msra.mxu0 0
      %1965 = vmatprep.subr.bf16.mxu0 0
      %1966 = vmatpush1.bf16.msra.mxu0 0
      %1967 = vmatprep.subr.bf16.mxu0 0
      %1968 = vmatpush1.bf16.msra.mxu0 0
      %1969 = vmatprep.subr.bf16.mxu0 0
      %1970 = vmatpush1.bf16.msra.mxu0 0
      %1971 = vmatprep.subr.bf16.mxu0 0
      %1972 = vmatpush1.bf16.msra.mxu0 0
      %1973 = vmatprep.subr.bf16.mxu0 0
      %1974 = vmatpush1.bf16.msra.mxu0 0
      %1975 = vmatprep.subr.bf16.mxu0 0
      %1976 = vmatpush1.bf16.msra.mxu0 0
      %1977 = vmatprep.subr.bf16.mxu0 0
      %1978 = vmatpush1.bf16.msra.mxu0 0
      %1979 = vmatprep.subr.bf16.mxu0 0
      %1980 = vmatpush1.bf16.msra.mxu0 0
      %1981 = vmatprep.subr.bf16.mxu0 0
      %1982 = vmatpush1.bf16.msra.mxu0 0
      %1983 = vmatprep.subr.bf16.mxu0 0
      %1984 = vmatpush1.bf16.msra.mxu0 0
      %1985 = vmatprep.subr.bf16.mxu0 0
      %1986 = vmatpush1.bf16.msra.mxu0 0
      %1987 = vmatprep.subr.bf16.mxu0 0
      %1988 = vmatpush1.bf16.msra.mxu0 0
      %1989 = vmatprep.subr.bf16.mxu0 0
      %1990 = vmatpush1.bf16.msra.mxu0 0
      %1991 = vmatprep.subr.bf16.mxu0 0
      %1992 = vmatpush1.bf16.msra.mxu0 0
      %1993 = vmatprep.mubr.bf16.mxu0 0
      %1994 = vmatmul.mubr.bf16.gmra.mrb[0].mxu0 %v656
      %v1995 = vpop.f32.mrb[0].mxu0
      %v1996 = vadd.f32 0.0, %v1995
      %v1997 = vpop.f32.mrb[0].mxu0
      %v1998 = vpop.f32.mrb[0].mxu0
      %v1999 = vadd.f32 0.0, %v1998
      %v2000 = vpop.f32.mrb[0].mxu0
      %2001 = vmatprep.mubr.bf16.mxu0 0
      %2002 = vmatmul.mubr.bf16.gmra.mrb[0].mxu0 %v659
      %v2003 = vpop.f32.mrb[0].mxu0
      %v2004 = vadd.f32 0.0, %v2003
      %v2005 = vpop.f32.mrb[0].mxu0
      %v2006 = vpop.f32.mrb[0].mxu0
      %v2007 = vadd.f32 0.0, %v2006
      %v2008 = vpop.f32.mrb[0].mxu0
      %2009 = vmatprep.mubr.bf16.mxu0 0
      %2010 = vmatmul.mubr.bf16.gmra.mrb[0].mxu0 %v662
      %v2011 = vpop.f32.mrb[0].mxu0
      %v2012 = vadd.f32 0.0, %v2011
      %v2013 = vpop.f32.mrb[0].mxu0
      %v2014 = vpop.f32.mrb[0].mxu0
      %v2015 = vadd.f32 0.0, %v2014
      %v2016 = vpop.f32.mrb[0].mxu0
      %2017 = vmatprep.mubr.bf16.mxu0 0
      %2018 = vmatmul.mubr.bf16.gmra.mrb[0].mxu0 %v665
      %v2019 = vpop.f32.mrb[0].mxu0
      %v2020 = vadd.f32 0.0, %v2019
      %v2021 = vpop.f32.mrb[0].mxu0
      %v2022 = vpop.f32.mrb[0].mxu0
      %v2023 = vadd.f32 0.0, %v2022
      %v2024 = vpop.f32.mrb[0].mxu0
      %2025 = vmatprep.mubr.bf16.mxu0 0
      %2026 = vmatmul.mubr.bf16.gmra.mrb[0].mxu0 %v668
      %v2027 = vpop.f32.mrb[0].mxu0
      %v2028 = vadd.f32 0.0, %v2027
      %v2029 = vpop.f32.mrb[0].mxu0
      %v2030 = vpop.f32.mrb[0].mxu0
      %v2031 = vadd.f32 0.0, %v2030
      %v2032 = vpop.f32.mrb[0].mxu0
      %2033 = vmatprep.mubr.bf16.mxu0 0
      %2034 = vmatmul.mubr.bf16.gmra.mrb[0].mxu0 %v671
      %v2035 = vpop.f32.mrb[0].mxu0
      %v2036 = vadd.f32 0.0, %v2035
      %v2037 = vpop.f32.mrb[0].mxu0
      %v2038 = vpop.f32.mrb[0].mxu0
      %v2039 = vadd.f32 0.0, %v2038
      %v2040 = vpop.f32.mrb[0].mxu0
      %2041 = vmatprep.mubr.bf16.mxu0 0
      %2042 = vmatmul.mubr.bf16.gmra.mrb[0].mxu0 %v674
      %v2043 = vpop.f32.mrb[0].mxu0
      %v2044 = vadd.f32 0.0, %v2043
      %v2045 = vpop.f32.mrb[0].mxu0
      %v2046 = vpop.f32.mrb[0].mxu0
      %v2047 = vadd.f32 0.0, %v2046
      %v2048 = vpop.f32.mrb[0].mxu0
      %2049 = vmatprep.mubr.bf16.mxu0 0
      %2050 = vmatmul.mubr.bf16.gmra.mrb[0].mxu0 %v677
      %v2051 = vpop.f32.mrb[0].mxu0
      %v2052 = vadd.f32 0.0, %v2051
      %v2053 = vpop.f32.mrb[0].mxu0
      %v2054 = vpop.f32.mrb[0].mxu0
      %v2055 = vadd.f32 0.0, %v2054
      %v2056 = vpop.f32.mrb[0].mxu0
      %2057 = vmatprep.mubr.bf16.mxu0 0
      %2058 = vmatmul.mubr.bf16.gmra.mrb[0].mxu0 %v680
      %v2059 = vpop.f32.mrb[0].mxu0
      %v2060 = vadd.f32 0.0, %v2059
      %v2061 = vpop.f32.mrb[0].mxu0
      %v2062 = vpop.f32.mrb[0].mxu0
      %v2063 = vadd.f32 0.0, %v2062
      %v2064 = vpop.f32.mrb[0].mxu0
      %2065 = vmatprep.mubr.bf16.mxu0 0
      %2066 = vmatmul.mubr.bf16.gmra.mrb[0].mxu0 %v683
      %v2067 = vpop.f32.mrb[0].mxu0
      %v2068 = vadd.f32 0.0, %v2067
      %v2069 = vpop.f32.mrb[0].mxu0
      %v2070 = vpop.f32.mrb[0].mxu0
      %v2071 = vadd.f32 0.0, %v2070
      %v2072 = vpop.f32.mrb[0].mxu0
      %2073 = vmatprep.mubr.bf16.mxu0 0
      %2074 = vmatmul.mubr.bf16.gmra.mrb[0].mxu0 %v1423
      %v2075 = vpop.f32.mrb[0].mxu0
      %v2076 = vadd.f32 0.0, %v2075
      %v2077 = vpop.f32.mrb[0].mxu0
      %v2078 = vpop.f32.mrb[0].mxu0
      %v2079 = vadd.f32 0.0, %v2078
      %v2080 = vpop.f32.mrb[0].mxu0
      %2081 = vmatprep.mubr.bf16.mxu0 0
      %2082 = vmatmul.mubr.bf16.gmra.mrb[0].mxu0 %v1953
      %v2083 = vpop.f32.mrb[0].mxu0
      %v2084 = vadd.f32 0.0, %v2083
      %v2085 = vpop.f32.mrb[0].mxu0
      %v2086 = vpop.f32.mrb[0].mxu0
      %v2087 = vadd.f32 0.0, %v2086
      %v2088 = vpop.f32.mrb[0].mxu0
      %2089 = vmatprep.mubr.bf16.mxu0 0
      %2090 = vmatmul.mubr.bf16.gmra.mrb[0].mxu0 %v1956
      %v2091 = vpop.f32.mrb[0].mxu0
      %v2092 = vadd.f32 0.0, %v2091
      %v2093 = vpop.f32.mrb[0].mxu0
      %v2094 = vpop.f32.mrb[0].mxu0
      %v2095 = vadd.f32 0.0, %v2094
      %v2096 = vpop.f32.mrb[0].mxu0
      %2097 = vdwg.mxu0
      %v2098 = vadd.f32 %v1917, %v1996
      %v2099 = vadd.f32 %v1918, %v1999
      %v2100 = vadd.f32 %v1919, %v2004
      %v2101 = vadd.f32 %v1920, %v2007
      %v2102 = vadd.f32 %v1921, %v2012
      %v2103 = vadd.f32 %v1922, %v2015
      %v2104 = vadd.f32 %v1923, %v2020
      %v2105 = vadd.f32 %v1924, %v2023
      %v2106 = vadd.f32 %v1925, %v2028
      %v2107 = vadd.f32 %v1926, %v2031
      %v2108 = vadd.f32 %v1927, %v2036
      %v2109 = vadd.f32 %v1928, %v2039
      %v2110 = vadd.f32 %v1929, %v2044
      %v2111 = vadd.f32 %v1930, %v2047
      %v2112 = vadd.f32 %v1931, %v2052
      %v2113 = vadd.f32 %v1932, %v2055
      %v2114 = vadd.f32 %v1933, %v2060
      %v2115 = vadd.f32 %v1934, %v2063
      %v2116 = vadd.f32 %v1935, %v2068
      %v2117 = vadd.f32 %v1936, %v2071
      %v2118 = vadd.f32 %v1937, %v2076
      %v2119 = vadd.f32 %v1938, %v2079
      %v2120 = vadd.f32 %v1939, %v2084
      %v2121 = vadd.f32 %v1940, %v2087
      %v2122 = vadd.f32 %v1941, %v2092
      %v2123 = vadd.f32 %v1942, %v2095
      %s2124 = scalar_lea.vmem %s1, 16
      %v2125 = vld [vmem:[%s2124] sm:$0x3]
      %v2127 = vrot.slane %v1771, 1
      %v2128 = vsel %vm1010, %v1597, %v2127
      %v2130 = vsel %vm648, %v2128, 0
      %v2133 = vsel %vm648, %v2127, 0
      %v2136 = vsel %vm688, %v2125, 0
      %2138 = vmatprep.subr.bf16.mxu0 0
      %2139 = vmatpush1.bf16.msra.mxu0 %v2136
      %2140 = vmatprep.subr.bf16.mxu0 0
      %2141 = vmatpush1.bf16.msra.mxu0 0
      %2142 = vmatprep.subr.bf16.mxu0 0
      %2143 = vmatpush1.bf16.msra.mxu0 0
      %2144 = vmatprep.subr.bf16.mxu0 0
      %2145 = vmatpush1.bf16.msra.mxu0 0
      %2146 = vmatprep.subr.bf16.mxu0 0
      %2147 = vmatpush1.bf16.msra.mxu0 0
      %2148 = vmatprep.subr.bf16.mxu0 0
      %2149 = vmatpush1.bf16.msra.mxu0 0
      %2150 = vmatprep.subr.bf16.mxu0 0
      %2151 = vmatpush1.bf16.msra.mxu0 0
      %2152 = vmatprep.subr.bf16.mxu0 0
      %2153 = vmatpush1.bf16.msra.mxu0 0
      %2154 = vmatprep.subr.bf16.mxu0 0
      %2155 = vmatpush1.bf16.msra.mxu0 0
      %2156 = vmatprep.subr.bf16.mxu0 0
      %2157 = vmatpush1.bf16.msra.mxu0 0
      %2158 = vmatprep.subr.bf16.mxu0 0
      %2159 = vmatpush1.bf16.msra.mxu0 0
      %2160 = vmatprep.subr.bf16.mxu0 0
      %2161 = vmatpush1.bf16.msra.mxu0 0
      %2162 = vmatprep.subr.bf16.mxu0 0
      %2163 = vmatpush1.bf16.msra.mxu0 0
      %2164 = vmatprep.subr.bf16.mxu0 0
      %2165 = vmatpush1.bf16.msra.mxu0 0
      %2166 = vmatprep.subr.bf16.mxu0 0
      %2167 = vmatpush1.bf16.msra.mxu0 0
      %2168 = vmatprep.subr.bf16.mxu0 0
      %2169 = vmatpush1.bf16.msra.mxu0 0
      %2170 = vmatprep.mubr.bf16.mxu0 0
      %2171 = vmatmul.mubr.bf16.gmra.mrb[0].mxu0 %v1043
      %v2172 = vpop.f32.mrb[0].mxu0
      %v2173 = vadd.f32 0.0, %v2172
      %v2174 = vpop.f32.mrb[0].mxu0
      %v2175 = vpop.f32.mrb[0].mxu0
      %v2176 = vadd.f32 0.0, %v2175
      %v2177 = vpop.f32.mrb[0].mxu0
      %2178 = vmatprep.mubr.bf16.mxu0 0
      %2179 = vmatmul.mubr.bf16.gmra.mrb[0].mxu0 %v1046
      %v2180 = vpop.f32.mrb[0].mxu0
      %v2181 = vadd.f32 0.0, %v2180
      %v2182 = vpop.f32.mrb[0].mxu0
      %v2183 = vpop.f32.mrb[0].mxu0
      %v2184 = vadd.f32 0.0, %v2183
      %v2185 = vpop.f32.mrb[0].mxu0
      %2186 = vmatprep.mubr.bf16.mxu0 0
      %2187 = vmatmul.mubr.bf16.gmra.mrb[0].mxu0 %v1049
      %v2188 = vpop.f32.mrb[0].mxu0
      %v2189 = vadd.f32 0.0, %v2188
      %v2190 = vpop.f32.mrb[0].mxu0
      %v2191 = vpop.f32.mrb[0].mxu0
      %v2192 = vadd.f32 0.0, %v2191
      %v2193 = vpop.f32.mrb[0].mxu0
      %2194 = vmatprep.mubr.bf16.mxu0 0
      %2195 = vmatmul.mubr.bf16.gmra.mrb[0].mxu0 %v1052
      %v2196 = vpop.f32.mrb[0].mxu0
      %v2197 = vadd.f32 0.0, %v2196
      %v2198 = vpop.f32.mrb[0].mxu0
      %v2199 = vpop.f32.mrb[0].mxu0
      %v2200 = vadd.f32 0.0, %v2199
      %v2201 = vpop.f32.mrb[0].mxu0
      %2202 = vmatprep.mubr.bf16.mxu0 0
      %2203 = vmatmul.mubr.bf16.gmra.mrb[0].mxu0 %v1055
      %v2204 = vpop.f32.mrb[0].mxu0
      %v2205 = vadd.f32 0.0, %v2204
      %v2206 = vpop.f32.mrb[0].mxu0
      %v2207 = vpop.f32.mrb[0].mxu0
      %v2208 = vadd.f32 0.0, %v2207
      %v2209 = vpop.f32.mrb[0].mxu0
      %2210 = vmatprep.mubr.bf16.mxu0 0
      %2211 = vmatmul.mubr.bf16.gmra.mrb[0].mxu0 %v1058
      %v2212 = vpop.f32.mrb[0].mxu0
      %v2213 = vadd.f32 0.0, %v2212
      %v2214 = vpop.f32.mrb[0].mxu0
      %v2215 = vpop.f32.mrb[0].mxu0
      %v2216 = vadd.f32 0.0, %v2215
      %v2217 = vpop.f32.mrb[0].mxu0
      %2218 = vmatprep.mubr.bf16.mxu0 0
      %2219 = vmatmul.mubr.bf16.gmra.mrb[0].mxu0 %v1061
      %v2220 = vpop.f32.mrb[0].mxu0
      %v2221 = vadd.f32 0.0, %v2220
      %v2222 = vpop.f32.mrb[0].mxu0
      %v2223 = vpop.f32.mrb[0].mxu0
      %v2224 = vadd.f32 0.0, %v2223
      %v2225 = vpop.f32.mrb[0].mxu0
      %2226 = vmatprep.mubr.bf16.mxu0 0
      %2227 = vmatmul.mubr.bf16.gmra.mrb[0].mxu0 %v1064
      %v2228 = vpop.f32.mrb[0].mxu0
      %v2229 = vadd.f32 0.0, %v2228
      %v2230 = vpop.f32.mrb[0].mxu0
      %v2231 = vpop.f32.mrb[0].mxu0
      %v2232 = vadd.f32 0.0, %v2231
      %v2233 = vpop.f32.mrb[0].mxu0
      %2234 = vmatprep.mubr.bf16.mxu0 0
      %2235 = vmatmul.mubr.bf16.gmra.mrb[0].mxu0 %v1067
      %v2236 = vpop.f32.mrb[0].mxu0
      %v2237 = vadd.f32 0.0, %v2236
      %v2238 = vpop.f32.mrb[0].mxu0
      %v2239 = vpop.f32.mrb[0].mxu0
      %v2240 = vadd.f32 0.0, %v2239
      %v2241 = vpop.f32.mrb[0].mxu0
      %2242 = vmatprep.mubr.bf16.mxu0 0
      %2243 = vmatmul.mubr.bf16.gmra.mrb[0].mxu0 %v1070
      %v2244 = vpop.f32.mrb[0].mxu0
      %v2245 = vadd.f32 0.0, %v2244
      %v2246 = vpop.f32.mrb[0].mxu0
      %v2247 = vpop.f32.mrb[0].mxu0
      %v2248 = vadd.f32 0.0, %v2247
      %v2249 = vpop.f32.mrb[0].mxu0
      %2250 = vmatprep.mubr.bf16.mxu0 0
      %2251 = vmatmul.mubr.bf16.gmra.mrb[0].mxu0 %v1600
      %v2252 = vpop.f32.mrb[0].mxu0
      %v2253 = vadd.f32 0.0, %v2252
      %v2254 = vpop.f32.mrb[0].mxu0
      %v2255 = vpop.f32.mrb[0].mxu0
      %v2256 = vadd.f32 0.0, %v2255
      %v2257 = vpop.f32.mrb[0].mxu0
      %2258 = vmatprep.mubr.bf16.mxu0 0
      %2259 = vmatmul.mubr.bf16.gmra.mrb[0].mxu0 %v2130
      %v2260 = vpop.f32.mrb[0].mxu0
      %v2261 = vadd.f32 0.0, %v2260
      %v2262 = vpop.f32.mrb[0].mxu0
      %v2263 = vpop.f32.mrb[0].mxu0
      %v2264 = vadd.f32 0.0, %v2263
      %v2265 = vpop.f32.mrb[0].mxu0
      %2266 = vmatprep.mubr.bf16.mxu0 0
      %2267 = vmatmul.mubr.bf16.gmra.mrb[0].mxu0 %v2133
      %v2268 = vpop.f32.mrb[0].mxu0
      %v2269 = vadd.f32 0.0, %v2268
      %v2270 = vpop.f32.mrb[0].mxu0
      %v2271 = vpop.f32.mrb[0].mxu0
      %v2272 = vadd.f32 0.0, %v2271
      %v2273 = vpop.f32.mrb[0].mxu0
      %2274 = vdwg.mxu0
      %v2275 = vadd.f32 %v2098, %v2173
      %v2276 = vadd.f32 %v2099, %v2176
      %v2277 = vadd.f32 %v2100, %v2181
      %v2278 = vadd.f32 %v2101, %v2184
      %v2279 = vadd.f32 %v2102, %v2189
      %v2280 = vadd.f32 %v2103, %v2192
      %v2281 = vadd.f32 %v2104, %v2197
      %v2282 = vadd.f32 %v2105, %v2200
      %v2283 = vadd.f32 %v2106, %v2205
      %v2284 = vadd.f32 %v2107, %v2208
      %v2285 = vadd.f32 %v2108, %v2213
      %v2286 = vadd.f32 %v2109, %v2216
      %v2287 = vadd.f32 %v2110, %v2221
      %v2288 = vadd.f32 %v2111, %v2224
      %v2289 = vadd.f32 %v2112, %v2229
      %v2290 = vadd.f32 %v2113, %v2232
      %v2291 = vadd.f32 %v2114, %v2237
      %v2292 = vadd.f32 %v2115, %v2240
      %v2293 = vadd.f32 %v2116, %v2245
      %v2294 = vadd.f32 %v2117, %v2248
      %v2295 = vadd.f32 %v2118, %v2253
      %v2296 = vadd.f32 %v2119, %v2256
      %v2297 = vadd.f32 %v2120, %v2261
      %v2298 = vadd.f32 %v2121, %v2264
      %v2299 = vadd.f32 %v2122, %v2269
      %v2300 = vadd.f32 %v2123, %v2272
      %v2301 = vld [vmem:[%s2] sm:$0x1]
      %v2303 = vlaneseq
      %v2304 = vshrl.u32 %v2303, 7
      %v2305 = vsub.s32 0, %v2304
      %v2306 = vrot.slane %v2301, %v2305
      %v2308 = vmul.f32 %v2275, %v2306
      %v2309 = vmul.f32 %v2276, %v2306
      %v2310 = vmul.f32 %v2277, %v2306
      %v2311 = vmul.f32 %v2278, %v2306
      %v2312 = vmul.f32 %v2279, %v2306
      %v2313 = vmul.f32 %v2280, %v2306
      %v2314 = vmul.f32 %v2281, %v2306
      %v2315 = vmul.f32 %v2282, %v2306
      %v2316 = vmul.f32 %v2283, %v2306
      %v2317 = vmul.f32 %v2284, %v2306
      %v2318 = vmul.f32 %v2285, %v2306
      %v2319 = vmul.f32 %v2286, %v2306
      %v2320 = vmul.f32 %v2287, %v2306
      %v2321 = vmul.f32 %v2288, %v2306
      %v2322 = vmul.f32 %v2289, %v2306
      %v2323 = vmul.f32 %v2290, %v2306
      %v2324 = vmul.f32 %v2291, %v2306
      %v2325 = vmul.f32 %v2292, %v2306
      %v2326 = vmul.f32 %v2293, %v2306
      %v2327 = vmul.f32 %v2294, %v2306
      %v2328 = vmul.f32 %v2295, %v2306
      %v2329 = vmul.f32 %v2296, %v2306
      %v2330 = vmul.f32 %v2297, %v2306
      %v2331 = vmul.f32 %v2298, %v2306
      %v2332 = vmul.f32 %v2299, %v2306
      %v2333 = vmul.f32 %v2300, %v2306
      %v2334 = vld [vmem:[%s3] sm:$0x1]
      %v2336 = vlaneseq
      %v2337 = vshrl.u32 %v2336, 7
      %v2338 = vsub.s32 0, %v2337
      %v2339 = vrot.slane %v2334, %v2338
      %v2341 = vadd.f32 %v2308, %v2339
      %v2342 = vadd.f32 %v2309, %v2339
      %v2343 = vadd.f32 %v2310, %v2339
      %v2344 = vadd.f32 %v2311, %v2339
      %v2345 = vadd.f32 %v2312, %v2339
      %v2346 = vadd.f32 %v2313, %v2339
      %v2347 = vadd.f32 %v2314, %v2339
      %v2348 = vadd.f32 %v2315, %v2339
      %v2349 = vadd.f32 %v2316, %v2339
      %v2350 = vadd.f32 %v2317, %v2339
      %v2351 = vadd.f32 %v2318, %v2339
      %v2352 = vadd.f32 %v2319, %v2339
      %v2353 = vadd.f32 %v2320, %v2339
      %v2354 = vadd.f32 %v2321, %v2339
      %v2355 = vadd.f32 %v2322, %v2339
      %v2356 = vadd.f32 %v2323, %v2339
      %v2357 = vadd.f32 %v2324, %v2339
      %v2358 = vadd.f32 %v2325, %v2339
      %v2359 = vadd.f32 %v2326, %v2339
      %v2360 = vadd.f32 %v2327, %v2339
      %v2361 = vadd.f32 %v2328, %v2339
      %v2362 = vadd.f32 %v2329, %v2339
      %v2363 = vadd.f32 %v2330, %v2339
      %v2364 = vadd.f32 %v2331, %v2339
      %v2365 = vadd.f32 %v2332, %v2339
      %v2366 = vadd.f32 %v2333, %v2339
      %v2367 = vmax.f32 %v2341, 0.0
      %v2368 = vmax.f32 %v2342, 0.0
      %v2369 = vmax.f32 %v2343, 0.0
      %v2370 = vmax.f32 %v2344, 0.0
      %v2371 = vmax.f32 %v2345, 0.0
      %v2372 = vmax.f32 %v2346, 0.0
      %v2373 = vmax.f32 %v2347, 0.0
      %v2374 = vmax.f32 %v2348, 0.0
      %v2375 = vmax.f32 %v2349, 0.0
      %v2376 = vmax.f32 %v2350, 0.0
      %v2377 = vmax.f32 %v2351, 0.0
      %v2378 = vmax.f32 %v2352, 0.0
      %v2379 = vmax.f32 %v2353, 0.0
      %v2380 = vmax.f32 %v2354, 0.0
      %v2381 = vmax.f32 %v2355, 0.0
      %v2382 = vmax.f32 %v2356, 0.0
      %v2383 = vmax.f32 %v2357, 0.0
      %v2384 = vmax.f32 %v2358, 0.0
      %v2385 = vmax.f32 %v2359, 0.0
      %v2386 = vmax.f32 %v2360, 0.0
      %v2387 = vmax.f32 %v2361, 0.0
      %v2388 = vmax.f32 %v2362, 0.0
      %v2389 = vmax.f32 %v2363, 0.0
      %v2390 = vmax.f32 %v2364, 0.0
      %v2391 = vmax.f32 %v2365, 0.0
      %v2392 = vmax.f32 %v2366, 0.0
      %v2393 = vld [vmem:[%s13] sm:$0xff]
      %v2394 = vld [vmem:[%s13 + $0x8] sm:$0xff]
      %v2395 = vld [vmem:[%s13 + $0x10] sm:$0xff]
      %v2396 = vld [vmem:[%s13 + $0x18] sm:$0xff]
      %v2397 = vld [vmem:[%s13 + $0x20] sm:$0xff]
      %v2398 = vld [vmem:[%s13 + $0x28] sm:$0xff]
      %v2399 = vld [vmem:[%s13 + $0x30] sm:$0xff]
      %v2400 = vld [vmem:[%s13 + $0x38] sm:$0xff]
      %v2401 = vld [vmem:[%s13 + $0x40] sm:$0xff]
      %v2402 = vld [vmem:[%s13 + $0x48] sm:$0xff]
      %v2403 = vld [vmem:[%s13 + $0x50] sm:$0xff]
      %v2404 = vld [vmem:[%s13 + $0x58] sm:$0xff]
      %v2405 = vld [vmem:[%s13 + $0x60] sm:$0x1]
      %v2406 = vld [vmem:[%s13 + $0x68] sm:$0x1]
      %vm2407 = vcmask 629760
      %v2409 = vsel %vm2407, %v2394, 0
      %v2412 = vsel %vm2407, %v2396, 0
      %v2415 = vsel %vm2407, %v2398, 0
      %v2418 = vsel %vm2407, %v2400, 0
      %v2421 = vsel %vm2407, %v2402, 0
      %v2424 = vsel %vm2407, %v2404, 0
      %v2427 = vsel %vm2407, %v2406, 0
      %vm2429 = vcmask 1044480
      %v2431 = vsel %vm2429, %v2392, 0
      %2433 = vmatprep.subr.mxu0 0.0
      %2434 = vmatpush1.msra.mxu0 %v2367
      %2435 = vmatprep.subr.mxu0 0.0
      %2436 = vmatpush1.msra.mxu0 %v2368
      %2437 = vmatprep.subr.mxu0 0.0
      %2438 = vmatpush1.msra.mxu0 %v2369
      %2439 = vmatprep.subr.mxu0 0.0
      %2440 = vmatpush1.msra.mxu0 %v2370
      %2441 = vmatprep.subr.mxu0 0.0
      %2442 = vmatpush1.msra.mxu0 %v2371
      %2443 = vmatprep.subr.mxu0 0.0
      %2444 = vmatpush1.msra.mxu0 %v2372
      %2445 = vmatprep.subr.mxu0 0.0
      %2446 = vmatpush1.msra.mxu0 %v2373
      %2447 = vmatprep.subr.mxu0 0.0
      %2448 = vmatpush1.msra.mxu0 %v2374
      %2449 = vmatprep.subr.mxu0 0.0
      %2450 = vmatpush1.msra.mxu0 %v2375
      %2451 = vmatprep.subr.mxu0 0.0
      %2452 = vmatpush1.msra.mxu0 %v2376
      %2453 = vmatprep.subr.mxu0 0.0
      %2454 = vmatpush1.msra.mxu0 %v2377
      %2455 = vmatprep.subr.mxu0 0.0
      %2456 = vmatpush1.msra.mxu0 %v2378
      %2457 = vmatprep.subr.mxu0 0.0
      %2458 = vmatpush1.msra.mxu0 %v2379
      %2459 = vmatprep.subr.mxu0 0.0
      %2460 = vmatpush1.msra.mxu0 %v2380
      %2461 = vmatprep.subr.mxu0 0.0
      %2462 = vmatpush1.msra.mxu0 %v2381
      %2463 = vmatprep.subr.mxu0 0.0
      %2464 = vmatpush1.msra.mxu0 %v2382
      %2465 = vmatprep.subr.mxu0 0.0
      %2466 = vmatpush1.msra.mxu0 %v2383
      %2467 = vmatprep.subr.mxu0 0.0
      %2468 = vmatpush1.msra.mxu0 %v2384
      %2469 = vmatprep.subr.mxu0 0.0
      %2470 = vmatpush1.msra.mxu0 %v2385
      %2471 = vmatprep.subr.mxu0 0.0
      %2472 = vmatpush1.msra.mxu0 %v2386
      %2473 = vmatprep.subr.mxu0 0.0
      %2474 = vmatpush1.msra.mxu0 %v2387
      %2475 = vmatprep.subr.mxu0 0.0
      %2476 = vmatpush1.msra.mxu0 %v2388
      %2477 = vmatprep.subr.mxu0 0.0
      %2478 = vmatpush1.msra.mxu0 %v2389
      %2479 = vmatprep.subr.mxu0 0.0
      %2480 = vmatpush1.msra.mxu0 %v2390
      %2481 = vmatprep.subr.mxu0 0.0
      %2482 = vmatpush1.msra.mxu0 %v2391
      %2483 = vmatprep.subr.mxu0 0.0
      %2484 = vmatpush1.msra.mxu0 %v2431
      %2485 = vmatprep.subr.mxu0 0.0
      %2486 = vmatpush1.msra.mxu0 0.0
      %2487 = vmatprep.subr.mxu0 0.0
      %2488 = vmatpush1.msra.mxu0 0.0
      %2489 = vmatprep.subr.mxu0 0.0
      %2490 = vmatpush1.msra.mxu0 0.0
      %2491 = vmatprep.subr.mxu0 0.0
      %2492 = vmatpush1.msra.mxu0 0.0
      %2493 = vmatprep.subr.mxu0 0.0
      %2494 = vmatpush1.msra.mxu0 0.0
      %2495 = vmatprep.subr.mxu0 0.0
      %2496 = vmatpush1.msra.mxu0 0.0
      %2497 = vmatprep.mubr.f32.mxu0 %v2409
      %2498 = vmatmul.mubr.f32.gmra.mrb[0].mxu0 %v2393
      %v2499 = vpop.f32.mrb[0].mxu0
      %v2500 = vadd.f32 0.0, %v2499
      %v2501 = vpop.f32.mrb[0].mxu0
      %2502 = vmatprep.mubr.f32.mxu0 %v2412
      %2503 = vmatmul.mubr.f32.gmra.mrb[0].mxu0 %v2395
      %v2504 = vpop.f32.mrb[0].mxu0
      %v2505 = vadd.f32 0.0, %v2504
      %v2506 = vpop.f32.mrb[0].mxu0
      %2507 = vmatprep.mubr.f32.mxu0 %v2415
      %2508 = vmatmul.mubr.f32.gmra.mrb[0].mxu0 %v2397
      %v2509 = vpop.f32.mrb[0].mxu0
      %v2510 = vadd.f32 0.0, %v2509
      %v2511 = vpop.f32.mrb[0].mxu0
      %2512 = vmatprep.mubr.f32.mxu0 %v2418
      %2513 = vmatmul.mubr.f32.gmra.mrb[0].mxu0 %v2399
      %v2514 = vpop.f32.mrb[0].mxu0
      %v2515 = vadd.f32 0.0, %v2514
      %v2516 = vpop.f32.mrb[0].mxu0
      %2517 = vmatprep.mubr.f32.mxu0 %v2421
      %2518 = vmatmul.mubr.f32.gmra.mrb[0].mxu0 %v2401
      %v2519 = vpop.f32.mrb[0].mxu0
      %v2520 = vadd.f32 0.0, %v2519
      %v2521 = vpop.f32.mrb[0].mxu0
      %2522 = vmatprep.mubr.f32.mxu0 %v2424
      %2523 = vmatmul.mubr.f32.gmra.mrb[0].mxu0 %v2403
      %v2524 = vpop.f32.mrb[0].mxu0
      %v2525 = vadd.f32 0.0, %v2524
      %v2526 = vpop.f32.mrb[0].mxu0
      %2527 = vmatprep.mubr.f32.mxu0 %v2427
      %2528 = vmatmul.mubr.f32.gmra.mrb[0].mxu0 %v2405
      %v2529 = vpop.f32.mrb[0].mxu0
      %v2530 = vadd.f32 0.0, %v2529
      %v2531 = vpop.f32.mrb[0].mxu0
      %2532 = vdwg.mxu0
      %v2533 = vpack.c.bf16 %v527, %v526
      %v2534 = vld [vmem:[%s4] sm:$0x3]
      %v2536 = vsel %vm648, %v2533, 0
      %v2539 = vsel %vm688, %v2534, 0
      %2541 = vmatprep.subr.bf16.mxu0 0
      %2542 = vmatpush1.bf16.msra.mxu0 %v2539
      %2543 = vmatprep.subr.bf16.mxu0 0
      %2544 = vmatpush1.bf16.msra.mxu0 0
      %2545 = vmatprep.subr.bf16.mxu0 0
      %2546 = vmatpush1.bf16.msra.mxu0 0
      %2547 = vmatprep.subr.bf16.mxu0 0
      %2548 = vmatpush1.bf16.msra.mxu0 0
      %2549 = vmatprep.subr.bf16.mxu0 0
      %2550 = vmatpush1.bf16.msra.mxu0 0
      %2551 = vmatprep.subr.bf16.mxu0 0
      %2552 = vmatpush1.bf16.msra.mxu0 0
      %2553 = vmatprep.subr.bf16.mxu0 0
      %2554 = vmatpush1.bf16.msra.mxu0 0
      %2555 = vmatprep.subr.bf16.mxu0 0
      %2556 = vmatpush1.bf16.msra.mxu0 0
      %2557 = vmatprep.subr.bf16.mxu0 0
      %2558 = vmatpush1.bf16.msra.mxu0 0
      %2559 = vmatprep.subr.bf16.mxu0 0
      %2560 = vmatpush1.bf16.msra.mxu0 0
      %2561 = vmatprep.subr.bf16.mxu0 0
      %2562 = vmatpush1.bf16.msra.mxu0 0
      %2563 = vmatprep.subr.bf16.mxu0 0
      %2564 = vmatpush1.bf16.msra.mxu0 0
      %2565 = vmatprep.subr.bf16.mxu0 0
      %2566 = vmatpush1.bf16.msra.mxu0 0
      %2567 = vmatprep.subr.bf16.mxu0 0
      %2568 = vmatpush1.bf16.msra.mxu0 0
      %2569 = vmatprep.subr.bf16.mxu0 0
      %2570 = vmatpush1.bf16.msra.mxu0 0
      %2571 = vmatprep.subr.bf16.mxu0 0
      %2572 = vmatpush1.bf16.msra.mxu0 0
      %2573 = vmatprep.mubr.bf16.mxu0 0
      %2574 = vmatmul.mubr.bf16.gmra.mrb[0].mxu0 %v829
      %v2575 = vpop.f32.mrb[0].mxu0
      %v2576 = vadd.f32 0.0, %v2575
      %v2577 = vpop.f32.mrb[0].mxu0
      %v2578 = vpop.f32.mrb[0].mxu0
      %v2579 = vadd.f32 0.0, %v2578
      %v2580 = vpop.f32.mrb[0].mxu0
      %2581 = vmatprep.mubr.bf16.mxu0 0
      %2582 = vmatmul.mubr.bf16.gmra.mrb[0].mxu0 %v831
      %v2583 = vpop.f32.mrb[0].mxu0
      %v2584 = vadd.f32 0.0, %v2583
      %v2585 = vpop.f32.mrb[0].mxu0
      %v2586 = vpop.f32.mrb[0].mxu0
      %v2587 = vadd.f32 0.0, %v2586
      %v2588 = vpop.f32.mrb[0].mxu0
      %2589 = vmatprep.mubr.bf16.mxu0 0
      %2590 = vmatmul.mubr.bf16.gmra.mrb[0].mxu0 %v833
      %v2591 = vpop.f32.mrb[0].mxu0
      %v2592 = vadd.f32 0.0, %v2591
      %v2593 = vpop.f32.mrb[0].mxu0
      %v2594 = vpop.f32.mrb[0].mxu0
      %v2595 = vadd.f32 0.0, %v2594
      %v2596 = vpop.f32.mrb[0].mxu0
      %2597 = vmatprep.mubr.bf16.mxu0 0
      %2598 = vmatmul.mubr.bf16.gmra.mrb[0].mxu0 %v835
      %v2599 = vpop.f32.mrb[0].mxu0
      %v2600 = vadd.f32 0.0, %v2599
      %v2601 = vpop.f32.mrb[0].mxu0
      %v2602 = vpop.f32.mrb[0].mxu0
      %v2603 = vadd.f32 0.0, %v2602
      %v2604 = vpop.f32.mrb[0].mxu0
      %2605 = vmatprep.mubr.bf16.mxu0 0
      %2606 = vmatmul.mubr.bf16.gmra.mrb[0].mxu0 %v837
      %v2607 = vpop.f32.mrb[0].mxu0
      %v2608 = vadd.f32 0.0, %v2607
      %v2609 = vpop.f32.mrb[0].mxu0
      %v2610 = vpop.f32.mrb[0].mxu0
      %v2611 = vadd.f32 0.0, %v2610
      %v2612 = vpop.f32.mrb[0].mxu0
      %2613 = vmatprep.mubr.bf16.mxu0 0
      %2614 = vmatmul.mubr.bf16.gmra.mrb[0].mxu0 %v839
      %v2615 = vpop.f32.mrb[0].mxu0
      %v2616 = vadd.f32 0.0, %v2615
      %v2617 = vpop.f32.mrb[0].mxu0
      %v2618 = vpop.f32.mrb[0].mxu0
      %v2619 = vadd.f32 0.0, %v2618
      %v2620 = vpop.f32.mrb[0].mxu0
      %2621 = vmatprep.mubr.bf16.mxu0 0
      %2622 = vmatmul.mubr.bf16.gmra.mrb[0].mxu0 %v841
      %v2623 = vpop.f32.mrb[0].mxu0
      %v2624 = vadd.f32 0.0, %v2623
      %v2625 = vpop.f32.mrb[0].mxu0
      %v2626 = vpop.f32.mrb[0].mxu0
      %v2627 = vadd.f32 0.0, %v2626
      %v2628 = vpop.f32.mrb[0].mxu0
      %2629 = vmatprep.mubr.bf16.mxu0 0
      %2630 = vmatmul.mubr.bf16.gmra.mrb[0].mxu0 %v843
      %v2631 = vpop.f32.mrb[0].mxu0
      %v2632 = vadd.f32 0.0, %v2631
      %v2633 = vpop.f32.mrb[0].mxu0
      %v2634 = vpop.f32.mrb[0].mxu0
      %v2635 = vadd.f32 0.0, %v2634
      %v2636 = vpop.f32.mrb[0].mxu0
      %2637 = vmatprep.mubr.bf16.mxu0 0
      %2638 = vmatmul.mubr.bf16.gmra.mrb[0].mxu0 %v845
      %v2639 = vpop.f32.mrb[0].mxu0
      %v2640 = vadd.f32 0.0, %v2639
      %v2641 = vpop.f32.mrb[0].mxu0
      %v2642 = vpop.f32.mrb[0].mxu0
      %v2643 = vadd.f32 0.0, %v2642
      %v2644 = vpop.f32.mrb[0].mxu0
      %2645 = vmatprep.mubr.bf16.mxu0 0
      %2646 = vmatmul.mubr.bf16.gmra.mrb[0].mxu0 %v847
      %v2647 = vpop.f32.mrb[0].mxu0
      %v2648 = vadd.f32 0.0, %v2647
      %v2649 = vpop.f32.mrb[0].mxu0
      %v2650 = vpop.f32.mrb[0].mxu0
      %v2651 = vadd.f32 0.0, %v2650
      %v2652 = vpop.f32.mrb[0].mxu0
      %2653 = vmatprep.mubr.bf16.mxu0 0
      %2654 = vmatmul.mubr.bf16.gmra.mrb[0].mxu0 %v849
      %v2655 = vpop.f32.mrb[0].mxu0
      %v2656 = vadd.f32 0.0, %v2655
      %v2657 = vpop.f32.mrb[0].mxu0
      %v2658 = vpop.f32.mrb[0].mxu0
      %v2659 = vadd.f32 0.0, %v2658
      %v2660 = vpop.f32.mrb[0].mxu0
      %2661 = vmatprep.mubr.bf16.mxu0 0
      %2662 = vmatmul.mubr.bf16.gmra.mrb[0].mxu0 %v851
      %v2663 = vpop.f32.mrb[0].mxu0
      %v2664 = vadd.f32 0.0, %v2663
      %v2665 = vpop.f32.mrb[0].mxu0
      %v2666 = vpop.f32.mrb[0].mxu0
      %v2667 = vadd.f32 0.0, %v2666
      %v2668 = vpop.f32.mrb[0].mxu0
      %2669 = vmatprep.mubr.bf16.mxu0 0
      %2670 = vmatmul.mubr.bf16.gmra.mrb[0].mxu0 %v853
      %v2671 = vpop.f32.mrb[0].mxu0
      %v2672 = vadd.f32 0.0, %v2671
      %v2673 = vpop.f32.mrb[0].mxu0
      %v2674 = vpop.f32.mrb[0].mxu0
      %v2675 = vadd.f32 0.0, %v2674
      %v2676 = vpop.f32.mrb[0].mxu0
      %2677 = vmatprep.mubr.bf16.mxu0 0
      %2678 = vmatmul.mubr.bf16.gmra.mrb[0].mxu0 %v1245
      %v2679 = vpop.f32.mrb[0].mxu0
      %v2680 = vadd.f32 0.0, %v2679
      %v2681 = vpop.f32.mrb[0].mxu0
      %v2682 = vpop.f32.mrb[0].mxu0
      %v2683 = vadd.f32 0.0, %v2682
      %v2684 = vpop.f32.mrb[0].mxu0
      %2685 = vmatprep.mubr.bf16.mxu0 0
      %2686 = vmatmul.mubr.bf16.gmra.mrb[0].mxu0 %v1775
      %v2687 = vpop.f32.mrb[0].mxu0
      %v2688 = vadd.f32 0.0, %v2687
      %v2689 = vpop.f32.mrb[0].mxu0
      %v2690 = vpop.f32.mrb[0].mxu0
      %v2691 = vadd.f32 0.0, %v2690
      %v2692 = vpop.f32.mrb[0].mxu0
      %2693 = vmatprep.mubr.bf16.mxu0 0
      %2694 = vmatmul.mubr.bf16.gmra.mrb[0].mxu0 %v2536
      %v2695 = vpop.f32.mrb[0].mxu0
      %v2696 = vadd.f32 0.0, %v2695
      %v2697 = vpop.f32.mrb[0].mxu0
      %v2698 = vpop.f32.mrb[0].mxu0
      %v2699 = vadd.f32 0.0, %v2698
      %v2700 = vpop.f32.mrb[0].mxu0
      %2701 = vdwg.mxu0
      %v2702 = vld [vmem:[%s5] sm:$0x1]
      %v2704 = vlaneseq
      %v2705 = vshrl.u32 %v2704, 7
      %v2706 = vsub.s32 0, %v2705
      %v2707 = vrot.slane %v2702, %v2706
      %v2709 = vmul.f32 %v2576, %v2707
      %v2710 = vmul.f32 %v2579, %v2707
      %v2711 = vmul.f32 %v2584, %v2707
      %v2712 = vmul.f32 %v2587, %v2707
      %v2713 = vmul.f32 %v2592, %v2707
      %v2714 = vmul.f32 %v2595, %v2707
      %v2715 = vmul.f32 %v2600, %v2707
      %v2716 = vmul.f32 %v2603, %v2707
      %v2717 = vmul.f32 %v2608, %v2707
      %v2718 = vmul.f32 %v2611, %v2707
      %v2719 = vmul.f32 %v2616, %v2707
      %v2720 = vmul.f32 %v2619, %v2707
      %v2721 = vmul.f32 %v2624, %v2707
      %v2722 = vmul.f32 %v2627, %v2707
      %v2723 = vmul.f32 %v2632, %v2707
      %v2724 = vmul.f32 %v2635, %v2707
      %v2725 = vmul.f32 %v2640, %v2707
      %v2726 = vmul.f32 %v2643, %v2707
      %v2727 = vmul.f32 %v2648, %v2707
      %v2728 = vmul.f32 %v2651, %v2707
      %v2729 = vmul.f32 %v2656, %v2707
      %v2730 = vmul.f32 %v2659, %v2707
      %v2731 = vmul.f32 %v2664, %v2707
      %v2732 = vmul.f32 %v2667, %v2707
      %v2733 = vmul.f32 %v2672, %v2707
      %v2734 = vmul.f32 %v2675, %v2707
      %v2735 = vmul.f32 %v2680, %v2707
      %v2736 = vmul.f32 %v2683, %v2707
      %v2737 = vmul.f32 %v2688, %v2707
      %v2738 = vmul.f32 %v2691, %v2707
      %v2739 = vmul.f32 %v2696, %v2707
      %v2740 = vmul.f32 %v2699, %v2707
      %v2741 = vld [vmem:[%s6] sm:$0x1]
      %v2743 = vlaneseq
      %v2744 = vshrl.u32 %v2743, 7
      %v2745 = vsub.s32 0, %v2744
      %v2746 = vrot.slane %v2741, %v2745
      %v2748 = vadd.f32 %v2709, %v2746
      %v2749 = vadd.f32 %v2710, %v2746
      %v2750 = vadd.f32 %v2711, %v2746
      %v2751 = vadd.f32 %v2712, %v2746
      %v2752 = vadd.f32 %v2713, %v2746
      %v2753 = vadd.f32 %v2714, %v2746
      %v2754 = vadd.f32 %v2715, %v2746
      %v2755 = vadd.f32 %v2716, %v2746
      %v2756 = vadd.f32 %v2717, %v2746
      %v2757 = vadd.f32 %v2718, %v2746
      %v2758 = vadd.f32 %v2719, %v2746
      %v2759 = vadd.f32 %v2720, %v2746
      %v2760 = vadd.f32 %v2721, %v2746
      %v2761 = vadd.f32 %v2722, %v2746
      %v2762 = vadd.f32 %v2723, %v2746
      %v2763 = vadd.f32 %v2724, %v2746
      %v2764 = vadd.f32 %v2725, %v2746
      %v2765 = vadd.f32 %v2726, %v2746
      %v2766 = vadd.f32 %v2727, %v2746
      %v2767 = vadd.f32 %v2728, %v2746
      %v2768 = vadd.f32 %v2729, %v2746
      %v2769 = vadd.f32 %v2730, %v2746
      %v2770 = vadd.f32 %v2731, %v2746
      %v2771 = vadd.f32 %v2732, %v2746
      %v2772 = vadd.f32 %v2733, %v2746
      %v2773 = vadd.f32 %v2734, %v2746
      %v2774 = vadd.f32 %v2735, %v2746
      %v2775 = vadd.f32 %v2736, %v2746
      %v2776 = vadd.f32 %v2737, %v2746
      %v2777 = vadd.f32 %v2738, %v2746
      %v2778 = vadd.f32 %v2739, %v2746
      %v2779 = vadd.f32 %v2740, %v2746
      %v2780 = vmax.f32 %v2748, 0.0
      %v2781 = vmax.f32 %v2749, 0.0
      %v2782 = vmax.f32 %v2750, 0.0
      %v2783 = vmax.f32 %v2751, 0.0
      %v2784 = vmax.f32 %v2752, 0.0
      %v2785 = vmax.f32 %v2753, 0.0
      %v2786 = vmax.f32 %v2754, 0.0
      %v2787 = vmax.f32 %v2755, 0.0
      %v2788 = vmax.f32 %v2756, 0.0
      %v2789 = vmax.f32 %v2757, 0.0
      %v2790 = vmax.f32 %v2758, 0.0
      %v2791 = vmax.f32 %v2759, 0.0
      %v2792 = vmax.f32 %v2760, 0.0
      %v2793 = vmax.f32 %v2761, 0.0
      %v2794 = vmax.f32 %v2762, 0.0
      %v2795 = vmax.f32 %v2763, 0.0
      %v2796 = vmax.f32 %v2764, 0.0
      %v2797 = vmax.f32 %v2765, 0.0
      %v2798 = vmax.f32 %v2766, 0.0
      %v2799 = vmax.f32 %v2767, 0.0
      %v2800 = vmax.f32 %v2768, 0.0
      %v2801 = vmax.f32 %v2769, 0.0
      %v2802 = vmax.f32 %v2770, 0.0
      %v2803 = vmax.f32 %v2771, 0.0
      %v2804 = vmax.f32 %v2772, 0.0
      %v2805 = vmax.f32 %v2773, 0.0
      %v2806 = vmax.f32 %v2774, 0.0
      %v2807 = vmax.f32 %v2775, 0.0
      %v2808 = vmax.f32 %v2776, 0.0
      %v2809 = vmax.f32 %v2777, 0.0
      %v2810 = vmax.f32 %v2778, 0.0
      %v2811 = vmax.f32 %v2779, 0.0
      %vm2812 = vcmask 64512
      %2813 = vst.msk [vmem:[#allocation2] sm:$0xff] %vm2812, 0.0
      %2814 = vst.msk [vmem:[#allocation2 + $0x8] sm:$0xff] %vm2812, 0.0
      %2815 = vst.msk [vmem:[#allocation2 + $0x10] sm:$0xff] %vm2812, 0.0
      %2816 = vst.msk [vmem:[#allocation2 + $0x18] sm:$0xff] %vm2812, 0.0
      %2817 = vst.msk [vmem:[#allocation2 + $0x20] sm:$0xff] %vm2812, 0.0
      %2818 = vst.msk [vmem:[#allocation2 + $0x28] sm:$0xff] %vm2812, 0.0
      %2819 = vst.msk [vmem:[#allocation2 + $0x30] sm:$0xff] %vm2812, 0.0
      %2820 = vst.msk [vmem:[#allocation2 + $0x38] sm:$0xff] %vm2812, 0.0
      %2821 = vst.msk [vmem:[#allocation2 + $0x40] sm:$0xff] %vm2812, 0.0
      %2822 = vst.msk [vmem:[#allocation2 + $0x48] sm:$0xff] %vm2812, 0.0
      %2823 = vst.msk [vmem:[#allocation2 + $0x50] sm:$0xff] %vm2812, 0.0
      %2824 = vst.msk [vmem:[#allocation2 + $0x58] sm:$0xff] %vm2812, 0.0
      %2825 = vst.msk [vmem:[#allocation2 + $0x60] sm:$0xff] %vm2812, 0.0
      %2826 = vst.msk [vmem:[#allocation2 + $0x68] sm:$0xff] %vm2812, 0.0
      %2827 = vst.msk [vmem:[#allocation2 + $0x70] sm:$0xff] %vm2812, 0.0
      %2828 = vst.msk [vmem:[#allocation2 + $0x78] sm:$0xff] %vm2812, 0.0
      %2829 = vst.msk [vmem:[#allocation2 + $0x80] sm:$0xff] %vm2812, 0.0
      %2830 = vst.msk [vmem:[#allocation2 + $0x88] sm:$0xff] %vm2812, 0.0
      %2831 = vst.msk [vmem:[#allocation2 + $0x90] sm:$0xff] %vm2812, 0.0
      %2832 = vst.msk [vmem:[#allocation2 + $0x98] sm:$0xff] %vm2812, 0.0
      %2833 = vst.msk [vmem:[#allocation2 + $0xa0] sm:$0xff] %vm2812, 0.0
      %2834 = vst.msk [vmem:[#allocation2 + $0xa8] sm:$0xff] %vm2812, 0.0
      %2835 = vst.msk [vmem:[#allocation2 + $0xb0] sm:$0xff] %vm2812, 0.0
      %2836 = vst.msk [vmem:[#allocation2 + $0xb8] sm:$0xff] %vm2812, 0.0
      %2837 = vst.msk [vmem:[#allocation2 + $0xc0] sm:$0xff] %vm2812, 0.0
      %2838 = vst.msk [vmem:[#allocation2 + $0xc8] sm:$0xff] %vm2812, 0.0
      %2839 = vst.msk [vmem:[#allocation2 + $0xd0] sm:$0xff] %vm2812, 0.0
      %2840 = vst.msk [vmem:[#allocation2 + $0xd8] sm:$0xff] %vm2812, 0.0
      %2841 = vst.msk [vmem:[#allocation2 + $0xe0] sm:$0xff] %vm2812, 0.0
      %2842 = vst.msk [vmem:[#allocation2 + $0xe8] sm:$0xff] %vm2812, 0.0
      %2843 = vst.msk [vmem:[#allocation2 + $0xf0] sm:$0xff] %vm2812, 0.0
      %2844 = vst.msk [vmem:[#allocation2 + $0xf8] sm:$0xff] %vm2812, 0.0
      %2845 = vst.msk [vmem:[#allocation2 + $0x100] sm:$0xff] %vm2812, 0.0
      %2846 = vst.msk [vmem:[#allocation2 + $0x108] sm:$0xff] %vm2812, 0.0
      %2847 = vst.msk [vmem:[#allocation2 + $0x110] sm:$0xff] %vm2812, 0.0
      %2848 = vst.msk [vmem:[#allocation2 + $0x118] sm:$0xff] %vm2812, 0.0
      %2849 = vst.msk [vmem:[#allocation2 + $0x120] sm:$0xff] %vm2812, 0.0
      %2850 = vst.msk [vmem:[#allocation2 + $0x128] sm:$0xff] %vm2812, 0.0
      %2851 = vst.msk [vmem:[#allocation2 + $0x130] sm:$0xff] %vm2812, 0.0
      %2852 = vst.msk [vmem:[#allocation2 + $0x138] sm:$0xff] %vm2812, 0.0
      %vm2853 = vcmask 60416
      %2854 = vst.msk [vmem:[#allocation2 + $0x140] sm:$0xf] %vm2853, 0.0
      %2855 = vst.msk [vmem:[#allocation2 + $0x13] sm:$0xff] %vm2812, %v2780
      %2856 = vst.msk [vmem:[#allocation2 + $0x1b] sm:$0xff] %vm2812, %v2781
      %2857 = vst.msk [vmem:[#allocation2 + $0x25] sm:$0xff] %vm2812, %v2782
      %2858 = vst.msk [vmem:[#allocation2 + $0x2d] sm:$0xff] %vm2812, %v2783
      %2859 = vst.msk [vmem:[#allocation2 + $0x37] sm:$0xff] %vm2812, %v2784
      %2860 = vst.msk [vmem:[#allocation2 + $0x3f] sm:$0xff] %vm2812, %v2785
      %2861 = vst.msk [vmem:[#allocation2 + $0x49] sm:$0xff] %vm2812, %v2786
      %2862 = vst.msk [vmem:[#allocation2 + $0x51] sm:$0xff] %vm2812, %v2787
      %2863 = vst.msk [vmem:[#allocation2 + $0x5b] sm:$0xff] %vm2812, %v2788
      %2864 = vst.msk [vmem:[#allocation2 + $0x63] sm:$0xff] %vm2812, %v2789
      %2865 = vst.msk [vmem:[#allocation2 + $0x6d] sm:$0xff] %vm2812, %v2790
      %2866 = vst.msk [vmem:[#allocation2 + $0x75] sm:$0xff] %vm2812, %v2791
      %2867 = vst.msk [vmem:[#allocation2 + $0x7f] sm:$0xff] %vm2812, %v2792
      %2868 = vst.msk [vmem:[#allocation2 + $0x87] sm:$0xff] %vm2812, %v2793
      %2869 = vst.msk [vmem:[#allocation2 + $0x91] sm:$0xff] %vm2812, %v2794
      %2870 = vst.msk [vmem:[#allocation2 + $0x99] sm:$0xff] %vm2812, %v2795
      %2871 = vst.msk [vmem:[#allocation2 + $0xa3] sm:$0xff] %vm2812, %v2796
      %2872 = vst.msk [vmem:[#allocation2 + $0xab] sm:$0xff] %vm2812, %v2797
      %2873 = vst.msk [vmem:[#allocation2 + $0xb5] sm:$0xff] %vm2812, %v2798
      %2874 = vst.msk [vmem:[#allocation2 + $0xbd] sm:$0xff] %vm2812, %v2799
      %2875 = vst.msk [vmem:[#allocation2 + $0xc7] sm:$0xff] %vm2812, %v2800
      %2876 = vst.msk [vmem:[#allocation2 + $0xcf] sm:$0xff] %vm2812, %v2801
      %2877 = vst.msk [vmem:[#allocation2 + $0xd9] sm:$0xff] %vm2812, %v2802
      %2878 = vst.msk [vmem:[#allocation2 + $0xe1] sm:$0xff] %vm2812, %v2803
      %2879 = vst.msk [vmem:[#allocation2 + $0xeb] sm:$0xff] %vm2812, %v2804
      %2880 = vst.msk [vmem:[#allocation2 + $0xf3] sm:$0xff] %vm2812, %v2805
      %2881 = vst.msk [vmem:[#allocation2 + $0xfd] sm:$0xff] %vm2812, %v2806
      %2882 = vst.msk [vmem:[#allocation2 + $0x105] sm:$0xff] %vm2812, %v2807
      %2883 = vst.msk [vmem:[#allocation2 + $0x10f] sm:$0xff] %vm2812, %v2808
      %2884 = vst.msk [vmem:[#allocation2 + $0x117] sm:$0xff] %vm2812, %v2809
      %2885 = vst.msk [vmem:[#allocation2 + $0x121] sm:$0xff] %vm2812, %v2810
      %2886 = vst.msk [vmem:[#allocation2 + $0x129] sm:$0xff] %vm2812, %v2811
      %v2887 = vld [vmem:[#allocation2] sm:$0xff]
      %v2888 = vld [vmem:[#allocation2 + $0x8] sm:$0xff]
      %v2889 = vld [vmem:[#allocation2 + $0x10] sm:$0xff]
      %v2890 = vld [vmem:[#allocation2 + $0x18] sm:$0xff]
      %v2891 = vld [vmem:[#allocation2 + $0x20] sm:$0xff]
      %v2892 = vld [vmem:[#allocation2 + $0x28] sm:$0xff]
      %v2893 = vld [vmem:[#allocation2 + $0x30] sm:$0xff]
      %v2894 = vld [vmem:[#allocation2 + $0x38] sm:$0xff]
      %v2895 = vld [vmem:[#allocation2 + $0x40] sm:$0xff]
      %v2896 = vld [vmem:[#allocation2 + $0x48] sm:$0xff]
      %v2897 = vld [vmem:[#allocation2 + $0x50] sm:$0xff]
      %v2898 = vld [vmem:[#allocation2 + $0x58] sm:$0xff]
      %v2899 = vld [vmem:[#allocation2 + $0x60] sm:$0xff]
      %v2900 = vld [vmem:[#allocation2 + $0x68] sm:$0xff]
      %v2901 = vld [vmem:[#allocation2 + $0x70] sm:$0xff]
      %v2902 = vld [vmem:[#allocation2 + $0x78] sm:$0xff]
      %v2903 = vld [vmem:[#allocation2 + $0x80] sm:$0xff]
      %v2904 = vld [vmem:[#allocation2 + $0x88] sm:$0xff]
      %v2905 = vld [vmem:[#allocation2 + $0x90] sm:$0xff]
      %v2906 = vld [vmem:[#allocation2 + $0x98] sm:$0xff]
      %v2907 = vld [vmem:[#allocation2 + $0xa0] sm:$0xff]
      %v2908 = vld [vmem:[#allocation2 + $0xa8] sm:$0xff]
      %v2909 = vld [vmem:[#allocation2 + $0xb0] sm:$0xff]
      %v2910 = vld [vmem:[#allocation2 + $0xb8] sm:$0xff]
      %v2911 = vld [vmem:[#allocation2 + $0xc0] sm:$0xff]
      %v2912 = vld [vmem:[#allocation2 + $0xc8] sm:$0xff]
      %v2913 = vld [vmem:[#allocation2 + $0xd0] sm:$0xff]
      %v2914 = vld [vmem:[#allocation2 + $0xd8] sm:$0xff]
      %v2915 = vld [vmem:[#allocation2 + $0xe0] sm:$0xff]
      %v2916 = vld [vmem:[#allocation2 + $0xe8] sm:$0xff]
      %v2917 = vld [vmem:[#allocation2 + $0xf0] sm:$0xff]
      %v2918 = vld [vmem:[#allocation2 + $0xf8] sm:$0xff]
      %v2919 = vld [vmem:[#allocation2 + $0x100] sm:$0xff]
      %v2920 = vld [vmem:[#allocation2 + $0x108] sm:$0xff]
      %v2921 = vld [vmem:[#allocation2 + $0x110] sm:$0xff]
      %v2922 = vld [vmem:[#allocation2 + $0x118] sm:$0x3f]
      %v2923 = vpack.c.bf16 %v2888, %v2887
      %v2924 = vpack.c.bf16 %v2890, %v2889
      %v2925 = vpack.c.bf16 %v2892, %v2891
      %v2926 = vpack.c.bf16 %v2894, %v2893
      %v2927 = vpack.c.bf16 %v2896, %v2895
      %v2928 = vpack.c.bf16 %v2898, %v2897
      %v2929 = vpack.c.bf16 %v2900, %v2899
      %v2930 = vpack.c.bf16 %v2902, %v2901
      %v2931 = vpack.c.bf16 %v2904, %v2903
      %v2932 = vpack.c.bf16 %v2906, %v2905
      %v2933 = vpack.c.bf16 %v2908, %v2907
      %v2934 = vpack.c.bf16 %v2910, %v2909
      %v2935 = vpack.c.bf16 %v2912, %v2911
      %v2936 = vpack.c.bf16 %v2914, %v2913
      %v2937 = vpack.c.bf16 %v2916, %v2915
      %v2938 = vpack.c.bf16 %v2918, %v2917
      %v2939 = vpack.c.bf16 %v2920, %v2919
      %v2940 = vpack.c.bf16 %v2922, %v2921
      %v2941 = vld [vmem:[%s7] sm:$0xf]
      %v2942 = vld [vmem:[#allocation2 + $0x1] sm:$0xff]
      %v2943 = vld [vmem:[#allocation2 + $0x9] sm:$0xff]
      %v2944 = vld [vmem:[#allocation2 + $0x11] sm:$0xff]
      %v2945 = vld [vmem:[#allocation2 + $0x19] sm:$0xff]
      %v2946 = vld [vmem:[#allocation2 + $0x21] sm:$0xff]
      %v2947 = vld [vmem:[#allocation2 + $0x29] sm:$0xff]
      %v2948 = vld [vmem:[#allocation2 + $0x31] sm:$0xff]
      %v2949 = vld [vmem:[#allocation2 + $0x39] sm:$0xff]
      %v2950 = vld [vmem:[#allocation2 + $0x41] sm:$0xff]
      %v2951 = vld [vmem:[#allocation2 + $0x49] sm:$0xff]
      %v2952 = vld [vmem:[#allocation2 + $0x51] sm:$0xff]
      %v2953 = vld [vmem:[#allocation2 + $0x59] sm:$0xff]
      %v2954 = vld [vmem:[#allocation2 + $0x61] sm:$0xff]
      %v2955 = vld [vmem:[#allocation2 + $0x69] sm:$0xff]
      %v2956 = vld [vmem:[#allocation2 + $0x71] sm:$0xff]
      %v2957 = vld [vmem:[#allocation2 + $0x79] sm:$0xff]
      %v2958 = vld [vmem:[#allocation2 + $0x81] sm:$0xff]
      %v2959 = vld [vmem:[#allocation2 + $0x89] sm:$0xff]
      %v2960 = vld [vmem:[#allocation2 + $0x91] sm:$0xff]
      %v2961 = vld [vmem:[#allocation2 + $0x99] sm:$0xff]
      %v2962 = vld [vmem:[#allocation2 + $0xa1] sm:$0xff]
      %v2963 = vld [vmem:[#allocation2 + $0xa9] sm:$0xff]
      %v2964 = vld [vmem:[#allocation2 + $0xb1] sm:$0xff]
      %v2965 = vld [vmem:[#allocation2 + $0xb9] sm:$0xff]
      %v2966 = vld [vmem:[#allocation2 + $0xc1] sm:$0xff]
      %v2967 = vld [vmem:[#allocation2 + $0xc9] sm:$0xff]
      %v2968 = vld [vmem:[#allocation2 + $0xd1] sm:$0xff]
      %v2969 = vld [vmem:[#allocation2 + $0xd9] sm:$0xff]
      %v2970 = vld [vmem:[#allocation2 + $0xe1] sm:$0xff]
      %v2971 = vld [vmem:[#allocation2 + $0xe9] sm:$0xff]
      %v2972 = vld [vmem:[#allocation2 + $0xf1] sm:$0xff]
      %v2973 = vld [vmem:[#allocation2 + $0xf9] sm:$0xff]
      %v2974 = vld [vmem:[#allocation2 + $0x101] sm:$0xff]
      %v2975 = vld [vmem:[#allocation2 + $0x109] sm:$0xff]
      %v2976 = vld [vmem:[#allocation2 + $0x111] sm:$0xff]
      %v2977 = vld [vmem:[#allocation2 + $0x119] sm:$0x3f]
      %v2978 = vpack.c.bf16 %v2943, %v2942
      %v2979 = vpack.c.bf16 %v2945, %v2944
      %v2980 = vpack.c.bf16 %v2947, %v2946
      %v2981 = vpack.c.bf16 %v2949, %v2948
      %v2982 = vpack.c.bf16 %v2951, %v2950
      %v2983 = vpack.c.bf16 %v2953, %v2952
      %v2984 = vpack.c.bf16 %v2955, %v2954
      %v2985 = vpack.c.bf16 %v2957, %v2956
      %v2986 = vpack.c.bf16 %v2959, %v2958
      %v2987 = vpack.c.bf16 %v2961, %v2960
      %v2988 = vpack.c.bf16 %v2963, %v2962
      %v2989 = vpack.c.bf16 %v2965, %v2964
      %v2990 = vpack.c.bf16 %v2967, %v2966
      %v2991 = vpack.c.bf16 %v2969, %v2968
      %v2992 = vpack.c.bf16 %v2971, %v2970
      %v2993 = vpack.c.bf16 %v2973, %v2972
      %v2994 = vpack.c.bf16 %v2975, %v2974
      %v2995 = vpack.c.bf16 %v2977, %v2976
      %s2996 = scalar_lea.vmem %s7, 4
      %v2997 = vld [vmem:[%s2996] sm:$0xf]
      %v2999 = vsel %vm2812, %v2978, 0
      %v3002 = vsel %vm2812, %v2979, 0
      %v3005 = vsel %vm2812, %v2980, 0
      %v3008 = vsel %vm2812, %v2981, 0
      %v3011 = vsel %vm2812, %v2982, 0
      %v3014 = vsel %vm2812, %v2983, 0
      %v3017 = vsel %vm2812, %v2984, 0
      %v3020 = vsel %vm2812, %v2985, 0
      %v3023 = vsel %vm2812, %v2986, 0
      %v3026 = vsel %vm2812, %v2987, 0
      %v3029 = vsel %vm2812, %v2988, 0
      %v3032 = vsel %vm2812, %v2989, 0
      %v3035 = vsel %vm2812, %v2990, 0
      %v3038 = vsel %vm2812, %v2991, 0
      %v3041 = vsel %vm2812, %v2992, 0
      %v3044 = vsel %vm2812, %v2993, 0
      %v3047 = vsel %vm2812, %v2994, 0
      %v3050 = vsel %vm2812, %v2995, 0
      %vm3052 = vcmask 1043456
      %v3054 = vsel %vm3052, %v2997, 0
      %3056 = vmatprep.subr.bf16.mxu0 0
      %3057 = vmatpush1.bf16.msra.mxu0 %v3054
      %3058 = vmatprep.subr.bf16.mxu0 0
      %3059 = vmatpush1.bf16.msra.mxu0 0
      %3060 = vmatprep.subr.bf16.mxu0 0
      %3061 = vmatpush1.bf16.msra.mxu0 0
      %3062 = vmatprep.subr.bf16.mxu0 0
      %3063 = vmatpush1.bf16.msra.mxu0 0
      %3064 = vmatprep.subr.bf16.mxu0 0
      %3065 = vmatpush1.bf16.msra.mxu0 0
      %3066 = vmatprep.subr.bf16.mxu0 0
      %3067 = vmatpush1.bf16.msra.mxu0 0
      %3068 = vmatprep.subr.bf16.mxu0 0
      %3069 = vmatpush1.bf16.msra.mxu0 0
      %3070 = vmatprep.subr.bf16.mxu0 0
      %3071 = vmatpush1.bf16.msra.mxu0 0
      %3072 = vmatprep.subr.bf16.mxu0 0
      %3073 = vmatpush1.bf16.msra.mxu0 0
      %3074 = vmatprep.subr.bf16.mxu0 0
      %3075 = vmatpush1.bf16.msra.mxu0 0
      %3076 = vmatprep.subr.bf16.mxu0 0
      %3077 = vmatpush1.bf16.msra.mxu0 0
      %3078 = vmatprep.subr.bf16.mxu0 0
      %3079 = vmatpush1.bf16.msra.mxu0 0
      %3080 = vmatprep.subr.bf16.mxu0 0
      %3081 = vmatpush1.bf16.msra.mxu0 0
      %3082 = vmatprep.subr.bf16.mxu0 0
      %3083 = vmatpush1.bf16.msra.mxu0 0
      %3084 = vmatprep.subr.bf16.mxu0 0
      %3085 = vmatpush1.bf16.msra.mxu0 0
      %3086 = vmatprep.subr.bf16.mxu0 0
      %3087 = vmatpush1.bf16.msra.mxu0 0
      %3088 = vmatprep.mubr.bf16.mxu0 0
      %3089 = vmatmul.mubr.bf16.gmra.mrb[0].mxu0 %v2999
      %v3090 = vpop.f32.mrb[0].mxu0
      %v3091 = vadd.f32 0.0, %v3090
      %v3092 = vpop.f32.mrb[0].mxu0
      %v3093 = vpop.f32.mrb[0].mxu0
      %v3094 = vadd.f32 0.0, %v3093
      %v3095 = vpop.f32.mrb[0].mxu0
      %3096 = vmatprep.mubr.bf16.mxu0 0
      %3097 = vmatmul.mubr.bf16.gmra.mrb[0].mxu0 %v3002
      %v3098 = vpop.f32.mrb[0].mxu0
      %v3099 = vadd.f32 0.0, %v3098
      %v3100 = vpop.f32.mrb[0].mxu0
      %v3101 = vpop.f32.mrb[0].mxu0
      %v3102 = vadd.f32 0.0, %v3101
      %v3103 = vpop.f32.mrb[0].mxu0
      %3104 = vmatprep.mubr.bf16.mxu0 0
      %3105 = vmatmul.mubr.bf16.gmra.mrb[0].mxu0 %v3005
      %v3106 = vpop.f32.mrb[0].mxu0
      %v3107 = vadd.f32 0.0, %v3106
      %v3108 = vpop.f32.mrb[0].mxu0
      %v3109 = vpop.f32.mrb[0].mxu0
      %v3110 = vadd.f32 0.0, %v3109
      %v3111 = vpop.f32.mrb[0].mxu0
      %3112 = vmatprep.mubr.bf16.mxu0 0
      %3113 = vmatmul.mubr.bf16.gmra.mrb[0].mxu0 %v3008
      %v3114 = vpop.f32.mrb[0].mxu0
      %v3115 = vadd.f32 0.0, %v3114
      %v3116 = vpop.f32.mrb[0].mxu0
      %v3117 = vpop.f32.mrb[0].mxu0
      %v3118 = vadd.f32 0.0, %v3117
      %v3119 = vpop.f32.mrb[0].mxu0
      %3120 = vmatprep.mubr.bf16.mxu0 0
      %3121 = vmatmul.mubr.bf16.gmra.mrb[0].mxu0 %v3011
      %v3122 = vpop.f32.mrb[0].mxu0
      %v3123 = vadd.f32 0.0, %v3122
      %v3124 = vpop.f32.mrb[0].mxu0
      %v3125 = vpop.f32.mrb[0].mxu0
      %v3126 = vadd.f32 0.0, %v3125
      %v3127 = vpop.f32.mrb[0].mxu0
      %3128 = vmatprep.mubr.bf16.mxu0 0
      %3129 = vmatmul.mubr.bf16.gmra.mrb[0].mxu0 %v3014
      %v3130 = vpop.f32.mrb[0].mxu0
      %v3131 = vadd.f32 0.0, %v3130
      %v3132 = vpop.f32.mrb[0].mxu0
      %v3133 = vpop.f32.mrb[0].mxu0
      %v3134 = vadd.f32 0.0, %v3133
      %v3135 = vpop.f32.mrb[0].mxu0
      %3136 = vmatprep.mubr.bf16.mxu0 0
      %3137 = vmatmul.mubr.bf16.gmra.mrb[0].mxu0 %v3017
      %v3138 = vpop.f32.mrb[0].mxu0
      %v3139 = vadd.f32 0.0, %v3138
      %v3140 = vpop.f32.mrb[0].mxu0
      %v3141 = vpop.f32.mrb[0].mxu0
      %v3142 = vadd.f32 0.0, %v3141
      %v3143 = vpop.f32.mrb[0].mxu0
      %3144 = vmatprep.mubr.bf16.mxu0 0
      %3145 = vmatmul.mubr.bf16.gmra.mrb[0].mxu0 %v3020
      %v3146 = vpop.f32.mrb[0].mxu0
      %v3147 = vadd.f32 0.0, %v3146
      %v3148 = vpop.f32.mrb[0].mxu0
      %v3149 = vpop.f32.mrb[0].mxu0
      %v3150 = vadd.f32 0.0, %v3149
      %v3151 = vpop.f32.mrb[0].mxu0
      %3152 = vmatprep.mubr.bf16.mxu0 0
      %3153 = vmatmul.mubr.bf16.gmra.mrb[0].mxu0 %v3023
      %v3154 = vpop.f32.mrb[0].mxu0
      %v3155 = vadd.f32 0.0, %v3154
      %v3156 = vpop.f32.mrb[0].mxu0
      %v3157 = vpop.f32.mrb[0].mxu0
      %v3158 = vadd.f32 0.0, %v3157
      %v3159 = vpop.f32.mrb[0].mxu0
      %3160 = vmatprep.mubr.bf16.mxu0 0
      %3161 = vmatmul.mubr.bf16.gmra.mrb[0].mxu0 %v3026
      %v3162 = vpop.f32.mrb[0].mxu0
      %v3163 = vadd.f32 0.0, %v3162
      %v3164 = vpop.f32.mrb[0].mxu0
      %v3165 = vpop.f32.mrb[0].mxu0
      %v3166 = vadd.f32 0.0, %v3165
      %v3167 = vpop.f32.mrb[0].mxu0
      %3168 = vmatprep.mubr.bf16.mxu0 0
      %3169 = vmatmul.mubr.bf16.gmra.mrb[0].mxu0 %v3029
      %v3170 = vpop.f32.mrb[0].mxu0
      %v3171 = vadd.f32 0.0, %v3170
      %v3172 = vpop.f32.mrb[0].mxu0
      %v3173 = vpop.f32.mrb[0].mxu0
      %v3174 = vadd.f32 0.0, %v3173
      %v3175 = vpop.f32.mrb[0].mxu0
      %3176 = vmatprep.mubr.bf16.mxu0 0
      %3177 = vmatmul.mubr.bf16.gmra.mrb[0].mxu0 %v3032
      %v3178 = vpop.f32.mrb[0].mxu0
      %v3179 = vadd.f32 0.0, %v3178
      %v3180 = vpop.f32.mrb[0].mxu0
      %v3181 = vpop.f32.mrb[0].mxu0
      %v3182 = vadd.f32 0.0, %v3181
      %v3183 = vpop.f32.mrb[0].mxu0
      %3184 = vmatprep.mubr.bf16.mxu0 0
      %3185 = vmatmul.mubr.bf16.gmra.mrb[0].mxu0 %v3035
      %v3186 = vpop.f32.mrb[0].mxu0
      %v3187 = vadd.f32 0.0, %v3186
      %v3188 = vpop.f32.mrb[0].mxu0
      %v3189 = vpop.f32.mrb[0].mxu0
      %v3190 = vadd.f32 0.0, %v3189
      %v3191 = vpop.f32.mrb[0].mxu0
      %3192 = vmatprep.mubr.bf16.mxu0 0
      %3193 = vmatmul.mubr.bf16.gmra.mrb[0].mxu0 %v3038
      %v3194 = vpop.f32.mrb[0].mxu0
      %v3195 = vadd.f32 0.0, %v3194
      %v3196 = vpop.f32.mrb[0].mxu0
      %v3197 = vpop.f32.mrb[0].mxu0
      %v3198 = vadd.f32 0.0, %v3197
      %v3199 = vpop.f32.mrb[0].mxu0
      %3200 = vmatprep.mubr.bf16.mxu0 0
      %3201 = vmatmul.mubr.bf16.gmra.mrb[0].mxu0 %v3041
      %v3202 = vpop.f32.mrb[0].mxu0
      %v3203 = vadd.f32 0.0, %v3202
      %v3204 = vpop.f32.mrb[0].mxu0
      %v3205 = vpop.f32.mrb[0].mxu0
      %v3206 = vadd.f32 0.0, %v3205
      %v3207 = vpop.f32.mrb[0].mxu0
      %3208 = vmatprep.mubr.bf16.mxu0 0
      %3209 = vmatmul.mubr.bf16.gmra.mrb[0].mxu0 %v3044
      %v3210 = vpop.f32.mrb[0].mxu0
      %v3211 = vadd.f32 0.0, %v3210
      %v3212 = vpop.f32.mrb[0].mxu0
      %v3213 = vpop.f32.mrb[0].mxu0
      %v3214 = vadd.f32 0.0, %v3213
      %v3215 = vpop.f32.mrb[0].mxu0
      %3216 = vmatprep.mubr.bf16.mxu0 0
      %3217 = vmatmul.mubr.bf16.gmra.mrb[0].mxu0 %v3047
      %v3218 = vpop.f32.mrb[0].mxu0
      %v3219 = vadd.f32 0.0, %v3218
      %v3220 = vpop.f32.mrb[0].mxu0
      %v3221 = vpop.f32.mrb[0].mxu0
      %v3222 = vadd.f32 0.0, %v3221
      %v3223 = vpop.f32.mrb[0].mxu0
      %3224 = vmatprep.mubr.bf16.mxu0 0
      %3225 = vmatmul.mubr.bf16.gmra.mrb[0].mxu0 %v3050
      %v3226 = vpop.f32.mrb[0].mxu0
      %v3227 = vpop.f32.mrb[0].mxu0
      %v3228 = vpop.f32.mrb[0].mxu0
      %v3229 = vpop.f32.mrb[0].mxu0
      %3230 = vdwg.mxu0
      %v3232 = vsel %vm2812, %v2923, 0
      %v3235 = vsel %vm2812, %v2924, 0
      %v3238 = vsel %vm2812, %v2925, 0
      %v3241 = vsel %vm2812, %v2926, 0
      %v3244 = vsel %vm2812, %v2927, 0
      %v3247 = vsel %vm2812, %v2928, 0
      %v3250 = vsel %vm2812, %v2929, 0
      %v3253 = vsel %vm2812, %v2930, 0
      %v3256 = vsel %vm2812, %v2931, 0
      %v3259 = vsel %vm2812, %v2932, 0
      %v3262 = vsel %vm2812, %v2933, 0
      %v3265 = vsel %vm2812, %v2934, 0
      %v3268 = vsel %vm2812, %v2935, 0
      %v3271 = vsel %vm2812, %v2936, 0
      %v3274 = vsel %vm2812, %v2937, 0
      %v3277 = vsel %vm2812, %v2938, 0
      %v3280 = vsel %vm2812, %v2939, 0
      %v3283 = vsel %vm2812, %v2940, 0
      %v3286 = vsel %vm3052, %v2941, 0
      %3288 = vmatprep.subr.bf16.mxu0 0
      %3289 = vmatpush1.bf16.msra.mxu0 %v3286
      %3290 = vmatprep.subr.bf16.mxu0 0
      %3291 = vmatpush1.bf16.msra.mxu0 0
      %3292 = vmatprep.subr.bf16.mxu0 0
      %3293 = vmatpush1.bf16.msra.mxu0 0
      %3294 = vmatprep.subr.bf16.mxu0 0
      %3295 = vmatpush1.bf16.msra.mxu0 0
      %3296 = vmatprep.subr.bf16.mxu0 0
      %3297 = vmatpush1.bf16.msra.mxu0 0
      %3298 = vmatprep.subr.bf16.mxu0 0
      %3299 = vmatpush1.bf16.msra.mxu0 0
      %3300 = vmatprep.subr.bf16.mxu0 0
      %3301 = vmatpush1.bf16.msra.mxu0 0
      %3302 = vmatprep.subr.bf16.mxu0 0
      %3303 = vmatpush1.bf16.msra.mxu0 0
      %3304 = vmatprep.subr.bf16.mxu0 0
      %3305 = vmatpush1.bf16.msra.mxu0 0
      %3306 = vmatprep.subr.bf16.mxu0 0
      %3307 = vmatpush1.bf16.msra.mxu0 0
      %3308 = vmatprep.subr.bf16.mxu0 0
      %3309 = vmatpush1.bf16.msra.mxu0 0
      %3310 = vmatprep.subr.bf16.mxu0 0
      %3311 = vmatpush1.bf16.msra.mxu0 0
      %3312 = vmatprep.subr.bf16.mxu0 0
      %3313 = vmatpush1.bf16.msra.mxu0 0
      %3314 = vmatprep.subr.bf16.mxu0 0
      %3315 = vmatpush1.bf16.msra.mxu0 0
      %3316 = vmatprep.subr.bf16.mxu0 0
      %3317 = vmatpush1.bf16.msra.mxu0 0
      %3318 = vmatprep.subr.bf16.mxu0 0
      %3319 = vmatpush1.bf16.msra.mxu0 0
      %3320 = vmatprep.mubr.bf16.mxu0 0
      %3321 = vmatmul.mubr.bf16.gmra.mrb[0].mxu0 %v3232
      %v3322 = vpop.f32.mrb[0].mxu0
      %v3323 = vadd.f32 %v3091, %v3322
      %v3324 = vpop.f32.mrb[0].mxu0
      %v3325 = vpop.f32.mrb[0].mxu0
      %v3326 = vadd.f32 %v3094, %v3325
      %v3327 = vpop.f32.mrb[0].mxu0
      %3328 = vmatprep.mubr.bf16.mxu0 0
      %3329 = vmatmul.mubr.bf16.gmra.mrb[0].mxu0 %v3235
      %v3330 = vpop.f32.mrb[0].mxu0
      %v3331 = vadd.f32 %v3099, %v3330
      %v3332 = vpop.f32.mrb[0].mxu0
      %v3333 = vpop.f32.mrb[0].mxu0
      %v3334 = vadd.f32 %v3102, %v3333
      %v3335 = vpop.f32.mrb[0].mxu0
      %3336 = vmatprep.mubr.bf16.mxu0 0
      %3337 = vmatmul.mubr.bf16.gmra.mrb[0].mxu0 %v3238
      %v3338 = vpop.f32.mrb[0].mxu0
      %v3339 = vadd.f32 %v3107, %v3338
      %v3340 = vpop.f32.mrb[0].mxu0
      %v3341 = vpop.f32.mrb[0].mxu0
      %v3342 = vadd.f32 %v3110, %v3341
      %v3343 = vpop.f32.mrb[0].mxu0
      %3344 = vmatprep.mubr.bf16.mxu0 0
      %3345 = vmatmul.mubr.bf16.gmra.mrb[0].mxu0 %v3241
      %v3346 = vpop.f32.mrb[0].mxu0
      %v3347 = vadd.f32 %v3115, %v3346
      %v3348 = vpop.f32.mrb[0].mxu0
      %v3349 = vpop.f32.mrb[0].mxu0
      %v3350 = vadd.f32 %v3118, %v3349
      %v3351 = vpop.f32.mrb[0].mxu0
      %3352 = vmatprep.mubr.bf16.mxu0 0
      %3353 = vmatmul.mubr.bf16.gmra.mrb[0].mxu0 %v3244
      %v3354 = vpop.f32.mrb[0].mxu0
      %v3355 = vadd.f32 %v3123, %v3354
      %v3356 = vpop.f32.mrb[0].mxu0
      %v3357 = vpop.f32.mrb[0].mxu0
      %v3358 = vadd.f32 %v3126, %v3357
      %v3359 = vpop.f32.mrb[0].mxu0
      %3360 = vmatprep.mubr.bf16.mxu0 0
      %3361 = vmatmul.mubr.bf16.gmra.mrb[0].mxu0 %v3247
      %v3362 = vpop.f32.mrb[0].mxu0
      %v3363 = vadd.f32 %v3131, %v3362
      %v3364 = vpop.f32.mrb[0].mxu0
      %v3365 = vpop.f32.mrb[0].mxu0
      %v3366 = vadd.f32 %v3134, %v3365
      %v3367 = vpop.f32.mrb[0].mxu0
      %3368 = vmatprep.mubr.bf16.mxu0 0
      %3369 = vmatmul.mubr.bf16.gmra.mrb[0].mxu0 %v3250
      %v3370 = vpop.f32.mrb[0].mxu0
      %v3371 = vadd.f32 %v3139, %v3370
      %v3372 = vpop.f32.mrb[0].mxu0
      %v3373 = vpop.f32.mrb[0].mxu0
      %v3374 = vadd.f32 %v3142, %v3373
      %v3375 = vpop.f32.mrb[0].mxu0
      %3376 = vmatprep.mubr.bf16.mxu0 0
      %3377 = vmatmul.mubr.bf16.gmra.mrb[0].mxu0 %v3253
      %v3378 = vpop.f32.mrb[0].mxu0
      %v3379 = vadd.f32 %v3147, %v3378
      %v3380 = vpop.f32.mrb[0].mxu0
      %v3381 = vpop.f32.mrb[0].mxu0
      %v3382 = vadd.f32 %v3150, %v3381
      %v3383 = vpop.f32.mrb[0].mxu0
      %3384 = vmatprep.mubr.bf16.mxu0 0
      %3385 = vmatmul.mubr.bf16.gmra.mrb[0].mxu0 %v3256
      %v3386 = vpop.f32.mrb[0].mxu0
      %v3387 = vadd.f32 %v3155, %v3386
      %v3388 = vpop.f32.mrb[0].mxu0
      %v3389 = vpop.f32.mrb[0].mxu0
      %v3390 = vadd.f32 %v3158, %v3389
      %v3391 = vpop.f32.mrb[0].mxu0
      %3392 = vmatprep.mubr.bf16.mxu0 0
      %3393 = vmatmul.mubr.bf16.gmra.mrb[0].mxu0 %v3259
      %v3394 = vpop.f32.mrb[0].mxu0
      %v3395 = vadd.f32 %v3163, %v3394
      %v3396 = vpop.f32.mrb[0].mxu0
      %v3397 = vpop.f32.mrb[0].mxu0
      %v3398 = vadd.f32 %v3166, %v3397
      %v3399 = vpop.f32.mrb[0].mxu0
      %3400 = vmatprep.mubr.bf16.mxu0 0
      %3401 = vmatmul.mubr.bf16.gmra.mrb[0].mxu0 %v3262
      %v3402 = vpop.f32.mrb[0].mxu0
      %v3403 = vadd.f32 %v3171, %v3402
      %v3404 = vpop.f32.mrb[0].mxu0
      %v3405 = vpop.f32.mrb[0].mxu0
      %v3406 = vadd.f32 %v3174, %v3405
      %v3407 = vpop.f32.mrb[0].mxu0
      %3408 = vmatprep.mubr.bf16.mxu0 0
      %3409 = vmatmul.mubr.bf16.gmra.mrb[0].mxu0 %v3265
      %v3410 = vpop.f32.mrb[0].mxu0
      %v3411 = vadd.f32 %v3179, %v3410
      %v3412 = vpop.f32.mrb[0].mxu0
      %v3413 = vpop.f32.mrb[0].mxu0
      %v3414 = vadd.f32 %v3182, %v3413
      %v3415 = vpop.f32.mrb[0].mxu0
      %3416 = vmatprep.mubr.bf16.mxu0 0
      %3417 = vmatmul.mubr.bf16.gmra.mrb[0].mxu0 %v3268
      %v3418 = vpop.f32.mrb[0].mxu0
      %v3419 = vadd.f32 %v3187, %v3418
      %v3420 = vpop.f32.mrb[0].mxu0
      %v3421 = vpop.f32.mrb[0].mxu0
      %v3422 = vadd.f32 %v3190, %v3421
      %v3423 = vpop.f32.mrb[0].mxu0
      %3424 = vmatprep.mubr.bf16.mxu0 0
      %3425 = vmatmul.mubr.bf16.gmra.mrb[0].mxu0 %v3271
      %v3426 = vpop.f32.mrb[0].mxu0
      %v3427 = vadd.f32 %v3195, %v3426
      %v3428 = vpop.f32.mrb[0].mxu0
      %v3429 = vpop.f32.mrb[0].mxu0
      %v3430 = vadd.f32 %v3198, %v3429
      %v3431 = vpop.f32.mrb[0].mxu0
      %3432 = vmatprep.mubr.bf16.mxu0 0
      %3433 = vmatmul.mubr.bf16.gmra.mrb[0].mxu0 %v3274
      %v3434 = vpop.f32.mrb[0].mxu0
      %v3435 = vadd.f32 %v3203, %v3434
      %v3436 = vpop.f32.mrb[0].mxu0
      %v3437 = vpop.f32.mrb[0].mxu0
      %v3438 = vadd.f32 %v3206, %v3437
      %v3439 = vpop.f32.mrb[0].mxu0
      %3440 = vmatprep.mubr.bf16.mxu0 0
      %3441 = vmatmul.mubr.bf16.gmra.mrb[0].mxu0 %v3277
      %v3442 = vpop.f32.mrb[0].mxu0
      %v3443 = vadd.f32 %v3211, %v3442
      %v3444 = vpop.f32.mrb[0].mxu0
      %v3445 = vpop.f32.mrb[0].mxu0
      %v3446 = vadd.f32 %v3214, %v3445
      %v3447 = vpop.f32.mrb[0].mxu0
      %3448 = vmatprep.mubr.bf16.mxu0 0
      %3449 = vmatmul.mubr.bf16.gmra.mrb[0].mxu0 %v3280
      %v3450 = vpop.f32.mrb[0].mxu0
      %v3451 = vadd.f32 %v3219, %v3450
      %v3452 = vpop.f32.mrb[0].mxu0
      %v3453 = vpop.f32.mrb[0].mxu0
      %v3454 = vadd.f32 %v3222, %v3453
      %v3455 = vpop.f32.mrb[0].mxu0
      %3456 = vmatprep.mubr.bf16.mxu0 0
      %3457 = vmatmul.mubr.bf16.gmra.mrb[0].mxu0 %v3283
      %v3458 = vpop.f32.mrb[0].mxu0
      %v3459 = vpop.f32.mrb[0].mxu0
      %v3460 = vpop.f32.mrb[0].mxu0
      %v3461 = vpop.f32.mrb[0].mxu0
      %3462 = vdwg.mxu0
      %v3463 = vld [vmem:[#allocation2 + $0x2] sm:$0xff]
      %v3464 = vld [vmem:[#allocation2 + $0xa] sm:$0xff]
      %v3465 = vld [vmem:[#allocation2 + $0x12] sm:$0xff]
      %v3466 = vld [vmem:[#allocation2 + $0x1a] sm:$0xff]
      %v3467 = vld [vmem:[#allocation2 + $0x22] sm:$0xff]
      %v3468 = vld [vmem:[#allocation2 + $0x2a] sm:$0xff]
      %v3469 = vld [vmem:[#allocation2 + $0x32] sm:$0xff]
      %v3470 = vld [vmem:[#allocation2 + $0x3a] sm:$0xff]
      %v3471 = vld [vmem:[#allocation2 + $0x42] sm:$0xff]
      %v3472 = vld [vmem:[#allocation2 + $0x4a] sm:$0xff]
      %v3473 = vld [vmem:[#allocation2 + $0x52] sm:$0xff]
      %v3474 = vld [vmem:[#allocation2 + $0x5a] sm:$0xff]
      %v3475 = vld [vmem:[#allocation2 + $0x62] sm:$0xff]
      %v3476 = vld [vmem:[#allocation2 + $0x6a] sm:$0xff]
      %v3477 = vld [vmem:[#allocation2 + $0x72] sm:$0xff]
      %v3478 = vld [vmem:[#allocation2 + $0x7a] sm:$0xff]
      %v3479 = vld [vmem:[#allocation2 + $0x82] sm:$0xff]
      %v3480 = vld [vmem:[#allocation2 + $0x8a] sm:$0xff]
      %v3481 = vld [vmem:[#allocation2 + $0x92] sm:$0xff]
      %v3482 = vld [vmem:[#allocation2 + $0x9a] sm:$0xff]
      %v3483 = vld [vmem:[#allocation2 + $0xa2] sm:$0xff]
      %v3484 = vld [vmem:[#allocation2 + $0xaa] sm:$0xff]
      %v3485 = vld [vmem:[#allocation2 + $0xb2] sm:$0xff]
      %v3486 = vld [vmem:[#allocation2 + $0xba] sm:$0xff]
      %v3487 = vld [vmem:[#allocation2 + $0xc2] sm:$0xff]
      %v3488 = vld [vmem:[#allocation2 + $0xca] sm:$0xff]
      %v3489 = vld [vmem:[#allocation2 + $0xd2] sm:$0xff]
      %v3490 = vld [vmem:[#allocation2 + $0xda] sm:$0xff]
      %v3491 = vld [vmem:[#allocation2 + $0xe2] sm:$0xff]
      %v3492 = vld [vmem:[#allocation2 + $0xea] sm:$0xff]
      %v3493 = vld [vmem:[#allocation2 + $0xf2] sm:$0xff]
      %v3494 = vld [vmem:[#allocation2 + $0xfa] sm:$0xff]
      %v3495 = vld [vmem:[#allocation2 + $0x102] sm:$0xff]
      %v3496 = vld [vmem:[#allocation2 + $0x10a] sm:$0xff]
      %v3497 = vld [vmem:[#allocation2 + $0x112] sm:$0xff]
      %v3498 = vld [vmem:[#allocation2 + $0x11a] sm:$0x3f]
      %v3499 = vpack.c.bf16 %v3464, %v3463
      %v3500 = vpack.c.bf16 %v3466, %v3465
      %v3501 = vpack.c.bf16 %v3468, %v3467
      %v3502 = vpack.c.bf16 %v3470, %v3469
      %v3503 = vpack.c.bf16 %v3472, %v3471
      %v3504 = vpack.c.bf16 %v3474, %v3473
      %v3505 = vpack.c.bf16 %v3476, %v3475
      %v3506 = vpack.c.bf16 %v3478, %v3477
      %v3507 = vpack.c.bf16 %v3480, %v3479
      %v3508 = vpack.c.bf16 %v3482, %v3481
      %v3509 = vpack.c.bf16 %v3484, %v3483
      %v3510 = vpack.c.bf16 %v3486, %v3485
      %v3511 = vpack.c.bf16 %v3488, %v3487
      %v3512 = vpack.c.bf16 %v3490, %v3489
      %v3513 = vpack.c.bf16 %v3492, %v3491
      %v3514 = vpack.c.bf16 %v3494, %v3493
      %v3515 = vpack.c.bf16 %v3496, %v3495
      %v3516 = vpack.c.bf16 %v3498, %v3497
      %s3517 = scalar_lea.vmem %s7, 8
      %v3518 = vld [vmem:[%s3517] sm:$0xf]
      %v3520 = vsel %vm2812, %v3499, 0
      %v3523 = vsel %vm2812, %v3500, 0
      %v3526 = vsel %vm2812, %v3501, 0
      %v3529 = vsel %vm2812, %v3502, 0
      %v3532 = vsel %vm2812, %v3503, 0
      %v3535 = vsel %vm2812, %v3504, 0
      %v3538 = vsel %vm2812, %v3505, 0
      %v3541 = vsel %vm2812, %v3506, 0
      %v3544 = vsel %vm2812, %v3507, 0
      %v3547 = vsel %vm2812, %v3508, 0
      %v3550 = vsel %vm2812, %v3509, 0
      %v3553 = vsel %vm2812, %v3510, 0
      %v3556 = vsel %vm2812, %v3511, 0
      %v3559 = vsel %vm2812, %v3512, 0
      %v3562 = vsel %vm2812, %v3513, 0
      %v3565 = vsel %vm2812, %v3514, 0
      %v3568 = vsel %vm2812, %v3515, 0
      %v3571 = vsel %vm2812, %v3516, 0
      %v3574 = vsel %vm3052, %v3518, 0
      %3576 = vmatprep.subr.bf16.mxu0 0
      %3577 = vmatpush1.bf16.msra.mxu0 %v3574
      %3578 = vmatprep.subr.bf16.mxu0 0
      %3579 = vmatpush1.bf16.msra.mxu0 0
      %3580 = vmatprep.subr.bf16.mxu0 0
      %3581 = vmatpush1.bf16.msra.mxu0 0
      %3582 = vmatprep.subr.bf16.mxu0 0
      %3583 = vmatpush1.bf16.msra.mxu0 0
      %3584 = vmatprep.subr.bf16.mxu0 0
      %3585 = vmatpush1.bf16.msra.mxu0 0
      %3586 = vmatprep.subr.bf16.mxu0 0
      %3587 = vmatpush1.bf16.msra.mxu0 0
      %3588 = vmatprep.subr.bf16.mxu0 0
      %3589 = vmatpush1.bf16.msra.mxu0 0
      %3590 = vmatprep.subr.bf16.mxu0 0
      %3591 = vmatpush1.bf16.msra.mxu0 0
      %3592 = vmatprep.subr.bf16.mxu0 0
      %3593 = vmatpush1.bf16.msra.mxu0 0
      %3594 = vmatprep.subr.bf16.mxu0 0
      %3595 = vmatpush1.bf16.msra.mxu0 0
      %3596 = vmatprep.subr.bf16.mxu0 0
      %3597 = vmatpush1.bf16.msra.mxu0 0
      %3598 = vmatprep.subr.bf16.mxu0 0
      %3599 = vmatpush1.bf16.msra.mxu0 0
      %3600 = vmatprep.subr.bf16.mxu0 0
      %3601 = vmatpush1.bf16.msra.mxu0 0
      %3602 = vmatprep.subr.bf16.mxu0 0
      %3603 = vmatpush1.bf16.msra.mxu0 0
      %3604 = vmatprep.subr.bf16.mxu0 0
      %3605 = vmatpush1.bf16.msra.mxu0 0
      %3606 = vmatprep.subr.bf16.mxu0 0
      %3607 = vmatpush1.bf16.msra.mxu0 0
      %3608 = vmatprep.mubr.bf16.mxu0 0
      %3609 = vmatmul.mubr.bf16.gmra.mrb[0].mxu0 %v3520
      %v3610 = vpop.f32.mrb[0].mxu0
      %v3611 = vadd.f32 0.0, %v3610
      %v3612 = vpop.f32.mrb[0].mxu0
      %v3613 = vpop.f32.mrb[0].mxu0
      %v3614 = vadd.f32 0.0, %v3613
      %v3615 = vpop.f32.mrb[0].mxu0
      %3616 = vmatprep.mubr.bf16.mxu0 0
      %3617 = vmatmul.mubr.bf16.gmra.mrb[0].mxu0 %v3523
      %v3618 = vpop.f32.mrb[0].mxu0
      %v3619 = vadd.f32 0.0, %v3618
      %v3620 = vpop.f32.mrb[0].mxu0
      %v3621 = vpop.f32.mrb[0].mxu0
      %v3622 = vadd.f32 0.0, %v3621
      %v3623 = vpop.f32.mrb[0].mxu0
      %3624 = vmatprep.mubr.bf16.mxu0 0
      %3625 = vmatmul.mubr.bf16.gmra.mrb[0].mxu0 %v3526
      %v3626 = vpop.f32.mrb[0].mxu0
      %v3627 = vadd.f32 0.0, %v3626
      %v3628 = vpop.f32.mrb[0].mxu0
      %v3629 = vpop.f32.mrb[0].mxu0
      %v3630 = vadd.f32 0.0, %v3629
      %v3631 = vpop.f32.mrb[0].mxu0
      %3632 = vmatprep.mubr.bf16.mxu0 0
      %3633 = vmatmul.mubr.bf16.gmra.mrb[0].mxu0 %v3529
      %v3634 = vpop.f32.mrb[0].mxu0
      %v3635 = vadd.f32 0.0, %v3634
      %v3636 = vpop.f32.mrb[0].mxu0
      %v3637 = vpop.f32.mrb[0].mxu0
      %v3638 = vadd.f32 0.0, %v3637
      %v3639 = vpop.f32.mrb[0].mxu0
      %3640 = vmatprep.mubr.bf16.mxu0 0
      %3641 = vmatmul.mubr.bf16.gmra.mrb[0].mxu0 %v3532
      %v3642 = vpop.f32.mrb[0].mxu0
      %v3643 = vadd.f32 0.0, %v3642
      %v3644 = vpop.f32.mrb[0].mxu0
      %v3645 = vpop.f32.mrb[0].mxu0
      %v3646 = vadd.f32 0.0, %v3645
      %v3647 = vpop.f32.mrb[0].mxu0
      %3648 = vmatprep.mubr.bf16.mxu0 0
      %3649 = vmatmul.mubr.bf16.gmra.mrb[0].mxu0 %v3535
      %v3650 = vpop.f32.mrb[0].mxu0
      %v3651 = vadd.f32 0.0, %v3650
      %v3652 = vpop.f32.mrb[0].mxu0
      %v3653 = vpop.f32.mrb[0].mxu0
      %v3654 = vadd.f32 0.0, %v3653
      %v3655 = vpop.f32.mrb[0].mxu0
      %3656 = vmatprep.mubr.bf16.mxu0 0
      %3657 = vmatmul.mubr.bf16.gmra.mrb[0].mxu0 %v3538
      %v3658 = vpop.f32.mrb[0].mxu0
      %v3659 = vadd.f32 0.0, %v3658
      %v3660 = vpop.f32.mrb[0].mxu0
      %v3661 = vpop.f32.mrb[0].mxu0
      %v3662 = vadd.f32 0.0, %v3661
      %v3663 = vpop.f32.mrb[0].mxu0
      %3664 = vmatprep.mubr.bf16.mxu0 0
      %3665 = vmatmul.mubr.bf16.gmra.mrb[0].mxu0 %v3541
      %v3666 = vpop.f32.mrb[0].mxu0
      %v3667 = vadd.f32 0.0, %v3666
      %v3668 = vpop.f32.mrb[0].mxu0
      %v3669 = vpop.f32.mrb[0].mxu0
      %v3670 = vadd.f32 0.0, %v3669
      %v3671 = vpop.f32.mrb[0].mxu0
      %3672 = vmatprep.mubr.bf16.mxu0 0
      %3673 = vmatmul.mubr.bf16.gmra.mrb[0].mxu0 %v3544
      %v3674 = vpop.f32.mrb[0].mxu0
      %v3675 = vadd.f32 0.0, %v3674
      %v3676 = vpop.f32.mrb[0].mxu0
      %v3677 = vpop.f32.mrb[0].mxu0
      %v3678 = vadd.f32 0.0, %v3677
      %v3679 = vpop.f32.mrb[0].mxu0
      %3680 = vmatprep.mubr.bf16.mxu0 0
      %3681 = vmatmul.mubr.bf16.gmra.mrb[0].mxu0 %v3547
      %v3682 = vpop.f32.mrb[0].mxu0
      %v3683 = vadd.f32 0.0, %v3682
      %v3684 = vpop.f32.mrb[0].mxu0
      %v3685 = vpop.f32.mrb[0].mxu0
      %v3686 = vadd.f32 0.0, %v3685
      %v3687 = vpop.f32.mrb[0].mxu0
      %3688 = vmatprep.mubr.bf16.mxu0 0
      %3689 = vmatmul.mubr.bf16.gmra.mrb[0].mxu0 %v3550
      %v3690 = vpop.f32.mrb[0].mxu0
      %v3691 = vadd.f32 0.0, %v3690
      %v3692 = vpop.f32.mrb[0].mxu0
      %v3693 = vpop.f32.mrb[0].mxu0
      %v3694 = vadd.f32 0.0, %v3693
      %v3695 = vpop.f32.mrb[0].mxu0
      %3696 = vmatprep.mubr.bf16.mxu0 0
      %3697 = vmatmul.mubr.bf16.gmra.mrb[0].mxu0 %v3553
      %v3698 = vpop.f32.mrb[0].mxu0
      %v3699 = vadd.f32 0.0, %v3698
      %v3700 = vpop.f32.mrb[0].mxu0
      %v3701 = vpop.f32.mrb[0].mxu0
      %v3702 = vadd.f32 0.0, %v3701
      %v3703 = vpop.f32.mrb[0].mxu0
      %3704 = vmatprep.mubr.bf16.mxu0 0
      %3705 = vmatmul.mubr.bf16.gmra.mrb[0].mxu0 %v3556
      %v3706 = vpop.f32.mrb[0].mxu0
      %v3707 = vadd.f32 0.0, %v3706
      %v3708 = vpop.f32.mrb[0].mxu0
      %v3709 = vpop.f32.mrb[0].mxu0
      %v3710 = vadd.f32 0.0, %v3709
      %v3711 = vpop.f32.mrb[0].mxu0
      %3712 = vmatprep.mubr.bf16.mxu0 0
      %3713 = vmatmul.mubr.bf16.gmra.mrb[0].mxu0 %v3559
      %v3714 = vpop.f32.mrb[0].mxu0
      %v3715 = vadd.f32 0.0, %v3714
      %v3716 = vpop.f32.mrb[0].mxu0
      %v3717 = vpop.f32.mrb[0].mxu0
      %v3718 = vadd.f32 0.0, %v3717
      %v3719 = vpop.f32.mrb[0].mxu0
      %3720 = vmatprep.mubr.bf16.mxu0 0
      %3721 = vmatmul.mubr.bf16.gmra.mrb[0].mxu0 %v3562
      %v3722 = vpop.f32.mrb[0].mxu0
      %v3723 = vadd.f32 0.0, %v3722
      %v3724 = vpop.f32.mrb[0].mxu0
      %v3725 = vpop.f32.mrb[0].mxu0
      %v3726 = vadd.f32 0.0, %v3725
      %v3727 = vpop.f32.mrb[0].mxu0
      %3728 = vmatprep.mubr.bf16.mxu0 0
      %3729 = vmatmul.mubr.bf16.gmra.mrb[0].mxu0 %v3565
      %v3730 = vpop.f32.mrb[0].mxu0
      %v3731 = vadd.f32 0.0, %v3730
      %v3732 = vpop.f32.mrb[0].mxu0
      %v3733 = vpop.f32.mrb[0].mxu0
      %v3734 = vadd.f32 0.0, %v3733
      %v3735 = vpop.f32.mrb[0].mxu0
      %3736 = vmatprep.mubr.bf16.mxu0 0
      %3737 = vmatmul.mubr.bf16.gmra.mrb[0].mxu0 %v3568
      %v3738 = vpop.f32.mrb[0].mxu0
      %v3739 = vadd.f32 0.0, %v3738
      %v3740 = vpop.f32.mrb[0].mxu0
      %v3741 = vpop.f32.mrb[0].mxu0
      %v3742 = vadd.f32 0.0, %v3741
      %v3743 = vpop.f32.mrb[0].mxu0
      %3744 = vmatprep.mubr.bf16.mxu0 0
      %3745 = vmatmul.mubr.bf16.gmra.mrb[0].mxu0 %v3571
      %v3746 = vpop.f32.mrb[0].mxu0
      %v3747 = vpop.f32.mrb[0].mxu0
      %v3748 = vpop.f32.mrb[0].mxu0
      %v3749 = vpop.f32.mrb[0].mxu0
      %3750 = vdwg.mxu0
      %v3751 = vadd.f32 %v3323, %v3611
      %v3752 = vadd.f32 %v3326, %v3614
      %v3753 = vadd.f32 %v3331, %v3619
      %v3754 = vadd.f32 %v3334, %v3622
      %v3755 = vadd.f32 %v3339, %v3627
      %v3756 = vadd.f32 %v3342, %v3630
      %v3757 = vadd.f32 %v3347, %v3635
      %v3758 = vadd.f32 %v3350, %v3638
      %v3759 = vadd.f32 %v3355, %v3643
      %v3760 = vadd.f32 %v3358, %v3646
      %v3761 = vadd.f32 %v3363, %v3651
      %v3762 = vadd.f32 %v3366, %v3654
      %v3763 = vadd.f32 %v3371, %v3659
      %v3764 = vadd.f32 %v3374, %v3662
      %v3765 = vadd.f32 %v3379, %v3667
      %v3766 = vadd.f32 %v3382, %v3670
      %v3767 = vadd.f32 %v3387, %v3675
      %v3768 = vadd.f32 %v3390, %v3678
      %v3769 = vadd.f32 %v3395, %v3683
      %v3770 = vadd.f32 %v3398, %v3686
      %v3771 = vadd.f32 %v3403, %v3691
      %v3772 = vadd.f32 %v3406, %v3694
      %v3773 = vadd.f32 %v3411, %v3699
      %v3774 = vadd.f32 %v3414, %v3702
      %v3775 = vadd.f32 %v3419, %v3707
      %v3776 = vadd.f32 %v3422, %v3710
      %v3777 = vadd.f32 %v3427, %v3715
      %v3778 = vadd.f32 %v3430, %v3718
      %v3779 = vadd.f32 %v3435, %v3723
      %v3780 = vadd.f32 %v3438, %v3726
      %v3781 = vadd.f32 %v3443, %v3731
      %v3782 = vadd.f32 %v3446, %v3734
      %v3783 = vadd.f32 %v3451, %v3739
      %v3784 = vadd.f32 %v3454, %v3742
      %v3785 = vld [vmem:[#allocation2 + $0x12] sm:$0xff]
      %v3786 = vld [vmem:[#allocation2 + $0x1a] sm:$0xff]
      %v3787 = vld [vmem:[#allocation2 + $0x22] sm:$0xff]
      %v3788 = vld [vmem:[#allocation2 + $0x2a] sm:$0xff]
      %v3789 = vld [vmem:[#allocation2 + $0x32] sm:$0xff]
      %v3790 = vld [vmem:[#allocation2 + $0x3a] sm:$0xff]
      %v3791 = vld [vmem:[#allocation2 + $0x42] sm:$0xff]
      %v3792 = vld [vmem:[#allocation2 + $0x4a] sm:$0xff]
      %v3793 = vld [vmem:[#allocation2 + $0x52] sm:$0xff]
      %v3794 = vld [vmem:[#allocation2 + $0x5a] sm:$0xff]
      %v3795 = vld [vmem:[#allocation2 + $0x62] sm:$0xff]
      %v3796 = vld [vmem:[#allocation2 + $0x6a] sm:$0xff]
      %v3797 = vld [vmem:[#allocation2 + $0x72] sm:$0xff]
      %v3798 = vld [vmem:[#allocation2 + $0x7a] sm:$0xff]
      %v3799 = vld [vmem:[#allocation2 + $0x82] sm:$0xff]
      %v3800 = vld [vmem:[#allocation2 + $0x8a] sm:$0xff]
      %v3801 = vld [vmem:[#allocation2 + $0x92] sm:$0xff]
      %v3802 = vld [vmem:[#allocation2 + $0x9a] sm:$0xff]
      %v3803 = vld [vmem:[#allocation2 + $0xa2] sm:$0xff]
      %v3804 = vld [vmem:[#allocation2 + $0xaa] sm:$0xff]
      %v3805 = vld [vmem:[#allocation2 + $0xb2] sm:$0xff]
      %v3806 = vld [vmem:[#allocation2 + $0xba] sm:$0xff]
      %v3807 = vld [vmem:[#allocation2 + $0xc2] sm:$0xff]
      %v3808 = vld [vmem:[#allocation2 + $0xca] sm:$0xff]
      %v3809 = vld [vmem:[#allocation2 + $0xd2] sm:$0xff]
      %v3810 = vld [vmem:[#allocation2 + $0xda] sm:$0xff]
      %v3811 = vld [vmem:[#allocation2 + $0xe2] sm:$0xff]
      %v3812 = vld [vmem:[#allocation2 + $0xea] sm:$0xff]
      %v3813 = vld [vmem:[#allocation2 + $0xf2] sm:$0xff]
      %v3814 = vld [vmem:[#allocation2 + $0xfa] sm:$0xff]
      %v3815 = vld [vmem:[#allocation2 + $0x102] sm:$0xff]
      %v3816 = vld [vmem:[#allocation2 + $0x10a] sm:$0xff]
      %v3817 = vld [vmem:[#allocation2 + $0x112] sm:$0xff]
      %v3818 = vld [vmem:[#allocation2 + $0x11a] sm:$0xff]
      %v3819 = vld [vmem:[#allocation2 + $0x122] sm:$0xff]
      %v3820 = vld [vmem:[#allocation2 + $0x12a] sm:$0x3f]
      %v3821 = vpack.c.bf16 %v3786, %v3785
      %v3822 = vpack.c.bf16 %v3788, %v3787
      %v3823 = vpack.c.bf16 %v3790, %v3789
      %v3824 = vpack.c.bf16 %v3792, %v3791
      %v3825 = vpack.c.bf16 %v3794, %v3793
      %v3826 = vpack.c.bf16 %v3796, %v3795
      %v3827 = vpack.c.bf16 %v3798, %v3797
      %v3828 = vpack.c.bf16 %v3800, %v3799
      %v3829 = vpack.c.bf16 %v3802, %v3801
      %v3830 = vpack.c.bf16 %v3804, %v3803
      %v3831 = vpack.c.bf16 %v3806, %v3805
      %v3832 = vpack.c.bf16 %v3808, %v3807
      %v3833 = vpack.c.bf16 %v3810, %v3809
      %v3834 = vpack.c.bf16 %v3812, %v3811
      %v3835 = vpack.c.bf16 %v3814, %v3813
      %v3836 = vpack.c.bf16 %v3816, %v3815
      %v3837 = vpack.c.bf16 %v3818, %v3817
      %v3838 = vpack.c.bf16 %v3820, %v3819
      %s3839 = scalar_lea.vmem %s7, 12
      %v3840 = vld [vmem:[%s3839] sm:$0xf]
      %v3842 = vsel %vm2812, %v3821, 0
      %v3845 = vsel %vm2812, %v3822, 0
      %v3848 = vsel %vm2812, %v3823, 0
      %v3851 = vsel %vm2812, %v3824, 0
      %v3854 = vsel %vm2812, %v3825, 0
      %v3857 = vsel %vm2812, %v3826, 0
      %v3860 = vsel %vm2812, %v3827, 0
      %v3863 = vsel %vm2812, %v3828, 0
      %v3866 = vsel %vm2812, %v3829, 0
      %v3869 = vsel %vm2812, %v3830, 0
      %v3872 = vsel %vm2812, %v3831, 0
      %v3875 = vsel %vm2812, %v3832, 0
      %v3878 = vsel %vm2812, %v3833, 0
      %v3881 = vsel %vm2812, %v3834, 0
      %v3884 = vsel %vm2812, %v3835, 0
      %v3887 = vsel %vm2812, %v3836, 0
      %v3890 = vsel %vm2812, %v3837, 0
      %v3893 = vsel %vm2812, %v3838, 0
      %v3896 = vsel %vm3052, %v3840, 0
      %3898 = vmatprep.subr.bf16.mxu0 0
      %3899 = vmatpush1.bf16.msra.mxu0 %v3896
      %3900 = vmatprep.subr.bf16.mxu0 0
      %3901 = vmatpush1.bf16.msra.mxu0 0
      %3902 = vmatprep.subr.bf16.mxu0 0
      %3903 = vmatpush1.bf16.msra.mxu0 0
      %3904 = vmatprep.subr.bf16.mxu0 0
      %3905 = vmatpush1.bf16.msra.mxu0 0
      %3906 = vmatprep.subr.bf16.mxu0 0
      %3907 = vmatpush1.bf16.msra.mxu0 0
      %3908 = vmatprep.subr.bf16.mxu0 0
      %3909 = vmatpush1.bf16.msra.mxu0 0
      %3910 = vmatprep.subr.bf16.mxu0 0
      %3911 = vmatpush1.bf16.msra.mxu0 0
      %3912 = vmatprep.subr.bf16.mxu0 0
      %3913 = vmatpush1.bf16.msra.mxu0 0
      %3914 = vmatprep.subr.bf16.mxu0 0
      %3915 = vmatpush1.bf16.msra.mxu0 0
      %3916 = vmatprep.subr.bf16.mxu0 0
      %3917 = vmatpush1.bf16.msra.mxu0 0
      %3918 = vmatprep.subr.bf16.mxu0 0
      %3919 = vmatpush1.bf16.msra.mxu0 0
      %3920 = vmatprep.subr.bf16.mxu0 0
      %3921 = vmatpush1.bf16.msra.mxu0 0
      %3922 = vmatprep.subr.bf16.mxu0 0
      %3923 = vmatpush1.bf16.msra.mxu0 0
      %3924 = vmatprep.subr.bf16.mxu0 0
      %3925 = vmatpush1.bf16.msra.mxu0 0
      %3926 = vmatprep.subr.bf16.mxu0 0
      %3927 = vmatpush1.bf16.msra.mxu0 0
      %3928 = vmatprep.subr.bf16.mxu0 0
      %3929 = vmatpush1.bf16.msra.mxu0 0
      %3930 = vmatprep.mubr.bf16.mxu0 0
      %3931 = vmatmul.mubr.bf16.gmra.mrb[0].mxu0 %v3842
      %v3932 = vpop.f32.mrb[0].mxu0
      %v3933 = vadd.f32 0.0, %v3932
      %v3934 = vpop.f32.mrb[0].mxu0
      %v3935 = vpop.f32.mrb[0].mxu0
      %v3936 = vadd.f32 0.0, %v3935
      %v3937 = vpop.f32.mrb[0].mxu0
      %3938 = vmatprep.mubr.bf16.mxu0 0
      %3939 = vmatmul.mubr.bf16.gmra.mrb[0].mxu0 %v3845
      %v3940 = vpop.f32.mrb[0].mxu0
      %v3941 = vadd.f32 0.0, %v3940
      %v3942 = vpop.f32.mrb[0].mxu0
      %v3943 = vpop.f32.mrb[0].mxu0
      %v3944 = vadd.f32 0.0, %v3943
      %v3945 = vpop.f32.mrb[0].mxu0
      %3946 = vmatprep.mubr.bf16.mxu0 0
      %3947 = vmatmul.mubr.bf16.gmra.mrb[0].mxu0 %v3848
      %v3948 = vpop.f32.mrb[0].mxu0
      %v3949 = vadd.f32 0.0, %v3948
      %v3950 = vpop.f32.mrb[0].mxu0
      %v3951 = vpop.f32.mrb[0].mxu0
      %v3952 = vadd.f32 0.0, %v3951
      %v3953 = vpop.f32.mrb[0].mxu0
      %3954 = vmatprep.mubr.bf16.mxu0 0
      %3955 = vmatmul.mubr.bf16.gmra.mrb[0].mxu0 %v3851
      %v3956 = vpop.f32.mrb[0].mxu0
      %v3957 = vadd.f32 0.0, %v3956
      %v3958 = vpop.f32.mrb[0].mxu0
      %v3959 = vpop.f32.mrb[0].mxu0
      %v3960 = vadd.f32 0.0, %v3959
      %v3961 = vpop.f32.mrb[0].mxu0
      %3962 = vmatprep.mubr.bf16.mxu0 0
      %3963 = vmatmul.mubr.bf16.gmra.mrb[0].mxu0 %v3854
      %v3964 = vpop.f32.mrb[0].mxu0
      %v3965 = vadd.f32 0.0, %v3964
      %v3966 = vpop.f32.mrb[0].mxu0
      %v3967 = vpop.f32.mrb[0].mxu0
      %v3968 = vadd.f32 0.0, %v3967
      %v3969 = vpop.f32.mrb[0].mxu0
      %3970 = vmatprep.mubr.bf16.mxu0 0
      %3971 = vmatmul.mubr.bf16.gmra.mrb[0].mxu0 %v3857
      %v3972 = vpop.f32.mrb[0].mxu0
      %v3973 = vadd.f32 0.0, %v3972
      %v3974 = vpop.f32.mrb[0].mxu0
      %v3975 = vpop.f32.mrb[0].mxu0
      %v3976 = vadd.f32 0.0, %v3975
      %v3977 = vpop.f32.mrb[0].mxu0
      %3978 = vmatprep.mubr.bf16.mxu0 0
      %3979 = vmatmul.mubr.bf16.gmra.mrb[0].mxu0 %v3860
      %v3980 = vpop.f32.mrb[0].mxu0
      %v3981 = vadd.f32 0.0, %v3980
      %v3982 = vpop.f32.mrb[0].mxu0
      %v3983 = vpop.f32.mrb[0].mxu0
      %v3984 = vadd.f32 0.0, %v3983
      %v3985 = vpop.f32.mrb[0].mxu0
      %3986 = vmatprep.mubr.bf16.mxu0 0
      %3987 = vmatmul.mubr.bf16.gmra.mrb[0].mxu0 %v3863
      %v3988 = vpop.f32.mrb[0].mxu0
      %v3989 = vadd.f32 0.0, %v3988
      %v3990 = vpop.f32.mrb[0].mxu0
      %v3991 = vpop.f32.mrb[0].mxu0
      %v3992 = vadd.f32 0.0, %v3991
      %v3993 = vpop.f32.mrb[0].mxu0
      %3994 = vmatprep.mubr.bf16.mxu0 0
      %3995 = vmatmul.mubr.bf16.gmra.mrb[0].mxu0 %v3866
      %v3996 = vpop.f32.mrb[0].mxu0
      %v3997 = vadd.f32 0.0, %v3996
      %v3998 = vpop.f32.mrb[0].mxu0
      %v3999 = vpop.f32.mrb[0].mxu0
      %v4000 = vadd.f32 0.0, %v3999
      %v4001 = vpop.f32.mrb[0].mxu0
      %4002 = vmatprep.mubr.bf16.mxu0 0
      %4003 = vmatmul.mubr.bf16.gmra.mrb[0].mxu0 %v3869
      %v4004 = vpop.f32.mrb[0].mxu0
      %v4005 = vadd.f32 0.0, %v4004
      %v4006 = vpop.f32.mrb[0].mxu0
      %v4007 = vpop.f32.mrb[0].mxu0
      %v4008 = vadd.f32 0.0, %v4007
      %v4009 = vpop.f32.mrb[0].mxu0
      %4010 = vmatprep.mubr.bf16.mxu0 0
      %4011 = vmatmul.mubr.bf16.gmra.mrb[0].mxu0 %v3872
      %v4012 = vpop.f32.mrb[0].mxu0
      %v4013 = vadd.f32 0.0, %v4012
      %v4014 = vpop.f32.mrb[0].mxu0
      %v4015 = vpop.f32.mrb[0].mxu0
      %v4016 = vadd.f32 0.0, %v4015
      %v4017 = vpop.f32.mrb[0].mxu0
      %4018 = vmatprep.mubr.bf16.mxu0 0
      %4019 = vmatmul.mubr.bf16.gmra.mrb[0].mxu0 %v3875
      %v4020 = vpop.f32.mrb[0].mxu0
      %v4021 = vadd.f32 0.0, %v4020
      %v4022 = vpop.f32.mrb[0].mxu0
      %v4023 = vpop.f32.mrb[0].mxu0
      %v4024 = vadd.f32 0.0, %v4023
      %v4025 = vpop.f32.mrb[0].mxu0
      %4026 = vmatprep.mubr.bf16.mxu0 0
      %4027 = vmatmul.mubr.bf16.gmra.mrb[0].mxu0 %v3878
      %v4028 = vpop.f32.mrb[0].mxu0
      %v4029 = vadd.f32 0.0, %v4028
      %v4030 = vpop.f32.mrb[0].mxu0
      %v4031 = vpop.f32.mrb[0].mxu0
      %v4032 = vadd.f32 0.0, %v4031
      %v4033 = vpop.f32.mrb[0].mxu0
      %4034 = vmatprep.mubr.bf16.mxu0 0
      %4035 = vmatmul.mubr.bf16.gmra.mrb[0].mxu0 %v3881
      %v4036 = vpop.f32.mrb[0].mxu0
      %v4037 = vadd.f32 0.0, %v4036
      %v4038 = vpop.f32.mrb[0].mxu0
      %v4039 = vpop.f32.mrb[0].mxu0
      %v4040 = vadd.f32 0.0, %v4039
      %v4041 = vpop.f32.mrb[0].mxu0
      %4042 = vmatprep.mubr.bf16.mxu0 0
      %4043 = vmatmul.mubr.bf16.gmra.mrb[0].mxu0 %v3884
      %v4044 = vpop.f32.mrb[0].mxu0
      %v4045 = vadd.f32 0.0, %v4044
      %v4046 = vpop.f32.mrb[0].mxu0
      %v4047 = vpop.f32.mrb[0].mxu0
      %v4048 = vadd.f32 0.0, %v4047
      %v4049 = vpop.f32.mrb[0].mxu0
      %4050 = vmatprep.mubr.bf16.mxu0 0
      %4051 = vmatmul.mubr.bf16.gmra.mrb[0].mxu0 %v3887
      %v4052 = vpop.f32.mrb[0].mxu0
      %v4053 = vadd.f32 0.0, %v4052
      %v4054 = vpop.f32.mrb[0].mxu0
      %v4055 = vpop.f32.mrb[0].mxu0
      %v4056 = vadd.f32 0.0, %v4055
      %v4057 = vpop.f32.mrb[0].mxu0
      %4058 = vmatprep.mubr.bf16.mxu0 0
      %4059 = vmatmul.mubr.bf16.gmra.mrb[0].mxu0 %v3890
      %v4060 = vpop.f32.mrb[0].mxu0
      %v4061 = vadd.f32 0.0, %v4060
      %v4062 = vpop.f32.mrb[0].mxu0
      %v4063 = vpop.f32.mrb[0].mxu0
      %v4064 = vadd.f32 0.0, %v4063
      %v4065 = vpop.f32.mrb[0].mxu0
      %4066 = vmatprep.mubr.bf16.mxu0 0
      %4067 = vmatmul.mubr.bf16.gmra.mrb[0].mxu0 %v3893
      %v4068 = vpop.f32.mrb[0].mxu0
      %v4069 = vpop.f32.mrb[0].mxu0
      %v4070 = vpop.f32.mrb[0].mxu0
      %v4071 = vpop.f32.mrb[0].mxu0
      %4072 = vdwg.mxu0
      %v4073 = vadd.f32 %v3751, %v3933
      %v4074 = vadd.f32 %v3752, %v3936
      %v4075 = vadd.f32 %v3753, %v3941
      %v4076 = vadd.f32 %v3754, %v3944
      %v4077 = vadd.f32 %v3755, %v3949
      %v4078 = vadd.f32 %v3756, %v3952
      %v4079 = vadd.f32 %v3757, %v3957
      %v4080 = vadd.f32 %v3758, %v3960
      %v4081 = vadd.f32 %v3759, %v3965
      %v4082 = vadd.f32 %v3760, %v3968
      %v4083 = vadd.f32 %v3761, %v3973
      %v4084 = vadd.f32 %v3762, %v3976
      %v4085 = vadd.f32 %v3763, %v3981
      %v4086 = vadd.f32 %v3764, %v3984
      %v4087 = vadd.f32 %v3765, %v3989
      %v4088 = vadd.f32 %v3766, %v3992
      %v4089 = vadd.f32 %v3767, %v3997
      %v4090 = vadd.f32 %v3768, %v4000
      %v4091 = vadd.f32 %v3769, %v4005
      %v4092 = vadd.f32 %v3770, %v4008
      %v4093 = vadd.f32 %v3771, %v4013
      %v4094 = vadd.f32 %v3772, %v4016
      %v4095 = vadd.f32 %v3773, %v4021
      %v4096 = vadd.f32 %v3774, %v4024
      %v4097 = vadd.f32 %v3775, %v4029
      %v4098 = vadd.f32 %v3776, %v4032
      %v4099 = vadd.f32 %v3777, %v4037
      %v4100 = vadd.f32 %v3778, %v4040
      %v4101 = vadd.f32 %v3779, %v4045
      %v4102 = vadd.f32 %v3780, %v4048
      %v4103 = vadd.f32 %v3781, %v4053
      %v4104 = vadd.f32 %v3782, %v4056
      %v4105 = vadd.f32 %v3783, %v4061
      %v4106 = vadd.f32 %v3784, %v4064
      %v4107 = vld [vmem:[#allocation2 + $0x13] sm:$0xff]
      %v4108 = vld [vmem:[#allocation2 + $0x1b] sm:$0xff]
      %v4109 = vld [vmem:[#allocation2 + $0x23] sm:$0xff]
      %v4110 = vld [vmem:[#allocation2 + $0x2b] sm:$0xff]
      %v4111 = vld [vmem:[#allocation2 + $0x33] sm:$0xff]
      %v4112 = vld [vmem:[#allocation2 + $0x3b] sm:$0xff]
      %v4113 = vld [vmem:[#allocation2 + $0x43] sm:$0xff]
      %v4114 = vld [vmem:[#allocation2 + $0x4b] sm:$0xff]
      %v4115 = vld [vmem:[#allocation2 + $0x53] sm:$0xff]
      %v4116 = vld [vmem:[#allocation2 + $0x5b] sm:$0xff]
      %v4117 = vld [vmem:[#allocation2 + $0x63] sm:$0xff]
      %v4118 = vld [vmem:[#allocation2 + $0x6b] sm:$0xff]
      %v4119 = vld [vmem:[#allocation2 + $0x73] sm:$0xff]
      %v4120 = vld [vmem:[#allocation2 + $0x7b] sm:$0xff]
      %v4121 = vld [vmem:[#allocation2 + $0x83] sm:$0xff]
      %v4122 = vld [vmem:[#allocation2 + $0x8b] sm:$0xff]
      %v4123 = vld [vmem:[#allocation2 + $0x93] sm:$0xff]
      %v4124 = vld [vmem:[#allocation2 + $0x9b] sm:$0xff]
      %v4125 = vld [vmem:[#allocation2 + $0xa3] sm:$0xff]
      %v4126 = vld [vmem:[#allocation2 + $0xab] sm:$0xff]
      %v4127 = vld [vmem:[#allocation2 + $0xb3] sm:$0xff]
      %v4128 = vld [vmem:[#allocation2 + $0xbb] sm:$0xff]
      %v4129 = vld [vmem:[#allocation2 + $0xc3] sm:$0xff]
      %v4130 = vld [vmem:[#allocation2 + $0xcb] sm:$0xff]
      %v4131 = vld [vmem:[#allocation2 + $0xd3] sm:$0xff]
      %v4132 = vld [vmem:[#allocation2 + $0xdb] sm:$0xff]
      %v4133 = vld [vmem:[#allocation2 + $0xe3] sm:$0xff]
      %v4134 = vld [vmem:[#allocation2 + $0xeb] sm:$0xff]
      %v4135 = vld [vmem:[#allocation2 + $0xf3] sm:$0xff]
      %v4136 = vld [vmem:[#allocation2 + $0xfb] sm:$0xff]
      %v4137 = vld [vmem:[#allocation2 + $0x103] sm:$0xff]
      %v4138 = vld [vmem:[#allocation2 + $0x10b] sm:$0xff]
      %v4139 = vld [vmem:[#allocation2 + $0x113] sm:$0xff]
      %v4140 = vld [vmem:[#allocation2 + $0x11b] sm:$0xff]
      %v4141 = vld [vmem:[#allocation2 + $0x123] sm:$0xff]
      %v4142 = vld [vmem:[#allocation2 + $0x12b] sm:$0x3f]
      %v4143 = vpack.c.bf16 %v4108, %v4107
      %v4144 = vpack.c.bf16 %v4110, %v4109
      %v4145 = vpack.c.bf16 %v4112, %v4111
      %v4146 = vpack.c.bf16 %v4114, %v4113
      %v4147 = vpack.c.bf16 %v4116, %v4115
      %v4148 = vpack.c.bf16 %v4118, %v4117
      %v4149 = vpack.c.bf16 %v4120, %v4119
      %v4150 = vpack.c.bf16 %v4122, %v4121
      %v4151 = vpack.c.bf16 %v4124, %v4123
      %v4152 = vpack.c.bf16 %v4126, %v4125
      %v4153 = vpack.c.bf16 %v4128, %v4127
      %v4154 = vpack.c.bf16 %v4130, %v4129
      %v4155 = vpack.c.bf16 %v4132, %v4131
      %v4156 = vpack.c.bf16 %v4134, %v4133
      %v4157 = vpack.c.bf16 %v4136, %v4135
      %v4158 = vpack.c.bf16 %v4138, %v4137
      %v4159 = vpack.c.bf16 %v4140, %v4139
      %v4160 = vpack.c.bf16 %v4142, %v4141
      %s4161 = scalar_lea.vmem %s7, 16
      %v4162 = vld [vmem:[%s4161] sm:$0xf]
      %v4164 = vsel %vm2812, %v4143, 0
      %v4167 = vsel %vm2812, %v4144, 0
      %v4170 = vsel %vm2812, %v4145, 0
      %v4173 = vsel %vm2812, %v4146, 0
      %v4176 = vsel %vm2812, %v4147, 0
      %v4179 = vsel %vm2812, %v4148, 0
      %v4182 = vsel %vm2812, %v4149, 0
      %v4185 = vsel %vm2812, %v4150, 0
      %v4188 = vsel %vm2812, %v4151, 0
      %v4191 = vsel %vm2812, %v4152, 0
      %v4194 = vsel %vm2812, %v4153, 0
      %v4197 = vsel %vm2812, %v4154, 0
      %v4200 = vsel %vm2812, %v4155, 0
      %v4203 = vsel %vm2812, %v4156, 0
      %v4206 = vsel %vm2812, %v4157, 0
      %v4209 = vsel %vm2812, %v4158, 0
      %v4212 = vsel %vm2812, %v4159, 0
      %v4215 = vsel %vm2812, %v4160, 0
      %v4218 = vsel %vm3052, %v4162, 0
      %4220 = vmatprep.subr.bf16.mxu0 0
      %4221 = vmatpush1.bf16.msra.mxu0 %v4218
      %4222 = vmatprep.subr.bf16.mxu0 0
      %4223 = vmatpush1.bf16.msra.mxu0 0
      %4224 = vmatprep.subr.bf16.mxu0 0
      %4225 = vmatpush1.bf16.msra.mxu0 0
      %4226 = vmatprep.subr.bf16.mxu0 0
      %4227 = vmatpush1.bf16.msra.mxu0 0
      %4228 = vmatprep.subr.bf16.mxu0 0
      %4229 = vmatpush1.bf16.msra.mxu0 0
      %4230 = vmatprep.subr.bf16.mxu0 0
      %4231 = vmatpush1.bf16.msra.mxu0 0
      %4232 = vmatprep.subr.bf16.mxu0 0
      %4233 = vmatpush1.bf16.msra.mxu0 0
      %4234 = vmatprep.subr.bf16.mxu0 0
      %4235 = vmatpush1.bf16.msra.mxu0 0
      %4236 = vmatprep.subr.bf16.mxu0 0
      %4237 = vmatpush1.bf16.msra.mxu0 0
      %4238 = vmatprep.subr.bf16.mxu0 0
      %4239 = vmatpush1.bf16.msra.mxu0 0
      %4240 = vmatprep.subr.bf16.mxu0 0
      %4241 = vmatpush1.bf16.msra.mxu0 0
      %4242 = vmatprep.subr.bf16.mxu0 0
      %4243 = vmatpush1.bf16.msra.mxu0 0
      %4244 = vmatprep.subr.bf16.mxu0 0
      %4245 = vmatpush1.bf16.msra.mxu0 0
      %4246 = vmatprep.subr.bf16.mxu0 0
      %4247 = vmatpush1.bf16.msra.mxu0 0
      %4248 = vmatprep.subr.bf16.mxu0 0
      %4249 = vmatpush1.bf16.msra.mxu0 0
      %4250 = vmatprep.subr.bf16.mxu0 0
      %4251 = vmatpush1.bf16.msra.mxu0 0
      %4252 = vmatprep.mubr.bf16.mxu0 0
      %4253 = vmatmul.mubr.bf16.gmra.mrb[0].mxu0 %v4164
      %v4254 = vpop.f32.mrb[0].mxu0
      %v4255 = vadd.f32 0.0, %v4254
      %v4256 = vpop.f32.mrb[0].mxu0
      %v4257 = vpop.f32.mrb[0].mxu0
      %v4258 = vadd.f32 0.0, %v4257
      %v4259 = vpop.f32.mrb[0].mxu0
      %4260 = vmatprep.mubr.bf16.mxu0 0
      %4261 = vmatmul.mubr.bf16.gmra.mrb[0].mxu0 %v4167
      %v4262 = vpop.f32.mrb[0].mxu0
      %v4263 = vadd.f32 0.0, %v4262
      %v4264 = vpop.f32.mrb[0].mxu0
      %v4265 = vpop.f32.mrb[0].mxu0
      %v4266 = vadd.f32 0.0, %v4265
      %v4267 = vpop.f32.mrb[0].mxu0
      %4268 = vmatprep.mubr.bf16.mxu0 0
      %4269 = vmatmul.mubr.bf16.gmra.mrb[0].mxu0 %v4170
      %v4270 = vpop.f32.mrb[0].mxu0
      %v4271 = vadd.f32 0.0, %v4270
      %v4272 = vpop.f32.mrb[0].mxu0
      %v4273 = vpop.f32.mrb[0].mxu0
      %v4274 = vadd.f32 0.0, %v4273
      %v4275 = vpop.f32.mrb[0].mxu0
      %4276 = vmatprep.mubr.bf16.mxu0 0
      %4277 = vmatmul.mubr.bf16.gmra.mrb[0].mxu0 %v4173
      %v4278 = vpop.f32.mrb[0].mxu0
      %v4279 = vadd.f32 0.0, %v4278
      %v4280 = vpop.f32.mrb[0].mxu0
      %v4281 = vpop.f32.mrb[0].mxu0
      %v4282 = vadd.f32 0.0, %v4281
      %v4283 = vpop.f32.mrb[0].mxu0
      %4284 = vmatprep.mubr.bf16.mxu0 0
      %4285 = vmatmul.mubr.bf16.gmra.mrb[0].mxu0 %v4176
      %v4286 = vpop.f32.mrb[0].mxu0
      %v4287 = vadd.f32 0.0, %v4286
      %v4288 = vpop.f32.mrb[0].mxu0
      %v4289 = vpop.f32.mrb[0].mxu0
      %v4290 = vadd.f32 0.0, %v4289
      %v4291 = vpop.f32.mrb[0].mxu0
      %4292 = vmatprep.mubr.bf16.mxu0 0
      %4293 = vmatmul.mubr.bf16.gmra.mrb[0].mxu0 %v4179
      %v4294 = vpop.f32.mrb[0].mxu0
      %v4295 = vadd.f32 0.0, %v4294
      %v4296 = vpop.f32.mrb[0].mxu0
      %v4297 = vpop.f32.mrb[0].mxu0
      %v4298 = vadd.f32 0.0, %v4297
      %v4299 = vpop.f32.mrb[0].mxu0
      %4300 = vmatprep.mubr.bf16.mxu0 0
      %4301 = vmatmul.mubr.bf16.gmra.mrb[0].mxu0 %v4182
      %v4302 = vpop.f32.mrb[0].mxu0
      %v4303 = vadd.f32 0.0, %v4302
      %v4304 = vpop.f32.mrb[0].mxu0
      %v4305 = vpop.f32.mrb[0].mxu0
      %v4306 = vadd.f32 0.0, %v4305
      %v4307 = vpop.f32.mrb[0].mxu0
      %4308 = vmatprep.mubr.bf16.mxu0 0
      %4309 = vmatmul.mubr.bf16.gmra.mrb[0].mxu0 %v4185
      %v4310 = vpop.f32.mrb[0].mxu0
      %v4311 = vadd.f32 0.0, %v4310
      %v4312 = vpop.f32.mrb[0].mxu0
      %v4313 = vpop.f32.mrb[0].mxu0
      %v4314 = vadd.f32 0.0, %v4313
      %v4315 = vpop.f32.mrb[0].mxu0
      %4316 = vmatprep.mubr.bf16.mxu0 0
      %4317 = vmatmul.mubr.bf16.gmra.mrb[0].mxu0 %v4188
      %v4318 = vpop.f32.mrb[0].mxu0
      %v4319 = vadd.f32 0.0, %v4318
      %v4320 = vpop.f32.mrb[0].mxu0
      %v4321 = vpop.f32.mrb[0].mxu0
      %v4322 = vadd.f32 0.0, %v4321
      %v4323 = vpop.f32.mrb[0].mxu0
      %4324 = vmatprep.mubr.bf16.mxu0 0
      %4325 = vmatmul.mubr.bf16.gmra.mrb[0].mxu0 %v4191
      %v4326 = vpop.f32.mrb[0].mxu0
      %v4327 = vadd.f32 0.0, %v4326
      %v4328 = vpop.f32.mrb[0].mxu0
      %v4329 = vpop.f32.mrb[0].mxu0
      %v4330 = vadd.f32 0.0, %v4329
      %v4331 = vpop.f32.mrb[0].mxu0
      %4332 = vmatprep.mubr.bf16.mxu0 0
      %4333 = vmatmul.mubr.bf16.gmra.mrb[0].mxu0 %v4194
      %v4334 = vpop.f32.mrb[0].mxu0
      %v4335 = vadd.f32 0.0, %v4334
      %v4336 = vpop.f32.mrb[0].mxu0
      %v4337 = vpop.f32.mrb[0].mxu0
      %v4338 = vadd.f32 0.0, %v4337
      %v4339 = vpop.f32.mrb[0].mxu0
      %4340 = vmatprep.mubr.bf16.mxu0 0
      %4341 = vmatmul.mubr.bf16.gmra.mrb[0].mxu0 %v4197
      %v4342 = vpop.f32.mrb[0].mxu0
      %v4343 = vadd.f32 0.0, %v4342
      %v4344 = vpop.f32.mrb[0].mxu0
      %v4345 = vpop.f32.mrb[0].mxu0
      %v4346 = vadd.f32 0.0, %v4345
      %v4347 = vpop.f32.mrb[0].mxu0
      %4348 = vmatprep.mubr.bf16.mxu0 0
      %4349 = vmatmul.mubr.bf16.gmra.mrb[0].mxu0 %v4200
      %v4350 = vpop.f32.mrb[0].mxu0
      %v4351 = vadd.f32 0.0, %v4350
      %v4352 = vpop.f32.mrb[0].mxu0
      %v4353 = vpop.f32.mrb[0].mxu0
      %v4354 = vadd.f32 0.0, %v4353
      %v4355 = vpop.f32.mrb[0].mxu0
      %4356 = vmatprep.mubr.bf16.mxu0 0
      %4357 = vmatmul.mubr.bf16.gmra.mrb[0].mxu0 %v4203
      %v4358 = vpop.f32.mrb[0].mxu0
      %v4359 = vadd.f32 0.0, %v4358
      %v4360 = vpop.f32.mrb[0].mxu0
      %v4361 = vpop.f32.mrb[0].mxu0
      %v4362 = vadd.f32 0.0, %v4361
      %v4363 = vpop.f32.mrb[0].mxu0
      %4364 = vmatprep.mubr.bf16.mxu0 0
      %4365 = vmatmul.mubr.bf16.gmra.mrb[0].mxu0 %v4206
      %v4366 = vpop.f32.mrb[0].mxu0
      %v4367 = vadd.f32 0.0, %v4366
      %v4368 = vpop.f32.mrb[0].mxu0
      %v4369 = vpop.f32.mrb[0].mxu0
      %v4370 = vadd.f32 0.0, %v4369
      %v4371 = vpop.f32.mrb[0].mxu0
      %4372 = vmatprep.mubr.bf16.mxu0 0
      %4373 = vmatmul.mubr.bf16.gmra.mrb[0].mxu0 %v4209
      %v4374 = vpop.f32.mrb[0].mxu0
      %v4375 = vadd.f32 0.0, %v4374
      %v4376 = vpop.f32.mrb[0].mxu0
      %v4377 = vpop.f32.mrb[0].mxu0
      %v4378 = vadd.f32 0.0, %v4377
      %v4379 = vpop.f32.mrb[0].mxu0
      %4380 = vmatprep.mubr.bf16.mxu0 0
      %4381 = vmatmul.mubr.bf16.gmra.mrb[0].mxu0 %v4212
      %v4382 = vpop.f32.mrb[0].mxu0
      %v4383 = vadd.f32 0.0, %v4382
      %v4384 = vpop.f32.mrb[0].mxu0
      %v4385 = vpop.f32.mrb[0].mxu0
      %v4386 = vadd.f32 0.0, %v4385
      %v4387 = vpop.f32.mrb[0].mxu0
      %4388 = vmatprep.mubr.bf16.mxu0 0
      %4389 = vmatmul.mubr.bf16.gmra.mrb[0].mxu0 %v4215
      %v4390 = vpop.f32.mrb[0].mxu0
      %v4391 = vpop.f32.mrb[0].mxu0
      %v4392 = vpop.f32.mrb[0].mxu0
      %v4393 = vpop.f32.mrb[0].mxu0
      %4394 = vdwg.mxu0
      %v4395 = vadd.f32 %v4073, %v4255
      %v4396 = vadd.f32 %v4074, %v4258
      %v4397 = vadd.f32 %v4075, %v4263
      %v4398 = vadd.f32 %v4076, %v4266
      %v4399 = vadd.f32 %v4077, %v4271
      %v4400 = vadd.f32 %v4078, %v4274
      %v4401 = vadd.f32 %v4079, %v4279
      %v4402 = vadd.f32 %v4080, %v4282
      %v4403 = vadd.f32 %v4081, %v4287
      %v4404 = vadd.f32 %v4082, %v4290
      %v4405 = vadd.f32 %v4083, %v4295
      %v4406 = vadd.f32 %v4084, %v4298
      %v4407 = vadd.f32 %v4085, %v4303
      %v4408 = vadd.f32 %v4086, %v4306
      %v4409 = vadd.f32 %v4087, %v4311
      %v4410 = vadd.f32 %v4088, %v4314
      %v4411 = vadd.f32 %v4089, %v4319
      %v4412 = vadd.f32 %v4090, %v4322
      %v4413 = vadd.f32 %v4091, %v4327
      %v4414 = vadd.f32 %v4092, %v4330
      %v4415 = vadd.f32 %v4093, %v4335
      %v4416 = vadd.f32 %v4094, %v4338
      %v4417 = vadd.f32 %v4095, %v4343
      %v4418 = vadd.f32 %v4096, %v4346
      %v4419 = vadd.f32 %v4097, %v4351
      %v4420 = vadd.f32 %v4098, %v4354
      %v4421 = vadd.f32 %v4099, %v4359
      %v4422 = vadd.f32 %v4100, %v4362
      %v4423 = vadd.f32 %v4101, %v4367
      %v4424 = vadd.f32 %v4102, %v4370
      %v4425 = vadd.f32 %v4103, %v4375
      %v4426 = vadd.f32 %v4104, %v4378
      %v4427 = vadd.f32 %v4105, %v4383
      %v4428 = vadd.f32 %v4106, %v4386
      %v4429 = vld [vmem:[#allocation2 + $0x14] sm:$0xff]
      %v4430 = vld [vmem:[#allocation2 + $0x1c] sm:$0xff]
      %v4431 = vld [vmem:[#allocation2 + $0x24] sm:$0xff]
      %v4432 = vld [vmem:[#allocation2 + $0x2c] sm:$0xff]
      %v4433 = vld [vmem:[#allocation2 + $0x34] sm:$0xff]
      %v4434 = vld [vmem:[#allocation2 + $0x3c] sm:$0xff]
      %v4435 = vld [vmem:[#allocation2 + $0x44] sm:$0xff]
      %v4436 = vld [vmem:[#allocation2 + $0x4c] sm:$0xff]
      %v4437 = vld [vmem:[#allocation2 + $0x54] sm:$0xff]
      %v4438 = vld [vmem:[#allocation2 + $0x5c] sm:$0xff]
      %v4439 = vld [vmem:[#allocation2 + $0x64] sm:$0xff]
      %v4440 = vld [vmem:[#allocation2 + $0x6c] sm:$0xff]
      %v4441 = vld [vmem:[#allocation2 + $0x74] sm:$0xff]
      %v4442 = vld [vmem:[#allocation2 + $0x7c] sm:$0xff]
      %v4443 = vld [vmem:[#allocation2 + $0x84] sm:$0xff]
      %v4444 = vld [vmem:[#allocation2 + $0x8c] sm:$0xff]
      %v4445 = vld [vmem:[#allocation2 + $0x94] sm:$0xff]
      %v4446 = vld [vmem:[#allocation2 + $0x9c] sm:$0xff]
      %v4447 = vld [vmem:[#allocation2 + $0xa4] sm:$0xff]
      %v4448 = vld [vmem:[#allocation2 + $0xac] sm:$0xff]
      %v4449 = vld [vmem:[#allocation2 + $0xb4] sm:$0xff]
      %v4450 = vld [vmem:[#allocation2 + $0xbc] sm:$0xff]
      %v4451 = vld [vmem:[#allocation2 + $0xc4] sm:$0xff]
      %v4452 = vld [vmem:[#allocation2 + $0xcc] sm:$0xff]
      %v4453 = vld [vmem:[#allocation2 + $0xd4] sm:$0xff]
      %v4454 = vld [vmem:[#allocation2 + $0xdc] sm:$0xff]
      %v4455 = vld [vmem:[#allocation2 + $0xe4] sm:$0xff]
      %v4456 = vld [vmem:[#allocation2 + $0xec] sm:$0xff]
      %v4457 = vld [vmem:[#allocation2 + $0xf4] sm:$0xff]
      %v4458 = vld [vmem:[#allocation2 + $0xfc] sm:$0xff]
      %v4459 = vld [vmem:[#allocation2 + $0x104] sm:$0xff]
      %v4460 = vld [vmem:[#allocation2 + $0x10c] sm:$0xff]
      %v4461 = vld [vmem:[#allocation2 + $0x114] sm:$0xff]
      %v4462 = vld [vmem:[#allocation2 + $0x11c] sm:$0xff]
      %v4463 = vld [vmem:[#allocation2 + $0x124] sm:$0xff]
      %v4464 = vld [vmem:[#allocation2 + $0x12c] sm:$0x3f]
      %v4465 = vpack.c.bf16 %v4430, %v4429
      %v4466 = vpack.c.bf16 %v4432, %v4431
      %v4467 = vpack.c.bf16 %v4434, %v4433
      %v4468 = vpack.c.bf16 %v4436, %v4435
      %v4469 = vpack.c.bf16 %v4438, %v4437
      %v4470 = vpack.c.bf16 %v4440, %v4439
      %v4471 = vpack.c.bf16 %v4442, %v4441
      %v4472 = vpack.c.bf16 %v4444, %v4443
      %v4473 = vpack.c.bf16 %v4446, %v4445
      %v4474 = vpack.c.bf16 %v4448, %v4447
      %v4475 = vpack.c.bf16 %v4450, %v4449
      %v4476 = vpack.c.bf16 %v4452, %v4451
      %v4477 = vpack.c.bf16 %v4454, %v4453
      %v4478 = vpack.c.bf16 %v4456, %v4455
      %v4479 = vpack.c.bf16 %v4458, %v4457
      %v4480 = vpack.c.bf16 %v4460, %v4459
      %v4481 = vpack.c.bf16 %v4462, %v4461
      %v4482 = vpack.c.bf16 %v4464, %v4463
      %s4483 = scalar_lea.vmem %s7, 20
      %v4484 = vld [vmem:[%s4483] sm:$0xf]
      %v4486 = vsel %vm2812, %v4465, 0
      %v4489 = vsel %vm2812, %v4466, 0
      %v4492 = vsel %vm2812, %v4467, 0
      %v4495 = vsel %vm2812, %v4468, 0
      %v4498 = vsel %vm2812, %v4469, 0
      %v4501 = vsel %vm2812, %v4470, 0
      %v4504 = vsel %vm2812, %v4471, 0
      %v4507 = vsel %vm2812, %v4472, 0
      %v4510 = vsel %vm2812, %v4473, 0
      %v4513 = vsel %vm2812, %v4474, 0
      %v4516 = vsel %vm2812, %v4475, 0
      %v4519 = vsel %vm2812, %v4476, 0
      %v4522 = vsel %vm2812, %v4477, 0
      %v4525 = vsel %vm2812, %v4478, 0
      %v4528 = vsel %vm2812, %v4479, 0
      %v4531 = vsel %vm2812, %v4480, 0
      %v4534 = vsel %vm2812, %v4481, 0
      %v4537 = vsel %vm2812, %v4482, 0
      %v4540 = vsel %vm3052, %v4484, 0
      %4542 = vmatprep.subr.bf16.mxu0 0
      %4543 = vmatpush1.bf16.msra.mxu0 %v4540
      %4544 = vmatprep.subr.bf16.mxu0 0
      %4545 = vmatpush1.bf16.msra.mxu0 0
      %4546 = vmatprep.subr.bf16.mxu0 0
      %4547 = vmatpush1.bf16.msra.mxu0 0
      %4548 = vmatprep.subr.bf16.mxu0 0
      %4549 = vmatpush1.bf16.msra.mxu0 0
      %4550 = vmatprep.subr.bf16.mxu0 0
      %4551 = vmatpush1.bf16.msra.mxu0 0
      %4552 = vmatprep.subr.bf16.mxu0 0
      %4553 = vmatpush1.bf16.msra.mxu0 0
      %4554 = vmatprep.subr.bf16.mxu0 0
      %4555 = vmatpush1.bf16.msra.mxu0 0
      %4556 = vmatprep.subr.bf16.mxu0 0
      %4557 = vmatpush1.bf16.msra.mxu0 0
      %4558 = vmatprep.subr.bf16.mxu0 0
      %4559 = vmatpush1.bf16.msra.mxu0 0
      %4560 = vmatprep.subr.bf16.mxu0 0
      %4561 = vmatpush1.bf16.msra.mxu0 0
      %4562 = vmatprep.subr.bf16.mxu0 0
      %4563 = vmatpush1.bf16.msra.mxu0 0
      %4564 = vmatprep.subr.bf16.mxu0 0
      %4565 = vmatpush1.bf16.msra.mxu0 0
      %4566 = vmatprep.subr.bf16.mxu0 0
      %4567 = vmatpush1.bf16.msra.mxu0 0
      %4568 = vmatprep.subr.bf16.mxu0 0
      %4569 = vmatpush1.bf16.msra.mxu0 0
      %4570 = vmatprep.subr.bf16.mxu0 0
      %4571 = vmatpush1.bf16.msra.mxu0 0
      %4572 = vmatprep.subr.bf16.mxu0 0
      %4573 = vmatpush1.bf16.msra.mxu0 0
      %4574 = vmatprep.mubr.bf16.mxu0 0
      %4575 = vmatmul.mubr.bf16.gmra.mrb[0].mxu0 %v4486
      %v4576 = vpop.f32.mrb[0].mxu0
      %v4577 = vadd.f32 0.0, %v4576
      %v4578 = vpop.f32.mrb[0].mxu0
      %v4579 = vpop.f32.mrb[0].mxu0
      %v4580 = vadd.f32 0.0, %v4579
      %v4581 = vpop.f32.mrb[0].mxu0
      %4582 = vmatprep.mubr.bf16.mxu0 0
      %4583 = vmatmul.mubr.bf16.gmra.mrb[0].mxu0 %v4489
      %v4584 = vpop.f32.mrb[0].mxu0
      %v4585 = vadd.f32 0.0, %v4584
      %v4586 = vpop.f32.mrb[0].mxu0
      %v4587 = vpop.f32.mrb[0].mxu0
      %v4588 = vadd.f32 0.0, %v4587
      %v4589 = vpop.f32.mrb[0].mxu0
      %4590 = vmatprep.mubr.bf16.mxu0 0
      %4591 = vmatmul.mubr.bf16.gmra.mrb[0].mxu0 %v4492
      %v4592 = vpop.f32.mrb[0].mxu0
      %v4593 = vadd.f32 0.0, %v4592
      %v4594 = vpop.f32.mrb[0].mxu0
      %v4595 = vpop.f32.mrb[0].mxu0
      %v4596 = vadd.f32 0.0, %v4595
      %v4597 = vpop.f32.mrb[0].mxu0
      %4598 = vmatprep.mubr.bf16.mxu0 0
      %4599 = vmatmul.mubr.bf16.gmra.mrb[0].mxu0 %v4495
      %v4600 = vpop.f32.mrb[0].mxu0
      %v4601 = vadd.f32 0.0, %v4600
      %v4602 = vpop.f32.mrb[0].mxu0
      %v4603 = vpop.f32.mrb[0].mxu0
      %v4604 = vadd.f32 0.0, %v4603
      %v4605 = vpop.f32.mrb[0].mxu0
      %4606 = vmatprep.mubr.bf16.mxu0 0
      %4607 = vmatmul.mubr.bf16.gmra.mrb[0].mxu0 %v4498
      %v4608 = vpop.f32.mrb[0].mxu0
      %v4609 = vadd.f32 0.0, %v4608
      %v4610 = vpop.f32.mrb[0].mxu0
      %v4611 = vpop.f32.mrb[0].mxu0
      %v4612 = vadd.f32 0.0, %v4611
      %v4613 = vpop.f32.mrb[0].mxu0
      %4614 = vmatprep.mubr.bf16.mxu0 0
      %4615 = vmatmul.mubr.bf16.gmra.mrb[0].mxu0 %v4501
      %v4616 = vpop.f32.mrb[0].mxu0
      %v4617 = vadd.f32 0.0, %v4616
      %v4618 = vpop.f32.mrb[0].mxu0
      %v4619 = vpop.f32.mrb[0].mxu0
      %v4620 = vadd.f32 0.0, %v4619
      %v4621 = vpop.f32.mrb[0].mxu0
      %4622 = vmatprep.mubr.bf16.mxu0 0
      %4623 = vmatmul.mubr.bf16.gmra.mrb[0].mxu0 %v4504
      %v4624 = vpop.f32.mrb[0].mxu0
      %v4625 = vadd.f32 0.0, %v4624
      %v4626 = vpop.f32.mrb[0].mxu0
      %v4627 = vpop.f32.mrb[0].mxu0
      %v4628 = vadd.f32 0.0, %v4627
      %v4629 = vpop.f32.mrb[0].mxu0
      %4630 = vmatprep.mubr.bf16.mxu0 0
      %4631 = vmatmul.mubr.bf16.gmra.mrb[0].mxu0 %v4507
      %v4632 = vpop.f32.mrb[0].mxu0
      %v4633 = vadd.f32 0.0, %v4632
      %v4634 = vpop.f32.mrb[0].mxu0
      %v4635 = vpop.f32.mrb[0].mxu0
      %v4636 = vadd.f32 0.0, %v4635
      %v4637 = vpop.f32.mrb[0].mxu0
      %4638 = vmatprep.mubr.bf16.mxu0 0
      %4639 = vmatmul.mubr.bf16.gmra.mrb[0].mxu0 %v4510
      %v4640 = vpop.f32.mrb[0].mxu0
      %v4641 = vadd.f32 0.0, %v4640
      %v4642 = vpop.f32.mrb[0].mxu0
      %v4643 = vpop.f32.mrb[0].mxu0
      %v4644 = vadd.f32 0.0, %v4643
      %v4645 = vpop.f32.mrb[0].mxu0
      %4646 = vmatprep.mubr.bf16.mxu0 0
      %4647 = vmatmul.mubr.bf16.gmra.mrb[0].mxu0 %v4513
      %v4648 = vpop.f32.mrb[0].mxu0
      %v4649 = vadd.f32 0.0, %v4648
      %v4650 = vpop.f32.mrb[0].mxu0
      %v4651 = vpop.f32.mrb[0].mxu0
      %v4652 = vadd.f32 0.0, %v4651
      %v4653 = vpop.f32.mrb[0].mxu0
      %4654 = vmatprep.mubr.bf16.mxu0 0
      %4655 = vmatmul.mubr.bf16.gmra.mrb[0].mxu0 %v4516
      %v4656 = vpop.f32.mrb[0].mxu0
      %v4657 = vadd.f32 0.0, %v4656
      %v4658 = vpop.f32.mrb[0].mxu0
      %v4659 = vpop.f32.mrb[0].mxu0
      %v4660 = vadd.f32 0.0, %v4659
      %v4661 = vpop.f32.mrb[0].mxu0
      %4662 = vmatprep.mubr.bf16.mxu0 0
      %4663 = vmatmul.mubr.bf16.gmra.mrb[0].mxu0 %v4519
      %v4664 = vpop.f32.mrb[0].mxu0
      %v4665 = vadd.f32 0.0, %v4664
      %v4666 = vpop.f32.mrb[0].mxu0
      %v4667 = vpop.f32.mrb[0].mxu0
      %v4668 = vadd.f32 0.0, %v4667
      %v4669 = vpop.f32.mrb[0].mxu0
      %4670 = vmatprep.mubr.bf16.mxu0 0
      %4671 = vmatmul.mubr.bf16.gmra.mrb[0].mxu0 %v4522
      %v4672 = vpop.f32.mrb[0].mxu0
      %v4673 = vadd.f32 0.0, %v4672
      %v4674 = vpop.f32.mrb[0].mxu0
      %v4675 = vpop.f32.mrb[0].mxu0
      %v4676 = vadd.f32 0.0, %v4675
      %v4677 = vpop.f32.mrb[0].mxu0
      %4678 = vmatprep.mubr.bf16.mxu0 0
      %4679 = vmatmul.mubr.bf16.gmra.mrb[0].mxu0 %v4525
      %v4680 = vpop.f32.mrb[0].mxu0
      %v4681 = vadd.f32 0.0, %v4680
      %v4682 = vpop.f32.mrb[0].mxu0
      %v4683 = vpop.f32.mrb[0].mxu0
      %v4684 = vadd.f32 0.0, %v4683
      %v4685 = vpop.f32.mrb[0].mxu0
      %4686 = vmatprep.mubr.bf16.mxu0 0
      %4687 = vmatmul.mubr.bf16.gmra.mrb[0].mxu0 %v4528
      %v4688 = vpop.f32.mrb[0].mxu0
      %v4689 = vadd.f32 0.0, %v4688
      %v4690 = vpop.f32.mrb[0].mxu0
      %v4691 = vpop.f32.mrb[0].mxu0
      %v4692 = vadd.f32 0.0, %v4691
      %v4693 = vpop.f32.mrb[0].mxu0
      %4694 = vmatprep.mubr.bf16.mxu0 0
      %4695 = vmatmul.mubr.bf16.gmra.mrb[0].mxu0 %v4531
      %v4696 = vpop.f32.mrb[0].mxu0
      %v4697 = vadd.f32 0.0, %v4696
      %v4698 = vpop.f32.mrb[0].mxu0
      %v4699 = vpop.f32.mrb[0].mxu0
      %v4700 = vadd.f32 0.0, %v4699
      %v4701 = vpop.f32.mrb[0].mxu0
      %4702 = vmatprep.mubr.bf16.mxu0 0
      %4703 = vmatmul.mubr.bf16.gmra.mrb[0].mxu0 %v4534
      %v4704 = vpop.f32.mrb[0].mxu0
      %v4705 = vadd.f32 0.0, %v4704
      %v4706 = vpop.f32.mrb[0].mxu0
      %v4707 = vpop.f32.mrb[0].mxu0
      %v4708 = vadd.f32 0.0, %v4707
      %v4709 = vpop.f32.mrb[0].mxu0
      %4710 = vmatprep.mubr.bf16.mxu0 0
      %4711 = vmatmul.mubr.bf16.gmra.mrb[0].mxu0 %v4537
      %v4712 = vpop.f32.mrb[0].mxu0
      %v4713 = vpop.f32.mrb[0].mxu0
      %v4714 = vpop.f32.mrb[0].mxu0
      %v4715 = vpop.f32.mrb[0].mxu0
      %4716 = vdwg.mxu0
      %v4717 = vadd.f32 %v4395, %v4577
      %v4718 = vadd.f32 %v4396, %v4580
      %v4719 = vadd.f32 %v4397, %v4585
      %v4720 = vadd.f32 %v4398, %v4588
      %v4721 = vadd.f32 %v4399, %v4593
      %v4722 = vadd.f32 %v4400, %v4596
      %v4723 = vadd.f32 %v4401, %v4601
      %v4724 = vadd.f32 %v4402, %v4604
      %v4725 = vadd.f32 %v4403, %v4609
      %v4726 = vadd.f32 %v4404, %v4612
      %v4727 = vadd.f32 %v4405, %v4617
      %v4728 = vadd.f32 %v4406, %v4620
      %v4729 = vadd.f32 %v4407, %v4625
      %v4730 = vadd.f32 %v4408, %v4628
      %v4731 = vadd.f32 %v4409, %v4633
      %v4732 = vadd.f32 %v4410, %v4636
      %v4733 = vadd.f32 %v4411, %v4641
      %v4734 = vadd.f32 %v4412, %v4644
      %v4735 = vadd.f32 %v4413, %v4649
      %v4736 = vadd.f32 %v4414, %v4652
      %v4737 = vadd.f32 %v4415, %v4657
      %v4738 = vadd.f32 %v4416, %v4660
      %v4739 = vadd.f32 %v4417, %v4665
      %v4740 = vadd.f32 %v4418, %v4668
      %v4741 = vadd.f32 %v4419, %v4673
      %v4742 = vadd.f32 %v4420, %v4676
      %v4743 = vadd.f32 %v4421, %v4681
      %v4744 = vadd.f32 %v4422, %v4684
      %v4745 = vadd.f32 %v4423, %v4689
      %v4746 = vadd.f32 %v4424, %v4692
      %v4747 = vadd.f32 %v4425, %v4697
      %v4748 = vadd.f32 %v4426, %v4700
      %v4749 = vadd.f32 %v4427, %v4705
      %v4750 = vadd.f32 %v4428, %v4708
      %v4751 = vld [vmem:[#allocation2 + $0x24] sm:$0xff]
      %v4752 = vld [vmem:[#allocation2 + $0x2c] sm:$0xff]
      %v4753 = vld [vmem:[#allocation2 + $0x34] sm:$0xff]
      %v4754 = vld [vmem:[#allocation2 + $0x3c] sm:$0xff]
      %v4755 = vld [vmem:[#allocation2 + $0x44] sm:$0xff]
      %v4756 = vld [vmem:[#allocation2 + $0x4c] sm:$0xff]
      %v4757 = vld [vmem:[#allocation2 + $0x54] sm:$0xff]
      %v4758 = vld [vmem:[#allocation2 + $0x5c] sm:$0xff]
      %v4759 = vld [vmem:[#allocation2 + $0x64] sm:$0xff]
      %v4760 = vld [vmem:[#allocation2 + $0x6c] sm:$0xff]
      %v4761 = vld [vmem:[#allocation2 + $0x74] sm:$0xff]
      %v4762 = vld [vmem:[#allocation2 + $0x7c] sm:$0xff]
      %v4763 = vld [vmem:[#allocation2 + $0x84] sm:$0xff]
      %v4764 = vld [vmem:[#allocation2 + $0x8c] sm:$0xff]
      %v4765 = vld [vmem:[#allocation2 + $0x94] sm:$0xff]
      %v4766 = vld [vmem:[#allocation2 + $0x9c] sm:$0xff]
      %v4767 = vld [vmem:[#allocation2 + $0xa4] sm:$0xff]
      %v4768 = vld [vmem:[#allocation2 + $0xac] sm:$0xff]
      %v4769 = vld [vmem:[#allocation2 + $0xb4] sm:$0xff]
      %v4770 = vld [vmem:[#allocation2 + $0xbc] sm:$0xff]
      %v4771 = vld [vmem:[#allocation2 + $0xc4] sm:$0xff]
      %v4772 = vld [vmem:[#allocation2 + $0xcc] sm:$0xff]
      %v4773 = vld [vmem:[#allocation2 + $0xd4] sm:$0xff]
      %v4774 = vld [vmem:[#allocation2 + $0xdc] sm:$0xff]
      %v4775 = vld [vmem:[#allocation2 + $0xe4] sm:$0xff]
      %v4776 = vld [vmem:[#allocation2 + $0xec] sm:$0xff]
      %v4777 = vld [vmem:[#allocation2 + $0xf4] sm:$0xff]
      %v4778 = vld [vmem:[#allocation2 + $0xfc] sm:$0xff]
      %v4779 = vld [vmem:[#allocation2 + $0x104] sm:$0xff]
      %v4780 = vld [vmem:[#allocation2 + $0x10c] sm:$0xff]
      %v4781 = vld [vmem:[#allocation2 + $0x114] sm:$0xff]
      %v4782 = vld [vmem:[#allocation2 + $0x11c] sm:$0xff]
      %v4783 = vld [vmem:[#allocation2 + $0x124] sm:$0xff]
      %v4784 = vld [vmem:[#allocation2 + $0x12c] sm:$0xff]
      %v4785 = vld [vmem:[#allocation2 + $0x134] sm:$0xff]
      %v4786 = vld [vmem:[#allocation2 + $0x13c] sm:$0x3f]
      %v4787 = vpack.c.bf16 %v4752, %v4751
      %v4788 = vpack.c.bf16 %v4754, %v4753
      %v4789 = vpack.c.bf16 %v4756, %v4755
      %v4790 = vpack.c.bf16 %v4758, %v4757
      %v4791 = vpack.c.bf16 %v4760, %v4759
      %v4792 = vpack.c.bf16 %v4762, %v4761
      %v4793 = vpack.c.bf16 %v4764, %v4763
      %v4794 = vpack.c.bf16 %v4766, %v4765
      %v4795 = vpack.c.bf16 %v4768, %v4767
      %v4796 = vpack.c.bf16 %v4770, %v4769
      %v4797 = vpack.c.bf16 %v4772, %v4771
      %v4798 = vpack.c.bf16 %v4774, %v4773
      %v4799 = vpack.c.bf16 %v4776, %v4775
      %v4800 = vpack.c.bf16 %v4778, %v4777
      %v4801 = vpack.c.bf16 %v4780, %v4779
      %v4802 = vpack.c.bf16 %v4782, %v4781
      %v4803 = vpack.c.bf16 %v4784, %v4783
      %v4804 = vpack.c.bf16 %v4786, %v4785
      %s4805 = scalar_lea.vmem %s7, 24
      %v4806 = vld [vmem:[%s4805] sm:$0xf]
      %v4808 = vsel %vm2812, %v4787, 0
      %v4811 = vsel %vm2812, %v4788, 0
      %v4814 = vsel %vm2812, %v4789, 0
      %v4817 = vsel %vm2812, %v4790, 0
      %v4820 = vsel %vm2812, %v4791, 0
      %v4823 = vsel %vm2812, %v4792, 0
      %v4826 = vsel %vm2812, %v4793, 0
      %v4829 = vsel %vm2812, %v4794, 0
      %v4832 = vsel %vm2812, %v4795, 0
      %v4835 = vsel %vm2812, %v4796, 0
      %v4838 = vsel %vm2812, %v4797, 0
      %v4841 = vsel %vm2812, %v4798, 0
      %v4844 = vsel %vm2812, %v4799, 0
      %v4847 = vsel %vm2812, %v4800, 0
      %v4850 = vsel %vm2812, %v4801, 0
      %v4853 = vsel %vm2812, %v4802, 0
      %v4856 = vsel %vm2812, %v4803, 0
      %v4859 = vsel %vm2812, %v4804, 0
      %v4862 = vsel %vm3052, %v4806, 0
      %4864 = vmatprep.subr.bf16.mxu0 0
      %4865 = vmatpush1.bf16.msra.mxu0 %v4862
      %4866 = vmatprep.subr.bf16.mxu0 0
      %4867 = vmatpush1.bf16.msra.mxu0 0
      %4868 = vmatprep.subr.bf16.mxu0 0
      %4869 = vmatpush1.bf16.msra.mxu0 0
      %4870 = vmatprep.subr.bf16.mxu0 0
      %4871 = vmatpush1.bf16.msra.mxu0 0
      %4872 = vmatprep.subr.bf16.mxu0 0
      %4873 = vmatpush1.bf16.msra.mxu0 0
      %4874 = vmatprep.subr.bf16.mxu0 0
      %4875 = vmatpush1.bf16.msra.mxu0 0
      %4876 = vmatprep.subr.bf16.mxu0 0
      %4877 = vmatpush1.bf16.msra.mxu0 0
      %4878 = vmatprep.subr.bf16.mxu0 0
      %4879 = vmatpush1.bf16.msra.mxu0 0
      %4880 = vmatprep.subr.bf16.mxu0 0
      %4881 = vmatpush1.bf16.msra.mxu0 0
      %4882 = vmatprep.subr.bf16.mxu0 0
      %4883 = vmatpush1.bf16.msra.mxu0 0
      %4884 = vmatprep.subr.bf16.mxu0 0
      %4885 = vmatpush1.bf16.msra.mxu0 0
      %4886 = vmatprep.subr.bf16.mxu0 0
      %4887 = vmatpush1.bf16.msra.mxu0 0
      %4888 = vmatprep.subr.bf16.mxu0 0
      %4889 = vmatpush1.bf16.msra.mxu0 0
      %4890 = vmatprep.subr.bf16.mxu0 0
      %4891 = vmatpush1.bf16.msra.mxu0 0
      %4892 = vmatprep.subr.bf16.mxu0 0
      %4893 = vmatpush1.bf16.msra.mxu0 0
      %4894 = vmatprep.subr.bf16.mxu0 0
      %4895 = vmatpush1.bf16.msra.mxu0 0
      %4896 = vmatprep.mubr.bf16.mxu0 0
      %4897 = vmatmul.mubr.bf16.gmra.mrb[0].mxu0 %v4808
      %v4898 = vpop.f32.mrb[0].mxu0
      %v4899 = vadd.f32 0.0, %v4898
      %v4900 = vpop.f32.mrb[0].mxu0
      %v4901 = vpop.f32.mrb[0].mxu0
      %v4902 = vadd.f32 0.0, %v4901
      %v4903 = vpop.f32.mrb[0].mxu0
      %4904 = vmatprep.mubr.bf16.mxu0 0
      %4905 = vmatmul.mubr.bf16.gmra.mrb[0].mxu0 %v4811
      %v4906 = vpop.f32.mrb[0].mxu0
      %v4907 = vadd.f32 0.0, %v4906
      %v4908 = vpop.f32.mrb[0].mxu0
      %v4909 = vpop.f32.mrb[0].mxu0
      %v4910 = vadd.f32 0.0, %v4909
      %v4911 = vpop.f32.mrb[0].mxu0
      %4912 = vmatprep.mubr.bf16.mxu0 0
      %4913 = vmatmul.mubr.bf16.gmra.mrb[0].mxu0 %v4814
      %v4914 = vpop.f32.mrb[0].mxu0
      %v4915 = vadd.f32 0.0, %v4914
      %v4916 = vpop.f32.mrb[0].mxu0
      %v4917 = vpop.f32.mrb[0].mxu0
      %v4918 = vadd.f32 0.0, %v4917
      %v4919 = vpop.f32.mrb[0].mxu0
      %4920 = vmatprep.mubr.bf16.mxu0 0
      %4921 = vmatmul.mubr.bf16.gmra.mrb[0].mxu0 %v4817
      %v4922 = vpop.f32.mrb[0].mxu0
      %v4923 = vadd.f32 0.0, %v4922
      %v4924 = vpop.f32.mrb[0].mxu0
      %v4925 = vpop.f32.mrb[0].mxu0
      %v4926 = vadd.f32 0.0, %v4925
      %v4927 = vpop.f32.mrb[0].mxu0
      %4928 = vmatprep.mubr.bf16.mxu0 0
      %4929 = vmatmul.mubr.bf16.gmra.mrb[0].mxu0 %v4820
      %v4930 = vpop.f32.mrb[0].mxu0
      %v4931 = vadd.f32 0.0, %v4930
      %v4932 = vpop.f32.mrb[0].mxu0
      %v4933 = vpop.f32.mrb[0].mxu0
      %v4934 = vadd.f32 0.0, %v4933
      %v4935 = vpop.f32.mrb[0].mxu0
      %4936 = vmatprep.mubr.bf16.mxu0 0
      %4937 = vmatmul.mubr.bf16.gmra.mrb[0].mxu0 %v4823
      %v4938 = vpop.f32.mrb[0].mxu0
      %v4939 = vadd.f32 0.0, %v4938
      %v4940 = vpop.f32.mrb[0].mxu0
      %v4941 = vpop.f32.mrb[0].mxu0
      %v4942 = vadd.f32 0.0, %v4941
      %v4943 = vpop.f32.mrb[0].mxu0
      %4944 = vmatprep.mubr.bf16.mxu0 0
      %4945 = vmatmul.mubr.bf16.gmra.mrb[0].mxu0 %v4826
      %v4946 = vpop.f32.mrb[0].mxu0
      %v4947 = vadd.f32 0.0, %v4946
      %v4948 = vpop.f32.mrb[0].mxu0
      %v4949 = vpop.f32.mrb[0].mxu0
      %v4950 = vadd.f32 0.0, %v4949
      %v4951 = vpop.f32.mrb[0].mxu0
      %4952 = vmatprep.mubr.bf16.mxu0 0
      %4953 = vmatmul.mubr.bf16.gmra.mrb[0].mxu0 %v4829
      %v4954 = vpop.f32.mrb[0].mxu0
      %v4955 = vadd.f32 0.0, %v4954
      %v4956 = vpop.f32.mrb[0].mxu0
      %v4957 = vpop.f32.mrb[0].mxu0
      %v4958 = vadd.f32 0.0, %v4957
      %v4959 = vpop.f32.mrb[0].mxu0
      %4960 = vmatprep.mubr.bf16.mxu0 0
      %4961 = vmatmul.mubr.bf16.gmra.mrb[0].mxu0 %v4832
      %v4962 = vpop.f32.mrb[0].mxu0
      %v4963 = vadd.f32 0.0, %v4962
      %v4964 = vpop.f32.mrb[0].mxu0
      %v4965 = vpop.f32.mrb[0].mxu0
      %v4966 = vadd.f32 0.0, %v4965
      %v4967 = vpop.f32.mrb[0].mxu0
      %4968 = vmatprep.mubr.bf16.mxu0 0
      %4969 = vmatmul.mubr.bf16.gmra.mrb[0].mxu0 %v4835
      %v4970 = vpop.f32.mrb[0].mxu0
      %v4971 = vadd.f32 0.0, %v4970
      %v4972 = vpop.f32.mrb[0].mxu0
      %v4973 = vpop.f32.mrb[0].mxu0
      %v4974 = vadd.f32 0.0, %v4973
      %v4975 = vpop.f32.mrb[0].mxu0
      %4976 = vmatprep.mubr.bf16.mxu0 0
      %4977 = vmatmul.mubr.bf16.gmra.mrb[0].mxu0 %v4838
      %v4978 = vpop.f32.mrb[0].mxu0
      %v4979 = vadd.f32 0.0, %v4978
      %v4980 = vpop.f32.mrb[0].mxu0
      %v4981 = vpop.f32.mrb[0].mxu0
      %v4982 = vadd.f32 0.0, %v4981
      %v4983 = vpop.f32.mrb[0].mxu0
      %4984 = vmatprep.mubr.bf16.mxu0 0
      %4985 = vmatmul.mubr.bf16.gmra.mrb[0].mxu0 %v4841
      %v4986 = vpop.f32.mrb[0].mxu0
      %v4987 = vadd.f32 0.0, %v4986
      %v4988 = vpop.f32.mrb[0].mxu0
      %v4989 = vpop.f32.mrb[0].mxu0
      %v4990 = vadd.f32 0.0, %v4989
      %v4991 = vpop.f32.mrb[0].mxu0
      %4992 = vmatprep.mubr.bf16.mxu0 0
      %4993 = vmatmul.mubr.bf16.gmra.mrb[0].mxu0 %v4844
      %v4994 = vpop.f32.mrb[0].mxu0
      %v4995 = vadd.f32 0.0, %v4994
      %v4996 = vpop.f32.mrb[0].mxu0
      %v4997 = vpop.f32.mrb[0].mxu0
      %v4998 = vadd.f32 0.0, %v4997
      %v4999 = vpop.f32.mrb[0].mxu0
      %5000 = vmatprep.mubr.bf16.mxu0 0
      %5001 = vmatmul.mubr.bf16.gmra.mrb[0].mxu0 %v4847
      %v5002 = vpop.f32.mrb[0].mxu0
      %v5003 = vadd.f32 0.0, %v5002
      %v5004 = vpop.f32.mrb[0].mxu0
      %v5005 = vpop.f32.mrb[0].mxu0
      %v5006 = vadd.f32 0.0, %v5005
      %v5007 = vpop.f32.mrb[0].mxu0
      %5008 = vmatprep.mubr.bf16.mxu0 0
      %5009 = vmatmul.mubr.bf16.gmra.mrb[0].mxu0 %v4850
      %v5010 = vpop.f32.mrb[0].mxu0
      %v5011 = vadd.f32 0.0, %v5010
      %v5012 = vpop.f32.mrb[0].mxu0
      %v5013 = vpop.f32.mrb[0].mxu0
      %v5014 = vadd.f32 0.0, %v5013
      %v5015 = vpop.f32.mrb[0].mxu0
      %5016 = vmatprep.mubr.bf16.mxu0 0
      %5017 = vmatmul.mubr.bf16.gmra.mrb[0].mxu0 %v4853
      %v5018 = vpop.f32.mrb[0].mxu0
      %v5019 = vadd.f32 0.0, %v5018
      %v5020 = vpop.f32.mrb[0].mxu0
      %v5021 = vpop.f32.mrb[0].mxu0
      %v5022 = vadd.f32 0.0, %v5021
      %v5023 = vpop.f32.mrb[0].mxu0
      %5024 = vmatprep.mubr.bf16.mxu0 0
      %5025 = vmatmul.mubr.bf16.gmra.mrb[0].mxu0 %v4856
      %v5026 = vpop.f32.mrb[0].mxu0
      %v5027 = vadd.f32 0.0, %v5026
      %v5028 = vpop.f32.mrb[0].mxu0
      %v5029 = vpop.f32.mrb[0].mxu0
      %v5030 = vadd.f32 0.0, %v5029
      %v5031 = vpop.f32.mrb[0].mxu0
      %5032 = vmatprep.mubr.bf16.mxu0 0
      %5033 = vmatmul.mubr.bf16.gmra.mrb[0].mxu0 %v4859
      %v5034 = vpop.f32.mrb[0].mxu0
      %v5035 = vpop.f32.mrb[0].mxu0
      %v5036 = vpop.f32.mrb[0].mxu0
      %v5037 = vpop.f32.mrb[0].mxu0
      %5038 = vdwg.mxu0
      %v5039 = vadd.f32 %v4717, %v4899
      %v5040 = vadd.f32 %v4718, %v4902
      %v5041 = vadd.f32 %v4719, %v4907
      %v5042 = vadd.f32 %v4720, %v4910
      %v5043 = vadd.f32 %v4721, %v4915
      %v5044 = vadd.f32 %v4722, %v4918
      %v5045 = vadd.f32 %v4723, %v4923
      %v5046 = vadd.f32 %v4724, %v4926
      %v5047 = vadd.f32 %v4725, %v4931
      %v5048 = vadd.f32 %v4726, %v4934
      %v5049 = vadd.f32 %v4727, %v4939
      %v5050 = vadd.f32 %v4728, %v4942
      %v5051 = vadd.f32 %v4729, %v4947
      %v5052 = vadd.f32 %v4730, %v4950
      %v5053 = vadd.f32 %v4731, %v4955
      %v5054 = vadd.f32 %v4732, %v4958
      %v5055 = vadd.f32 %v4733, %v4963
      %v5056 = vadd.f32 %v4734, %v4966
      %v5057 = vadd.f32 %v4735, %v4971
      %v5058 = vadd.f32 %v4736, %v4974
      %v5059 = vadd.f32 %v4737, %v4979
      %v5060 = vadd.f32 %v4738, %v4982
      %v5061 = vadd.f32 %v4739, %v4987
      %v5062 = vadd.f32 %v4740, %v4990
      %v5063 = vadd.f32 %v4741, %v4995
      %v5064 = vadd.f32 %v4742, %v4998
      %v5065 = vadd.f32 %v4743, %v5003
      %v5066 = vadd.f32 %v4744, %v5006
      %v5067 = vadd.f32 %v4745, %v5011
      %v5068 = vadd.f32 %v4746, %v5014
      %v5069 = vadd.f32 %v4747, %v5019
      %v5070 = vadd.f32 %v4748, %v5022
      %v5071 = vadd.f32 %v4749, %v5027
      %v5072 = vadd.f32 %v4750, %v5030
      %v5073 = vld [vmem:[#allocation2 + $0x25] sm:$0xff]
      %v5074 = vld [vmem:[#allocation2 + $0x2d] sm:$0xff]
      %v5075 = vld [vmem:[#allocation2 + $0x35] sm:$0xff]
      %v5076 = vld [vmem:[#allocation2 + $0x3d] sm:$0xff]
      %v5077 = vld [vmem:[#allocation2 + $0x45] sm:$0xff]
      %v5078 = vld [vmem:[#allocation2 + $0x4d] sm:$0xff]
      %v5079 = vld [vmem:[#allocation2 + $0x55] sm:$0xff]
      %v5080 = vld [vmem:[#allocation2 + $0x5d] sm:$0xff]
      %v5081 = vld [vmem:[#allocation2 + $0x65] sm:$0xff]
      %v5082 = vld [vmem:[#allocation2 + $0x6d] sm:$0xff]
      %v5083 = vld [vmem:[#allocation2 + $0x75] sm:$0xff]
      %v5084 = vld [vmem:[#allocation2 + $0x7d] sm:$0xff]
      %v5085 = vld [vmem:[#allocation2 + $0x85] sm:$0xff]
      %v5086 = vld [vmem:[#allocation2 + $0x8d] sm:$0xff]
      %v5087 = vld [vmem:[#allocation2 + $0x95] sm:$0xff]
      %v5088 = vld [vmem:[#allocation2 + $0x9d] sm:$0xff]
      %v5089 = vld [vmem:[#allocation2 + $0xa5] sm:$0xff]
      %v5090 = vld [vmem:[#allocation2 + $0xad] sm:$0xff]
      %v5091 = vld [vmem:[#allocation2 + $0xb5] sm:$0xff]
      %v5092 = vld [vmem:[#allocation2 + $0xbd] sm:$0xff]
      %v5093 = vld [vmem:[#allocation2 + $0xc5] sm:$0xff]
      %v5094 = vld [vmem:[#allocation2 + $0xcd] sm:$0xff]
      %v5095 = vld [vmem:[#allocation2 + $0xd5] sm:$0xff]
      %v5096 = vld [vmem:[#allocation2 + $0xdd] sm:$0xff]
      %v5097 = vld [vmem:[#allocation2 + $0xe5] sm:$0xff]
      %v5098 = vld [vmem:[#allocation2 + $0xed] sm:$0xff]
      %v5099 = vld [vmem:[#allocation2 + $0xf5] sm:$0xff]
      %v5100 = vld [vmem:[#allocation2 + $0xfd] sm:$0xff]
      %v5101 = vld [vmem:[#allocation2 + $0x105] sm:$0xff]
      %v5102 = vld [vmem:[#allocation2 + $0x10d] sm:$0xff]
      %v5103 = vld [vmem:[#allocation2 + $0x115] sm:$0xff]
      %v5104 = vld [vmem:[#allocation2 + $0x11d] sm:$0xff]
      %v5105 = vld [vmem:[#allocation2 + $0x125] sm:$0xff]
      %v5106 = vld [vmem:[#allocation2 + $0x12d] sm:$0xff]
      %v5107 = vld [vmem:[#allocation2 + $0x135] sm:$0xff]
      %v5108 = vld [vmem:[#allocation2 + $0x13d] sm:$0x3f]
      %v5109 = vpack.c.bf16 %v5074, %v5073
      %v5110 = vpack.c.bf16 %v5076, %v5075
      %v5111 = vpack.c.bf16 %v5078, %v5077
      %v5112 = vpack.c.bf16 %v5080, %v5079
      %v5113 = vpack.c.bf16 %v5082, %v5081
      %v5114 = vpack.c.bf16 %v5084, %v5083
      %v5115 = vpack.c.bf16 %v5086, %v5085
      %v5116 = vpack.c.bf16 %v5088, %v5087
      %v5117 = vpack.c.bf16 %v5090, %v5089
      %v5118 = vpack.c.bf16 %v5092, %v5091
      %v5119 = vpack.c.bf16 %v5094, %v5093
      %v5120 = vpack.c.bf16 %v5096, %v5095
      %v5121 = vpack.c.bf16 %v5098, %v5097
      %v5122 = vpack.c.bf16 %v5100, %v5099
      %v5123 = vpack.c.bf16 %v5102, %v5101
      %v5124 = vpack.c.bf16 %v5104, %v5103
      %v5125 = vpack.c.bf16 %v5106, %v5105
      %v5126 = vpack.c.bf16 %v5108, %v5107
      %s5127 = scalar_lea.vmem %s7, 28
      %v5128 = vld [vmem:[%s5127] sm:$0xf]
      %v5130 = vsel %vm2812, %v5109, 0
      %v5133 = vsel %vm2812, %v5110, 0
      %v5136 = vsel %vm2812, %v5111, 0
      %v5139 = vsel %vm2812, %v5112, 0
      %v5142 = vsel %vm2812, %v5113, 0
      %v5145 = vsel %vm2812, %v5114, 0
      %v5148 = vsel %vm2812, %v5115, 0
      %v5151 = vsel %vm2812, %v5116, 0
      %v5154 = vsel %vm2812, %v5117, 0
      %v5157 = vsel %vm2812, %v5118, 0
      %v5160 = vsel %vm2812, %v5119, 0
      %v5163 = vsel %vm2812, %v5120, 0
      %v5166 = vsel %vm2812, %v5121, 0
      %v5169 = vsel %vm2812, %v5122, 0
      %v5172 = vsel %vm2812, %v5123, 0
      %v5175 = vsel %vm2812, %v5124, 0
      %v5178 = vsel %vm2812, %v5125, 0
      %v5181 = vsel %vm2812, %v5126, 0
      %v5184 = vsel %vm3052, %v5128, 0
      %5186 = vmatprep.subr.bf16.mxu0 0
      %5187 = vmatpush1.bf16.msra.mxu0 %v5184
      %5188 = vmatprep.subr.bf16.mxu0 0
      %5189 = vmatpush1.bf16.msra.mxu0 0
      %5190 = vmatprep.subr.bf16.mxu0 0
      %5191 = vmatpush1.bf16.msra.mxu0 0
      %5192 = vmatprep.subr.bf16.mxu0 0
      %5193 = vmatpush1.bf16.msra.mxu0 0
      %5194 = vmatprep.subr.bf16.mxu0 0
      %5195 = vmatpush1.bf16.msra.mxu0 0
      %5196 = vmatprep.subr.bf16.mxu0 0
      %5197 = vmatpush1.bf16.msra.mxu0 0
      %5198 = vmatprep.subr.bf16.mxu0 0
      %5199 = vmatpush1.bf16.msra.mxu0 0
      %5200 = vmatprep.subr.bf16.mxu0 0
      %5201 = vmatpush1.bf16.msra.mxu0 0
      %5202 = vmatprep.subr.bf16.mxu0 0
      %5203 = vmatpush1.bf16.msra.mxu0 0
      %5204 = vmatprep.subr.bf16.mxu0 0
      %5205 = vmatpush1.bf16.msra.mxu0 0
      %5206 = vmatprep.subr.bf16.mxu0 0
      %5207 = vmatpush1.bf16.msra.mxu0 0
      %5208 = vmatprep.subr.bf16.mxu0 0
      %5209 = vmatpush1.bf16.msra.mxu0 0
      %5210 = vmatprep.subr.bf16.mxu0 0
      %5211 = vmatpush1.bf16.msra.mxu0 0
      %5212 = vmatprep.subr.bf16.mxu0 0
      %5213 = vmatpush1.bf16.msra.mxu0 0
      %5214 = vmatprep.subr.bf16.mxu0 0
      %5215 = vmatpush1.bf16.msra.mxu0 0
      %5216 = vmatprep.subr.bf16.mxu0 0
      %5217 = vmatpush1.bf16.msra.mxu0 0
      %5218 = vmatprep.mubr.bf16.mxu0 0
      %5219 = vmatmul.mubr.bf16.gmra.mrb[0].mxu0 %v5130
      %v5220 = vpop.f32.mrb[0].mxu0
      %v5221 = vadd.f32 0.0, %v5220
      %v5222 = vpop.f32.mrb[0].mxu0
      %v5223 = vpop.f32.mrb[0].mxu0
      %v5224 = vadd.f32 0.0, %v5223
      %v5225 = vpop.f32.mrb[0].mxu0
      %5226 = vmatprep.mubr.bf16.mxu0 0
      %5227 = vmatmul.mubr.bf16.gmra.mrb[0].mxu0 %v5133
      %v5228 = vpop.f32.mrb[0].mxu0
      %v5229 = vadd.f32 0.0, %v5228
      %v5230 = vpop.f32.mrb[0].mxu0
      %v5231 = vpop.f32.mrb[0].mxu0
      %v5232 = vadd.f32 0.0, %v5231
      %v5233 = vpop.f32.mrb[0].mxu0
      %5234 = vmatprep.mubr.bf16.mxu0 0
      %5235 = vmatmul.mubr.bf16.gmra.mrb[0].mxu0 %v5136
      %v5236 = vpop.f32.mrb[0].mxu0
      %v5237 = vadd.f32 0.0, %v5236
      %v5238 = vpop.f32.mrb[0].mxu0
      %v5239 = vpop.f32.mrb[0].mxu0
      %v5240 = vadd.f32 0.0, %v5239
      %v5241 = vpop.f32.mrb[0].mxu0
      %5242 = vmatprep.mubr.bf16.mxu0 0
      %5243 = vmatmul.mubr.bf16.gmra.mrb[0].mxu0 %v5139
      %v5244 = vpop.f32.mrb[0].mxu0
      %v5245 = vadd.f32 0.0, %v5244
      %v5246 = vpop.f32.mrb[0].mxu0
      %v5247 = vpop.f32.mrb[0].mxu0
      %v5248 = vadd.f32 0.0, %v5247
      %v5249 = vpop.f32.mrb[0].mxu0
      %5250 = vmatprep.mubr.bf16.mxu0 0
      %5251 = vmatmul.mubr.bf16.gmra.mrb[0].mxu0 %v5142
      %v5252 = vpop.f32.mrb[0].mxu0
      %v5253 = vadd.f32 0.0, %v5252
      %v5254 = vpop.f32.mrb[0].mxu0
      %v5255 = vpop.f32.mrb[0].mxu0
      %v5256 = vadd.f32 0.0, %v5255
      %v5257 = vpop.f32.mrb[0].mxu0
      %5258 = vmatprep.mubr.bf16.mxu0 0
      %5259 = vmatmul.mubr.bf16.gmra.mrb[0].mxu0 %v5145
      %v5260 = vpop.f32.mrb[0].mxu0
      %v5261 = vadd.f32 0.0, %v5260
      %v5262 = vpop.f32.mrb[0].mxu0
      %v5263 = vpop.f32.mrb[0].mxu0
      %v5264 = vadd.f32 0.0, %v5263
      %v5265 = vpop.f32.mrb[0].mxu0
      %5266 = vmatprep.mubr.bf16.mxu0 0
      %5267 = vmatmul.mubr.bf16.gmra.mrb[0].mxu0 %v5148
      %v5268 = vpop.f32.mrb[0].mxu0
      %v5269 = vadd.f32 0.0, %v5268
      %v5270 = vpop.f32.mrb[0].mxu0
      %v5271 = vpop.f32.mrb[0].mxu0
      %v5272 = vadd.f32 0.0, %v5271
      %v5273 = vpop.f32.mrb[0].mxu0
      %5274 = vmatprep.mubr.bf16.mxu0 0
      %5275 = vmatmul.mubr.bf16.gmra.mrb[0].mxu0 %v5151
      %v5276 = vpop.f32.mrb[0].mxu0
      %v5277 = vadd.f32 0.0, %v5276
      %v5278 = vpop.f32.mrb[0].mxu0
      %v5279 = vpop.f32.mrb[0].mxu0
      %v5280 = vadd.f32 0.0, %v5279
      %v5281 = vpop.f32.mrb[0].mxu0
      %5282 = vmatprep.mubr.bf16.mxu0 0
      %5283 = vmatmul.mubr.bf16.gmra.mrb[0].mxu0 %v5154
      %v5284 = vpop.f32.mrb[0].mxu0
      %v5285 = vadd.f32 0.0, %v5284
      %v5286 = vpop.f32.mrb[0].mxu0
      %v5287 = vpop.f32.mrb[0].mxu0
      %v5288 = vadd.f32 0.0, %v5287
      %v5289 = vpop.f32.mrb[0].mxu0
      %5290 = vmatprep.mubr.bf16.mxu0 0
      %5291 = vmatmul.mubr.bf16.gmra.mrb[0].mxu0 %v5157
      %v5292 = vpop.f32.mrb[0].mxu0
      %v5293 = vadd.f32 0.0, %v5292
      %v5294 = vpop.f32.mrb[0].mxu0
      %v5295 = vpop.f32.mrb[0].mxu0
      %v5296 = vadd.f32 0.0, %v5295
      %v5297 = vpop.f32.mrb[0].mxu0
      %5298 = vmatprep.mubr.bf16.mxu0 0
      %5299 = vmatmul.mubr.bf16.gmra.mrb[0].mxu0 %v5160
      %v5300 = vpop.f32.mrb[0].mxu0
      %v5301 = vadd.f32 0.0, %v5300
      %v5302 = vpop.f32.mrb[0].mxu0
      %v5303 = vpop.f32.mrb[0].mxu0
      %v5304 = vadd.f32 0.0, %v5303
      %v5305 = vpop.f32.mrb[0].mxu0
      %5306 = vmatprep.mubr.bf16.mxu0 0
      %5307 = vmatmul.mubr.bf16.gmra.mrb[0].mxu0 %v5163
      %v5308 = vpop.f32.mrb[0].mxu0
      %v5309 = vadd.f32 0.0, %v5308
      %v5310 = vpop.f32.mrb[0].mxu0
      %v5311 = vpop.f32.mrb[0].mxu0
      %v5312 = vadd.f32 0.0, %v5311
      %v5313 = vpop.f32.mrb[0].mxu0
      %5314 = vmatprep.mubr.bf16.mxu0 0
      %5315 = vmatmul.mubr.bf16.gmra.mrb[0].mxu0 %v5166
      %v5316 = vpop.f32.mrb[0].mxu0
      %v5317 = vadd.f32 0.0, %v5316
      %v5318 = vpop.f32.mrb[0].mxu0
      %v5319 = vpop.f32.mrb[0].mxu0
      %v5320 = vadd.f32 0.0, %v5319
      %v5321 = vpop.f32.mrb[0].mxu0
      %5322 = vmatprep.mubr.bf16.mxu0 0
      %5323 = vmatmul.mubr.bf16.gmra.mrb[0].mxu0 %v5169
      %v5324 = vpop.f32.mrb[0].mxu0
      %v5325 = vadd.f32 0.0, %v5324
      %v5326 = vpop.f32.mrb[0].mxu0
      %v5327 = vpop.f32.mrb[0].mxu0
      %v5328 = vadd.f32 0.0, %v5327
      %v5329 = vpop.f32.mrb[0].mxu0
      %5330 = vmatprep.mubr.bf16.mxu0 0
      %5331 = vmatmul.mubr.bf16.gmra.mrb[0].mxu0 %v5172
      %v5332 = vpop.f32.mrb[0].mxu0
      %v5333 = vadd.f32 0.0, %v5332
      %v5334 = vpop.f32.mrb[0].mxu0
      %v5335 = vpop.f32.mrb[0].mxu0
      %v5336 = vadd.f32 0.0, %v5335
      %v5337 = vpop.f32.mrb[0].mxu0
      %5338 = vmatprep.mubr.bf16.mxu0 0
      %5339 = vmatmul.mubr.bf16.gmra.mrb[0].mxu0 %v5175
      %v5340 = vpop.f32.mrb[0].mxu0
      %v5341 = vadd.f32 0.0, %v5340
      %v5342 = vpop.f32.mrb[0].mxu0
      %v5343 = vpop.f32.mrb[0].mxu0
      %v5344 = vadd.f32 0.0, %v5343
      %v5345 = vpop.f32.mrb[0].mxu0
      %5346 = vmatprep.mubr.bf16.mxu0 0
      %5347 = vmatmul.mubr.bf16.gmra.mrb[0].mxu0 %v5178
      %v5348 = vpop.f32.mrb[0].mxu0
      %v5349 = vadd.f32 0.0, %v5348
      %v5350 = vpop.f32.mrb[0].mxu0
      %v5351 = vpop.f32.mrb[0].mxu0
      %v5352 = vadd.f32 0.0, %v5351
      %v5353 = vpop.f32.mrb[0].mxu0
      %5354 = vmatprep.mubr.bf16.mxu0 0
      %5355 = vmatmul.mubr.bf16.gmra.mrb[0].mxu0 %v5181
      %v5356 = vpop.f32.mrb[0].mxu0
      %v5357 = vpop.f32.mrb[0].mxu0
      %v5358 = vpop.f32.mrb[0].mxu0
      %v5359 = vpop.f32.mrb[0].mxu0
      %5360 = vdwg.mxu0
      %v5361 = vadd.f32 %v5039, %v5221
      %v5362 = vadd.f32 %v5040, %v5224
      %v5363 = vadd.f32 %v5041, %v5229
      %v5364 = vadd.f32 %v5042, %v5232
      %v5365 = vadd.f32 %v5043, %v5237
      %v5366 = vadd.f32 %v5044, %v5240
      %v5367 = vadd.f32 %v5045, %v5245
      %v5368 = vadd.f32 %v5046, %v5248
      %v5369 = vadd.f32 %v5047, %v5253
      %v5370 = vadd.f32 %v5048, %v5256
      %v5371 = vadd.f32 %v5049, %v5261
      %v5372 = vadd.f32 %v5050, %v5264
      %v5373 = vadd.f32 %v5051, %v5269
      %v5374 = vadd.f32 %v5052, %v5272
      %v5375 = vadd.f32 %v5053, %v5277
      %v5376 = vadd.f32 %v5054, %v5280
      %v5377 = vadd.f32 %v5055, %v5285
      %v5378 = vadd.f32 %v5056, %v5288
      %v5379 = vadd.f32 %v5057, %v5293
      %v5380 = vadd.f32 %v5058, %v5296
      %v5381 = vadd.f32 %v5059, %v5301
      %v5382 = vadd.f32 %v5060, %v5304
      %v5383 = vadd.f32 %v5061, %v5309
      %v5384 = vadd.f32 %v5062, %v5312
      %v5385 = vadd.f32 %v5063, %v5317
      %v5386 = vadd.f32 %v5064, %v5320
      %v5387 = vadd.f32 %v5065, %v5325
      %v5388 = vadd.f32 %v5066, %v5328
      %v5389 = vadd.f32 %v5067, %v5333
      %v5390 = vadd.f32 %v5068, %v5336
      %v5391 = vadd.f32 %v5069, %v5341
      %v5392 = vadd.f32 %v5070, %v5344
      %v5393 = vadd.f32 %v5071, %v5349
      %v5394 = vadd.f32 %v5072, %v5352
      %v5395 = vld [vmem:[#allocation2 + $0x26] sm:$0xff]
      %v5396 = vld [vmem:[#allocation2 + $0x2e] sm:$0xff]
      %v5397 = vld [vmem:[#allocation2 + $0x36] sm:$0xff]
      %v5398 = vld [vmem:[#allocation2 + $0x3e] sm:$0xff]
      %v5399 = vld [vmem:[#allocation2 + $0x46] sm:$0xff]
      %v5400 = vld [vmem:[#allocation2 + $0x4e] sm:$0xff]
      %v5401 = vld [vmem:[#allocation2 + $0x56] sm:$0xff]
      %v5402 = vld [vmem:[#allocation2 + $0x5e] sm:$0xff]
      %v5403 = vld [vmem:[#allocation2 + $0x66] sm:$0xff]
      %v5404 = vld [vmem:[#allocation2 + $0x6e] sm:$0xff]
      %v5405 = vld [vmem:[#allocation2 + $0x76] sm:$0xff]
      %v5406 = vld [vmem:[#allocation2 + $0x7e] sm:$0xff]
      %v5407 = vld [vmem:[#allocation2 + $0x86] sm:$0xff]
      %v5408 = vld [vmem:[#allocation2 + $0x8e] sm:$0xff]
      %v5409 = vld [vmem:[#allocation2 + $0x96] sm:$0xff]
      %v5410 = vld [vmem:[#allocation2 + $0x9e] sm:$0xff]
      %v5411 = vld [vmem:[#allocation2 + $0xa6] sm:$0xff]
      %v5412 = vld [vmem:[#allocation2 + $0xae] sm:$0xff]
      %v5413 = vld [vmem:[#allocation2 + $0xb6] sm:$0xff]
      %v5414 = vld [vmem:[#allocation2 + $0xbe] sm:$0xff]
      %v5415 = vld [vmem:[#allocation2 + $0xc6] sm:$0xff]
      %v5416 = vld [vmem:[#allocation2 + $0xce] sm:$0xff]
      %v5417 = vld [vmem:[#allocation2 + $0xd6] sm:$0xff]
      %v5418 = vld [vmem:[#allocation2 + $0xde] sm:$0xff]
      %v5419 = vld [vmem:[#allocation2 + $0xe6] sm:$0xff]
      %v5420 = vld [vmem:[#allocation2 + $0xee] sm:$0xff]
      %v5421 = vld [vmem:[#allocation2 + $0xf6] sm:$0xff]
      %v5422 = vld [vmem:[#allocation2 + $0xfe] sm:$0xff]
      %v5423 = vld [vmem:[#allocation2 + $0x106] sm:$0xff]
      %v5424 = vld [vmem:[#allocation2 + $0x10e] sm:$0xff]
      %v5425 = vld [vmem:[#allocation2 + $0x116] sm:$0xff]
      %v5426 = vld [vmem:[#allocation2 + $0x11e] sm:$0xff]
      %v5427 = vld [vmem:[#allocation2 + $0x126] sm:$0xff]
      %v5428 = vld [vmem:[#allocation2 + $0x12e] sm:$0xff]
      %v5429 = vld [vmem:[#allocation2 + $0x136] sm:$0xff]
      %v5430 = vld [vmem:[#allocation2 + $0x13e] sm:$0x3f]
      %v5431 = vpack.c.bf16 %v5396, %v5395
      %v5432 = vpack.c.bf16 %v5398, %v5397
      %v5433 = vpack.c.bf16 %v5400, %v5399
      %v5434 = vpack.c.bf16 %v5402, %v5401
      %v5435 = vpack.c.bf16 %v5404, %v5403
      %v5436 = vpack.c.bf16 %v5406, %v5405
      %v5437 = vpack.c.bf16 %v5408, %v5407
      %v5438 = vpack.c.bf16 %v5410, %v5409
      %v5439 = vpack.c.bf16 %v5412, %v5411
      %v5440 = vpack.c.bf16 %v5414, %v5413
      %v5441 = vpack.c.bf16 %v5416, %v5415
      %v5442 = vpack.c.bf16 %v5418, %v5417
      %v5443 = vpack.c.bf16 %v5420, %v5419
      %v5444 = vpack.c.bf16 %v5422, %v5421
      %v5445 = vpack.c.bf16 %v5424, %v5423
      %v5446 = vpack.c.bf16 %v5426, %v5425
      %v5447 = vpack.c.bf16 %v5428, %v5427
      %v5448 = vpack.c.bf16 %v5430, %v5429
      %s5449 = scalar_lea.vmem %s7, 32
      %v5450 = vld [vmem:[%s5449] sm:$0xf]
      %v5452 = vsel %vm2812, %v5431, 0
      %v5455 = vsel %vm2812, %v5432, 0
      %v5458 = vsel %vm2812, %v5433, 0
      %v5461 = vsel %vm2812, %v5434, 0
      %v5464 = vsel %vm2812, %v5435, 0
      %v5467 = vsel %vm2812, %v5436, 0
      %v5470 = vsel %vm2812, %v5437, 0
      %v5473 = vsel %vm2812, %v5438, 0
      %v5476 = vsel %vm2812, %v5439, 0
      %v5479 = vsel %vm2812, %v5440, 0
      %v5482 = vsel %vm2812, %v5441, 0
      %v5485 = vsel %vm2812, %v5442, 0
      %v5488 = vsel %vm2812, %v5443, 0
      %v5491 = vsel %vm2812, %v5444, 0
      %v5494 = vsel %vm2812, %v5445, 0
      %v5497 = vsel %vm2812, %v5446, 0
      %v5500 = vsel %vm2812, %v5447, 0
      %v5503 = vsel %vm2812, %v5448, 0
      %v5506 = vsel %vm3052, %v5450, 0
      %5508 = vmatprep.subr.bf16.mxu0 0
      %5509 = vmatpush1.bf16.msra.mxu0 %v5506
      %5510 = vmatprep.subr.bf16.mxu0 0
      %5511 = vmatpush1.bf16.msra.mxu0 0
      %5512 = vmatprep.subr.bf16.mxu0 0
      %5513 = vmatpush1.bf16.msra.mxu0 0
      %5514 = vmatprep.subr.bf16.mxu0 0
      %5515 = vmatpush1.bf16.msra.mxu0 0
      %5516 = vmatprep.subr.bf16.mxu0 0
      %5517 = vmatpush1.bf16.msra.mxu0 0
      %5518 = vmatprep.subr.bf16.mxu0 0
      %5519 = vmatpush1.bf16.msra.mxu0 0
      %5520 = vmatprep.subr.bf16.mxu0 0
      %5521 = vmatpush1.bf16.msra.mxu0 0
      %5522 = vmatprep.subr.bf16.mxu0 0
      %5523 = vmatpush1.bf16.msra.mxu0 0
      %5524 = vmatprep.subr.bf16.mxu0 0
      %5525 = vmatpush1.bf16.msra.mxu0 0
      %5526 = vmatprep.subr.bf16.mxu0 0
      %5527 = vmatpush1.bf16.msra.mxu0 0
      %5528 = vmatprep.subr.bf16.mxu0 0
      %5529 = vmatpush1.bf16.msra.mxu0 0
      %5530 = vmatprep.subr.bf16.mxu0 0
      %5531 = vmatpush1.bf16.msra.mxu0 0
      %5532 = vmatprep.subr.bf16.mxu0 0
      %5533 = vmatpush1.bf16.msra.mxu0 0
      %5534 = vmatprep.subr.bf16.mxu0 0
      %5535 = vmatpush1.bf16.msra.mxu0 0
      %5536 = vmatprep.subr.bf16.mxu0 0
      %5537 = vmatpush1.bf16.msra.mxu0 0
      %5538 = vmatprep.subr.bf16.mxu0 0
      %5539 = vmatpush1.bf16.msra.mxu0 0
      %5540 = vmatprep.mubr.bf16.mxu0 0
      %5541 = vmatmul.mubr.bf16.gmra.mrb[0].mxu0 %v5452
      %v5542 = vpop.f32.mrb[0].mxu0
      %v5543 = vadd.f32 0.0, %v5542
      %v5544 = vpop.f32.mrb[0].mxu0
      %v5545 = vpop.f32.mrb[0].mxu0
      %v5546 = vadd.f32 0.0, %v5545
      %v5547 = vpop.f32.mrb[0].mxu0
      %5548 = vmatprep.mubr.bf16.mxu0 0
      %5549 = vmatmul.mubr.bf16.gmra.mrb[0].mxu0 %v5455
      %v5550 = vpop.f32.mrb[0].mxu0
      %v5551 = vadd.f32 0.0, %v5550
      %v5552 = vpop.f32.mrb[0].mxu0
      %v5553 = vpop.f32.mrb[0].mxu0
      %v5554 = vadd.f32 0.0, %v5553
      %v5555 = vpop.f32.mrb[0].mxu0
      %5556 = vmatprep.mubr.bf16.mxu0 0
      %5557 = vmatmul.mubr.bf16.gmra.mrb[0].mxu0 %v5458
      %v5558 = vpop.f32.mrb[0].mxu0
      %v5559 = vadd.f32 0.0, %v5558
      %v5560 = vpop.f32.mrb[0].mxu0
      %v5561 = vpop.f32.mrb[0].mxu0
      %v5562 = vadd.f32 0.0, %v5561
      %v5563 = vpop.f32.mrb[0].mxu0
      %5564 = vmatprep.mubr.bf16.mxu0 0
      %5565 = vmatmul.mubr.bf16.gmra.mrb[0].mxu0 %v5461
      %v5566 = vpop.f32.mrb[0].mxu0
      %v5567 = vadd.f32 0.0, %v5566
      %v5568 = vpop.f32.mrb[0].mxu0
      %v5569 = vpop.f32.mrb[0].mxu0
      %v5570 = vadd.f32 0.0, %v5569
      %v5571 = vpop.f32.mrb[0].mxu0
      %5572 = vmatprep.mubr.bf16.mxu0 0
      %5573 = vmatmul.mubr.bf16.gmra.mrb[0].mxu0 %v5464
      %v5574 = vpop.f32.mrb[0].mxu0
      %v5575 = vadd.f32 0.0, %v5574
      %v5576 = vpop.f32.mrb[0].mxu0
      %v5577 = vpop.f32.mrb[0].mxu0
      %v5578 = vadd.f32 0.0, %v5577
      %v5579 = vpop.f32.mrb[0].mxu0
      %5580 = vmatprep.mubr.bf16.mxu0 0
      %5581 = vmatmul.mubr.bf16.gmra.mrb[0].mxu0 %v5467
      %v5582 = vpop.f32.mrb[0].mxu0
      %v5583 = vadd.f32 0.0, %v5582
      %v5584 = vpop.f32.mrb[0].mxu0
      %v5585 = vpop.f32.mrb[0].mxu0
      %v5586 = vadd.f32 0.0, %v5585
      %v5587 = vpop.f32.mrb[0].mxu0
      %5588 = vmatprep.mubr.bf16.mxu0 0
      %5589 = vmatmul.mubr.bf16.gmra.mrb[0].mxu0 %v5470
      %v5590 = vpop.f32.mrb[0].mxu0
      %v5591 = vadd.f32 0.0, %v5590
      %v5592 = vpop.f32.mrb[0].mxu0
      %v5593 = vpop.f32.mrb[0].mxu0
      %v5594 = vadd.f32 0.0, %v5593
      %v5595 = vpop.f32.mrb[0].mxu0
      %5596 = vmatprep.mubr.bf16.mxu0 0
      %5597 = vmatmul.mubr.bf16.gmra.mrb[0].mxu0 %v5473
      %v5598 = vpop.f32.mrb[0].mxu0
      %v5599 = vadd.f32 0.0, %v5598
      %v5600 = vpop.f32.mrb[0].mxu0
      %v5601 = vpop.f32.mrb[0].mxu0
      %v5602 = vadd.f32 0.0, %v5601
      %v5603 = vpop.f32.mrb[0].mxu0
      %5604 = vmatprep.mubr.bf16.mxu0 0
      %5605 = vmatmul.mubr.bf16.gmra.mrb[0].mxu0 %v5476
      %v5606 = vpop.f32.mrb[0].mxu0
      %v5607 = vadd.f32 0.0, %v5606
      %v5608 = vpop.f32.mrb[0].mxu0
      %v5609 = vpop.f32.mrb[0].mxu0
      %v5610 = vadd.f32 0.0, %v5609
      %v5611 = vpop.f32.mrb[0].mxu0
      %5612 = vmatprep.mubr.bf16.mxu0 0
      %5613 = vmatmul.mubr.bf16.gmra.mrb[0].mxu0 %v5479
      %v5614 = vpop.f32.mrb[0].mxu0
      %v5615 = vadd.f32 0.0, %v5614
      %v5616 = vpop.f32.mrb[0].mxu0
      %v5617 = vpop.f32.mrb[0].mxu0
      %v5618 = vadd.f32 0.0, %v5617
      %v5619 = vpop.f32.mrb[0].mxu0
      %5620 = vmatprep.mubr.bf16.mxu0 0
      %5621 = vmatmul.mubr.bf16.gmra.mrb[0].mxu0 %v5482
      %v5622 = vpop.f32.mrb[0].mxu0
      %v5623 = vadd.f32 0.0, %v5622
      %v5624 = vpop.f32.mrb[0].mxu0
      %v5625 = vpop.f32.mrb[0].mxu0
      %v5626 = vadd.f32 0.0, %v5625
      %v5627 = vpop.f32.mrb[0].mxu0
      %5628 = vmatprep.mubr.bf16.mxu0 0
      %5629 = vmatmul.mubr.bf16.gmra.mrb[0].mxu0 %v5485
      %v5630 = vpop.f32.mrb[0].mxu0
      %v5631 = vadd.f32 0.0, %v5630
      %v5632 = vpop.f32.mrb[0].mxu0
      %v5633 = vpop.f32.mrb[0].mxu0
      %v5634 = vadd.f32 0.0, %v5633
      %v5635 = vpop.f32.mrb[0].mxu0
      %5636 = vmatprep.mubr.bf16.mxu0 0
      %5637 = vmatmul.mubr.bf16.gmra.mrb[0].mxu0 %v5488
      %v5638 = vpop.f32.mrb[0].mxu0
      %v5639 = vadd.f32 0.0, %v5638
      %v5640 = vpop.f32.mrb[0].mxu0
      %v5641 = vpop.f32.mrb[0].mxu0
      %v5642 = vadd.f32 0.0, %v5641
      %v5643 = vpop.f32.mrb[0].mxu0
      %5644 = vmatprep.mubr.bf16.mxu0 0
      %5645 = vmatmul.mubr.bf16.gmra.mrb[0].mxu0 %v5491
      %v5646 = vpop.f32.mrb[0].mxu0
      %v5647 = vadd.f32 0.0, %v5646
      %v5648 = vpop.f32.mrb[0].mxu0
      %v5649 = vpop.f32.mrb[0].mxu0
      %v5650 = vadd.f32 0.0, %v5649
      %v5651 = vpop.f32.mrb[0].mxu0
      %5652 = vmatprep.mubr.bf16.mxu0 0
      %5653 = vmatmul.mubr.bf16.gmra.mrb[0].mxu0 %v5494
      %v5654 = vpop.f32.mrb[0].mxu0
      %v5655 = vadd.f32 0.0, %v5654
      %v5656 = vpop.f32.mrb[0].mxu0
      %v5657 = vpop.f32.mrb[0].mxu0
      %v5658 = vadd.f32 0.0, %v5657
      %v5659 = vpop.f32.mrb[0].mxu0
      %5660 = vmatprep.mubr.bf16.mxu0 0
      %5661 = vmatmul.mubr.bf16.gmra.mrb[0].mxu0 %v5497
      %v5662 = vpop.f32.mrb[0].mxu0
      %v5663 = vadd.f32 0.0, %v5662
      %v5664 = vpop.f32.mrb[0].mxu0
      %v5665 = vpop.f32.mrb[0].mxu0
      %v5666 = vadd.f32 0.0, %v5665
      %v5667 = vpop.f32.mrb[0].mxu0
      %5668 = vmatprep.mubr.bf16.mxu0 0
      %5669 = vmatmul.mubr.bf16.gmra.mrb[0].mxu0 %v5500
      %v5670 = vpop.f32.mrb[0].mxu0
      %v5671 = vadd.f32 0.0, %v5670
      %v5672 = vpop.f32.mrb[0].mxu0
      %v5673 = vpop.f32.mrb[0].mxu0
      %v5674 = vadd.f32 0.0, %v5673
      %v5675 = vpop.f32.mrb[0].mxu0
      %5676 = vmatprep.mubr.bf16.mxu0 0
      %5677 = vmatmul.mubr.bf16.gmra.mrb[0].mxu0 %v5503
      %v5678 = vpop.f32.mrb[0].mxu0
      %v5679 = vpop.f32.mrb[0].mxu0
      %v5680 = vpop.f32.mrb[0].mxu0
      %v5681 = vpop.f32.mrb[0].mxu0
      %5682 = vdwg.mxu0
      %v5683 = vadd.f32 %v5361, %v5543
      %v5684 = vadd.f32 %v5362, %v5546
      %v5685 = vadd.f32 %v5363, %v5551
      %v5686 = vadd.f32 %v5364, %v5554
      %v5687 = vadd.f32 %v5365, %v5559
      %v5688 = vadd.f32 %v5366, %v5562
      %v5689 = vadd.f32 %v5367, %v5567
      %v5690 = vadd.f32 %v5368, %v5570
      %v5691 = vadd.f32 %v5369, %v5575
      %v5692 = vadd.f32 %v5370, %v5578
      %v5693 = vadd.f32 %v5371, %v5583
      %v5694 = vadd.f32 %v5372, %v5586
      %v5695 = vadd.f32 %v5373, %v5591
      %v5696 = vadd.f32 %v5374, %v5594
      %v5697 = vadd.f32 %v5375, %v5599
      %v5698 = vadd.f32 %v5376, %v5602
      %v5699 = vadd.f32 %v5377, %v5607
      %v5700 = vadd.f32 %v5378, %v5610
      %v5701 = vadd.f32 %v5379, %v5615
      %v5702 = vadd.f32 %v5380, %v5618
      %v5703 = vadd.f32 %v5381, %v5623
      %v5704 = vadd.f32 %v5382, %v5626
      %v5705 = vadd.f32 %v5383, %v5631
      %v5706 = vadd.f32 %v5384, %v5634
      %v5707 = vadd.f32 %v5385, %v5639
      %v5708 = vadd.f32 %v5386, %v5642
      %v5709 = vadd.f32 %v5387, %v5647
      %v5710 = vadd.f32 %v5388, %v5650
      %v5711 = vadd.f32 %v5389, %v5655
      %v5712 = vadd.f32 %v5390, %v5658
      %v5713 = vadd.f32 %v5391, %v5663
      %v5714 = vadd.f32 %v5392, %v5666
      %v5715 = vadd.f32 %v5393, %v5671
      %v5716 = vadd.f32 %v5394, %v5674
      %v5717 = vld [vmem:[%s8] sm:$0x1]
      %v5719 = vlaneseq
      %v5720 = vshrl.u32 %v5719, 7
      %v5721 = vsub.s32 0, %v5720
      %v5722 = vrot.slane %v5717, %v5721
      %v5724 = vmul.f32 %v5683, %v5722
      %v5725 = vmul.f32 %v5684, %v5722
      %v5726 = vmul.f32 %v5685, %v5722
      %v5727 = vmul.f32 %v5686, %v5722
      %v5728 = vmul.f32 %v5687, %v5722
      %v5729 = vmul.f32 %v5688, %v5722
      %v5730 = vmul.f32 %v5689, %v5722
      %v5731 = vmul.f32 %v5690, %v5722
      %v5732 = vmul.f32 %v5691, %v5722
      %v5733 = vmul.f32 %v5692, %v5722
      %v5734 = vmul.f32 %v5693, %v5722
      %v5735 = vmul.f32 %v5694, %v5722
      %v5736 = vmul.f32 %v5695, %v5722
      %v5737 = vmul.f32 %v5696, %v5722
      %v5738 = vmul.f32 %v5697, %v5722
      %v5739 = vmul.f32 %v5698, %v5722
      %v5740 = vmul.f32 %v5699, %v5722
      %v5741 = vmul.f32 %v5700, %v5722
      %v5742 = vmul.f32 %v5701, %v5722
      %v5743 = vmul.f32 %v5702, %v5722
      %v5744 = vmul.f32 %v5703, %v5722
      %v5745 = vmul.f32 %v5704, %v5722
      %v5746 = vmul.f32 %v5705, %v5722
      %v5747 = vmul.f32 %v5706, %v5722
      %v5748 = vmul.f32 %v5707, %v5722
      %v5749 = vmul.f32 %v5708, %v5722
      %v5750 = vmul.f32 %v5709, %v5722
      %v5751 = vmul.f32 %v5710, %v5722
      %v5752 = vmul.f32 %v5711, %v5722
      %v5753 = vmul.f32 %v5712, %v5722
      %v5754 = vmul.f32 %v5713, %v5722
      %v5755 = vmul.f32 %v5714, %v5722
      %v5756 = vmul.f32 %v5715, %v5722
      %v5757 = vmul.f32 %v5716, %v5722
      %v5758 = vld [vmem:[%s9] sm:$0x1]
      %v5760 = vlaneseq
      %v5761 = vshrl.u32 %v5760, 7
      %v5762 = vsub.s32 0, %v5761
      %v5763 = vrot.slane %v5758, %v5762
      %v5765 = vadd.f32 %v5724, %v5763
      %v5766 = vadd.f32 %v5725, %v5763
      %v5767 = vadd.f32 %v5726, %v5763
      %v5768 = vadd.f32 %v5727, %v5763
      %v5769 = vadd.f32 %v5728, %v5763
      %v5770 = vadd.f32 %v5729, %v5763
      %v5771 = vadd.f32 %v5730, %v5763
      %v5772 = vadd.f32 %v5731, %v5763
      %v5773 = vadd.f32 %v5732, %v5763
      %v5774 = vadd.f32 %v5733, %v5763
      %v5775 = vadd.f32 %v5734, %v5763
      %v5776 = vadd.f32 %v5735, %v5763
      %v5777 = vadd.f32 %v5736, %v5763
      %v5778 = vadd.f32 %v5737, %v5763
      %v5779 = vadd.f32 %v5738, %v5763
      %v5780 = vadd.f32 %v5739, %v5763
      %v5781 = vadd.f32 %v5740, %v5763
      %v5782 = vadd.f32 %v5741, %v5763
      %v5783 = vadd.f32 %v5742, %v5763
      %v5784 = vadd.f32 %v5743, %v5763
      %v5785 = vadd.f32 %v5744, %v5763
      %v5786 = vadd.f32 %v5745, %v5763
      %v5787 = vadd.f32 %v5746, %v5763
      %v5788 = vadd.f32 %v5747, %v5763
      %v5789 = vadd.f32 %v5748, %v5763
      %v5790 = vadd.f32 %v5749, %v5763
      %v5791 = vadd.f32 %v5750, %v5763
      %v5792 = vadd.f32 %v5751, %v5763
      %v5793 = vadd.f32 %v5752, %v5763
      %v5794 = vadd.f32 %v5753, %v5763
      %v5795 = vadd.f32 %v5754, %v5763
      %v5796 = vadd.f32 %v5755, %v5763
      %v5797 = vadd.f32 %v5756, %v5763
      %v5798 = vadd.f32 %v5757, %v5763
      %v5799 = vmax.f32 %v5765, 0.0
      %v5800 = vmax.f32 %v5766, 0.0
      %v5801 = vmax.f32 %v5767, 0.0
      %v5802 = vmax.f32 %v5768, 0.0
      %v5803 = vmax.f32 %v5769, 0.0
      %v5804 = vmax.f32 %v5770, 0.0
      %v5805 = vmax.f32 %v5771, 0.0
      %v5806 = vmax.f32 %v5772, 0.0
      %v5807 = vmax.f32 %v5773, 0.0
      %v5808 = vmax.f32 %v5774, 0.0
      %v5809 = vmax.f32 %v5775, 0.0
      %v5810 = vmax.f32 %v5776, 0.0
      %v5811 = vmax.f32 %v5777, 0.0
      %v5812 = vmax.f32 %v5778, 0.0
      %v5813 = vmax.f32 %v5779, 0.0
      %v5814 = vmax.f32 %v5780, 0.0
      %v5815 = vmax.f32 %v5781, 0.0
      %v5816 = vmax.f32 %v5782, 0.0
      %v5817 = vmax.f32 %v5783, 0.0
      %v5818 = vmax.f32 %v5784, 0.0
      %v5819 = vmax.f32 %v5785, 0.0
      %v5820 = vmax.f32 %v5786, 0.0
      %v5821 = vmax.f32 %v5787, 0.0
      %v5822 = vmax.f32 %v5788, 0.0
      %v5823 = vmax.f32 %v5789, 0.0
      %v5824 = vmax.f32 %v5790, 0.0
      %v5825 = vmax.f32 %v5791, 0.0
      %v5826 = vmax.f32 %v5792, 0.0
      %v5827 = vmax.f32 %v5793, 0.0
      %v5828 = vmax.f32 %v5794, 0.0
      %v5829 = vmax.f32 %v5795, 0.0
      %v5830 = vmax.f32 %v5796, 0.0
      %v5831 = vmax.f32 %v5797, 0.0
      %v5832 = vmax.f32 %v5798, 0.0
      %v5833 = vpack.c.bf16 %v5800, %v5799
      %v5834 = vpack.c.bf16 %v5802, %v5801
      %v5835 = vpack.c.bf16 %v5804, %v5803
      %v5836 = vpack.c.bf16 %v5806, %v5805
      %v5837 = vpack.c.bf16 %v5808, %v5807
      %v5838 = vpack.c.bf16 %v5810, %v5809
      %v5839 = vpack.c.bf16 %v5812, %v5811
      %v5840 = vpack.c.bf16 %v5814, %v5813
      %v5841 = vpack.c.bf16 %v5816, %v5815
      %v5842 = vpack.c.bf16 %v5818, %v5817
      %v5843 = vpack.c.bf16 %v5820, %v5819
      %v5844 = vpack.c.bf16 %v5822, %v5821
      %v5845 = vpack.c.bf16 %v5824, %v5823
      %v5846 = vpack.c.bf16 %v5826, %v5825
      %v5847 = vpack.c.bf16 %v5827, %v5827
      %v5848 = vld [vmem:[%s10] sm:$0xf]
      %v5849 = vld [vmem:[%s10 + $0x4] sm:$0x3]
      %s5850 = scalar_lea.vmem %s10, 8
      %v5851 = vld [vmem:[%s5850] sm:$0xf]
      %v5852 = vld [vmem:[%s5850 + $0x4] sm:$0x3]
      %v5854 = vshrl.u32 %v5833, 16
      %v5856 = vshll.u32 %v5833, 16
      %v5858 = vrot.slane %v5856, 1
      %v5859 = vor.u32 %v5854, %v5858
      %v5861 = vshll.u32 %v5834, 16
      %v5863 = vrot.slane %v5861, 1
      %v5864 = vsel %vm544, %v5859, %v5863
      %v5865 = vshrl.u32 %v5834, 16
      %v5867 = vor.u32 %v5865, %v5863
      %v5869 = vshll.u32 %v5835, 16
      %v5871 = vrot.slane %v5869, 1
      %v5872 = vsel %vm544, %v5867, %v5871
      %v5873 = vshrl.u32 %v5835, 16
      %v5875 = vor.u32 %v5873, %v5871
      %v5877 = vshll.u32 %v5836, 16
      %v5879 = vrot.slane %v5877, 1
      %v5880 = vsel %vm544, %v5875, %v5879
      %v5881 = vshrl.u32 %v5836, 16
      %v5883 = vor.u32 %v5881, %v5879
      %v5885 = vshll.u32 %v5837, 16
      %v5887 = vrot.slane %v5885, 1
      %v5888 = vsel %vm544, %v5883, %v5887
      %v5889 = vshrl.u32 %v5837, 16
      %v5891 = vor.u32 %v5889, %v5887
      %v5893 = vshll.u32 %v5838, 16
      %v5895 = vrot.slane %v5893, 1
      %v5896 = vsel %vm544, %v5891, %v5895
      %v5897 = vshrl.u32 %v5838, 16
      %v5899 = vor.u32 %v5897, %v5895
      %v5901 = vshll.u32 %v5839, 16
      %v5903 = vrot.slane %v5901, 1
      %v5904 = vsel %vm544, %v5899, %v5903
      %v5905 = vshrl.u32 %v5839, 16
      %v5907 = vor.u32 %v5905, %v5903
      %v5909 = vshll.u32 %v5840, 16
      %v5911 = vrot.slane %v5909, 1
      %v5912 = vsel %vm544, %v5907, %v5911
      %v5913 = vshrl.u32 %v5840, 16
      %v5915 = vor.u32 %v5913, %v5911
      %v5917 = vshll.u32 %v5841, 16
      %v5919 = vrot.slane %v5917, 1
      %v5920 = vsel %vm544, %v5915, %v5919
      %v5921 = vshrl.u32 %v5841, 16
      %v5923 = vor.u32 %v5921, %v5919
      %v5925 = vshll.u32 %v5842, 16
      %v5927 = vrot.slane %v5925, 1
      %v5928 = vsel %vm544, %v5923, %v5927
      %v5929 = vshrl.u32 %v5842, 16
      %v5931 = vor.u32 %v5929, %v5927
      %v5933 = vshll.u32 %v5843, 16
      %v5935 = vrot.slane %v5933, 1
      %v5936 = vsel %vm544, %v5931, %v5935
      %v5937 = vshrl.u32 %v5843, 16
      %v5939 = vor.u32 %v5937, %v5935
      %v5941 = vshll.u32 %v5844, 16
      %v5943 = vrot.slane %v5941, 1
      %v5944 = vsel %vm544, %v5939, %v5943
      %v5945 = vshrl.u32 %v5844, 16
      %v5947 = vor.u32 %v5945, %v5943
      %v5949 = vshll.u32 %v5845, 16
      %v5951 = vrot.slane %v5949, 1
      %v5952 = vsel %vm544, %v5947, %v5951
      %v5953 = vshrl.u32 %v5845, 16
      %v5955 = vor.u32 %v5953, %v5951
      %v5957 = vshll.u32 %v5846, 16
      %v5959 = vrot.slane %v5957, 1
      %v5960 = vsel %vm544, %v5955, %v5959
      %v5961 = vshrl.u32 %v5846, 16
      %v5963 = vor.u32 %v5961, %v5959
      %v5965 = vshll.u32 %v5847, 16
      %v5967 = vrot.slane %v5965, 1
      %v5968 = vsel %vm544, %v5963, %v5967
      %v5969 = vshrl.u32 %v5847, 16
      %v5971 = vor.u32 %v5969, %v5967
      %v5974 = vunpack.c.l.b16 %v5851
      %v5975 = vunpack.c.l.b16 %v5852
      %v5976 = vpack.c.b16 %v5975, %v5974
      %vm5977 = vcmask 97280
      %v5979 = vsel %vm5977, %v5864, 0
      %v5982 = vsel %vm5977, %v5872, 0
      %v5985 = vsel %vm5977, %v5880, 0
      %v5988 = vsel %vm5977, %v5888, 0
      %v5991 = vsel %vm5977, %v5896, 0
      %v5994 = vsel %vm5977, %v5904, 0
      %v5997 = vsel %vm5977, %v5912, 0
      %v6000 = vsel %vm5977, %v5920, 0
      %v6003 = vsel %vm5977, %v5928, 0
      %v6006 = vsel %vm5977, %v5936, 0
      %v6009 = vsel %vm5977, %v5944, 0
      %v6012 = vsel %vm5977, %v5952, 0
      %v6015 = vsel %vm5977, %v5960, 0
      %v6018 = vsel %vm5977, %v5968, 0
      %v6021 = vsel %vm5977, %v5971, 0
      %vm6023 = vcmask 1045504
      %v6025 = vsel %vm6023, %v5976, 0
      %6027 = vmatprep.subr.bf16.mxu0 0
      %6028 = vmatpush1.bf16.msra.mxu0 %v6025
      %6029 = vmatprep.subr.bf16.mxu0 0
      %6030 = vmatpush1.bf16.msra.mxu0 0
      %6031 = vmatprep.subr.bf16.mxu0 0
      %6032 = vmatpush1.bf16.msra.mxu0 0
      %6033 = vmatprep.subr.bf16.mxu0 0
      %6034 = vmatpush1.bf16.msra.mxu0 0
      %6035 = vmatprep.subr.bf16.mxu0 0
      %6036 = vmatpush1.bf16.msra.mxu0 0
      %6037 = vmatprep.subr.bf16.mxu0 0
      %6038 = vmatpush1.bf16.msra.mxu0 0
      %6039 = vmatprep.subr.bf16.mxu0 0
      %6040 = vmatpush1.bf16.msra.mxu0 0
      %6041 = vmatprep.subr.bf16.mxu0 0
      %6042 = vmatpush1.bf16.msra.mxu0 0
      %6043 = vmatprep.subr.bf16.mxu0 0
      %6044 = vmatpush1.bf16.msra.mxu0 0
      %6045 = vmatprep.subr.bf16.mxu0 0
      %6046 = vmatpush1.bf16.msra.mxu0 0
      %6047 = vmatprep.subr.bf16.mxu0 0
      %6048 = vmatpush1.bf16.msra.mxu0 0
      %6049 = vmatprep.subr.bf16.mxu0 0
      %6050 = vmatpush1.bf16.msra.mxu0 0
      %6051 = vmatprep.subr.bf16.mxu0 0
      %6052 = vmatpush1.bf16.msra.mxu0 0
      %6053 = vmatprep.subr.bf16.mxu0 0
      %6054 = vmatpush1.bf16.msra.mxu0 0
      %6055 = vmatprep.subr.bf16.mxu0 0
      %6056 = vmatpush1.bf16.msra.mxu0 0
      %6057 = vmatprep.subr.bf16.mxu0 0
      %6058 = vmatpush1.bf16.msra.mxu0 0
      %6059 = vmatprep.mubr.bf16.mxu0 0
      %6060 = vmatmul.mubr.bf16.gmra.mrb[0].mxu0 %v5979
      %v6061 = vpop.f32.mrb[0].mxu0
      %v6062 = vadd.f32 0.0, %v6061
      %v6063 = vpop.f32.mrb[0].mxu0
      %v6064 = vpop.f32.mrb[0].mxu0
      %v6065 = vadd.f32 0.0, %v6064
      %v6066 = vpop.f32.mrb[0].mxu0
      %6067 = vmatprep.mubr.bf16.mxu0 0
      %6068 = vmatmul.mubr.bf16.gmra.mrb[0].mxu0 %v5982
      %v6069 = vpop.f32.mrb[0].mxu0
      %v6070 = vadd.f32 0.0, %v6069
      %v6071 = vpop.f32.mrb[0].mxu0
      %v6072 = vpop.f32.mrb[0].mxu0
      %v6073 = vadd.f32 0.0, %v6072
      %v6074 = vpop.f32.mrb[0].mxu0
      %6075 = vmatprep.mubr.bf16.mxu0 0
      %6076 = vmatmul.mubr.bf16.gmra.mrb[0].mxu0 %v5985
      %v6077 = vpop.f32.mrb[0].mxu0
      %v6078 = vadd.f32 0.0, %v6077
      %v6079 = vpop.f32.mrb[0].mxu0
      %v6080 = vpop.f32.mrb[0].mxu0
      %v6081 = vadd.f32 0.0, %v6080
      %v6082 = vpop.f32.mrb[0].mxu0
      %6083 = vmatprep.mubr.bf16.mxu0 0
      %6084 = vmatmul.mubr.bf16.gmra.mrb[0].mxu0 %v5988
      %v6085 = vpop.f32.mrb[0].mxu0
      %v6086 = vadd.f32 0.0, %v6085
      %v6087 = vpop.f32.mrb[0].mxu0
      %v6088 = vpop.f32.mrb[0].mxu0
      %v6089 = vadd.f32 0.0, %v6088
      %v6090 = vpop.f32.mrb[0].mxu0
      %6091 = vmatprep.mubr.bf16.mxu0 0
      %6092 = vmatmul.mubr.bf16.gmra.mrb[0].mxu0 %v5991
      %v6093 = vpop.f32.mrb[0].mxu0
      %v6094 = vadd.f32 0.0, %v6093
      %v6095 = vpop.f32.mrb[0].mxu0
      %v6096 = vpop.f32.mrb[0].mxu0
      %v6097 = vadd.f32 0.0, %v6096
      %v6098 = vpop.f32.mrb[0].mxu0
      %6099 = vmatprep.mubr.bf16.mxu0 0
      %6100 = vmatmul.mubr.bf16.gmra.mrb[0].mxu0 %v5994
      %v6101 = vpop.f32.mrb[0].mxu0
      %v6102 = vadd.f32 0.0, %v6101
      %v6103 = vpop.f32.mrb[0].mxu0
      %v6104 = vpop.f32.mrb[0].mxu0
      %v6105 = vadd.f32 0.0, %v6104
      %v6106 = vpop.f32.mrb[0].mxu0
      %6107 = vmatprep.mubr.bf16.mxu0 0
      %6108 = vmatmul.mubr.bf16.gmra.mrb[0].mxu0 %v5997
      %v6109 = vpop.f32.mrb[0].mxu0
      %v6110 = vadd.f32 0.0, %v6109
      %v6111 = vpop.f32.mrb[0].mxu0
      %v6112 = vpop.f32.mrb[0].mxu0
      %v6113 = vadd.f32 0.0, %v6112
      %v6114 = vpop.f32.mrb[0].mxu0
      %6115 = vmatprep.mubr.bf16.mxu0 0
      %6116 = vmatmul.mubr.bf16.gmra.mrb[0].mxu0 %v6000
      %v6117 = vpop.f32.mrb[0].mxu0
      %v6118 = vadd.f32 0.0, %v6117
      %v6119 = vpop.f32.mrb[0].mxu0
      %v6120 = vpop.f32.mrb[0].mxu0
      %v6121 = vadd.f32 0.0, %v6120
      %v6122 = vpop.f32.mrb[0].mxu0
      %6123 = vmatprep.mubr.bf16.mxu0 0
      %6124 = vmatmul.mubr.bf16.gmra.mrb[0].mxu0 %v6003
      %v6125 = vpop.f32.mrb[0].mxu0
      %v6126 = vadd.f32 0.0, %v6125
      %v6127 = vpop.f32.mrb[0].mxu0
      %v6128 = vpop.f32.mrb[0].mxu0
      %v6129 = vadd.f32 0.0, %v6128
      %v6130 = vpop.f32.mrb[0].mxu0
      %6131 = vmatprep.mubr.bf16.mxu0 0
      %6132 = vmatmul.mubr.bf16.gmra.mrb[0].mxu0 %v6006
      %v6133 = vpop.f32.mrb[0].mxu0
      %v6134 = vadd.f32 0.0, %v6133
      %v6135 = vpop.f32.mrb[0].mxu0
      %v6136 = vpop.f32.mrb[0].mxu0
      %v6137 = vadd.f32 0.0, %v6136
      %v6138 = vpop.f32.mrb[0].mxu0
      %6139 = vmatprep.mubr.bf16.mxu0 0
      %6140 = vmatmul.mubr.bf16.gmra.mrb[0].mxu0 %v6009
      %v6141 = vpop.f32.mrb[0].mxu0
      %v6142 = vadd.f32 0.0, %v6141
      %v6143 = vpop.f32.mrb[0].mxu0
      %v6144 = vpop.f32.mrb[0].mxu0
      %v6145 = vadd.f32 0.0, %v6144
      %v6146 = vpop.f32.mrb[0].mxu0
      %6147 = vmatprep.mubr.bf16.mxu0 0
      %6148 = vmatmul.mubr.bf16.gmra.mrb[0].mxu0 %v6012
      %v6149 = vpop.f32.mrb[0].mxu0
      %v6150 = vadd.f32 0.0, %v6149
      %v6151 = vpop.f32.mrb[0].mxu0
      %v6152 = vpop.f32.mrb[0].mxu0
      %v6153 = vadd.f32 0.0, %v6152
      %v6154 = vpop.f32.mrb[0].mxu0
      %6155 = vmatprep.mubr.bf16.mxu0 0
      %6156 = vmatmul.mubr.bf16.gmra.mrb[0].mxu0 %v6015
      %v6157 = vpop.f32.mrb[0].mxu0
      %v6158 = vadd.f32 0.0, %v6157
      %v6159 = vpop.f32.mrb[0].mxu0
      %v6160 = vpop.f32.mrb[0].mxu0
      %v6161 = vadd.f32 0.0, %v6160
      %v6162 = vpop.f32.mrb[0].mxu0
      %6163 = vmatprep.mubr.bf16.mxu0 0
      %6164 = vmatmul.mubr.bf16.gmra.mrb[0].mxu0 %v6018
      %v6165 = vpop.f32.mrb[0].mxu0
      %v6166 = vadd.f32 0.0, %v6165
      %v6167 = vpop.f32.mrb[0].mxu0
      %v6168 = vpop.f32.mrb[0].mxu0
      %v6169 = vadd.f32 0.0, %v6168
      %v6170 = vpop.f32.mrb[0].mxu0
      %6171 = vmatprep.mubr.bf16.mxu0 0
      %6172 = vmatmul.mubr.bf16.gmra.mrb[0].mxu0 %v6021
      %v6173 = vpop.f32.mrb[0].mxu0
      %v6174 = vadd.f32 0.0, %v6173
      %v6175 = vpop.f32.mrb[0].mxu0
      %v6176 = vpop.f32.mrb[0].mxu0
      %v6177 = vpop.f32.mrb[0].mxu0
      %6178 = vdwg.mxu0
      %v6181 = vunpack.c.l.b16 %v5848
      %v6182 = vunpack.c.l.b16 %v5849
      %v6183 = vpack.c.b16 %v6182, %v6181
      %v6184 = vsel %vm5977, %v5833, 0
      %v6186 = vsel %vm5977, %v5834, 0
      %v6188 = vsel %vm5977, %v5835, 0
      %v6190 = vsel %vm5977, %v5836, 0
      %v6192 = vsel %vm5977, %v5837, 0
      %v6194 = vsel %vm5977, %v5838, 0
      %v6196 = vsel %vm5977, %v5839, 0
      %v6198 = vsel %vm5977, %v5840, 0
      %v6200 = vsel %vm5977, %v5841, 0
      %v6202 = vsel %vm5977, %v5842, 0
      %v6204 = vsel %vm5977, %v5843, 0
      %v6206 = vsel %vm5977, %v5844, 0
      %v6208 = vsel %vm5977, %v5845, 0
      %v6210 = vsel %vm5977, %v5846, 0
      %v6212 = vsel %vm5977, %v5847, 0
      %v6215 = vsel %vm6023, %v6183, 0
      %6217 = vmatprep.subr.bf16.mxu0 0
      %6218 = vmatpush1.bf16.msra.mxu0 %v6215
      %6219 = vmatprep.subr.bf16.mxu0 0
      %6220 = vmatpush1.bf16.msra.mxu0 0
      %6221 = vmatprep.subr.bf16.mxu0 0
      %6222 = vmatpush1.bf16.msra.mxu0 0
      %6223 = vmatprep.subr.bf16.mxu0 0
      %6224 = vmatpush1.bf16.msra.mxu0 0
      %6225 = vmatprep.subr.bf16.mxu0 0
      %6226 = vmatpush1.bf16.msra.mxu0 0
      %6227 = vmatprep.subr.bf16.mxu0 0
      %6228 = vmatpush1.bf16.msra.mxu0 0
      %6229 = vmatprep.subr.bf16.mxu0 0
      %6230 = vmatpush1.bf16.msra.mxu0 0
      %6231 = vmatprep.subr.bf16.mxu0 0
      %6232 = vmatpush1.bf16.msra.mxu0 0
      %6233 = vmatprep.subr.bf16.mxu0 0
      %6234 = vmatpush1.bf16.msra.mxu0 0
      %6235 = vmatprep.subr.bf16.mxu0 0
      %6236 = vmatpush1.bf16.msra.mxu0 0
      %6237 = vmatprep.subr.bf16.mxu0 0
      %6238 = vmatpush1.bf16.msra.mxu0 0
      %6239 = vmatprep.subr.bf16.mxu0 0
      %6240 = vmatpush1.bf16.msra.mxu0 0
      %6241 = vmatprep.subr.bf16.mxu0 0
      %6242 = vmatpush1.bf16.msra.mxu0 0
      %6243 = vmatprep.subr.bf16.mxu0 0
      %6244 = vmatpush1.bf16.msra.mxu0 0
      %6245 = vmatprep.subr.bf16.mxu0 0
      %6246 = vmatpush1.bf16.msra.mxu0 0
      %6247 = vmatprep.subr.bf16.mxu0 0
      %6248 = vmatpush1.bf16.msra.mxu0 0
      %6249 = vmatprep.mubr.bf16.mxu0 0
      %6250 = vmatmul.mubr.bf16.gmra.mrb[0].mxu0 %v6184
      %v6251 = vpop.f32.mrb[0].mxu0
      %v6252 = vadd.f32 %v6062, %v6251
      %v6253 = vpop.f32.mrb[0].mxu0
      %v6254 = vpop.f32.mrb[0].mxu0
      %v6255 = vadd.f32 %v6065, %v6254
      %v6256 = vpop.f32.mrb[0].mxu0
      %6257 = vmatprep.mubr.bf16.mxu0 0
      %6258 = vmatmul.mubr.bf16.gmra.mrb[0].mxu0 %v6186
      %v6259 = vpop.f32.mrb[0].mxu0
      %v6260 = vadd.f32 %v6070, %v6259
      %v6261 = vpop.f32.mrb[0].mxu0
      %v6262 = vpop.f32.mrb[0].mxu0
      %v6263 = vadd.f32 %v6073, %v6262
      %v6264 = vpop.f32.mrb[0].mxu0
      %6265 = vmatprep.mubr.bf16.mxu0 0
      %6266 = vmatmul.mubr.bf16.gmra.mrb[0].mxu0 %v6188
      %v6267 = vpop.f32.mrb[0].mxu0
      %v6268 = vadd.f32 %v6078, %v6267
      %v6269 = vpop.f32.mrb[0].mxu0
      %v6270 = vpop.f32.mrb[0].mxu0
      %v6271 = vadd.f32 %v6081, %v6270
      %v6272 = vpop.f32.mrb[0].mxu0
      %6273 = vmatprep.mubr.bf16.mxu0 0
      %6274 = vmatmul.mubr.bf16.gmra.mrb[0].mxu0 %v6190
      %v6275 = vpop.f32.mrb[0].mxu0
      %v6276 = vadd.f32 %v6086, %v6275
      %v6277 = vpop.f32.mrb[0].mxu0
      %v6278 = vpop.f32.mrb[0].mxu0
      %v6279 = vadd.f32 %v6089, %v6278
      %v6280 = vpop.f32.mrb[0].mxu0
      %6281 = vmatprep.mubr.bf16.mxu0 0
      %6282 = vmatmul.mubr.bf16.gmra.mrb[0].mxu0 %v6192
      %v6283 = vpop.f32.mrb[0].mxu0
      %v6284 = vadd.f32 %v6094, %v6283
      %v6285 = vpop.f32.mrb[0].mxu0
      %v6286 = vpop.f32.mrb[0].mxu0
      %v6287 = vadd.f32 %v6097, %v6286
      %v6288 = vpop.f32.mrb[0].mxu0
      %6289 = vmatprep.mubr.bf16.mxu0 0
      %6290 = vmatmul.mubr.bf16.gmra.mrb[0].mxu0 %v6194
      %v6291 = vpop.f32.mrb[0].mxu0
      %v6292 = vadd.f32 %v6102, %v6291
      %v6293 = vpop.f32.mrb[0].mxu0
      %v6294 = vpop.f32.mrb[0].mxu0
      %v6295 = vadd.f32 %v6105, %v6294
      %v6296 = vpop.f32.mrb[0].mxu0
      %6297 = vmatprep.mubr.bf16.mxu0 0
      %6298 = vmatmul.mubr.bf16.gmra.mrb[0].mxu0 %v6196
      %v6299 = vpop.f32.mrb[0].mxu0
      %v6300 = vadd.f32 %v6110, %v6299
      %v6301 = vpop.f32.mrb[0].mxu0
      %v6302 = vpop.f32.mrb[0].mxu0
      %v6303 = vadd.f32 %v6113, %v6302
      %v6304 = vpop.f32.mrb[0].mxu0
      %6305 = vmatprep.mubr.bf16.mxu0 0
      %6306 = vmatmul.mubr.bf16.gmra.mrb[0].mxu0 %v6198
      %v6307 = vpop.f32.mrb[0].mxu0
      %v6308 = vadd.f32 %v6118, %v6307
      %v6309 = vpop.f32.mrb[0].mxu0
      %v6310 = vpop.f32.mrb[0].mxu0
      %v6311 = vadd.f32 %v6121, %v6310
      %v6312 = vpop.f32.mrb[0].mxu0
      %6313 = vmatprep.mubr.bf16.mxu0 0
      %6314 = vmatmul.mubr.bf16.gmra.mrb[0].mxu0 %v6200
      %v6315 = vpop.f32.mrb[0].mxu0
      %v6316 = vadd.f32 %v6126, %v6315
      %v6317 = vpop.f32.mrb[0].mxu0
      %v6318 = vpop.f32.mrb[0].mxu0
      %v6319 = vadd.f32 %v6129, %v6318
      %v6320 = vpop.f32.mrb[0].mxu0
      %6321 = vmatprep.mubr.bf16.mxu0 0
      %6322 = vmatmul.mubr.bf16.gmra.mrb[0].mxu0 %v6202
      %v6323 = vpop.f32.mrb[0].mxu0
      %v6324 = vadd.f32 %v6134, %v6323
      %v6325 = vpop.f32.mrb[0].mxu0
      %v6326 = vpop.f32.mrb[0].mxu0
      %v6327 = vadd.f32 %v6137, %v6326
      %v6328 = vpop.f32.mrb[0].mxu0
      %6329 = vmatprep.mubr.bf16.mxu0 0
      %6330 = vmatmul.mubr.bf16.gmra.mrb[0].mxu0 %v6204
      %v6331 = vpop.f32.mrb[0].mxu0
      %v6332 = vadd.f32 %v6142, %v6331
      %v6333 = vpop.f32.mrb[0].mxu0
      %v6334 = vpop.f32.mrb[0].mxu0
      %v6335 = vadd.f32 %v6145, %v6334
      %v6336 = vpop.f32.mrb[0].mxu0
      %6337 = vmatprep.mubr.bf16.mxu0 0
      %6338 = vmatmul.mubr.bf16.gmra.mrb[0].mxu0 %v6206
      %v6339 = vpop.f32.mrb[0].mxu0
      %v6340 = vadd.f32 %v6150, %v6339
      %v6341 = vpop.f32.mrb[0].mxu0
      %v6342 = vpop.f32.mrb[0].mxu0
      %v6343 = vadd.f32 %v6153, %v6342
      %v6344 = vpop.f32.mrb[0].mxu0
      %6345 = vmatprep.mubr.bf16.mxu0 0
      %6346 = vmatmul.mubr.bf16.gmra.mrb[0].mxu0 %v6208
      %v6347 = vpop.f32.mrb[0].mxu0
      %v6348 = vadd.f32 %v6158, %v6347
      %v6349 = vpop.f32.mrb[0].mxu0
      %v6350 = vpop.f32.mrb[0].mxu0
      %v6351 = vadd.f32 %v6161, %v6350
      %v6352 = vpop.f32.mrb[0].mxu0
      %6353 = vmatprep.mubr.bf16.mxu0 0
      %6354 = vmatmul.mubr.bf16.gmra.mrb[0].mxu0 %v6210
      %v6355 = vpop.f32.mrb[0].mxu0
      %v6356 = vadd.f32 %v6166, %v6355
      %v6357 = vpop.f32.mrb[0].mxu0
      %v6358 = vpop.f32.mrb[0].mxu0
      %v6359 = vadd.f32 %v6169, %v6358
      %v6360 = vpop.f32.mrb[0].mxu0
      %6361 = vmatprep.mubr.bf16.mxu0 0
      %6362 = vmatmul.mubr.bf16.gmra.mrb[0].mxu0 %v6212
      %v6363 = vpop.f32.mrb[0].mxu0
      %v6364 = vadd.f32 %v6174, %v6363
      %v6365 = vpop.f32.mrb[0].mxu0
      %v6366 = vpop.f32.mrb[0].mxu0
      %v6367 = vpop.f32.mrb[0].mxu0
      %6368 = vdwg.mxu0
      %s6369 = scalar_lea.vmem %s10, 16
      %v6370 = vld [vmem:[%s6369] sm:$0xf]
      %v6371 = vld [vmem:[%s6369 + $0x4] sm:$0x3]
      %v6387 = vrot.slane %v5833, 1
      %v6388 = vrot.slane %v5834, 1
      %v6389 = vsel %vm1010, %v6387, %v6388
      %v6390 = vrot.slane %v5835, 1
      %v6391 = vsel %vm1010, %v6388, %v6390
      %v6392 = vrot.slane %v5836, 1
      %v6393 = vsel %vm1010, %v6390, %v6392
      %v6394 = vrot.slane %v5837, 1
      %v6395 = vsel %vm1010, %v6392, %v6394
      %v6396 = vrot.slane %v5838, 1
      %v6397 = vsel %vm1010, %v6394, %v6396
      %v6398 = vrot.slane %v5839, 1
      %v6399 = vsel %vm1010, %v6396, %v6398
      %v6400 = vrot.slane %v5840, 1
      %v6401 = vsel %vm1010, %v6398, %v6400
      %v6402 = vrot.slane %v5841, 1
      %v6403 = vsel %vm1010, %v6400, %v6402
      %v6404 = vrot.slane %v5842, 1
      %v6405 = vsel %vm1010, %v6402, %v6404
      %v6406 = vrot.slane %v5843, 1
      %v6407 = vsel %vm1010, %v6404, %v6406
      %v6408 = vrot.slane %v5844, 1
      %v6409 = vsel %vm1010, %v6406, %v6408
      %v6410 = vrot.slane %v5845, 1
      %v6411 = vsel %vm1010, %v6408, %v6410
      %v6412 = vrot.slane %v5846, 1
      %v6413 = vsel %vm1010, %v6410, %v6412
      %v6414 = vrot.slane %v5847, 1
      %v6415 = vsel %vm1010, %v6412, %v6414
      %v6418 = vunpack.c.l.b16 %v6370
      %v6419 = vunpack.c.l.b16 %v6371
      %v6420 = vpack.c.b16 %v6419, %v6418
      %v6422 = vsel %vm5977, %v6389, 0
      %v6425 = vsel %vm5977, %v6391, 0
      %v6428 = vsel %vm5977, %v6393, 0
      %v6431 = vsel %vm5977, %v6395, 0
      %v6434 = vsel %vm5977, %v6397, 0
      %v6437 = vsel %vm5977, %v6399, 0
      %v6440 = vsel %vm5977, %v6401, 0
      %v6443 = vsel %vm5977, %v6403, 0
      %v6446 = vsel %vm5977, %v6405, 0
      %v6449 = vsel %vm5977, %v6407, 0
      %v6452 = vsel %vm5977, %v6409, 0
      %v6455 = vsel %vm5977, %v6411, 0
      %v6458 = vsel %vm5977, %v6413, 0
      %v6461 = vsel %vm5977, %v6415, 0
      %v6464 = vsel %vm5977, %v6414, 0
      %v6467 = vsel %vm6023, %v6420, 0
      %6469 = vmatprep.subr.bf16.mxu0 0
      %6470 = vmatpush1.bf16.msra.mxu0 %v6467
      %6471 = vmatprep.subr.bf16.mxu0 0
      %6472 = vmatpush1.bf16.msra.mxu0 0
      %6473 = vmatprep.subr.bf16.mxu0 0
      %6474 = vmatpush1.bf16.msra.mxu0 0
      %6475 = vmatprep.subr.bf16.mxu0 0
      %6476 = vmatpush1.bf16.msra.mxu0 0
      %6477 = vmatprep.subr.bf16.mxu0 0
      %6478 = vmatpush1.bf16.msra.mxu0 0
      %6479 = vmatprep.subr.bf16.mxu0 0
      %6480 = vmatpush1.bf16.msra.mxu0 0
      %6481 = vmatprep.subr.bf16.mxu0 0
      %6482 = vmatpush1.bf16.msra.mxu0 0
      %6483 = vmatprep.subr.bf16.mxu0 0
      %6484 = vmatpush1.bf16.msra.mxu0 0
      %6485 = vmatprep.subr.bf16.mxu0 0
      %6486 = vmatpush1.bf16.msra.mxu0 0
      %6487 = vmatprep.subr.bf16.mxu0 0
      %6488 = vmatpush1.bf16.msra.mxu0 0
      %6489 = vmatprep.subr.bf16.mxu0 0
      %6490 = vmatpush1.bf16.msra.mxu0 0
      %6491 = vmatprep.subr.bf16.mxu0 0
      %6492 = vmatpush1.bf16.msra.mxu0 0
      %6493 = vmatprep.subr.bf16.mxu0 0
      %6494 = vmatpush1.bf16.msra.mxu0 0
      %6495 = vmatprep.subr.bf16.mxu0 0
      %6496 = vmatpush1.bf16.msra.mxu0 0
      %6497 = vmatprep.subr.bf16.mxu0 0
      %6498 = vmatpush1.bf16.msra.mxu0 0
      %6499 = vmatprep.subr.bf16.mxu0 0
      %6500 = vmatpush1.bf16.msra.mxu0 0
      %6501 = vmatprep.mubr.bf16.mxu0 0
      %6502 = vmatmul.mubr.bf16.gmra.mrb[0].mxu0 %v6422
      %v6503 = vpop.f32.mrb[0].mxu0
      %v6504 = vadd.f32 0.0, %v6503
      %v6505 = vpop.f32.mrb[0].mxu0
      %v6506 = vpop.f32.mrb[0].mxu0
      %v6507 = vadd.f32 0.0, %v6506
      %v6508 = vpop.f32.mrb[0].mxu0
      %6509 = vmatprep.mubr.bf16.mxu0 0
      %6510 = vmatmul.mubr.bf16.gmra.mrb[0].mxu0 %v6425
      %v6511 = vpop.f32.mrb[0].mxu0
      %v6512 = vadd.f32 0.0, %v6511
      %v6513 = vpop.f32.mrb[0].mxu0
      %v6514 = vpop.f32.mrb[0].mxu0
      %v6515 = vadd.f32 0.0, %v6514
      %v6516 = vpop.f32.mrb[0].mxu0
      %6517 = vmatprep.mubr.bf16.mxu0 0
      %6518 = vmatmul.mubr.bf16.gmra.mrb[0].mxu0 %v6428
      %v6519 = vpop.f32.mrb[0].mxu0
      %v6520 = vadd.f32 0.0, %v6519
      %v6521 = vpop.f32.mrb[0].mxu0
      %v6522 = vpop.f32.mrb[0].mxu0
      %v6523 = vadd.f32 0.0, %v6522
      %v6524 = vpop.f32.mrb[0].mxu0
      %6525 = vmatprep.mubr.bf16.mxu0 0
      %6526 = vmatmul.mubr.bf16.gmra.mrb[0].mxu0 %v6431
      %v6527 = vpop.f32.mrb[0].mxu0
      %v6528 = vadd.f32 0.0, %v6527
      %v6529 = vpop.f32.mrb[0].mxu0
      %v6530 = vpop.f32.mrb[0].mxu0
      %v6531 = vadd.f32 0.0, %v6530
      %v6532 = vpop.f32.mrb[0].mxu0
      %6533 = vmatprep.mubr.bf16.mxu0 0
      %6534 = vmatmul.mubr.bf16.gmra.mrb[0].mxu0 %v6434
      %v6535 = vpop.f32.mrb[0].mxu0
      %v6536 = vadd.f32 0.0, %v6535
      %v6537 = vpop.f32.mrb[0].mxu0
      %v6538 = vpop.f32.mrb[0].mxu0
      %v6539 = vadd.f32 0.0, %v6538
      %v6540 = vpop.f32.mrb[0].mxu0
      %6541 = vmatprep.mubr.bf16.mxu0 0
      %6542 = vmatmul.mubr.bf16.gmra.mrb[0].mxu0 %v6437
      %v6543 = vpop.f32.mrb[0].mxu0
      %v6544 = vadd.f32 0.0, %v6543
      %v6545 = vpop.f32.mrb[0].mxu0
      %v6546 = vpop.f32.mrb[0].mxu0
      %v6547 = vadd.f32 0.0, %v6546
      %v6548 = vpop.f32.mrb[0].mxu0
      %6549 = vmatprep.mubr.bf16.mxu0 0
      %6550 = vmatmul.mubr.bf16.gmra.mrb[0].mxu0 %v6440
      %v6551 = vpop.f32.mrb[0].mxu0
      %v6552 = vadd.f32 0.0, %v6551
      %v6553 = vpop.f32.mrb[0].mxu0
      %v6554 = vpop.f32.mrb[0].mxu0
      %v6555 = vadd.f32 0.0, %v6554
      %v6556 = vpop.f32.mrb[0].mxu0
      %6557 = vmatprep.mubr.bf16.mxu0 0
      %6558 = vmatmul.mubr.bf16.gmra.mrb[0].mxu0 %v6443
      %v6559 = vpop.f32.mrb[0].mxu0
      %v6560 = vadd.f32 0.0, %v6559
      %v6561 = vpop.f32.mrb[0].mxu0
      %v6562 = vpop.f32.mrb[0].mxu0
      %v6563 = vadd.f32 0.0, %v6562
      %v6564 = vpop.f32.mrb[0].mxu0
      %6565 = vmatprep.mubr.bf16.mxu0 0
      %6566 = vmatmul.mubr.bf16.gmra.mrb[0].mxu0 %v6446
      %v6567 = vpop.f32.mrb[0].mxu0
      %v6568 = vadd.f32 0.0, %v6567
      %v6569 = vpop.f32.mrb[0].mxu0
      %v6570 = vpop.f32.mrb[0].mxu0
      %v6571 = vadd.f32 0.0, %v6570
      %v6572 = vpop.f32.mrb[0].mxu0
      %6573 = vmatprep.mubr.bf16.mxu0 0
      %6574 = vmatmul.mubr.bf16.gmra.mrb[0].mxu0 %v6449
      %v6575 = vpop.f32.mrb[0].mxu0
      %v6576 = vadd.f32 0.0, %v6575
      %v6577 = vpop.f32.mrb[0].mxu0
      %v6578 = vpop.f32.mrb[0].mxu0
      %v6579 = vadd.f32 0.0, %v6578
      %v6580 = vpop.f32.mrb[0].mxu0
      %6581 = vmatprep.mubr.bf16.mxu0 0
      %6582 = vmatmul.mubr.bf16.gmra.mrb[0].mxu0 %v6452
      %v6583 = vpop.f32.mrb[0].mxu0
      %v6584 = vadd.f32 0.0, %v6583
      %v6585 = vpop.f32.mrb[0].mxu0
      %v6586 = vpop.f32.mrb[0].mxu0
      %v6587 = vadd.f32 0.0, %v6586
      %v6588 = vpop.f32.mrb[0].mxu0
      %6589 = vmatprep.mubr.bf16.mxu0 0
      %6590 = vmatmul.mubr.bf16.gmra.mrb[0].mxu0 %v6455
      %v6591 = vpop.f32.mrb[0].mxu0
      %v6592 = vadd.f32 0.0, %v6591
      %v6593 = vpop.f32.mrb[0].mxu0
      %v6594 = vpop.f32.mrb[0].mxu0
      %v6595 = vadd.f32 0.0, %v6594
      %v6596 = vpop.f32.mrb[0].mxu0
      %6597 = vmatprep.mubr.bf16.mxu0 0
      %6598 = vmatmul.mubr.bf16.gmra.mrb[0].mxu0 %v6458
      %v6599 = vpop.f32.mrb[0].mxu0
      %v6600 = vadd.f32 0.0, %v6599
      %v6601 = vpop.f32.mrb[0].mxu0
      %v6602 = vpop.f32.mrb[0].mxu0
      %v6603 = vadd.f32 0.0, %v6602
      %v6604 = vpop.f32.mrb[0].mxu0
      %6605 = vmatprep.mubr.bf16.mxu0 0
      %6606 = vmatmul.mubr.bf16.gmra.mrb[0].mxu0 %v6461
      %v6607 = vpop.f32.mrb[0].mxu0
      %v6608 = vadd.f32 0.0, %v6607
      %v6609 = vpop.f32.mrb[0].mxu0
      %v6610 = vpop.f32.mrb[0].mxu0
      %v6611 = vadd.f32 0.0, %v6610
      %v6612 = vpop.f32.mrb[0].mxu0
      %6613 = vmatprep.mubr.bf16.mxu0 0
      %6614 = vmatmul.mubr.bf16.gmra.mrb[0].mxu0 %v6464
      %v6615 = vpop.f32.mrb[0].mxu0
      %v6616 = vadd.f32 0.0, %v6615
      %v6617 = vpop.f32.mrb[0].mxu0
      %v6618 = vpop.f32.mrb[0].mxu0
      %v6619 = vpop.f32.mrb[0].mxu0
      %6620 = vdwg.mxu0
      %v6621 = vadd.f32 %v6252, %v6504
      %v6622 = vadd.f32 %v6255, %v6507
      %v6623 = vadd.f32 %v6260, %v6512
      %v6624 = vadd.f32 %v6263, %v6515
      %v6625 = vadd.f32 %v6268, %v6520
      %v6626 = vadd.f32 %v6271, %v6523
      %v6627 = vadd.f32 %v6276, %v6528
      %v6628 = vadd.f32 %v6279, %v6531
      %v6629 = vadd.f32 %v6284, %v6536
      %v6630 = vadd.f32 %v6287, %v6539
      %v6631 = vadd.f32 %v6292, %v6544
      %v6632 = vadd.f32 %v6295, %v6547
      %v6633 = vadd.f32 %v6300, %v6552
      %v6634 = vadd.f32 %v6303, %v6555
      %v6635 = vadd.f32 %v6308, %v6560
      %v6636 = vadd.f32 %v6311, %v6563
      %v6637 = vadd.f32 %v6316, %v6568
      %v6638 = vadd.f32 %v6319, %v6571
      %v6639 = vadd.f32 %v6324, %v6576
      %v6640 = vadd.f32 %v6327, %v6579
      %v6641 = vadd.f32 %v6332, %v6584
      %v6642 = vadd.f32 %v6335, %v6587
      %v6643 = vadd.f32 %v6340, %v6592
      %v6644 = vadd.f32 %v6343, %v6595
      %v6645 = vadd.f32 %v6348, %v6600
      %v6646 = vadd.f32 %v6351, %v6603
      %v6647 = vadd.f32 %v6356, %v6608
      %v6648 = vadd.f32 %v6359, %v6611
      %v6649 = vadd.f32 %v6364, %v6616
      %v6650 = vpack.c.bf16 %v5828, %v5827
      %v6651 = vpack.c.bf16 %v5829, %v5829
      %s6652 = scalar_lea.vmem %s10, 24
      %v6653 = vld [vmem:[%s6652] sm:$0xf]
      %v6654 = vld [vmem:[%s6652 + $0x4] sm:$0x3]
      %v6657 = vrot.slane %v6650, 1
      %v6658 = vsel %vm1010, %v6412, %v6657
      %v6659 = vrot.slane %v6651, 1
      %v6660 = vsel %vm1010, %v6657, %v6659
      %v6663 = vunpack.c.l.b16 %v6653
      %v6664 = vunpack.c.l.b16 %v6654
      %v6665 = vpack.c.b16 %v6664, %v6663
      %v6667 = vsel %vm5977, %v6658, 0
      %v6670 = vsel %vm5977, %v6660, 0
      %v6673 = vsel %vm5977, %v6659, 0
      %v6676 = vsel %vm6023, %v6665, 0
      %6678 = vmatprep.subr.bf16.mxu0 0
      %6679 = vmatpush1.bf16.msra.mxu0 %v6676
      %6680 = vmatprep.subr.bf16.mxu0 0
      %6681 = vmatpush1.bf16.msra.mxu0 0
      %6682 = vmatprep.subr.bf16.mxu0 0
      %6683 = vmatpush1.bf16.msra.mxu0 0
      %6684 = vmatprep.subr.bf16.mxu0 0
      %6685 = vmatpush1.bf16.msra.mxu0 0
      %6686 = vmatprep.subr.bf16.mxu0 0
      %6687 = vmatpush1.bf16.msra.mxu0 0
      %6688 = vmatprep.subr.bf16.mxu0 0
      %6689 = vmatpush1.bf16.msra.mxu0 0
      %6690 = vmatprep.subr.bf16.mxu0 0
      %6691 = vmatpush1.bf16.msra.mxu0 0
      %6692 = vmatprep.subr.bf16.mxu0 0
      %6693 = vmatpush1.bf16.msra.mxu0 0
      %6694 = vmatprep.subr.bf16.mxu0 0
      %6695 = vmatpush1.bf16.msra.mxu0 0
      %6696 = vmatprep.subr.bf16.mxu0 0
      %6697 = vmatpush1.bf16.msra.mxu0 0
      %6698 = vmatprep.subr.bf16.mxu0 0
      %6699 = vmatpush1.bf16.msra.mxu0 0
      %6700 = vmatprep.subr.bf16.mxu0 0
      %6701 = vmatpush1.bf16.msra.mxu0 0
      %6702 = vmatprep.subr.bf16.mxu0 0
      %6703 = vmatpush1.bf16.msra.mxu0 0
      %6704 = vmatprep.subr.bf16.mxu0 0
      %6705 = vmatpush1.bf16.msra.mxu0 0
      %6706 = vmatprep.subr.bf16.mxu0 0
      %6707 = vmatpush1.bf16.msra.mxu0 0
      %6708 = vmatprep.subr.bf16.mxu0 0
      %6709 = vmatpush1.bf16.msra.mxu0 0
      %6710 = vmatprep.mubr.bf16.mxu0 0
      %6711 = vmatmul.mubr.bf16.gmra.mrb[0].mxu0 %v6425
      %v6712 = vpop.f32.mrb[0].mxu0
      %v6713 = vadd.f32 0.0, %v6712
      %v6714 = vpop.f32.mrb[0].mxu0
      %v6715 = vpop.f32.mrb[0].mxu0
      %v6716 = vadd.f32 0.0, %v6715
      %v6717 = vpop.f32.mrb[0].mxu0
      %6718 = vmatprep.mubr.bf16.mxu0 0
      %6719 = vmatmul.mubr.bf16.gmra.mrb[0].mxu0 %v6428
      %v6720 = vpop.f32.mrb[0].mxu0
      %v6721 = vadd.f32 0.0, %v6720
      %v6722 = vpop.f32.mrb[0].mxu0
      %v6723 = vpop.f32.mrb[0].mxu0
      %v6724 = vadd.f32 0.0, %v6723
      %v6725 = vpop.f32.mrb[0].mxu0
      %6726 = vmatprep.mubr.bf16.mxu0 0
      %6727 = vmatmul.mubr.bf16.gmra.mrb[0].mxu0 %v6431
      %v6728 = vpop.f32.mrb[0].mxu0
      %v6729 = vadd.f32 0.0, %v6728
      %v6730 = vpop.f32.mrb[0].mxu0
      %v6731 = vpop.f32.mrb[0].mxu0
      %v6732 = vadd.f32 0.0, %v6731
      %v6733 = vpop.f32.mrb[0].mxu0
      %6734 = vmatprep.mubr.bf16.mxu0 0
      %6735 = vmatmul.mubr.bf16.gmra.mrb[0].mxu0 %v6434
      %v6736 = vpop.f32.mrb[0].mxu0
      %v6737 = vadd.f32 0.0, %v6736
      %v6738 = vpop.f32.mrb[0].mxu0
      %v6739 = vpop.f32.mrb[0].mxu0
      %v6740 = vadd.f32 0.0, %v6739
      %v6741 = vpop.f32.mrb[0].mxu0
      %6742 = vmatprep.mubr.bf16.mxu0 0
      %6743 = vmatmul.mubr.bf16.gmra.mrb[0].mxu0 %v6437
      %v6744 = vpop.f32.mrb[0].mxu0
      %v6745 = vadd.f32 0.0, %v6744
      %v6746 = vpop.f32.mrb[0].mxu0
      %v6747 = vpop.f32.mrb[0].mxu0
      %v6748 = vadd.f32 0.0, %v6747
      %v6749 = vpop.f32.mrb[0].mxu0
      %6750 = vmatprep.mubr.bf16.mxu0 0
      %6751 = vmatmul.mubr.bf16.gmra.mrb[0].mxu0 %v6440
      %v6752 = vpop.f32.mrb[0].mxu0
      %v6753 = vadd.f32 0.0, %v6752
      %v6754 = vpop.f32.mrb[0].mxu0
      %v6755 = vpop.f32.mrb[0].mxu0
      %v6756 = vadd.f32 0.0, %v6755
      %v6757 = vpop.f32.mrb[0].mxu0
      %6758 = vmatprep.mubr.bf16.mxu0 0
      %6759 = vmatmul.mubr.bf16.gmra.mrb[0].mxu0 %v6443
      %v6760 = vpop.f32.mrb[0].mxu0
      %v6761 = vadd.f32 0.0, %v6760
      %v6762 = vpop.f32.mrb[0].mxu0
      %v6763 = vpop.f32.mrb[0].mxu0
      %v6764 = vadd.f32 0.0, %v6763
      %v6765 = vpop.f32.mrb[0].mxu0
      %6766 = vmatprep.mubr.bf16.mxu0 0
      %6767 = vmatmul.mubr.bf16.gmra.mrb[0].mxu0 %v6446
      %v6768 = vpop.f32.mrb[0].mxu0
      %v6769 = vadd.f32 0.0, %v6768
      %v6770 = vpop.f32.mrb[0].mxu0
      %v6771 = vpop.f32.mrb[0].mxu0
      %v6772 = vadd.f32 0.0, %v6771
      %v6773 = vpop.f32.mrb[0].mxu0
      %6774 = vmatprep.mubr.bf16.mxu0 0
      %6775 = vmatmul.mubr.bf16.gmra.mrb[0].mxu0 %v6449
      %v6776 = vpop.f32.mrb[0].mxu0
      %v6777 = vadd.f32 0.0, %v6776
      %v6778 = vpop.f32.mrb[0].mxu0
      %v6779 = vpop.f32.mrb[0].mxu0
      %v6780 = vadd.f32 0.0, %v6779
      %v6781 = vpop.f32.mrb[0].mxu0
      %6782 = vmatprep.mubr.bf16.mxu0 0
      %6783 = vmatmul.mubr.bf16.gmra.mrb[0].mxu0 %v6452
      %v6784 = vpop.f32.mrb[0].mxu0
      %v6785 = vadd.f32 0.0, %v6784
      %v6786 = vpop.f32.mrb[0].mxu0
      %v6787 = vpop.f32.mrb[0].mxu0
      %v6788 = vadd.f32 0.0, %v6787
      %v6789 = vpop.f32.mrb[0].mxu0
      %6790 = vmatprep.mubr.bf16.mxu0 0
      %6791 = vmatmul.mubr.bf16.gmra.mrb[0].mxu0 %v6455
      %v6792 = vpop.f32.mrb[0].mxu0
      %v6793 = vadd.f32 0.0, %v6792
      %v6794 = vpop.f32.mrb[0].mxu0
      %v6795 = vpop.f32.mrb[0].mxu0
      %v6796 = vadd.f32 0.0, %v6795
      %v6797 = vpop.f32.mrb[0].mxu0
      %6798 = vmatprep.mubr.bf16.mxu0 0
      %6799 = vmatmul.mubr.bf16.gmra.mrb[0].mxu0 %v6458
      %v6800 = vpop.f32.mrb[0].mxu0
      %v6801 = vadd.f32 0.0, %v6800
      %v6802 = vpop.f32.mrb[0].mxu0
      %v6803 = vpop.f32.mrb[0].mxu0
      %v6804 = vadd.f32 0.0, %v6803
      %v6805 = vpop.f32.mrb[0].mxu0
      %6806 = vmatprep.mubr.bf16.mxu0 0
      %6807 = vmatmul.mubr.bf16.gmra.mrb[0].mxu0 %v6667
      %v6808 = vpop.f32.mrb[0].mxu0
      %v6809 = vadd.f32 0.0, %v6808
      %v6810 = vpop.f32.mrb[0].mxu0
      %v6811 = vpop.f32.mrb[0].mxu0
      %v6812 = vadd.f32 0.0, %v6811
      %v6813 = vpop.f32.mrb[0].mxu0
      %6814 = vmatprep.mubr.bf16.mxu0 0
      %6815 = vmatmul.mubr.bf16.gmra.mrb[0].mxu0 %v6670
      %v6816 = vpop.f32.mrb[0].mxu0
      %v6817 = vadd.f32 0.0, %v6816
      %v6818 = vpop.f32.mrb[0].mxu0
      %v6819 = vpop.f32.mrb[0].mxu0
      %v6820 = vadd.f32 0.0, %v6819
      %v6821 = vpop.f32.mrb[0].mxu0
      %6822 = vmatprep.mubr.bf16.mxu0 0
      %6823 = vmatmul.mubr.bf16.gmra.mrb[0].mxu0 %v6673
      %v6824 = vpop.f32.mrb[0].mxu0
      %v6825 = vadd.f32 0.0, %v6824
      %v6826 = vpop.f32.mrb[0].mxu0
      %v6827 = vpop.f32.mrb[0].mxu0
      %v6828 = vpop.f32.mrb[0].mxu0
      %6829 = vdwg.mxu0
      %v6830 = vadd.f32 %v6621, %v6713
      %v6831 = vadd.f32 %v6622, %v6716
      %v6832 = vadd.f32 %v6623, %v6721
      %v6833 = vadd.f32 %v6624, %v6724
      %v6834 = vadd.f32 %v6625, %v6729
      %v6835 = vadd.f32 %v6626, %v6732
      %v6836 = vadd.f32 %v6627, %v6737
      %v6837 = vadd.f32 %v6628, %v6740
      %v6838 = vadd.f32 %v6629, %v6745
      %v6839 = vadd.f32 %v6630, %v6748
      %v6840 = vadd.f32 %v6631, %v6753
      %v6841 = vadd.f32 %v6632, %v6756
      %v6842 = vadd.f32 %v6633, %v6761
      %v6843 = vadd.f32 %v6634, %v6764
      %v6844 = vadd.f32 %v6635, %v6769
      %v6845 = vadd.f32 %v6636, %v6772
      %v6846 = vadd.f32 %v6637, %v6777
      %v6847 = vadd.f32 %v6638, %v6780
      %v6848 = vadd.f32 %v6639, %v6785
      %v6849 = vadd.f32 %v6640, %v6788
      %v6850 = vadd.f32 %v6641, %v6793
      %v6851 = vadd.f32 %v6642, %v6796
      %v6852 = vadd.f32 %v6643, %v6801
      %v6853 = vadd.f32 %v6644, %v6804
      %v6854 = vadd.f32 %v6645, %v6809
      %v6855 = vadd.f32 %v6646, %v6812
      %v6856 = vadd.f32 %v6647, %v6817
      %v6857 = vadd.f32 %v6648, %v6820
      %v6858 = vadd.f32 %v6649, %v6825
      %s6859 = scalar_lea.vmem %s10, 32
      %v6860 = vld [vmem:[%s6859] sm:$0xf]
      %v6861 = vld [vmem:[%s6859 + $0x4] sm:$0x3]
      %vm6862 = vsmask.f32 6400
      %v6863 = vrot.slane %v5865, 1
      %v6864 = vrot.slane %v5861, 2
      %v6865 = vor.u32 %v6863, %v6864
      %v6866 = vrot.slane %v5873, 1
      %v6867 = vrot.slane %v5869, 2
      %v6868 = vor.u32 %v6866, %v6867
      %v6869 = vsel %vm6862, %v6865, %v6868
      %v6870 = vrot.slane %v5881, 1
      %v6871 = vrot.slane %v5877, 2
      %v6872 = vor.u32 %v6870, %v6871
      %v6873 = vsel %vm6862, %v6868, %v6872
      %v6874 = vrot.slane %v5889, 1
      %v6875 = vrot.slane %v5885, 2
      %v6876 = vor.u32 %v6874, %v6875
      %v6877 = vsel %vm6862, %v6872, %v6876
      %v6878 = vrot.slane %v5897, 1
      %v6879 = vrot.slane %v5893, 2
      %v6880 = vor.u32 %v6878, %v6879
      %v6881 = vsel %vm6862, %v6876, %v6880
      %v6882 = vrot.slane %v5905, 1
      %v6883 = vrot.slane %v5901, 2
      %v6884 = vor.u32 %v6882, %v6883
      %v6885 = vsel %vm6862, %v6880, %v6884
      %v6886 = vrot.slane %v5913, 1
      %v6887 = vrot.slane %v5909, 2
      %v6888 = vor.u32 %v6886, %v6887
      %v6889 = vsel %vm6862, %v6884, %v6888
      %v6890 = vrot.slane %v5921, 1
      %v6891 = vrot.slane %v5917, 2
      %v6892 = vor.u32 %v6890, %v6891
      %v6893 = vsel %vm6862, %v6888, %v6892
      %v6894 = vrot.slane %v5929, 1
      %v6895 = vrot.slane %v5925, 2
      %v6896 = vor.u32 %v6894, %v6895
      %v6897 = vsel %vm6862, %v6892, %v6896
      %v6898 = vrot.slane %v5937, 1
      %v6899 = vrot.slane %v5933, 2
      %v6900 = vor.u32 %v6898, %v6899
      %v6901 = vsel %vm6862, %v6896, %v6900
      %v6902 = vrot.slane %v5945, 1
      %v6903 = vrot.slane %v5941, 2
      %v6904 = vor.u32 %v6902, %v6903
      %v6905 = vsel %vm6862, %v6900, %v6904
      %v6906 = vrot.slane %v5953, 1
      %v6907 = vrot.slane %v5949, 2
      %v6908 = vor.u32 %v6906, %v6907
      %v6909 = vsel %vm6862, %v6904, %v6908
      %v6910 = vrot.slane %v5961, 1
      %v6911 = vrot.slane %v5957, 2
      %v6912 = vor.u32 %v6910, %v6911
      %v6913 = vsel %vm6862, %v6908, %v6912
      %v6915 = vshrl.u32 %v6650, 16
      %v6917 = vrot.slane %v6915, 1
      %v6918 = vshll.u32 %v6650, 16
      %v6920 = vrot.slane %v6918, 2
      %v6921 = vor.u32 %v6917, %v6920
      %v6922 = vsel %vm6862, %v6912, %v6921
      %v6924 = vshrl.u32 %v6651, 16
      %v6926 = vrot.slane %v6924, 1
      %v6927 = vshll.u32 %v6651, 16
      %v6929 = vrot.slane %v6927, 2
      %v6930 = vor.u32 %v6926, %v6929
      %v6931 = vsel %vm6862, %v6921, %v6930
      %v6934 = vunpack.c.l.b16 %v6860
      %v6935 = vunpack.c.l.b16 %v6861
      %v6936 = vpack.c.b16 %v6935, %v6934
      %v6938 = vsel %vm5977, %v6869, 0
      %v6941 = vsel %vm5977, %v6873, 0
      %v6944 = vsel %vm5977, %v6877, 0
      %v6947 = vsel %vm5977, %v6881, 0
      %v6950 = vsel %vm5977, %v6885, 0
      %v6953 = vsel %vm5977, %v6889, 0
      %v6956 = vsel %vm5977, %v6893, 0
      %v6959 = vsel %vm5977, %v6897, 0
      %v6962 = vsel %vm5977, %v6901, 0
      %v6965 = vsel %vm5977, %v6905, 0
      %v6968 = vsel %vm5977, %v6909, 0
      %v6971 = vsel %vm5977, %v6913, 0
      %v6974 = vsel %vm5977, %v6922, 0
      %v6977 = vsel %vm5977, %v6931, 0
      %v6980 = vsel %vm5977, %v6930, 0
      %v6983 = vsel %vm6023, %v6936, 0
      %6985 = vmatprep.subr.bf16.mxu0 0
      %6986 = vmatpush1.bf16.msra.mxu0 %v6983
      %6987 = vmatprep.subr.bf16.mxu0 0
      %6988 = vmatpush1.bf16.msra.mxu0 0
      %6989 = vmatprep.subr.bf16.mxu0 0
      %6990 = vmatpush1.bf16.msra.mxu0 0
      %6991 = vmatprep.subr.bf16.mxu0 0
      %6992 = vmatpush1.bf16.msra.mxu0 0
      %6993 = vmatprep.subr.bf16.mxu0 0
      %6994 = vmatpush1.bf16.msra.mxu0 0
      %6995 = vmatprep.subr.bf16.mxu0 0
      %6996 = vmatpush1.bf16.msra.mxu0 0
      %6997 = vmatprep.subr.bf16.mxu0 0
      %6998 = vmatpush1.bf16.msra.mxu0 0
      %6999 = vmatprep.subr.bf16.mxu0 0
      %7000 = vmatpush1.bf16.msra.mxu0 0
      %7001 = vmatprep.subr.bf16.mxu0 0
      %7002 = vmatpush1.bf16.msra.mxu0 0
      %7003 = vmatprep.subr.bf16.mxu0 0
      %7004 = vmatpush1.bf16.msra.mxu0 0
      %7005 = vmatprep.subr.bf16.mxu0 0
      %7006 = vmatpush1.bf16.msra.mxu0 0
      %7007 = vmatprep.subr.bf16.mxu0 0
      %7008 = vmatpush1.bf16.msra.mxu0 0
      %7009 = vmatprep.subr.bf16.mxu0 0
      %7010 = vmatpush1.bf16.msra.mxu0 0
      %7011 = vmatprep.subr.bf16.mxu0 0
      %7012 = vmatpush1.bf16.msra.mxu0 0
      %7013 = vmatprep.subr.bf16.mxu0 0
      %7014 = vmatpush1.bf16.msra.mxu0 0
      %7015 = vmatprep.subr.bf16.mxu0 0
      %7016 = vmatpush1.bf16.msra.mxu0 0
      %7017 = vmatprep.mubr.bf16.mxu0 0
      %7018 = vmatmul.mubr.bf16.gmra.mrb[0].mxu0 %v6938
      %v7019 = vpop.f32.mrb[0].mxu0
      %v7020 = vadd.f32 0.0, %v7019
      %v7021 = vpop.f32.mrb[0].mxu0
      %v7022 = vpop.f32.mrb[0].mxu0
      %v7023 = vadd.f32 0.0, %v7022
      %v7024 = vpop.f32.mrb[0].mxu0
      %7025 = vmatprep.mubr.bf16.mxu0 0
      %7026 = vmatmul.mubr.bf16.gmra.mrb[0].mxu0 %v6941
      %v7027 = vpop.f32.mrb[0].mxu0
      %v7028 = vadd.f32 0.0, %v7027
      %v7029 = vpop.f32.mrb[0].mxu0
      %v7030 = vpop.f32.mrb[0].mxu0
      %v7031 = vadd.f32 0.0, %v7030
      %v7032 = vpop.f32.mrb[0].mxu0
      %7033 = vmatprep.mubr.bf16.mxu0 0
      %7034 = vmatmul.mubr.bf16.gmra.mrb[0].mxu0 %v6944
      %v7035 = vpop.f32.mrb[0].mxu0
      %v7036 = vadd.f32 0.0, %v7035
      %v7037 = vpop.f32.mrb[0].mxu0
      %v7038 = vpop.f32.mrb[0].mxu0
      %v7039 = vadd.f32 0.0, %v7038
      %v7040 = vpop.f32.mrb[0].mxu0
      %7041 = vmatprep.mubr.bf16.mxu0 0
      %7042 = vmatmul.mubr.bf16.gmra.mrb[0].mxu0 %v6947
      %v7043 = vpop.f32.mrb[0].mxu0
      %v7044 = vadd.f32 0.0, %v7043
      %v7045 = vpop.f32.mrb[0].mxu0
      %v7046 = vpop.f32.mrb[0].mxu0
      %v7047 = vadd.f32 0.0, %v7046
      %v7048 = vpop.f32.mrb[0].mxu0
      %7049 = vmatprep.mubr.bf16.mxu0 0
      %7050 = vmatmul.mubr.bf16.gmra.mrb[0].mxu0 %v6950
      %v7051 = vpop.f32.mrb[0].mxu0
      %v7052 = vadd.f32 0.0, %v7051
      %v7053 = vpop.f32.mrb[0].mxu0
      %v7054 = vpop.f32.mrb[0].mxu0
      %v7055 = vadd.f32 0.0, %v7054
      %v7056 = vpop.f32.mrb[0].mxu0
      %7057 = vmatprep.mubr.bf16.mxu0 0
      %7058 = vmatmul.mubr.bf16.gmra.mrb[0].mxu0 %v6953
      %v7059 = vpop.f32.mrb[0].mxu0
      %v7060 = vadd.f32 0.0, %v7059
      %v7061 = vpop.f32.mrb[0].mxu0
      %v7062 = vpop.f32.mrb[0].mxu0
      %v7063 = vadd.f32 0.0, %v7062
      %v7064 = vpop.f32.mrb[0].mxu0
      %7065 = vmatprep.mubr.bf16.mxu0 0
      %7066 = vmatmul.mubr.bf16.gmra.mrb[0].mxu0 %v6956
      %v7067 = vpop.f32.mrb[0].mxu0
      %v7068 = vadd.f32 0.0, %v7067
      %v7069 = vpop.f32.mrb[0].mxu0
      %v7070 = vpop.f32.mrb[0].mxu0
      %v7071 = vadd.f32 0.0, %v7070
      %v7072 = vpop.f32.mrb[0].mxu0
      %7073 = vmatprep.mubr.bf16.mxu0 0
      %7074 = vmatmul.mubr.bf16.gmra.mrb[0].mxu0 %v6959
      %v7075 = vpop.f32.mrb[0].mxu0
      %v7076 = vadd.f32 0.0, %v7075
      %v7077 = vpop.f32.mrb[0].mxu0
      %v7078 = vpop.f32.mrb[0].mxu0
      %v7079 = vadd.f32 0.0, %v7078
      %v7080 = vpop.f32.mrb[0].mxu0
      %7081 = vmatprep.mubr.bf16.mxu0 0
      %7082 = vmatmul.mubr.bf16.gmra.mrb[0].mxu0 %v6962
      %v7083 = vpop.f32.mrb[0].mxu0
      %v7084 = vadd.f32 0.0, %v7083
      %v7085 = vpop.f32.mrb[0].mxu0
      %v7086 = vpop.f32.mrb[0].mxu0
      %v7087 = vadd.f32 0.0, %v7086
      %v7088 = vpop.f32.mrb[0].mxu0
      %7089 = vmatprep.mubr.bf16.mxu0 0
      %7090 = vmatmul.mubr.bf16.gmra.mrb[0].mxu0 %v6965
      %v7091 = vpop.f32.mrb[0].mxu0
      %v7092 = vadd.f32 0.0, %v7091
      %v7093 = vpop.f32.mrb[0].mxu0
      %v7094 = vpop.f32.mrb[0].mxu0
      %v7095 = vadd.f32 0.0, %v7094
      %v7096 = vpop.f32.mrb[0].mxu0
      %7097 = vmatprep.mubr.bf16.mxu0 0
      %7098 = vmatmul.mubr.bf16.gmra.mrb[0].mxu0 %v6968
      %v7099 = vpop.f32.mrb[0].mxu0
      %v7100 = vadd.f32 0.0, %v7099
      %v7101 = vpop.f32.mrb[0].mxu0
      %v7102 = vpop.f32.mrb[0].mxu0
      %v7103 = vadd.f32 0.0, %v7102
      %v7104 = vpop.f32.mrb[0].mxu0
      %7105 = vmatprep.mubr.bf16.mxu0 0
      %7106 = vmatmul.mubr.bf16.gmra.mrb[0].mxu0 %v6971
      %v7107 = vpop.f32.mrb[0].mxu0
      %v7108 = vadd.f32 0.0, %v7107
      %v7109 = vpop.f32.mrb[0].mxu0
      %v7110 = vpop.f32.mrb[0].mxu0
      %v7111 = vadd.f32 0.0, %v7110
      %v7112 = vpop.f32.mrb[0].mxu0
      %7113 = vmatprep.mubr.bf16.mxu0 0
      %7114 = vmatmul.mubr.bf16.gmra.mrb[0].mxu0 %v6974
      %v7115 = vpop.f32.mrb[0].mxu0
      %v7116 = vadd.f32 0.0, %v7115
      %v7117 = vpop.f32.mrb[0].mxu0
      %v7118 = vpop.f32.mrb[0].mxu0
      %v7119 = vadd.f32 0.0, %v7118
      %v7120 = vpop.f32.mrb[0].mxu0
      %7121 = vmatprep.mubr.bf16.mxu0 0
      %7122 = vmatmul.mubr.bf16.gmra.mrb[0].mxu0 %v6977
      %v7123 = vpop.f32.mrb[0].mxu0
      %v7124 = vadd.f32 0.0, %v7123
      %v7125 = vpop.f32.mrb[0].mxu0
      %v7126 = vpop.f32.mrb[0].mxu0
      %v7127 = vadd.f32 0.0, %v7126
      %v7128 = vpop.f32.mrb[0].mxu0
      %7129 = vmatprep.mubr.bf16.mxu0 0
      %7130 = vmatmul.mubr.bf16.gmra.mrb[0].mxu0 %v6980
      %v7131 = vpop.f32.mrb[0].mxu0
      %v7132 = vadd.f32 0.0, %v7131
      %v7133 = vpop.f32.mrb[0].mxu0
      %v7134 = vpop.f32.mrb[0].mxu0
      %v7135 = vpop.f32.mrb[0].mxu0
      %7136 = vdwg.mxu0
      %v7137 = vadd.f32 %v6830, %v7020
      %v7138 = vadd.f32 %v6831, %v7023
      %v7139 = vadd.f32 %v6832, %v7028
      %v7140 = vadd.f32 %v6833, %v7031
      %v7141 = vadd.f32 %v6834, %v7036
      %v7142 = vadd.f32 %v6835, %v7039
      %v7143 = vadd.f32 %v6836, %v7044
      %v7144 = vadd.f32 %v6837, %v7047
      %v7145 = vadd.f32 %v6838, %v7052
      %v7146 = vadd.f32 %v6839, %v7055
      %v7147 = vadd.f32 %v6840, %v7060
      %v7148 = vadd.f32 %v6841, %v7063
      %v7149 = vadd.f32 %v6842, %v7068
      %v7150 = vadd.f32 %v6843, %v7071
      %v7151 = vadd.f32 %v6844, %v7076
      %v7152 = vadd.f32 %v6845, %v7079
      %v7153 = vadd.f32 %v6846, %v7084
      %v7154 = vadd.f32 %v6847, %v7087
      %v7155 = vadd.f32 %v6848, %v7092
      %v7156 = vadd.f32 %v6849, %v7095
      %v7157 = vadd.f32 %v6850, %v7100
      %v7158 = vadd.f32 %v6851, %v7103
      %v7159 = vadd.f32 %v6852, %v7108
      %v7160 = vadd.f32 %v6853, %v7111
      %v7161 = vadd.f32 %v6854, %v7116
      %v7162 = vadd.f32 %v6855, %v7119
      %v7163 = vadd.f32 %v6856, %v7124
      %v7164 = vadd.f32 %v6857, %v7127
      %v7165 = vadd.f32 %v6858, %v7132
      %v7166 = vpack.c.bf16 %v5830, %v5829
      %s7167 = scalar_lea.vmem %s10, 40
      %v7168 = vld [vmem:[%s7167] sm:$0xf]
      %v7169 = vld [vmem:[%s7167 + $0x4] sm:$0x3]
      %vm7171 = vcmask 1045504
      %v7172 = vrot.slane %v5834, 2
      %v7173 = vrot.slane %v5835, 2
      %v7174 = vsel %vm7171, %v7172, %v7173
      %v7175 = vrot.slane %v5836, 2
      %v7176 = vsel %vm7171, %v7173, %v7175
      %v7177 = vrot.slane %v5837, 2
      %v7178 = vsel %vm7171, %v7175, %v7177
      %v7179 = vrot.slane %v5838, 2
      %v7180 = vsel %vm7171, %v7177, %v7179
      %v7181 = vrot.slane %v5839, 2
      %v7182 = vsel %vm7171, %v7179, %v7181
      %v7183 = vrot.slane %v5840, 2
      %v7184 = vsel %vm7171, %v7181, %v7183
      %v7185 = vrot.slane %v5841, 2
      %v7186 = vsel %vm7171, %v7183, %v7185
      %v7187 = vrot.slane %v5842, 2
      %v7188 = vsel %vm7171, %v7185, %v7187
      %v7189 = vrot.slane %v5843, 2
      %v7190 = vsel %vm7171, %v7187, %v7189
      %v7191 = vrot.slane %v5844, 2
      %v7192 = vsel %vm7171, %v7189, %v7191
      %v7193 = vrot.slane %v5845, 2
      %v7194 = vsel %vm7171, %v7191, %v7193
      %v7195 = vrot.slane %v5846, 2
      %v7196 = vsel %vm7171, %v7193, %v7195
      %v7197 = vrot.slane %v6650, 2
      %v7198 = vsel %vm7171, %v7195, %v7197
      %v7199 = vrot.slane %v7166, 2
      %v7200 = vsel %vm7171, %v7197, %v7199
      %v7203 = vunpack.c.l.b16 %v7168
      %v7204 = vunpack.c.l.b16 %v7169
      %v7205 = vpack.c.b16 %v7204, %v7203
      %v7207 = vsel %vm5977, %v7174, 0
      %v7210 = vsel %vm5977, %v7176, 0
      %v7213 = vsel %vm5977, %v7178, 0
      %v7216 = vsel %vm5977, %v7180, 0
      %v7219 = vsel %vm5977, %v7182, 0
      %v7222 = vsel %vm5977, %v7184, 0
      %v7225 = vsel %vm5977, %v7186, 0
      %v7228 = vsel %vm5977, %v7188, 0
      %v7231 = vsel %vm5977, %v7190, 0
      %v7234 = vsel %vm5977, %v7192, 0
      %v7237 = vsel %vm5977, %v7194, 0
      %v7240 = vsel %vm5977, %v7196, 0
      %v7243 = vsel %vm5977, %v7198, 0
      %v7246 = vsel %vm5977, %v7200, 0
      %v7249 = vsel %vm5977, %v7199, 0
      %v7252 = vsel %vm6023, %v7205, 0
      %7254 = vmatprep.subr.bf16.mxu0 0
      %7255 = vmatpush1.bf16.msra.mxu0 %v7252
      %7256 = vmatprep.subr.bf16.mxu0 0
      %7257 = vmatpush1.bf16.msra.mxu0 0
      %7258 = vmatprep.subr.bf16.mxu0 0
      %7259 = vmatpush1.bf16.msra.mxu0 0
      %7260 = vmatprep.subr.bf16.mxu0 0
      %7261 = vmatpush1.bf16.msra.mxu0 0
      %7262 = vmatprep.subr.bf16.mxu0 0
      %7263 = vmatpush1.bf16.msra.mxu0 0
      %7264 = vmatprep.subr.bf16.mxu0 0
      %7265 = vmatpush1.bf16.msra.mxu0 0
      %7266 = vmatprep.subr.bf16.mxu0 0
      %7267 = vmatpush1.bf16.msra.mxu0 0
      %7268 = vmatprep.subr.bf16.mxu0 0
      %7269 = vmatpush1.bf16.msra.mxu0 0
      %7270 = vmatprep.subr.bf16.mxu0 0
      %7271 = vmatpush1.bf16.msra.mxu0 0
      %7272 = vmatprep.subr.bf16.mxu0 0
      %7273 = vmatpush1.bf16.msra.mxu0 0
      %7274 = vmatprep.subr.bf16.mxu0 0
      %7275 = vmatpush1.bf16.msra.mxu0 0
      %7276 = vmatprep.subr.bf16.mxu0 0
      %7277 = vmatpush1.bf16.msra.mxu0 0
      %7278 = vmatprep.subr.bf16.mxu0 0
      %7279 = vmatpush1.bf16.msra.mxu0 0
      %7280 = vmatprep.subr.bf16.mxu0 0
      %7281 = vmatpush1.bf16.msra.mxu0 0
      %7282 = vmatprep.subr.bf16.mxu0 0
      %7283 = vmatpush1.bf16.msra.mxu0 0
      %7284 = vmatprep.subr.bf16.mxu0 0
      %7285 = vmatpush1.bf16.msra.mxu0 0
      %7286 = vmatprep.mubr.bf16.mxu0 0
      %7287 = vmatmul.mubr.bf16.gmra.mrb[0].mxu0 %v7207
      %v7288 = vpop.f32.mrb[0].mxu0
      %v7289 = vadd.f32 0.0, %v7288
      %v7290 = vpop.f32.mrb[0].mxu0
      %v7291 = vpop.f32.mrb[0].mxu0
      %v7292 = vadd.f32 0.0, %v7291
      %v7293 = vpop.f32.mrb[0].mxu0
      %7294 = vmatprep.mubr.bf16.mxu0 0
      %7295 = vmatmul.mubr.bf16.gmra.mrb[0].mxu0 %v7210
      %v7296 = vpop.f32.mrb[0].mxu0
      %v7297 = vadd.f32 0.0, %v7296
      %v7298 = vpop.f32.mrb[0].mxu0
      %v7299 = vpop.f32.mrb[0].mxu0
      %v7300 = vadd.f32 0.0, %v7299
      %v7301 = vpop.f32.mrb[0].mxu0
      %7302 = vmatprep.mubr.bf16.mxu0 0
      %7303 = vmatmul.mubr.bf16.gmra.mrb[0].mxu0 %v7213
      %v7304 = vpop.f32.mrb[0].mxu0
      %v7305 = vadd.f32 0.0, %v7304
      %v7306 = vpop.f32.mrb[0].mxu0
      %v7307 = vpop.f32.mrb[0].mxu0
      %v7308 = vadd.f32 0.0, %v7307
      %v7309 = vpop.f32.mrb[0].mxu0
      %7310 = vmatprep.mubr.bf16.mxu0 0
      %7311 = vmatmul.mubr.bf16.gmra.mrb[0].mxu0 %v7216
      %v7312 = vpop.f32.mrb[0].mxu0
      %v7313 = vadd.f32 0.0, %v7312
      %v7314 = vpop.f32.mrb[0].mxu0
      %v7315 = vpop.f32.mrb[0].mxu0
      %v7316 = vadd.f32 0.0, %v7315
      %v7317 = vpop.f32.mrb[0].mxu0
      %7318 = vmatprep.mubr.bf16.mxu0 0
      %7319 = vmatmul.mubr.bf16.gmra.mrb[0].mxu0 %v7219
      %v7320 = vpop.f32.mrb[0].mxu0
      %v7321 = vadd.f32 0.0, %v7320
      %v7322 = vpop.f32.mrb[0].mxu0
      %v7323 = vpop.f32.mrb[0].mxu0
      %v7324 = vadd.f32 0.0, %v7323
      %v7325 = vpop.f32.mrb[0].mxu0
      %7326 = vmatprep.mubr.bf16.mxu0 0
      %7327 = vmatmul.mubr.bf16.gmra.mrb[0].mxu0 %v7222
      %v7328 = vpop.f32.mrb[0].mxu0
      %v7329 = vadd.f32 0.0, %v7328
      %v7330 = vpop.f32.mrb[0].mxu0
      %v7331 = vpop.f32.mrb[0].mxu0
      %v7332 = vadd.f32 0.0, %v7331
      %v7333 = vpop.f32.mrb[0].mxu0
      %7334 = vmatprep.mubr.bf16.mxu0 0
      %7335 = vmatmul.mubr.bf16.gmra.mrb[0].mxu0 %v7225
      %v7336 = vpop.f32.mrb[0].mxu0
      %v7337 = vadd.f32 0.0, %v7336
      %v7338 = vpop.f32.mrb[0].mxu0
      %v7339 = vpop.f32.mrb[0].mxu0
      %v7340 = vadd.f32 0.0, %v7339
      %v7341 = vpop.f32.mrb[0].mxu0
      %7342 = vmatprep.mubr.bf16.mxu0 0
      %7343 = vmatmul.mubr.bf16.gmra.mrb[0].mxu0 %v7228
      %v7344 = vpop.f32.mrb[0].mxu0
      %v7345 = vadd.f32 0.0, %v7344
      %v7346 = vpop.f32.mrb[0].mxu0
      %v7347 = vpop.f32.mrb[0].mxu0
      %v7348 = vadd.f32 0.0, %v7347
      %v7349 = vpop.f32.mrb[0].mxu0
      %7350 = vmatprep.mubr.bf16.mxu0 0
      %7351 = vmatmul.mubr.bf16.gmra.mrb[0].mxu0 %v7231
      %v7352 = vpop.f32.mrb[0].mxu0
      %v7353 = vadd.f32 0.0, %v7352
      %v7354 = vpop.f32.mrb[0].mxu0
      %v7355 = vpop.f32.mrb[0].mxu0
      %v7356 = vadd.f32 0.0, %v7355
      %v7357 = vpop.f32.mrb[0].mxu0
      %7358 = vmatprep.mubr.bf16.mxu0 0
      %7359 = vmatmul.mubr.bf16.gmra.mrb[0].mxu0 %v7234
      %v7360 = vpop.f32.mrb[0].mxu0
      %v7361 = vadd.f32 0.0, %v7360
      %v7362 = vpop.f32.mrb[0].mxu0
      %v7363 = vpop.f32.mrb[0].mxu0
      %v7364 = vadd.f32 0.0, %v7363
      %v7365 = vpop.f32.mrb[0].mxu0
      %7366 = vmatprep.mubr.bf16.mxu0 0
      %7367 = vmatmul.mubr.bf16.gmra.mrb[0].mxu0 %v7237
      %v7368 = vpop.f32.mrb[0].mxu0
      %v7369 = vadd.f32 0.0, %v7368
      %v7370 = vpop.f32.mrb[0].mxu0
      %v7371 = vpop.f32.mrb[0].mxu0
      %v7372 = vadd.f32 0.0, %v7371
      %v7373 = vpop.f32.mrb[0].mxu0
      %7374 = vmatprep.mubr.bf16.mxu0 0
      %7375 = vmatmul.mubr.bf16.gmra.mrb[0].mxu0 %v7240
      %v7376 = vpop.f32.mrb[0].mxu0
      %v7377 = vadd.f32 0.0, %v7376
      %v7378 = vpop.f32.mrb[0].mxu0
      %v7379 = vpop.f32.mrb[0].mxu0
      %v7380 = vadd.f32 0.0, %v7379
      %v7381 = vpop.f32.mrb[0].mxu0
      %7382 = vmatprep.mubr.bf16.mxu0 0
      %7383 = vmatmul.mubr.bf16.gmra.mrb[0].mxu0 %v7243
      %v7384 = vpop.f32.mrb[0].mxu0
      %v7385 = vadd.f32 0.0, %v7384
      %v7386 = vpop.f32.mrb[0].mxu0
      %v7387 = vpop.f32.mrb[0].mxu0
      %v7388 = vadd.f32 0.0, %v7387
      %v7389 = vpop.f32.mrb[0].mxu0
      %7390 = vmatprep.mubr.bf16.mxu0 0
      %7391 = vmatmul.mubr.bf16.gmra.mrb[0].mxu0 %v7246
      %v7392 = vpop.f32.mrb[0].mxu0
      %v7393 = vadd.f32 0.0, %v7392
      %v7394 = vpop.f32.mrb[0].mxu0
      %v7395 = vpop.f32.mrb[0].mxu0
      %v7396 = vadd.f32 0.0, %v7395
      %v7397 = vpop.f32.mrb[0].mxu0
      %7398 = vmatprep.mubr.bf16.mxu0 0
      %7399 = vmatmul.mubr.bf16.gmra.mrb[0].mxu0 %v7249
      %v7400 = vpop.f32.mrb[0].mxu0
      %v7401 = vadd.f32 0.0, %v7400
      %v7402 = vpop.f32.mrb[0].mxu0
      %v7403 = vpop.f32.mrb[0].mxu0
      %v7404 = vpop.f32.mrb[0].mxu0
      %7405 = vdwg.mxu0
      %v7406 = vadd.f32 %v7137, %v7289
      %v7407 = vadd.f32 %v7138, %v7292
      %v7408 = vadd.f32 %v7139, %v7297
      %v7409 = vadd.f32 %v7140, %v7300
      %v7410 = vadd.f32 %v7141, %v7305
      %v7411 = vadd.f32 %v7142, %v7308
      %v7412 = vadd.f32 %v7143, %v7313
      %v7413 = vadd.f32 %v7144, %v7316
      %v7414 = vadd.f32 %v7145, %v7321
      %v7415 = vadd.f32 %v7146, %v7324
      %v7416 = vadd.f32 %v7147, %v7329
      %v7417 = vadd.f32 %v7148, %v7332
      %v7418 = vadd.f32 %v7149, %v7337
      %v7419 = vadd.f32 %v7150, %v7340
      %v7420 = vadd.f32 %v7151, %v7345
      %v7421 = vadd.f32 %v7152, %v7348
      %v7422 = vadd.f32 %v7153, %v7353
      %v7423 = vadd.f32 %v7154, %v7356
      %v7424 = vadd.f32 %v7155, %v7361
      %v7425 = vadd.f32 %v7156, %v7364
      %v7426 = vadd.f32 %v7157, %v7369
      %v7427 = vadd.f32 %v7158, %v7372
      %v7428 = vadd.f32 %v7159, %v7377
      %v7429 = vadd.f32 %v7160, %v7380
      %v7430 = vadd.f32 %v7161, %v7385
      %v7431 = vadd.f32 %v7162, %v7388
      %v7432 = vadd.f32 %v7163, %v7393
      %v7433 = vadd.f32 %v7164, %v7396
      %v7434 = vadd.f32 %v7165, %v7401
      %v7435 = vpack.c.bf16 %v5832, %v5831
      %s7436 = scalar_lea.vmem %s10, 48
      %v7437 = vld [vmem:[%s7436] sm:$0xf]
      %v7438 = vld [vmem:[%s7436 + $0x4] sm:$0x3]
      %v7440 = vrot.slane %v7435, 2
      %v7441 = vsel %vm7171, %v7199, %v7440
      %v7444 = vunpack.c.l.b16 %v7437
      %v7445 = vunpack.c.l.b16 %v7438
      %v7446 = vpack.c.b16 %v7445, %v7444
      %v7448 = vsel %vm5977, %v7441, 0
      %v7451 = vsel %vm5977, %v7440, 0
      %v7454 = vsel %vm6023, %v7446, 0
      %7456 = vmatprep.subr.bf16.mxu0 0
      %7457 = vmatpush1.bf16.msra.mxu0 %v7454
      %7458 = vmatprep.subr.bf16.mxu0 0
      %7459 = vmatpush1.bf16.msra.mxu0 0
      %7460 = vmatprep.subr.bf16.mxu0 0
      %7461 = vmatpush1.bf16.msra.mxu0 0
      %7462 = vmatprep.subr.bf16.mxu0 0
      %7463 = vmatpush1.bf16.msra.mxu0 0
      %7464 = vmatprep.subr.bf16.mxu0 0
      %7465 = vmatpush1.bf16.msra.mxu0 0
      %7466 = vmatprep.subr.bf16.mxu0 0
      %7467 = vmatpush1.bf16.msra.mxu0 0
      %7468 = vmatprep.subr.bf16.mxu0 0
      %7469 = vmatpush1.bf16.msra.mxu0 0
      %7470 = vmatprep.subr.bf16.mxu0 0
      %7471 = vmatpush1.bf16.msra.mxu0 0
      %7472 = vmatprep.subr.bf16.mxu0 0
      %7473 = vmatpush1.bf16.msra.mxu0 0
      %7474 = vmatprep.subr.bf16.mxu0 0
      %7475 = vmatpush1.bf16.msra.mxu0 0
      %7476 = vmatprep.subr.bf16.mxu0 0
      %7477 = vmatpush1.bf16.msra.mxu0 0
      %7478 = vmatprep.subr.bf16.mxu0 0
      %7479 = vmatpush1.bf16.msra.mxu0 0
      %7480 = vmatprep.subr.bf16.mxu0 0
      %7481 = vmatpush1.bf16.msra.mxu0 0
      %7482 = vmatprep.subr.bf16.mxu0 0
      %7483 = vmatpush1.bf16.msra.mxu0 0
      %7484 = vmatprep.subr.bf16.mxu0 0
      %7485 = vmatpush1.bf16.msra.mxu0 0
      %7486 = vmatprep.subr.bf16.mxu0 0
      %7487 = vmatpush1.bf16.msra.mxu0 0
      %7488 = vmatprep.mubr.bf16.mxu0 0
      %7489 = vmatmul.mubr.bf16.gmra.mrb[0].mxu0 %v7210
      %v7490 = vpop.f32.mrb[0].mxu0
      %v7491 = vadd.f32 0.0, %v7490
      %v7492 = vpop.f32.mrb[0].mxu0
      %v7493 = vpop.f32.mrb[0].mxu0
      %v7494 = vadd.f32 0.0, %v7493
      %v7495 = vpop.f32.mrb[0].mxu0
      %7496 = vmatprep.mubr.bf16.mxu0 0
      %7497 = vmatmul.mubr.bf16.gmra.mrb[0].mxu0 %v7213
      %v7498 = vpop.f32.mrb[0].mxu0
      %v7499 = vadd.f32 0.0, %v7498
      %v7500 = vpop.f32.mrb[0].mxu0
      %v7501 = vpop.f32.mrb[0].mxu0
      %v7502 = vadd.f32 0.0, %v7501
      %v7503 = vpop.f32.mrb[0].mxu0
      %7504 = vmatprep.mubr.bf16.mxu0 0
      %7505 = vmatmul.mubr.bf16.gmra.mrb[0].mxu0 %v7216
      %v7506 = vpop.f32.mrb[0].mxu0
      %v7507 = vadd.f32 0.0, %v7506
      %v7508 = vpop.f32.mrb[0].mxu0
      %v7509 = vpop.f32.mrb[0].mxu0
      %v7510 = vadd.f32 0.0, %v7509
      %v7511 = vpop.f32.mrb[0].mxu0
      %7512 = vmatprep.mubr.bf16.mxu0 0
      %7513 = vmatmul.mubr.bf16.gmra.mrb[0].mxu0 %v7219
      %v7514 = vpop.f32.mrb[0].mxu0
      %v7515 = vadd.f32 0.0, %v7514
      %v7516 = vpop.f32.mrb[0].mxu0
      %v7517 = vpop.f32.mrb[0].mxu0
      %v7518 = vadd.f32 0.0, %v7517
      %v7519 = vpop.f32.mrb[0].mxu0
      %7520 = vmatprep.mubr.bf16.mxu0 0
      %7521 = vmatmul.mubr.bf16.gmra.mrb[0].mxu0 %v7222
      %v7522 = vpop.f32.mrb[0].mxu0
      %v7523 = vadd.f32 0.0, %v7522
      %v7524 = vpop.f32.mrb[0].mxu0
      %v7525 = vpop.f32.mrb[0].mxu0
      %v7526 = vadd.f32 0.0, %v7525
      %v7527 = vpop.f32.mrb[0].mxu0
      %7528 = vmatprep.mubr.bf16.mxu0 0
      %7529 = vmatmul.mubr.bf16.gmra.mrb[0].mxu0 %v7225
      %v7530 = vpop.f32.mrb[0].mxu0
      %v7531 = vadd.f32 0.0, %v7530
      %v7532 = vpop.f32.mrb[0].mxu0
      %v7533 = vpop.f32.mrb[0].mxu0
      %v7534 = vadd.f32 0.0, %v7533
      %v7535 = vpop.f32.mrb[0].mxu0
      %7536 = vmatprep.mubr.bf16.mxu0 0
      %7537 = vmatmul.mubr.bf16.gmra.mrb[0].mxu0 %v7228
      %v7538 = vpop.f32.mrb[0].mxu0
      %v7539 = vadd.f32 0.0, %v7538
      %v7540 = vpop.f32.mrb[0].mxu0
      %v7541 = vpop.f32.mrb[0].mxu0
      %v7542 = vadd.f32 0.0, %v7541
      %v7543 = vpop.f32.mrb[0].mxu0
      %7544 = vmatprep.mubr.bf16.mxu0 0
      %7545 = vmatmul.mubr.bf16.gmra.mrb[0].mxu0 %v7231
      %v7546 = vpop.f32.mrb[0].mxu0
      %v7547 = vadd.f32 0.0, %v7546
      %v7548 = vpop.f32.mrb[0].mxu0
      %v7549 = vpop.f32.mrb[0].mxu0
      %v7550 = vadd.f32 0.0, %v7549
      %v7551 = vpop.f32.mrb[0].mxu0
      %7552 = vmatprep.mubr.bf16.mxu0 0
      %7553 = vmatmul.mubr.bf16.gmra.mrb[0].mxu0 %v7234
      %v7554 = vpop.f32.mrb[0].mxu0
      %v7555 = vadd.f32 0.0, %v7554
      %v7556 = vpop.f32.mrb[0].mxu0
      %v7557 = vpop.f32.mrb[0].mxu0
      %v7558 = vadd.f32 0.0, %v7557
      %v7559 = vpop.f32.mrb[0].mxu0
      %7560 = vmatprep.mubr.bf16.mxu0 0
      %7561 = vmatmul.mubr.bf16.gmra.mrb[0].mxu0 %v7237
      %v7562 = vpop.f32.mrb[0].mxu0
      %v7563 = vadd.f32 0.0, %v7562
      %v7564 = vpop.f32.mrb[0].mxu0
      %v7565 = vpop.f32.mrb[0].mxu0
      %v7566 = vadd.f32 0.0, %v7565
      %v7567 = vpop.f32.mrb[0].mxu0
      %7568 = vmatprep.mubr.bf16.mxu0 0
      %7569 = vmatmul.mubr.bf16.gmra.mrb[0].mxu0 %v7240
      %v7570 = vpop.f32.mrb[0].mxu0
      %v7571 = vadd.f32 0.0, %v7570
      %v7572 = vpop.f32.mrb[0].mxu0
      %v7573 = vpop.f32.mrb[0].mxu0
      %v7574 = vadd.f32 0.0, %v7573
      %v7575 = vpop.f32.mrb[0].mxu0
      %7576 = vmatprep.mubr.bf16.mxu0 0
      %7577 = vmatmul.mubr.bf16.gmra.mrb[0].mxu0 %v7243
      %v7578 = vpop.f32.mrb[0].mxu0
      %v7579 = vadd.f32 0.0, %v7578
      %v7580 = vpop.f32.mrb[0].mxu0
      %v7581 = vpop.f32.mrb[0].mxu0
      %v7582 = vadd.f32 0.0, %v7581
      %v7583 = vpop.f32.mrb[0].mxu0
      %7584 = vmatprep.mubr.bf16.mxu0 0
      %7585 = vmatmul.mubr.bf16.gmra.mrb[0].mxu0 %v7246
      %v7586 = vpop.f32.mrb[0].mxu0
      %v7587 = vadd.f32 0.0, %v7586
      %v7588 = vpop.f32.mrb[0].mxu0
      %v7589 = vpop.f32.mrb[0].mxu0
      %v7590 = vadd.f32 0.0, %v7589
      %v7591 = vpop.f32.mrb[0].mxu0
      %7592 = vmatprep.mubr.bf16.mxu0 0
      %7593 = vmatmul.mubr.bf16.gmra.mrb[0].mxu0 %v7448
      %v7594 = vpop.f32.mrb[0].mxu0
      %v7595 = vadd.f32 0.0, %v7594
      %v7596 = vpop.f32.mrb[0].mxu0
      %v7597 = vpop.f32.mrb[0].mxu0
      %v7598 = vadd.f32 0.0, %v7597
      %v7599 = vpop.f32.mrb[0].mxu0
      %7600 = vmatprep.mubr.bf16.mxu0 0
      %7601 = vmatmul.mubr.bf16.gmra.mrb[0].mxu0 %v7451
      %v7602 = vpop.f32.mrb[0].mxu0
      %v7603 = vadd.f32 0.0, %v7602
      %v7604 = vpop.f32.mrb[0].mxu0
      %v7605 = vpop.f32.mrb[0].mxu0
      %v7606 = vpop.f32.mrb[0].mxu0
      %7607 = vdwg.mxu0
      %v7608 = vadd.f32 %v7406, %v7491
      %v7609 = vadd.f32 %v7407, %v7494
      %v7610 = vadd.f32 %v7408, %v7499
      %v7611 = vadd.f32 %v7409, %v7502
      %v7612 = vadd.f32 %v7410, %v7507
      %v7613 = vadd.f32 %v7411, %v7510
      %v7614 = vadd.f32 %v7412, %v7515
      %v7615 = vadd.f32 %v7413, %v7518
      %v7616 = vadd.f32 %v7414, %v7523
      %v7617 = vadd.f32 %v7415, %v7526
      %v7618 = vadd.f32 %v7416, %v7531
      %v7619 = vadd.f32 %v7417, %v7534
      %v7620 = vadd.f32 %v7418, %v7539
      %v7621 = vadd.f32 %v7419, %v7542
      %v7622 = vadd.f32 %v7420, %v7547
      %v7623 = vadd.f32 %v7421, %v7550
      %v7624 = vadd.f32 %v7422, %v7555
      %v7625 = vadd.f32 %v7423, %v7558
      %v7626 = vadd.f32 %v7424, %v7563
      %v7627 = vadd.f32 %v7425, %v7566
      %v7628 = vadd.f32 %v7426, %v7571
      %v7629 = vadd.f32 %v7427, %v7574
      %v7630 = vadd.f32 %v7428, %v7579
      %v7631 = vadd.f32 %v7429, %v7582
      %v7632 = vadd.f32 %v7430, %v7587
      %v7633 = vadd.f32 %v7431, %v7590
      %v7634 = vadd.f32 %v7432, %v7595
      %v7635 = vadd.f32 %v7433, %v7598
      %v7636 = vadd.f32 %v7434, %v7603
      %s7637 = scalar_lea.vmem %s10, 56
      %v7638 = vld [vmem:[%s7637] sm:$0xf]
      %v7639 = vld [vmem:[%s7637 + $0x4] sm:$0x3]
      %vm7640 = vsmask.f32 5376
      %v7641 = vrot.slane %v5873, 2
      %v7642 = vrot.slane %v5869, 3
      %v7643 = vor.u32 %v7641, %v7642
      %v7644 = vrot.slane %v5881, 2
      %v7645 = vrot.slane %v5877, 3
      %v7646 = vor.u32 %v7644, %v7645
      %v7647 = vsel %vm7640, %v7643, %v7646
      %v7648 = vrot.slane %v5889, 2
      %v7649 = vrot.slane %v5885, 3
      %v7650 = vor.u32 %v7648, %v7649
      %v7651 = vsel %vm7640, %v7646, %v7650
      %v7652 = vrot.slane %v5897, 2
      %v7653 = vrot.slane %v5893, 3
      %v7654 = vor.u32 %v7652, %v7653
      %v7655 = vsel %vm7640, %v7650, %v7654
      %v7656 = vrot.slane %v5905, 2
      %v7657 = vrot.slane %v5901, 3
      %v7658 = vor.u32 %v7656, %v7657
      %v7659 = vsel %vm7640, %v7654, %v7658
      %v7660 = vrot.slane %v5913, 2
      %v7661 = vrot.slane %v5909, 3
      %v7662 = vor.u32 %v7660, %v7661
      %v7663 = vsel %vm7640, %v7658, %v7662
      %v7664 = vrot.slane %v5921, 2
      %v7665 = vrot.slane %v5917, 3
      %v7666 = vor.u32 %v7664, %v7665
      %v7667 = vsel %vm7640, %v7662, %v7666
      %v7668 = vrot.slane %v5929, 2
      %v7669 = vrot.slane %v5925, 3
      %v7670 = vor.u32 %v7668, %v7669
      %v7671 = vsel %vm7640, %v7666, %v7670
      %v7672 = vrot.slane %v5937, 2
      %v7673 = vrot.slane %v5933, 3
      %v7674 = vor.u32 %v7672, %v7673
      %v7675 = vsel %vm7640, %v7670, %v7674
      %v7676 = vrot.slane %v5945, 2
      %v7677 = vrot.slane %v5941, 3
      %v7678 = vor.u32 %v7676, %v7677
      %v7679 = vsel %vm7640, %v7674, %v7678
      %v7680 = vrot.slane %v5953, 2
      %v7681 = vrot.slane %v5949, 3
      %v7682 = vor.u32 %v7680, %v7681
      %v7683 = vsel %vm7640, %v7678, %v7682
      %v7684 = vrot.slane %v5961, 2
      %v7685 = vrot.slane %v5957, 3
      %v7686 = vor.u32 %v7684, %v7685
      %v7687 = vsel %vm7640, %v7682, %v7686
      %v7688 = vrot.slane %v6915, 2
      %v7689 = vrot.slane %v6918, 3
      %v7690 = vor.u32 %v7688, %v7689
      %v7691 = vsel %vm7640, %v7686, %v7690
      %v7693 = vshrl.u32 %v7166, 16
      %v7695 = vrot.slane %v7693, 2
      %v7696 = vshll.u32 %v7166, 16
      %v7698 = vrot.slane %v7696, 3
      %v7699 = vor.u32 %v7695, %v7698
      %v7700 = vsel %vm7640, %v7690, %v7699
      %v7702 = vshrl.u32 %v7435, 16
      %v7704 = vrot.slane %v7702, 2
      %v7705 = vshll.u32 %v7435, 16
      %v7707 = vrot.slane %v7705, 3
      %v7708 = vor.u32 %v7704, %v7707
      %v7709 = vsel %vm7640, %v7699, %v7708
      %v7712 = vunpack.c.l.b16 %v7638
      %v7713 = vunpack.c.l.b16 %v7639
      %v7714 = vpack.c.b16 %v7713, %v7712
      %v7716 = vsel %vm5977, %v7647, 0
      %v7719 = vsel %vm5977, %v7651, 0
      %v7722 = vsel %vm5977, %v7655, 0
      %v7725 = vsel %vm5977, %v7659, 0
      %v7728 = vsel %vm5977, %v7663, 0
      %v7731 = vsel %vm5977, %v7667, 0
      %v7734 = vsel %vm5977, %v7671, 0
      %v7737 = vsel %vm5977, %v7675, 0
      %v7740 = vsel %vm5977, %v7679, 0
      %v7743 = vsel %vm5977, %v7683, 0
      %v7746 = vsel %vm5977, %v7687, 0
      %v7749 = vsel %vm5977, %v7691, 0
      %v7752 = vsel %vm5977, %v7700, 0
      %v7755 = vsel %vm5977, %v7709, 0
      %v7758 = vsel %vm5977, %v7708, 0
      %v7761 = vsel %vm6023, %v7714, 0
      %7763 = vmatprep.subr.bf16.mxu0 0
      %7764 = vmatpush1.bf16.msra.mxu0 %v7761
      %7765 = vmatprep.subr.bf16.mxu0 0
      %7766 = vmatpush1.bf16.msra.mxu0 0
      %7767 = vmatprep.subr.bf16.mxu0 0
      %7768 = vmatpush1.bf16.msra.mxu0 0
      %7769 = vmatprep.subr.bf16.mxu0 0
      %7770 = vmatpush1.bf16.msra.mxu0 0
      %7771 = vmatprep.subr.bf16.mxu0 0
      %7772 = vmatpush1.bf16.msra.mxu0 0
      %7773 = vmatprep.subr.bf16.mxu0 0
      %7774 = vmatpush1.bf16.msra.mxu0 0
      %7775 = vmatprep.subr.bf16.mxu0 0
      %7776 = vmatpush1.bf16.msra.mxu0 0
      %7777 = vmatprep.subr.bf16.mxu0 0
      %7778 = vmatpush1.bf16.msra.mxu0 0
      %7779 = vmatprep.subr.bf16.mxu0 0
      %7780 = vmatpush1.bf16.msra.mxu0 0
      %7781 = vmatprep.subr.bf16.mxu0 0
      %7782 = vmatpush1.bf16.msra.mxu0 0
      %7783 = vmatprep.subr.bf16.mxu0 0
      %7784 = vmatpush1.bf16.msra.mxu0 0
      %7785 = vmatprep.subr.bf16.mxu0 0
      %7786 = vmatpush1.bf16.msra.mxu0 0
      %7787 = vmatprep.subr.bf16.mxu0 0
      %7788 = vmatpush1.bf16.msra.mxu0 0
      %7789 = vmatprep.subr.bf16.mxu0 0
      %7790 = vmatpush1.bf16.msra.mxu0 0
      %7791 = vmatprep.subr.bf16.mxu0 0
      %7792 = vmatpush1.bf16.msra.mxu0 0
      %7793 = vmatprep.subr.bf16.mxu0 0
      %7794 = vmatpush1.bf16.msra.mxu0 0
      %7795 = vmatprep.mubr.bf16.mxu0 0
      %7796 = vmatmul.mubr.bf16.gmra.mrb[0].mxu0 %v7716
      %v7797 = vpop.f32.mrb[0].mxu0
      %v7798 = vadd.f32 0.0, %v7797
      %v7799 = vpop.f32.mrb[0].mxu0
      %v7800 = vpop.f32.mrb[0].mxu0
      %v7801 = vadd.f32 0.0, %v7800
      %v7802 = vpop.f32.mrb[0].mxu0
      %7803 = vmatprep.mubr.bf16.mxu0 0
      %7804 = vmatmul.mubr.bf16.gmra.mrb[0].mxu0 %v7719
      %v7805 = vpop.f32.mrb[0].mxu0
      %v7806 = vadd.f32 0.0, %v7805
      %v7807 = vpop.f32.mrb[0].mxu0
      %v7808 = vpop.f32.mrb[0].mxu0
      %v7809 = vadd.f32 0.0, %v7808
      %v7810 = vpop.f32.mrb[0].mxu0
      %7811 = vmatprep.mubr.bf16.mxu0 0
      %7812 = vmatmul.mubr.bf16.gmra.mrb[0].mxu0 %v7722
      %v7813 = vpop.f32.mrb[0].mxu0
      %v7814 = vadd.f32 0.0, %v7813
      %v7815 = vpop.f32.mrb[0].mxu0
      %v7816 = vpop.f32.mrb[0].mxu0
      %v7817 = vadd.f32 0.0, %v7816
      %v7818 = vpop.f32.mrb[0].mxu0
      %7819 = vmatprep.mubr.bf16.mxu0 0
      %7820 = vmatmul.mubr.bf16.gmra.mrb[0].mxu0 %v7725
      %v7821 = vpop.f32.mrb[0].mxu0
      %v7822 = vadd.f32 0.0, %v7821
      %v7823 = vpop.f32.mrb[0].mxu0
      %v7824 = vpop.f32.mrb[0].mxu0
      %v7825 = vadd.f32 0.0, %v7824
      %v7826 = vpop.f32.mrb[0].mxu0
      %7827 = vmatprep.mubr.bf16.mxu0 0
      %7828 = vmatmul.mubr.bf16.gmra.mrb[0].mxu0 %v7728
      %v7829 = vpop.f32.mrb[0].mxu0
      %v7830 = vadd.f32 0.0, %v7829
      %v7831 = vpop.f32.mrb[0].mxu0
      %v7832 = vpop.f32.mrb[0].mxu0
      %v7833 = vadd.f32 0.0, %v7832
      %v7834 = vpop.f32.mrb[0].mxu0
      %7835 = vmatprep.mubr.bf16.mxu0 0
      %7836 = vmatmul.mubr.bf16.gmra.mrb[0].mxu0 %v7731
      %v7837 = vpop.f32.mrb[0].mxu0
      %v7838 = vadd.f32 0.0, %v7837
      %v7839 = vpop.f32.mrb[0].mxu0
      %v7840 = vpop.f32.mrb[0].mxu0
      %v7841 = vadd.f32 0.0, %v7840
      %v7842 = vpop.f32.mrb[0].mxu0
      %7843 = vmatprep.mubr.bf16.mxu0 0
      %7844 = vmatmul.mubr.bf16.gmra.mrb[0].mxu0 %v7734
      %v7845 = vpop.f32.mrb[0].mxu0
      %v7846 = vadd.f32 0.0, %v7845
      %v7847 = vpop.f32.mrb[0].mxu0
      %v7848 = vpop.f32.mrb[0].mxu0
      %v7849 = vadd.f32 0.0, %v7848
      %v7850 = vpop.f32.mrb[0].mxu0
      %7851 = vmatprep.mubr.bf16.mxu0 0
      %7852 = vmatmul.mubr.bf16.gmra.mrb[0].mxu0 %v7737
      %v7853 = vpop.f32.mrb[0].mxu0
      %v7854 = vadd.f32 0.0, %v7853
      %v7855 = vpop.f32.mrb[0].mxu0
      %v7856 = vpop.f32.mrb[0].mxu0
      %v7857 = vadd.f32 0.0, %v7856
      %v7858 = vpop.f32.mrb[0].mxu0
      %7859 = vmatprep.mubr.bf16.mxu0 0
      %7860 = vmatmul.mubr.bf16.gmra.mrb[0].mxu0 %v7740
      %v7861 = vpop.f32.mrb[0].mxu0
      %v7862 = vadd.f32 0.0, %v7861
      %v7863 = vpop.f32.mrb[0].mxu0
      %v7864 = vpop.f32.mrb[0].mxu0
      %v7865 = vadd.f32 0.0, %v7864
      %v7866 = vpop.f32.mrb[0].mxu0
      %7867 = vmatprep.mubr.bf16.mxu0 0
      %7868 = vmatmul.mubr.bf16.gmra.mrb[0].mxu0 %v7743
      %v7869 = vpop.f32.mrb[0].mxu0
      %v7870 = vadd.f32 0.0, %v7869
      %v7871 = vpop.f32.mrb[0].mxu0
      %v7872 = vpop.f32.mrb[0].mxu0
      %v7873 = vadd.f32 0.0, %v7872
      %v7874 = vpop.f32.mrb[0].mxu0
      %7875 = vmatprep.mubr.bf16.mxu0 0
      %7876 = vmatmul.mubr.bf16.gmra.mrb[0].mxu0 %v7746
      %v7877 = vpop.f32.mrb[0].mxu0
      %v7878 = vadd.f32 0.0, %v7877
      %v7879 = vpop.f32.mrb[0].mxu0
      %v7880 = vpop.f32.mrb[0].mxu0
      %v7881 = vadd.f32 0.0, %v7880
      %v7882 = vpop.f32.mrb[0].mxu0
      %7883 = vmatprep.mubr.bf16.mxu0 0
      %7884 = vmatmul.mubr.bf16.gmra.mrb[0].mxu0 %v7749
      %v7885 = vpop.f32.mrb[0].mxu0
      %v7886 = vadd.f32 0.0, %v7885
      %v7887 = vpop.f32.mrb[0].mxu0
      %v7888 = vpop.f32.mrb[0].mxu0
      %v7889 = vadd.f32 0.0, %v7888
      %v7890 = vpop.f32.mrb[0].mxu0
      %7891 = vmatprep.mubr.bf16.mxu0 0
      %7892 = vmatmul.mubr.bf16.gmra.mrb[0].mxu0 %v7752
      %v7893 = vpop.f32.mrb[0].mxu0
      %v7894 = vadd.f32 0.0, %v7893
      %v7895 = vpop.f32.mrb[0].mxu0
      %v7896 = vpop.f32.mrb[0].mxu0
      %v7897 = vadd.f32 0.0, %v7896
      %v7898 = vpop.f32.mrb[0].mxu0
      %7899 = vmatprep.mubr.bf16.mxu0 0
      %7900 = vmatmul.mubr.bf16.gmra.mrb[0].mxu0 %v7755
      %v7901 = vpop.f32.mrb[0].mxu0
      %v7902 = vadd.f32 0.0, %v7901
      %v7903 = vpop.f32.mrb[0].mxu0
      %v7904 = vpop.f32.mrb[0].mxu0
      %v7905 = vadd.f32 0.0, %v7904
      %v7906 = vpop.f32.mrb[0].mxu0
      %7907 = vmatprep.mubr.bf16.mxu0 0
      %7908 = vmatmul.mubr.bf16.gmra.mrb[0].mxu0 %v7758
      %v7909 = vpop.f32.mrb[0].mxu0
      %v7910 = vadd.f32 0.0, %v7909
      %v7911 = vpop.f32.mrb[0].mxu0
      %v7912 = vpop.f32.mrb[0].mxu0
      %v7913 = vpop.f32.mrb[0].mxu0
      %7914 = vdwg.mxu0
      %v7915 = vadd.f32 %v7608, %v7798
      %v7916 = vadd.f32 %v7609, %v7801
      %v7917 = vadd.f32 %v7610, %v7806
      %v7918 = vadd.f32 %v7611, %v7809
      %v7919 = vadd.f32 %v7612, %v7814
      %v7920 = vadd.f32 %v7613, %v7817
      %v7921 = vadd.f32 %v7614, %v7822
      %v7922 = vadd.f32 %v7615, %v7825
      %v7923 = vadd.f32 %v7616, %v7830
      %v7924 = vadd.f32 %v7617, %v7833
      %v7925 = vadd.f32 %v7618, %v7838
      %v7926 = vadd.f32 %v7619, %v7841
      %v7927 = vadd.f32 %v7620, %v7846
      %v7928 = vadd.f32 %v7621, %v7849
      %v7929 = vadd.f32 %v7622, %v7854
      %v7930 = vadd.f32 %v7623, %v7857
      %v7931 = vadd.f32 %v7624, %v7862
      %v7932 = vadd.f32 %v7625, %v7865
      %v7933 = vadd.f32 %v7626, %v7870
      %v7934 = vadd.f32 %v7627, %v7873
      %v7935 = vadd.f32 %v7628, %v7878
      %v7936 = vadd.f32 %v7629, %v7881
      %v7937 = vadd.f32 %v7630, %v7886
      %v7938 = vadd.f32 %v7631, %v7889
      %v7939 = vadd.f32 %v7632, %v7894
      %v7940 = vadd.f32 %v7633, %v7897
      %v7941 = vadd.f32 %v7634, %v7902
      %v7942 = vadd.f32 %v7635, %v7905
      %v7943 = vadd.f32 %v7636, %v7910
      %s7944 = scalar_lea.vmem %s10, 64
      %v7945 = vld [vmem:[%s7944] sm:$0xf]
      %v7946 = vld [vmem:[%s7944 + $0x4] sm:$0x3]
      %vm7947 = vcmask 1044480
      %v7948 = vrot.slane %v5835, 3
      %v7949 = vrot.slane %v5836, 3
      %v7950 = vsel %vm7947, %v7948, %v7949
      %v7951 = vrot.slane %v5837, 3
      %v7952 = vsel %vm7947, %v7949, %v7951
      %v7953 = vrot.slane %v5838, 3
      %v7954 = vsel %vm7947, %v7951, %v7953
      %v7955 = vrot.slane %v5839, 3
      %v7956 = vsel %vm7947, %v7953, %v7955
      %v7957 = vrot.slane %v5840, 3
      %v7958 = vsel %vm7947, %v7955, %v7957
      %v7959 = vrot.slane %v5841, 3
      %v7960 = vsel %vm7947, %v7957, %v7959
      %v7961 = vrot.slane %v5842, 3
      %v7962 = vsel %vm7947, %v7959, %v7961
      %v7963 = vrot.slane %v5843, 3
      %v7964 = vsel %vm7947, %v7961, %v7963
      %v7965 = vrot.slane %v5844, 3
      %v7966 = vsel %vm7947, %v7963, %v7965
      %v7967 = vrot.slane %v5845, 3
      %v7968 = vsel %vm7947, %v7965, %v7967
      %v7969 = vrot.slane %v5846, 3
      %v7970 = vsel %vm7947, %v7967, %v7969
      %v7971 = vrot.slane %v6650, 3
      %v7972 = vsel %vm7947, %v7969, %v7971
      %v7973 = vrot.slane %v7166, 3
      %v7974 = vsel %vm7947, %v7971, %v7973
      %v7975 = vrot.slane %v7435, 3
      %v7976 = vsel %vm7947, %v7973, %v7975
      %v7979 = vunpack.c.l.b16 %v7945
      %v7980 = vunpack.c.l.b16 %v7946
      %v7981 = vpack.c.b16 %v7980, %v7979
      %v7983 = vsel %vm5977, %v7950, 0
      %v7986 = vsel %vm5977, %v7952, 0
      %v7989 = vsel %vm5977, %v7954, 0
      %v7992 = vsel %vm5977, %v7956, 0
      %v7995 = vsel %vm5977, %v7958, 0
      %v7998 = vsel %vm5977, %v7960, 0
      %v8001 = vsel %vm5977, %v7962, 0
      %v8004 = vsel %vm5977, %v7964, 0
      %v8007 = vsel %vm5977, %v7966, 0
      %v8010 = vsel %vm5977, %v7968, 0
      %v8013 = vsel %vm5977, %v7970, 0
      %v8016 = vsel %vm5977, %v7972, 0
      %v8019 = vsel %vm5977, %v7974, 0
      %v8022 = vsel %vm5977, %v7976, 0
      %v8025 = vsel %vm5977, %v7975, 0
      %v8028 = vsel %vm6023, %v7981, 0
      %8030 = vmatprep.subr.bf16.mxu0 0
      %8031 = vmatpush1.bf16.msra.mxu0 %v8028
      %8032 = vmatprep.subr.bf16.mxu0 0
      %8033 = vmatpush1.bf16.msra.mxu0 0
      %8034 = vmatprep.subr.bf16.mxu0 0
      %8035 = vmatpush1.bf16.msra.mxu0 0
      %8036 = vmatprep.subr.bf16.mxu0 0
      %8037 = vmatpush1.bf16.msra.mxu0 0
      %8038 = vmatprep.subr.bf16.mxu0 0
      %8039 = vmatpush1.bf16.msra.mxu0 0
      %8040 = vmatprep.subr.bf16.mxu0 0
      %8041 = vmatpush1.bf16.msra.mxu0 0
      %8042 = vmatprep.subr.bf16.mxu0 0
      %8043 = vmatpush1.bf16.msra.mxu0 0
      %8044 = vmatprep.subr.bf16.mxu0 0
      %8045 = vmatpush1.bf16.msra.mxu0 0
      %8046 = vmatprep.subr.bf16.mxu0 0
      %8047 = vmatpush1.bf16.msra.mxu0 0
      %8048 = vmatprep.subr.bf16.mxu0 0
      %8049 = vmatpush1.bf16.msra.mxu0 0
      %8050 = vmatprep.subr.bf16.mxu0 0
      %8051 = vmatpush1.bf16.msra.mxu0 0
      %8052 = vmatprep.subr.bf16.mxu0 0
      %8053 = vmatpush1.bf16.msra.mxu0 0
      %8054 = vmatprep.subr.bf16.mxu0 0
      %8055 = vmatpush1.bf16.msra.mxu0 0
      %8056 = vmatprep.subr.bf16.mxu0 0
      %8057 = vmatpush1.bf16.msra.mxu0 0
      %8058 = vmatprep.subr.bf16.mxu0 0
      %8059 = vmatpush1.bf16.msra.mxu0 0
      %8060 = vmatprep.subr.bf16.mxu0 0
      %8061 = vmatpush1.bf16.msra.mxu0 0
      %8062 = vmatprep.mubr.bf16.mxu0 0
      %8063 = vmatmul.mubr.bf16.gmra.mrb[0].mxu0 %v7983
      %v8064 = vpop.f32.mrb[0].mxu0
      %v8065 = vadd.f32 0.0, %v8064
      %v8066 = vpop.f32.mrb[0].mxu0
      %v8067 = vpop.f32.mrb[0].mxu0
      %v8068 = vadd.f32 0.0, %v8067
      %v8069 = vpop.f32.mrb[0].mxu0
      %8070 = vmatprep.mubr.bf16.mxu0 0
      %8071 = vmatmul.mubr.bf16.gmra.mrb[0].mxu0 %v7986
      %v8072 = vpop.f32.mrb[0].mxu0
      %v8073 = vadd.f32 0.0, %v8072
      %v8074 = vpop.f32.mrb[0].mxu0
      %v8075 = vpop.f32.mrb[0].mxu0
      %v8076 = vadd.f32 0.0, %v8075
      %v8077 = vpop.f32.mrb[0].mxu0
      %8078 = vmatprep.mubr.bf16.mxu0 0
      %8079 = vmatmul.mubr.bf16.gmra.mrb[0].mxu0 %v7989
      %v8080 = vpop.f32.mrb[0].mxu0
      %v8081 = vadd.f32 0.0, %v8080
      %v8082 = vpop.f32.mrb[0].mxu0
      %v8083 = vpop.f32.mrb[0].mxu0
      %v8084 = vadd.f32 0.0, %v8083
      %v8085 = vpop.f32.mrb[0].mxu0
      %8086 = vmatprep.mubr.bf16.mxu0 0
      %8087 = vmatmul.mubr.bf16.gmra.mrb[0].mxu0 %v7992
      %v8088 = vpop.f32.mrb[0].mxu0
      %v8089 = vadd.f32 0.0, %v8088
      %v8090 = vpop.f32.mrb[0].mxu0
      %v8091 = vpop.f32.mrb[0].mxu0
      %v8092 = vadd.f32 0.0, %v8091
      %v8093 = vpop.f32.mrb[0].mxu0
      %8094 = vmatprep.mubr.bf16.mxu0 0
      %8095 = vmatmul.mubr.bf16.gmra.mrb[0].mxu0 %v7995
      %v8096 = vpop.f32.mrb[0].mxu0
      %v8097 = vadd.f32 0.0, %v8096
      %v8098 = vpop.f32.mrb[0].mxu0
      %v8099 = vpop.f32.mrb[0].mxu0
      %v8100 = vadd.f32 0.0, %v8099
      %v8101 = vpop.f32.mrb[0].mxu0
      %8102 = vmatprep.mubr.bf16.mxu0 0
      %8103 = vmatmul.mubr.bf16.gmra.mrb[0].mxu0 %v7998
      %v8104 = vpop.f32.mrb[0].mxu0
      %v8105 = vadd.f32 0.0, %v8104
      %v8106 = vpop.f32.mrb[0].mxu0
      %v8107 = vpop.f32.mrb[0].mxu0
      %v8108 = vadd.f32 0.0, %v8107
      %v8109 = vpop.f32.mrb[0].mxu0
      %8110 = vmatprep.mubr.bf16.mxu0 0
      %8111 = vmatmul.mubr.bf16.gmra.mrb[0].mxu0 %v8001
      %v8112 = vpop.f32.mrb[0].mxu0
      %v8113 = vadd.f32 0.0, %v8112
      %v8114 = vpop.f32.mrb[0].mxu0
      %v8115 = vpop.f32.mrb[0].mxu0
      %v8116 = vadd.f32 0.0, %v8115
      %v8117 = vpop.f32.mrb[0].mxu0
      %8118 = vmatprep.mubr.bf16.mxu0 0
      %8119 = vmatmul.mubr.bf16.gmra.mrb[0].mxu0 %v8004
      %v8120 = vpop.f32.mrb[0].mxu0
      %v8121 = vadd.f32 0.0, %v8120
      %v8122 = vpop.f32.mrb[0].mxu0
      %v8123 = vpop.f32.mrb[0].mxu0
      %v8124 = vadd.f32 0.0, %v8123
      %v8125 = vpop.f32.mrb[0].mxu0
      %8126 = vmatprep.mubr.bf16.mxu0 0
      %8127 = vmatmul.mubr.bf16.gmra.mrb[0].mxu0 %v8007
      %v8128 = vpop.f32.mrb[0].mxu0
      %v8129 = vadd.f32 0.0, %v8128
      %v8130 = vpop.f32.mrb[0].mxu0
      %v8131 = vpop.f32.mrb[0].mxu0
      %v8132 = vadd.f32 0.0, %v8131
      %v8133 = vpop.f32.mrb[0].mxu0
      %8134 = vmatprep.mubr.bf16.mxu0 0
      %8135 = vmatmul.mubr.bf16.gmra.mrb[0].mxu0 %v8010
      %v8136 = vpop.f32.mrb[0].mxu0
      %v8137 = vadd.f32 0.0, %v8136
      %v8138 = vpop.f32.mrb[0].mxu0
      %v8139 = vpop.f32.mrb[0].mxu0
      %v8140 = vadd.f32 0.0, %v8139
      %v8141 = vpop.f32.mrb[0].mxu0
      %8142 = vmatprep.mubr.bf16.mxu0 0
      %8143 = vmatmul.mubr.bf16.gmra.mrb[0].mxu0 %v8013
      %v8144 = vpop.f32.mrb[0].mxu0
      %v8145 = vadd.f32 0.0, %v8144
      %v8146 = vpop.f32.mrb[0].mxu0
      %v8147 = vpop.f32.mrb[0].mxu0
      %v8148 = vadd.f32 0.0, %v8147
      %v8149 = vpop.f32.mrb[0].mxu0
      %8150 = vmatprep.mubr.bf16.mxu0 0
      %8151 = vmatmul.mubr.bf16.gmra.mrb[0].mxu0 %v8016
      %v8152 = vpop.f32.mrb[0].mxu0
      %v8153 = vadd.f32 0.0, %v8152
      %v8154 = vpop.f32.mrb[0].mxu0
      %v8155 = vpop.f32.mrb[0].mxu0
      %v8156 = vadd.f32 0.0, %v8155
      %v8157 = vpop.f32.mrb[0].mxu0
      %8158 = vmatprep.mubr.bf16.mxu0 0
      %8159 = vmatmul.mubr.bf16.gmra.mrb[0].mxu0 %v8019
      %v8160 = vpop.f32.mrb[0].mxu0
      %v8161 = vadd.f32 0.0, %v8160
      %v8162 = vpop.f32.mrb[0].mxu0
      %v8163 = vpop.f32.mrb[0].mxu0
      %v8164 = vadd.f32 0.0, %v8163
      %v8165 = vpop.f32.mrb[0].mxu0
      %8166 = vmatprep.mubr.bf16.mxu0 0
      %8167 = vmatmul.mubr.bf16.gmra.mrb[0].mxu0 %v8022
      %v8168 = vpop.f32.mrb[0].mxu0
      %v8169 = vadd.f32 0.0, %v8168
      %v8170 = vpop.f32.mrb[0].mxu0
      %v8171 = vpop.f32.mrb[0].mxu0
      %v8172 = vadd.f32 0.0, %v8171
      %v8173 = vpop.f32.mrb[0].mxu0
      %8174 = vmatprep.mubr.bf16.mxu0 0
      %8175 = vmatmul.mubr.bf16.gmra.mrb[0].mxu0 %v8025
      %v8176 = vpop.f32.mrb[0].mxu0
      %v8177 = vadd.f32 0.0, %v8176
      %v8178 = vpop.f32.mrb[0].mxu0
      %v8179 = vpop.f32.mrb[0].mxu0
      %v8180 = vpop.f32.mrb[0].mxu0
      %8181 = vdwg.mxu0
      %v8182 = vadd.f32 %v7915, %v8065
      %v8183 = vadd.f32 %v7916, %v8068
      %v8184 = vadd.f32 %v7917, %v8073
      %v8185 = vadd.f32 %v7918, %v8076
      %v8186 = vadd.f32 %v7919, %v8081
      %v8187 = vadd.f32 %v7920, %v8084
      %v8188 = vadd.f32 %v7921, %v8089
      %v8189 = vadd.f32 %v7922, %v8092
      %v8190 = vadd.f32 %v7923, %v8097
      %v8191 = vadd.f32 %v7924, %v8100
      %v8192 = vadd.f32 %v7925, %v8105
      %v8193 = vadd.f32 %v7926, %v8108
      %v8194 = vadd.f32 %v7927, %v8113
      %v8195 = vadd.f32 %v7928, %v8116
      %v8196 = vadd.f32 %v7929, %v8121
      %v8197 = vadd.f32 %v7930, %v8124
      %v8198 = vadd.f32 %v7931, %v8129
      %v8199 = vadd.f32 %v7932, %v8132
      %v8200 = vadd.f32 %v7933, %v8137
      %v8201 = vadd.f32 %v7934, %v8140
      %v8202 = vadd.f32 %v7935, %v8145
      %v8203 = vadd.f32 %v7936, %v8148
      %v8204 = vadd.f32 %v7937, %v8153
      %v8205 = vadd.f32 %v7938, %v8156
      %v8206 = vadd.f32 %v7939, %v8161
      %v8207 = vadd.f32 %v7940, %v8164
      %v8208 = vadd.f32 %v7941, %v8169
      %v8209 = vadd.f32 %v7942, %v8172
      %v8210 = vadd.f32 %v7943, %v8177
      %v8211 = vld [vmem:[%s11] sm:$0x1]
      %v8213 = vlaneseq
      %v8214 = vshrl.u32 %v8213, 7
      %v8215 = vsub.s32 0, %v8214
      %v8216 = vrot.slane %v8211, %v8215
      %v8218 = vmul.f32 %v8182, %v8216
      %v8219 = vmul.f32 %v8183, %v8216
      %v8220 = vmul.f32 %v8184, %v8216
      %v8221 = vmul.f32 %v8185, %v8216
      %v8222 = vmul.f32 %v8186, %v8216
      %v8223 = vmul.f32 %v8187, %v8216
      %v8224 = vmul.f32 %v8188, %v8216
      %v8225 = vmul.f32 %v8189, %v8216
      %v8226 = vmul.f32 %v8190, %v8216
      %v8227 = vmul.f32 %v8191, %v8216
      %v8228 = vmul.f32 %v8192, %v8216
      %v8229 = vmul.f32 %v8193, %v8216
      %v8230 = vmul.f32 %v8194, %v8216
      %v8231 = vmul.f32 %v8195, %v8216
      %v8232 = vmul.f32 %v8196, %v8216
      %v8233 = vmul.f32 %v8197, %v8216
      %v8234 = vmul.f32 %v8198, %v8216
      %v8235 = vmul.f32 %v8199, %v8216
      %v8236 = vmul.f32 %v8200, %v8216
      %v8237 = vmul.f32 %v8201, %v8216
      %v8238 = vmul.f32 %v8202, %v8216
      %v8239 = vmul.f32 %v8203, %v8216
      %v8240 = vmul.f32 %v8204, %v8216
      %v8241 = vmul.f32 %v8205, %v8216
      %v8242 = vmul.f32 %v8206, %v8216
      %v8243 = vmul.f32 %v8207, %v8216
      %v8244 = vmul.f32 %v8208, %v8216
      %v8245 = vmul.f32 %v8209, %v8216
      %v8246 = vmul.f32 %v8210, %v8216
      %v8247 = vld [vmem:[%s12] sm:$0x1]
      %v8249 = vlaneseq
      %v8250 = vshrl.u32 %v8249, 7
      %v8251 = vsub.s32 0, %v8250
      %v8252 = vrot.slane %v8247, %v8251
      %v8254 = vadd.f32 %v8218, %v8252
      %v8255 = vadd.f32 %v8219, %v8252
      %v8256 = vadd.f32 %v8220, %v8252
      %v8257 = vadd.f32 %v8221, %v8252
      %v8258 = vadd.f32 %v8222, %v8252
      %v8259 = vadd.f32 %v8223, %v8252
      %v8260 = vadd.f32 %v8224, %v8252
      %v8261 = vadd.f32 %v8225, %v8252
      %v8262 = vadd.f32 %v8226, %v8252
      %v8263 = vadd.f32 %v8227, %v8252
      %v8264 = vadd.f32 %v8228, %v8252
      %v8265 = vadd.f32 %v8229, %v8252
      %v8266 = vadd.f32 %v8230, %v8252
      %v8267 = vadd.f32 %v8231, %v8252
      %v8268 = vadd.f32 %v8232, %v8252
      %v8269 = vadd.f32 %v8233, %v8252
      %v8270 = vadd.f32 %v8234, %v8252
      %v8271 = vadd.f32 %v8235, %v8252
      %v8272 = vadd.f32 %v8236, %v8252
      %v8273 = vadd.f32 %v8237, %v8252
      %v8274 = vadd.f32 %v8238, %v8252
      %v8275 = vadd.f32 %v8239, %v8252
      %v8276 = vadd.f32 %v8240, %v8252
      %v8277 = vadd.f32 %v8241, %v8252
      %v8278 = vadd.f32 %v8242, %v8252
      %v8279 = vadd.f32 %v8243, %v8252
      %v8280 = vadd.f32 %v8244, %v8252
      %v8281 = vadd.f32 %v8245, %v8252
      %v8282 = vadd.f32 %v8246, %v8252
      %v8283 = vmax.f32 %v8254, 0.0
      %v8284 = vmax.f32 %v8255, 0.0
      %v8285 = vmax.f32 %v8256, 0.0
      %v8286 = vmax.f32 %v8257, 0.0
      %v8287 = vmax.f32 %v8258, 0.0
      %v8288 = vmax.f32 %v8259, 0.0
      %v8289 = vmax.f32 %v8260, 0.0
      %v8290 = vmax.f32 %v8261, 0.0
      %v8291 = vmax.f32 %v8262, 0.0
      %v8292 = vmax.f32 %v8263, 0.0
      %v8293 = vmax.f32 %v8264, 0.0
      %v8294 = vmax.f32 %v8265, 0.0
      %v8295 = vmax.f32 %v8266, 0.0
      %v8296 = vmax.f32 %v8267, 0.0
      %v8297 = vmax.f32 %v8268, 0.0
      %v8298 = vmax.f32 %v8269, 0.0
      %v8299 = vmax.f32 %v8270, 0.0
      %v8300 = vmax.f32 %v8271, 0.0
      %v8301 = vmax.f32 %v8272, 0.0
      %v8302 = vmax.f32 %v8273, 0.0
      %v8303 = vmax.f32 %v8274, 0.0
      %v8304 = vmax.f32 %v8275, 0.0
      %v8305 = vmax.f32 %v8276, 0.0
      %v8306 = vmax.f32 %v8277, 0.0
      %v8307 = vmax.f32 %v8278, 0.0
      %v8308 = vmax.f32 %v8279, 0.0
      %v8309 = vmax.f32 %v8280, 0.0
      %v8310 = vmax.f32 %v8281, 0.0
      %v8311 = vmax.f32 %v8282, 0.0
      %v8312 = vld [vmem:[%s14] sm:$0xff]
      %v8313 = vld [vmem:[%s14 + $0x8] sm:$0xff]
      %v8314 = vld [vmem:[%s14 + $0x10] sm:$0xff]
      %v8315 = vld [vmem:[%s14 + $0x18] sm:$0xff]
      %v8316 = vld [vmem:[%s14 + $0x20] sm:$0xff]
      %v8317 = vld [vmem:[%s14 + $0x28] sm:$0xff]
      %v8318 = vld [vmem:[%s14 + $0x30] sm:$0xff]
      %v8319 = vld [vmem:[%s14 + $0x38] sm:$0xff]
      %v8320 = vld [vmem:[%s14 + $0x40] sm:$0xff]
      %v8321 = vld [vmem:[%s14 + $0x48] sm:$0xff]
      %v8322 = vld [vmem:[%s14 + $0x50] sm:$0xff]
      %v8323 = vld [vmem:[%s14 + $0x58] sm:$0xff]
      %v8324 = vld [vmem:[%s14 + $0x60] sm:$0x1]
      %v8325 = vld [vmem:[%s14 + $0x68] sm:$0x1]
      %vm8326 = vcmask 826368
      %v8328 = vsel %vm8326, %v8313, 0
      %v8331 = vsel %vm8326, %v8315, 0
      %v8334 = vsel %vm8326, %v8317, 0
      %v8337 = vsel %vm8326, %v8319, 0
      %v8340 = vsel %vm8326, %v8321, 0
      %v8343 = vsel %vm8326, %v8323, 0
      %v8346 = vsel %vm8326, %v8325, 0
      %v8349 = vsel %vm2429, %v8311, 0
      %8351 = vmatprep.subr.mxu0 0.0
      %8352 = vmatpush1.msra.mxu0 %v8283
      %8353 = vmatprep.subr.mxu0 0.0
      %8354 = vmatpush1.msra.mxu0 %v8284
      %8355 = vmatprep.subr.mxu0 0.0
      %8356 = vmatpush1.msra.mxu0 %v8285
      %8357 = vmatprep.subr.mxu0 0.0
      %8358 = vmatpush1.msra.mxu0 %v8286
      %8359 = vmatprep.subr.mxu0 0.0
      %8360 = vmatpush1.msra.mxu0 %v8287
      %8361 = vmatprep.subr.mxu0 0.0
      %8362 = vmatpush1.msra.mxu0 %v8288
      %8363 = vmatprep.subr.mxu0 0.0
      %8364 = vmatpush1.msra.mxu0 %v8289
      %8365 = vmatprep.subr.mxu0 0.0
      %8366 = vmatpush1.msra.mxu0 %v8290
      %8367 = vmatprep.subr.mxu0 0.0
      %8368 = vmatpush1.msra.mxu0 %v8291
      %8369 = vmatprep.subr.mxu0 0.0
      %8370 = vmatpush1.msra.mxu0 %v8292
      %8371 = vmatprep.subr.mxu0 0.0
      %8372 = vmatpush1.msra.mxu0 %v8293
      %8373 = vmatprep.subr.mxu0 0.0
      %8374 = vmatpush1.msra.mxu0 %v8294
      %8375 = vmatprep.subr.mxu0 0.0
      %8376 = vmatpush1.msra.mxu0 %v8295
      %8377 = vmatprep.subr.mxu0 0.0
      %8378 = vmatpush1.msra.mxu0 %v8296
      %8379 = vmatprep.subr.mxu0 0.0
      %8380 = vmatpush1.msra.mxu0 %v8297
      %8381 = vmatprep.subr.mxu0 0.0
      %8382 = vmatpush1.msra.mxu0 %v8298
      %8383 = vmatprep.subr.mxu0 0.0
      %8384 = vmatpush1.msra.mxu0 %v8299
      %8385 = vmatprep.subr.mxu0 0.0
      %8386 = vmatpush1.msra.mxu0 %v8300
      %8387 = vmatprep.subr.mxu0 0.0
      %8388 = vmatpush1.msra.mxu0 %v8301
      %8389 = vmatprep.subr.mxu0 0.0
      %8390 = vmatpush1.msra.mxu0 %v8302
      %8391 = vmatprep.subr.mxu0 0.0
      %8392 = vmatpush1.msra.mxu0 %v8303
      %8393 = vmatprep.subr.mxu0 0.0
      %8394 = vmatpush1.msra.mxu0 %v8304
      %8395 = vmatprep.subr.mxu0 0.0
      %8396 = vmatpush1.msra.mxu0 %v8305
      %8397 = vmatprep.subr.mxu0 0.0
      %8398 = vmatpush1.msra.mxu0 %v8306
      %8399 = vmatprep.subr.mxu0 0.0
      %8400 = vmatpush1.msra.mxu0 %v8307
      %8401 = vmatprep.subr.mxu0 0.0
      %8402 = vmatpush1.msra.mxu0 %v8308
      %8403 = vmatprep.subr.mxu0 0.0
      %8404 = vmatpush1.msra.mxu0 %v8309
      %8405 = vmatprep.subr.mxu0 0.0
      %8406 = vmatpush1.msra.mxu0 %v8310
      %8407 = vmatprep.subr.mxu0 0.0
      %8408 = vmatpush1.msra.mxu0 %v8349
      %8409 = vmatprep.subr.mxu0 0.0
      %8410 = vmatpush1.msra.mxu0 0.0
      %8411 = vmatprep.subr.mxu0 0.0
      %8412 = vmatpush1.msra.mxu0 0.0
      %8413 = vmatprep.subr.mxu0 0.0
      %8414 = vmatpush1.msra.mxu0 0.0
      %8415 = vmatprep.mubr.f32.mxu0 %v8328
      %8416 = vmatmul.mubr.f32.gmra.mrb[0].mxu0 %v8312
      %v8417 = vpop.f32.mrb[0].mxu0
      %v8418 = vadd.f32 0.0, %v8417
      %v8419 = vpop.f32.mrb[0].mxu0
      %8420 = vmatprep.mubr.f32.mxu0 %v8331
      %8421 = vmatmul.mubr.f32.gmra.mrb[0].mxu0 %v8314
      %v8422 = vpop.f32.mrb[0].mxu0
      %v8423 = vadd.f32 0.0, %v8422
      %v8424 = vpop.f32.mrb[0].mxu0
      %8425 = vmatprep.mubr.f32.mxu0 %v8334
      %8426 = vmatmul.mubr.f32.gmra.mrb[0].mxu0 %v8316
      %v8427 = vpop.f32.mrb[0].mxu0
      %v8428 = vadd.f32 0.0, %v8427
      %v8429 = vpop.f32.mrb[0].mxu0
      %8430 = vmatprep.mubr.f32.mxu0 %v8337
      %8431 = vmatmul.mubr.f32.gmra.mrb[0].mxu0 %v8318
      %v8432 = vpop.f32.mrb[0].mxu0
      %v8433 = vadd.f32 0.0, %v8432
      %v8434 = vpop.f32.mrb[0].mxu0
      %8435 = vmatprep.mubr.f32.mxu0 %v8340
      %8436 = vmatmul.mubr.f32.gmra.mrb[0].mxu0 %v8320
      %v8437 = vpop.f32.mrb[0].mxu0
      %v8438 = vadd.f32 0.0, %v8437
      %v8439 = vpop.f32.mrb[0].mxu0
      %8440 = vmatprep.mubr.f32.mxu0 %v8343
      %8441 = vmatmul.mubr.f32.gmra.mrb[0].mxu0 %v8322
      %v8442 = vpop.f32.mrb[0].mxu0
      %v8443 = vadd.f32 0.0, %v8442
      %v8444 = vpop.f32.mrb[0].mxu0
      %8445 = vmatprep.mubr.f32.mxu0 %v8346
      %8446 = vmatmul.mubr.f32.gmra.mrb[0].mxu0 %v8324
      %v8447 = vpop.f32.mrb[0].mxu0
      %v8448 = vadd.f32 0.0, %v8447
      %v8449 = vpop.f32.mrb[0].mxu0
      %8450 = vdwg.mxu0
      %vm8477 = vcmask 1046528
      %v8478 = vrot.slane %v496, 1
      %v8479 = vrot.slane %v497, 1
      %v8480 = vsel %vm8477, %v8478, %v8479
      %v8481 = vrot.slane %v498, 1
      %v8482 = vsel %vm8477, %v8479, %v8481
      %v8483 = vrot.slane %v499, 1
      %v8484 = vsel %vm8477, %v8481, %v8483
      %v8485 = vrot.slane %v500, 1
      %v8486 = vsel %vm8477, %v8483, %v8485
      %v8487 = vrot.slane %v501, 1
      %v8488 = vsel %vm8477, %v8485, %v8487
      %v8489 = vrot.slane %v502, 1
      %v8490 = vsel %vm8477, %v8487, %v8489
      %v8491 = vrot.slane %v503, 1
      %v8492 = vsel %vm8477, %v8489, %v8491
      %v8493 = vrot.slane %v504, 1
      %v8494 = vsel %vm8477, %v8491, %v8493
      %v8495 = vrot.slane %v505, 1
      %v8496 = vsel %vm8477, %v8493, %v8495
      %v8497 = vrot.slane %v506, 1
      %v8498 = vsel %vm8477, %v8495, %v8497
      %v8499 = vrot.slane %v507, 1
      %v8500 = vsel %vm8477, %v8497, %v8499
      %v8501 = vrot.slane %v508, 1
      %v8502 = vsel %vm8477, %v8499, %v8501
      %v8503 = vrot.slane %v509, 1
      %v8504 = vsel %vm8477, %v8501, %v8503
      %v8505 = vrot.slane %v510, 1
      %v8506 = vsel %vm8477, %v8503, %v8505
      %v8507 = vrot.slane %v511, 1
      %v8508 = vsel %vm8477, %v8505, %v8507
      %v8509 = vrot.slane %v512, 1
      %v8510 = vsel %vm8477, %v8507, %v8509
      %v8511 = vrot.slane %v513, 1
      %v8512 = vsel %vm8477, %v8509, %v8511
      %v8513 = vrot.slane %v514, 1
      %v8514 = vsel %vm8477, %v8511, %v8513
      %v8515 = vrot.slane %v515, 1
      %v8516 = vsel %vm8477, %v8513, %v8515
      %v8517 = vrot.slane %v516, 1
      %v8518 = vsel %vm8477, %v8515, %v8517
      %v8519 = vrot.slane %v517, 1
      %v8520 = vsel %vm8477, %v8517, %v8519
      %v8521 = vrot.slane %v518, 1
      %v8522 = vsel %vm8477, %v8519, %v8521
      %v8523 = vrot.slane %v519, 1
      %v8524 = vsel %vm8477, %v8521, %v8523
      %v8525 = vrot.slane %v520, 1
      %v8526 = vsel %vm8477, %v8523, %v8525
      %v8527 = vrot.slane %v521, 1
      %v8528 = vsel %vm8477, %v8525, %v8527
      %v8555 = vmax.f32 %v496, %v8480
      %v8556 = vmax.f32 %v497, %v8482
      %v8557 = vmax.f32 %v498, %v8484
      %v8558 = vmax.f32 %v499, %v8486
      %v8559 = vmax.f32 %v500, %v8488
      %v8560 = vmax.f32 %v501, %v8490
      %v8561 = vmax.f32 %v502, %v8492
      %v8562 = vmax.f32 %v503, %v8494
      %v8563 = vmax.f32 %v504, %v8496
      %v8564 = vmax.f32 %v505, %v8498
      %v8565 = vmax.f32 %v506, %v8500
      %v8566 = vmax.f32 %v507, %v8502
      %v8567 = vmax.f32 %v508, %v8504
      %v8568 = vmax.f32 %v509, %v8506
      %v8569 = vmax.f32 %v510, %v8508
      %v8570 = vmax.f32 %v511, %v8510
      %v8571 = vmax.f32 %v512, %v8512
      %v8572 = vmax.f32 %v513, %v8514
      %v8573 = vmax.f32 %v514, %v8516
      %v8574 = vmax.f32 %v515, %v8518
      %v8575 = vmax.f32 %v516, %v8520
      %v8576 = vmax.f32 %v517, %v8522
      %v8577 = vmax.f32 %v518, %v8524
      %v8578 = vmax.f32 %v519, %v8526
      %v8579 = vmax.f32 %v520, %v8528
      %v8580 = vmax.f32 %v521, %v8527
      %v8581 = vrot.slane %v496, 2
      %v8582 = vrot.slane %v497, 2
      %v8583 = vsel %vm6023, %v8581, %v8582
      %v8584 = vrot.slane %v498, 2
      %v8585 = vsel %vm6023, %v8582, %v8584
      %v8586 = vrot.slane %v499, 2
      %v8587 = vsel %vm6023, %v8584, %v8586
      %v8588 = vrot.slane %v500, 2
      %v8589 = vsel %vm6023, %v8586, %v8588
      %v8590 = vrot.slane %v501, 2
      %v8591 = vsel %vm6023, %v8588, %v8590
      %v8592 = vrot.slane %v502, 2
      %v8593 = vsel %vm6023, %v8590, %v8592
      %v8594 = vrot.slane %v503, 2
      %v8595 = vsel %vm6023, %v8592, %v8594
      %v8596 = vrot.slane %v504, 2
      %v8597 = vsel %vm6023, %v8594, %v8596
      %v8598 = vrot.slane %v505, 2
      %v8599 = vsel %vm6023, %v8596, %v8598
      %v8600 = vrot.slane %v506, 2
      %v8601 = vsel %vm6023, %v8598, %v8600
      %v8602 = vrot.slane %v507, 2
      %v8603 = vsel %vm6023, %v8600, %v8602
      %v8604 = vrot.slane %v508, 2
      %v8605 = vsel %vm6023, %v8602, %v8604
      %v8606 = vrot.slane %v509, 2
      %v8607 = vsel %vm6023, %v8604, %v8606
      %v8608 = vrot.slane %v510, 2
      %v8609 = vsel %vm6023, %v8606, %v8608
      %v8610 = vrot.slane %v511, 2
      %v8611 = vsel %vm6023, %v8608, %v8610
      %v8612 = vrot.slane %v512, 2
      %v8613 = vsel %vm6023, %v8610, %v8612
      %v8614 = vrot.slane %v513, 2
      %v8615 = vsel %vm6023, %v8612, %v8614
      %v8616 = vrot.slane %v514, 2
      %v8617 = vsel %vm6023, %v8614, %v8616
      %v8618 = vrot.slane %v515, 2
      %v8619 = vsel %vm6023, %v8616, %v8618
      %v8620 = vrot.slane %v516, 2
      %v8621 = vsel %vm6023, %v8618, %v8620
      %v8622 = vrot.slane %v517, 2
      %v8623 = vsel %vm6023, %v8620, %v8622
      %v8624 = vrot.slane %v518, 2
      %v8625 = vsel %vm6023, %v8622, %v8624
      %v8626 = vrot.slane %v519, 2
      %v8627 = vsel %vm6023, %v8624, %v8626
      %v8628 = vrot.slane %v520, 2
      %v8629 = vsel %vm6023, %v8626, %v8628
      %v8630 = vrot.slane %v521, 2
      %v8631 = vsel %vm6023, %v8628, %v8630
      %v8658 = vmax.f32 %v8555, %v8583
      %v8659 = vmax.f32 %v8556, %v8585
      %v8660 = vmax.f32 %v8557, %v8587
      %v8661 = vmax.f32 %v8558, %v8589
      %v8662 = vmax.f32 %v8559, %v8591
      %v8663 = vmax.f32 %v8560, %v8593
      %v8664 = vmax.f32 %v8561, %v8595
      %v8665 = vmax.f32 %v8562, %v8597
      %v8666 = vmax.f32 %v8563, %v8599
      %v8667 = vmax.f32 %v8564, %v8601
      %v8668 = vmax.f32 %v8565, %v8603
      %v8669 = vmax.f32 %v8566, %v8605
      %v8670 = vmax.f32 %v8567, %v8607
      %v8671 = vmax.f32 %v8568, %v8609
      %v8672 = vmax.f32 %v8569, %v8611
      %v8673 = vmax.f32 %v8570, %v8613
      %v8674 = vmax.f32 %v8571, %v8615
      %v8675 = vmax.f32 %v8572, %v8617
      %v8676 = vmax.f32 %v8573, %v8619
      %v8677 = vmax.f32 %v8574, %v8621
      %v8678 = vmax.f32 %v8575, %v8623
      %v8679 = vmax.f32 %v8576, %v8625
      %v8680 = vmax.f32 %v8577, %v8627
      %v8681 = vmax.f32 %v8578, %v8629
      %v8682 = vmax.f32 %v8579, %v8631
      %v8683 = vmax.f32 %v8580, %v8630
      %v8684 = vmax.f32 %v8658, %v498
      %v8685 = vmax.f32 %v8659, %v499
      %v8686 = vmax.f32 %v8660, %v500
      %v8687 = vmax.f32 %v8661, %v501
      %v8688 = vmax.f32 %v8662, %v502
      %v8689 = vmax.f32 %v8663, %v503
      %v8690 = vmax.f32 %v8664, %v504
      %v8691 = vmax.f32 %v8665, %v505
      %v8692 = vmax.f32 %v8666, %v506
      %v8693 = vmax.f32 %v8667, %v507
      %v8694 = vmax.f32 %v8668, %v508
      %v8695 = vmax.f32 %v8669, %v509
      %v8696 = vmax.f32 %v8670, %v510
      %v8697 = vmax.f32 %v8671, %v511
      %v8698 = vmax.f32 %v8672, %v512
      %v8699 = vmax.f32 %v8673, %v513
      %v8700 = vmax.f32 %v8674, %v514
      %v8701 = vmax.f32 %v8675, %v515
      %v8702 = vmax.f32 %v8676, %v516
      %v8703 = vmax.f32 %v8677, %v517
      %v8704 = vmax.f32 %v8678, %v518
      %v8705 = vmax.f32 %v8679, %v519
      %v8706 = vmax.f32 %v8680, %v520
      %v8707 = vmax.f32 %v8681, %v521
      %v8708 = vmax.f32 %v8682, %v522
      %v8709 = vmax.f32 %v8683, %v523
      %v8712 = vrot.slane %v522, 1
      %v8713 = vsel %vm8477, %v8527, %v8712
      %v8714 = vrot.slane %v523, 1
      %v8715 = vsel %vm8477, %v8712, %v8714
      %v8719 = vmax.f32 %v8684, %v8484
      %v8720 = vmax.f32 %v8685, %v8486
      %v8721 = vmax.f32 %v8686, %v8488
      %v8722 = vmax.f32 %v8687, %v8490
      %v8723 = vmax.f32 %v8688, %v8492
      %v8724 = vmax.f32 %v8689, %v8494
      %v8725 = vmax.f32 %v8690, %v8496
      %v8726 = vmax.f32 %v8691, %v8498
      %v8727 = vmax.f32 %v8692, %v8500
      %v8728 = vmax.f32 %v8693, %v8502
      %v8729 = vmax.f32 %v8694, %v8504
      %v8730 = vmax.f32 %v8695, %v8506
      %v8731 = vmax.f32 %v8696, %v8508
      %v8732 = vmax.f32 %v8697, %v8510
      %v8733 = vmax.f32 %v8698, %v8512
      %v8734 = vmax.f32 %v8699, %v8514
      %v8735 = vmax.f32 %v8700, %v8516
      %v8736 = vmax.f32 %v8701, %v8518
      %v8737 = vmax.f32 %v8702, %v8520
      %v8738 = vmax.f32 %v8703, %v8522
      %v8739 = vmax.f32 %v8704, %v8524
      %v8740 = vmax.f32 %v8705, %v8526
      %v8741 = vmax.f32 %v8706, %v8528
      %v8742 = vmax.f32 %v8707, %v8713
      %v8743 = vmax.f32 %v8708, %v8715
      %v8744 = vmax.f32 %v8709, %v8714
      %v8745 = vrot.slane %v522, 2
      %v8746 = vsel %vm6023, %v8630, %v8745
      %v8747 = vrot.slane %v523, 2
      %v8748 = vsel %vm6023, %v8745, %v8747
      %v8752 = vmax.f32 %v8719, %v8587
      %v8753 = vmax.f32 %v8720, %v8589
      %v8754 = vmax.f32 %v8721, %v8591
      %v8755 = vmax.f32 %v8722, %v8593
      %v8756 = vmax.f32 %v8723, %v8595
      %v8757 = vmax.f32 %v8724, %v8597
      %v8758 = vmax.f32 %v8725, %v8599
      %v8759 = vmax.f32 %v8726, %v8601
      %v8760 = vmax.f32 %v8727, %v8603
      %v8761 = vmax.f32 %v8728, %v8605
      %v8762 = vmax.f32 %v8729, %v8607
      %v8763 = vmax.f32 %v8730, %v8609
      %v8764 = vmax.f32 %v8731, %v8611
      %v8765 = vmax.f32 %v8732, %v8613
      %v8766 = vmax.f32 %v8733, %v8615
      %v8767 = vmax.f32 %v8734, %v8617
      %v8768 = vmax.f32 %v8735, %v8619
      %v8769 = vmax.f32 %v8736, %v8621
      %v8770 = vmax.f32 %v8737, %v8623
      %v8771 = vmax.f32 %v8738, %v8625
      %v8772 = vmax.f32 %v8739, %v8627
      %v8773 = vmax.f32 %v8740, %v8629
      %v8774 = vmax.f32 %v8741, %v8631
      %v8775 = vmax.f32 %v8742, %v8746
      %v8776 = vmax.f32 %v8743, %v8748
      %v8777 = vmax.f32 %v8744, %v8747
      %v8778 = vmax.f32 %v8752, %v500
      %v8779 = vmax.f32 %v8753, %v501
      %v8780 = vmax.f32 %v8754, %v502
      %v8781 = vmax.f32 %v8755, %v503
      %v8782 = vmax.f32 %v8756, %v504
      %v8783 = vmax.f32 %v8757, %v505
      %v8784 = vmax.f32 %v8758, %v506
      %v8785 = vmax.f32 %v8759, %v507
      %v8786 = vmax.f32 %v8760, %v508
      %v8787 = vmax.f32 %v8761, %v509
      %v8788 = vmax.f32 %v8762, %v510
      %v8789 = vmax.f32 %v8763, %v511
      %v8790 = vmax.f32 %v8764, %v512
      %v8791 = vmax.f32 %v8765, %v513
      %v8792 = vmax.f32 %v8766, %v514
      %v8793 = vmax.f32 %v8767, %v515
      %v8794 = vmax.f32 %v8768, %v516
      %v8795 = vmax.f32 %v8769, %v517
      %v8796 = vmax.f32 %v8770, %v518
      %v8797 = vmax.f32 %v8771, %v519
      %v8798 = vmax.f32 %v8772, %v520
      %v8799 = vmax.f32 %v8773, %v521
      %v8800 = vmax.f32 %v8774, %v522
      %v8801 = vmax.f32 %v8775, %v523
      %v8802 = vmax.f32 %v8776, %v524
      %v8803 = vmax.f32 %v8777, %v525
      %v8806 = vrot.slane %v524, 1
      %v8807 = vsel %vm8477, %v8714, %v8806
      %v8808 = vrot.slane %v525, 1
      %v8809 = vsel %vm8477, %v8806, %v8808
      %v8813 = vmax.f32 %v8778, %v8488
      %v8814 = vmax.f32 %v8779, %v8490
      %v8815 = vmax.f32 %v8780, %v8492
      %v8816 = vmax.f32 %v8781, %v8494
      %v8817 = vmax.f32 %v8782, %v8496
      %v8818 = vmax.f32 %v8783, %v8498
      %v8819 = vmax.f32 %v8784, %v8500
      %v8820 = vmax.f32 %v8785, %v8502
      %v8821 = vmax.f32 %v8786, %v8504
      %v8822 = vmax.f32 %v8787, %v8506
      %v8823 = vmax.f32 %v8788, %v8508
      %v8824 = vmax.f32 %v8789, %v8510
      %v8825 = vmax.f32 %v8790, %v8512
      %v8826 = vmax.f32 %v8791, %v8514
      %v8827 = vmax.f32 %v8792, %v8516
      %v8828 = vmax.f32 %v8793, %v8518
      %v8829 = vmax.f32 %v8794, %v8520
      %v8830 = vmax.f32 %v8795, %v8522
      %v8831 = vmax.f32 %v8796, %v8524
      %v8832 = vmax.f32 %v8797, %v8526
      %v8833 = vmax.f32 %v8798, %v8528
      %v8834 = vmax.f32 %v8799, %v8713
      %v8835 = vmax.f32 %v8800, %v8715
      %v8836 = vmax.f32 %v8801, %v8807
      %v8837 = vmax.f32 %v8802, %v8809
      %v8838 = vmax.f32 %v8803, %v8808
      %v8839 = vrot.slane %v524, 2
      %v8840 = vsel %vm6023, %v8747, %v8839
      %v8841 = vrot.slane %v525, 2
      %v8842 = vsel %vm6023, %v8839, %v8841
      %v8846 = vmax.f32 %v8813, %v8591
      %v8847 = vmax.f32 %v8814, %v8593
      %v8848 = vmax.f32 %v8815, %v8595
      %v8849 = vmax.f32 %v8816, %v8597
      %v8850 = vmax.f32 %v8817, %v8599
      %v8851 = vmax.f32 %v8818, %v8601
      %v8852 = vmax.f32 %v8819, %v8603
      %v8853 = vmax.f32 %v8820, %v8605
      %v8854 = vmax.f32 %v8821, %v8607
      %v8855 = vmax.f32 %v8822, %v8609
      %v8856 = vmax.f32 %v8823, %v8611
      %v8857 = vmax.f32 %v8824, %v8613
      %v8858 = vmax.f32 %v8825, %v8615
      %v8859 = vmax.f32 %v8826, %v8617
      %v8860 = vmax.f32 %v8827, %v8619
      %v8861 = vmax.f32 %v8828, %v8621
      %v8862 = vmax.f32 %v8829, %v8623
      %v8863 = vmax.f32 %v8830, %v8625
      %v8864 = vmax.f32 %v8831, %v8627
      %v8865 = vmax.f32 %v8832, %v8629
      %v8866 = vmax.f32 %v8833, %v8631
      %v8867 = vmax.f32 %v8834, %v8746
      %v8868 = vmax.f32 %v8835, %v8748
      %v8869 = vmax.f32 %v8836, %v8840
      %v8870 = vmax.f32 %v8837, %v8842
      %v8871 = vmax.f32 %v8838, %v8841
      %v8872 = vld [vmem:[%s13] sm:$0xff]
      %v8873 = vld [vmem:[%s13 + $0x8] sm:$0xff]
      %v8874 = vld [vmem:[%s13 + $0x10] sm:$0xff]
      %v8875 = vld [vmem:[%s13 + $0x18] sm:$0xff]
      %v8876 = vld [vmem:[%s13 + $0x20] sm:$0xff]
      %v8877 = vld [vmem:[%s13 + $0x28] sm:$0xff]
      %v8878 = vld [vmem:[%s13 + $0x30] sm:$0xff]
      %v8879 = vld [vmem:[%s13 + $0x38] sm:$0xff]
      %v8880 = vld [vmem:[%s13 + $0x40] sm:$0xff]
      %v8881 = vld [vmem:[%s13 + $0x48] sm:$0xff]
      %v8882 = vld [vmem:[%s13 + $0x50] sm:$0xff]
      %v8883 = vld [vmem:[%s13 + $0x58] sm:$0xff]
      %v8884 = vld [vmem:[%s13 + $0x60] sm:$0x1]
      %v8885 = vld [vmem:[%s13 + $0x68] sm:$0x1]
      %v8887 = vsel %vm2407, %v8873, 0
      %v8890 = vsel %vm2407, %v8875, 0
      %v8893 = vsel %vm2407, %v8877, 0
      %v8896 = vsel %vm2407, %v8879, 0
      %v8899 = vsel %vm2407, %v8881, 0
      %v8902 = vsel %vm2407, %v8883, 0
      %v8905 = vsel %vm2407, %v8885, 0
      %v8908 = vsel %vm2429, %v8871, 0
      %8910 = vmatprep.subr.mxu0 0.0
      %8911 = vmatpush1.msra.mxu0 %v8846
      %8912 = vmatprep.subr.mxu0 0.0
      %8913 = vmatpush1.msra.mxu0 %v8847
      %8914 = vmatprep.subr.mxu0 0.0
      %8915 = vmatpush1.msra.mxu0 %v8848
      %8916 = vmatprep.subr.mxu0 0.0
      %8917 = vmatpush1.msra.mxu0 %v8849
      %8918 = vmatprep.subr.mxu0 0.0
      %8919 = vmatpush1.msra.mxu0 %v8850
      %8920 = vmatprep.subr.mxu0 0.0
      %8921 = vmatpush1.msra.mxu0 %v8851
      %8922 = vmatprep.subr.mxu0 0.0
      %8923 = vmatpush1.msra.mxu0 %v8852
      %8924 = vmatprep.subr.mxu0 0.0
      %8925 = vmatpush1.msra.mxu0 %v8853
      %8926 = vmatprep.subr.mxu0 0.0
      %8927 = vmatpush1.msra.mxu0 %v8854
      %8928 = vmatprep.subr.mxu0 0.0
      %8929 = vmatpush1.msra.mxu0 %v8855
      %8930 = vmatprep.subr.mxu0 0.0
      %8931 = vmatpush1.msra.mxu0 %v8856
      %8932 = vmatprep.subr.mxu0 0.0
      %8933 = vmatpush1.msra.mxu0 %v8857
      %8934 = vmatprep.subr.mxu0 0.0
      %8935 = vmatpush1.msra.mxu0 %v8858
      %8936 = vmatprep.subr.mxu0 0.0
      %8937 = vmatpush1.msra.mxu0 %v8859
      %8938 = vmatprep.subr.mxu0 0.0
      %8939 = vmatpush1.msra.mxu0 %v8860
      %8940 = vmatprep.subr.mxu0 0.0
      %8941 = vmatpush1.msra.mxu0 %v8861
      %8942 = vmatprep.subr.mxu0 0.0
      %8943 = vmatpush1.msra.mxu0 %v8862
      %8944 = vmatprep.subr.mxu0 0.0
      %8945 = vmatpush1.msra.mxu0 %v8863
      %8946 = vmatprep.subr.mxu0 0.0
      %8947 = vmatpush1.msra.mxu0 %v8864
      %8948 = vmatprep.subr.mxu0 0.0
      %8949 = vmatpush1.msra.mxu0 %v8865
      %8950 = vmatprep.subr.mxu0 0.0
      %8951 = vmatpush1.msra.mxu0 %v8866
      %8952 = vmatprep.subr.mxu0 0.0
      %8953 = vmatpush1.msra.mxu0 %v8867
      %8954 = vmatprep.subr.mxu0 0.0
      %8955 = vmatpush1.msra.mxu0 %v8868
      %8956 = vmatprep.subr.mxu0 0.0
      %8957 = vmatpush1.msra.mxu0 %v8869
      %8958 = vmatprep.subr.mxu0 0.0
      %8959 = vmatpush1.msra.mxu0 %v8870
      %8960 = vmatprep.subr.mxu0 0.0
      %8961 = vmatpush1.msra.mxu0 %v8908
      %8962 = vmatprep.subr.mxu0 0.0
      %8963 = vmatpush1.msra.mxu0 0.0
      %8964 = vmatprep.subr.mxu0 0.0
      %8965 = vmatpush1.msra.mxu0 0.0
      %8966 = vmatprep.subr.mxu0 0.0
      %8967 = vmatpush1.msra.mxu0 0.0
      %8968 = vmatprep.subr.mxu0 0.0
      %8969 = vmatpush1.msra.mxu0 0.0
      %8970 = vmatprep.subr.mxu0 0.0
      %8971 = vmatpush1.msra.mxu0 0.0
      %8972 = vmatprep.subr.mxu0 0.0
      %8973 = vmatpush1.msra.mxu0 0.0
      %8974 = vmatprep.mubr.f32.mxu0 %v8887
      %8975 = vmatmul.mubr.f32.gmra.mrb[0].mxu0 %v8872
      %v8976 = vpop.f32.mrb[0].mxu0
      %v8977 = vadd.f32 0.0, %v8976
      %v8978 = vpop.f32.mrb[0].mxu0
      %8979 = vmatprep.mubr.f32.mxu0 %v8890
      %8980 = vmatmul.mubr.f32.gmra.mrb[0].mxu0 %v8874
      %v8981 = vpop.f32.mrb[0].mxu0
      %v8982 = vadd.f32 0.0, %v8981
      %v8983 = vpop.f32.mrb[0].mxu0
      %8984 = vmatprep.mubr.f32.mxu0 %v8893
      %8985 = vmatmul.mubr.f32.gmra.mrb[0].mxu0 %v8876
      %v8986 = vpop.f32.mrb[0].mxu0
      %v8987 = vadd.f32 0.0, %v8986
      %v8988 = vpop.f32.mrb[0].mxu0
      %8989 = vmatprep.mubr.f32.mxu0 %v8896
      %8990 = vmatmul.mubr.f32.gmra.mrb[0].mxu0 %v8878
      %v8991 = vpop.f32.mrb[0].mxu0
      %v8992 = vadd.f32 0.0, %v8991
      %v8993 = vpop.f32.mrb[0].mxu0
      %8994 = vmatprep.mubr.f32.mxu0 %v8899
      %8995 = vmatmul.mubr.f32.gmra.mrb[0].mxu0 %v8880
      %v8996 = vpop.f32.mrb[0].mxu0
      %v8997 = vadd.f32 0.0, %v8996
      %v8998 = vpop.f32.mrb[0].mxu0
      %8999 = vmatprep.mubr.f32.mxu0 %v8902
      %9000 = vmatmul.mubr.f32.gmra.mrb[0].mxu0 %v8882
      %v9001 = vpop.f32.mrb[0].mxu0
      %v9002 = vadd.f32 0.0, %v9001
      %v9003 = vpop.f32.mrb[0].mxu0
      %9004 = vmatprep.mubr.f32.mxu0 %v8905
      %9005 = vmatmul.mubr.f32.gmra.mrb[0].mxu0 %v8884
      %v9006 = vpop.f32.mrb[0].mxu0
      %v9007 = vadd.f32 0.0, %v9006
      %v9008 = vpop.f32.mrb[0].mxu0
      %9009 = vdwg.mxu0
      %9010 = vst.msk [vmem:[%s494] sm:$0xff] %vm2812, %v2500
      %9011 = vst.msk [vmem:[%s494 + $0x8] sm:$0xff] %vm2812, %v2505
      %9012 = vst.msk [vmem:[%s494 + $0x10] sm:$0xff] %vm2812, %v2510
      %9013 = vst.msk [vmem:[%s494 + $0x18] sm:$0xff] %vm2812, %v2515
      %9014 = vst.msk [vmem:[%s494 + $0x20] sm:$0xff] %vm2812, %v2520
      %9015 = vst.msk [vmem:[%s494 + $0x28] sm:$0xff] %vm2812, %v2525
      %vm9016 = vcmask 57344
      %9017 = vst.msk [vmem:[%s494 + $0x30] sm:$0x1] %vm9016, %v2530
      %9025 = vrot.lane.b32.xlu0 %v8418, 8
      %v9026 = vpop.permute.xlu0 %9025
      %9027 = vrot.lane.b32.xlu0 %v8423, 8
      %v9028 = vpop.permute.xlu0 %9027
      %9029 = vrot.lane.b32.xlu0 %v8428, 8
      %v9030 = vpop.permute.xlu0 %9029
      %9031 = vrot.lane.b32.xlu0 %v8433, 8
      %v9032 = vpop.permute.xlu0 %9031
      %9033 = vrot.lane.b32.xlu0 %v8438, 8
      %v9034 = vpop.permute.xlu0 %9033
      %9035 = vrot.lane.b32.xlu0 %v8443, 8
      %v9036 = vpop.permute.xlu0 %9035
      %9037 = vrot.lane.b32.xlu0 %v8448, 8
      %v9038 = vpop.permute.xlu0 %9037
      %vm9046 = vcmask 195648
      %9047 = vst.msk [vmem:[%s494] sm:$0xff] %vm9046, %v9026
      %9048 = vst.msk [vmem:[%s494 + $0x8] sm:$0xff] %vm9046, %v9028
      %9049 = vst.msk [vmem:[%s494 + $0x10] sm:$0xff] %vm9046, %v9030
      %9050 = vst.msk [vmem:[%s494 + $0x18] sm:$0xff] %vm9046, %v9032
      %9051 = vst.msk [vmem:[%s494 + $0x20] sm:$0xff] %vm9046, %v9034
      %9052 = vst.msk [vmem:[%s494 + $0x28] sm:$0xff] %vm9046, %v9036
      %vm9053 = vcmask 188480
      %9054 = vst.msk [vmem:[%s494 + $0x30] sm:$0x1] %vm9053, %v9038
      %9062 = vrot.lane.b32.xlu0 %v8977, 24
      %v9063 = vpop.permute.xlu0 %9062
      %9064 = vrot.lane.b32.xlu0 %v8982, 24
      %v9065 = vpop.permute.xlu0 %9064
      %9066 = vrot.lane.b32.xlu0 %v8987, 24
      %v9067 = vpop.permute.xlu0 %9066
      %9068 = vrot.lane.b32.xlu0 %v8992, 24
      %v9069 = vpop.permute.xlu0 %9068
      %9070 = vrot.lane.b32.xlu0 %v8997, 24
      %v9071 = vpop.permute.xlu0 %9070
      %9072 = vrot.lane.b32.xlu0 %v9002, 24
      %v9073 = vpop.permute.xlu0 %9072
      %9074 = vrot.lane.b32.xlu0 %v9007, 24
      %v9075 = vpop.permute.xlu0 %9074
      %vm9083 = vcmask 228544
      %9084 = vst.msk [vmem:[%s494] sm:$0xff] %vm9083, %v9063
      %9085 = vst.msk [vmem:[%s494 + $0x8] sm:$0xff] %vm9083, %v9065
      %9086 = vst.msk [vmem:[%s494 + $0x10] sm:$0xff] %vm9083, %v9067
      %9087 = vst.msk [vmem:[%s494 + $0x18] sm:$0xff] %vm9083, %v9069
      %9088 = vst.msk [vmem:[%s494 + $0x20] sm:$0xff] %vm9083, %v9071
      %9089 = vst.msk [vmem:[%s494 + $0x28] sm:$0xff] %vm9083, %v9073
      %vm9090 = vcmask 221376
      %9091 = vst.msk [vmem:[%s494 + $0x30] sm:$0x1] %vm9090, %v9075
      %p9092 = scmp.lt.s32.totalorder %s26, 1
      %s9093 = scalar_select %p9092, %s26, 1
      %s9094 = smul.addr %s9093, 7
      %s9095 = smul.addr %s9094, 8
      %s9096 = scalar_lea.vmem %s15, %s9095
      // Predicated region
      $region81: #{inception_block_b.1} parent=79 // pred_check
        %p9097 = pneg %p364
      $region82: #{inception_block_b.1} parent=79 // pred_check_branch
        %9099 = sbr.rel (%p9097) target = $region84
      $region83: #{inception_block_b.1} parent=79 // pred_region
        _
      $region84: #{inception_block_b.1} parent=79 // pred_fallthru
        _
    $region80: #{inception_block_b.1} parent=5 // pred_fallthru
      _
    %p9100 = scmp.le.s32.totalorder 2, %s21
    // Predicated region
    $region85: #{inception_block_b.1} parent=5 // pred_check
      %p9101 = pneg %p9100
    $region86: #{inception_block_b.1} parent=5 // pred_check_branch
      %9103 = sbr.rel (%p9101) target = $region88
    $region87: #{inception_block_b.1} parent=5 // pred_region
      %s9104 = ssub.s32 %s21, 2
      // Predicated region
      $region89: #{inception_block_b.1} parent=87 // pred_check
        %p9105 = pneg %p370
      $region90: #{inception_block_b.1} parent=87 // pred_check_branch
        %9107 = sbr.rel (%p9105) target = $region92
      $region91: #{inception_block_b.1} parent=87 // pred_region
        %p9108 = scmp.lt.s32.totalorder %s27, 1
        %s9109 = scalar_select %p9108, %s27, 1
        %s9110 = smul.addr %s9109, 7
        %s9111 = smul.addr %s9110, 8
        %s9112 = scalar_lea.vmem %s15, %s9111
      $region92: #{inception_block_b.1} parent=87 // pred_fallthru
        _
    $region88: #{inception_block_b.1} parent=5 // pred_fallthru
      _
  $region6: #{inception_block_b.1} parent=0 // loop_footer
    %s25 = sadd.s32 1, %s21
  $region7: #{inception_block_b.1} parent=0 // loop_footer_branch
    %20 = sbr.rel target = $region3
  $region8: #{inception_block_b.1} parent=0 // loop_exit
    _

</llo_original>
